<compile_context>
chip_gen: v7x
topology: tpu7x:2x2x1
jax: 0.10.0
libtpu: 0.0.40
codegen_flags: <defaults>
</compile_context>

<pallas_src>
import functools

import jax
import jax.numpy as jnp
from jax import lax
from jax.experimental import pallas as pl
from jax.experimental.pallas import tpu as pltpu


def _round_up(x, m):
    return (x + m - 1) // m * m


def _tile_bytes(shape, dtype):
    """Conservative VMEM footprint of one buffer, accounting for (8,128) tiling."""
    it = jnp.dtype(dtype).itemsize
    s = list(shape)
    if len(s) >= 2:
        s[-1] = _round_up(s[-1], 128)
        s[-2] = _round_up(s[-2], 8 * max(1, 4 // it))   # bf16 packs 16 sublanes
    elif s:
        s[-1] = _round_up(s[-1], 128)
    n = 1
    for d in s:
        n *= d
    return n * it


def _pick_block_batch(n, howo, m_target=512, m_cap=2048):
    """Samples per grid step: push M toward >=512 rows but keep >=2 grid steps."""
    divisors = [d for d in range(1, n + 1) if n % d == 0]
    cands = [d for d in divisors if n // d >= 2] or divisors   # prefer >=2 steps
    ok = [d for d in cands if d * howo <= m_cap]
    if ok:
        reach = [d for d in ok if d * howo >= m_target]
        return min(reach) if reach else max(ok)
    return min(cands)


# ----------------------------------------------------------------------------
# Fused conv kernel: NB samples per grid step.
#   x_ref : (NB, H,  W,  Cin)         bf16  (unpadded NHWC block)
#   w_ref : (kh*kw*Cin, Cout)         bf16  (K order = (dy, dx, c))
#   b_ref : (1, Cout)                 f32
#   o_ref : (NB, Ho, Wo, Cout)        f32
#   xp_ref: (NB, Hp, Wp, Cin)         bf16  scratch (reflect-padded slab)
#   p_ref : (NB, Ho, Wo, kh*kw*Cin)   bf16  scratch (folded-K patch operand)
# ----------------------------------------------------------------------------
def _conv_kernel(x_ref, w_ref, b_ref, o_ref, xp_ref, p_ref, *, kh, kw, pad, ho, wo):
    nb, ih, iw, cin = x_ref.shape
    cout = o_ref.shape[-1]

    # --- 1) reflect halo fused in VMEM (no HBM padding pass) -----------------
    if pad > 0:
        xp_ref[:, pad:pad + ih, pad:pad + iw, :] = x_ref[...]
        for r in range(pad):                                   # top / bottom rows
            xp_ref[:, pad - 1 - r:pad - r, pad:pad + iw, :] = \
                x_ref[:, r + 1:r + 2, :, :]
            xp_ref[:, pad + ih + r:pad + ih + r + 1, pad:pad + iw, :] = \
                x_ref[:, ih - 2 - r:ih - 1 - r, :, :]
        for r in range(pad):                                   # left / right cols (+corners)
            xp_ref[:, :, pad - 1 - r:pad - r, :] = \
                xp_ref[:, :, pad + 1 + r:pad + 2 + r, :]
            xp_ref[:, :, pad + iw + r:pad + iw + r + 1, :] = \
                xp_ref[:, :, pad + iw - 2 - r:pad + iw - 1 - r, :]
        src = xp_ref
    else:
        src = x_ref

    # --- 2) build folded-K patch operand once per step (im2col in VMEM) ------
    for dy in range(kh):
        for dx in range(kw):
            off = (dy * kw + dx) * cin
            p_ref[:, :, :, off:off + cin] = src[:, dy:dy + ho, dx:dx + wo, :]

    # --- 3) one MXU dot (K = kh*kw*Cin), f32 accumulation, fused bias --------
    lhs = p_ref[...].reshape(nb * ho * wo, kh * kw * cin)
    acc = jnp.dot(lhs, w_ref[...], preferred_element_type=jnp.float32)
    acc = acc + b_ref[...]
    o_ref[...] = acc.reshape(nb, ho, wo, cout).astype(o_ref.dtype)


# ----------------------------------------------------------------------------
# Wrapper: NCHW public API (matches the PyTorch module), NHWC internally.
# ----------------------------------------------------------------------------
def conv2d_reflect_pallas(x, w, b, *, stride=1, padding=1, out_dtype=jnp.float32):
    """x: (N, Cin, H, W) f32, w: (Cout, Cin, kh, kw) OIHW, b: (Cout,)."""
    # TODO(synk): stride > 1 would need strided patch slicing; module default is 1.
    assert stride == 1, "fused conv kernel implements stride=1 (module default)"
    N, Cin, H, W = x.shape
    Cout, Cin2, kh, kw = w.shape
    assert Cin2 == Cin
    pad = int(padding)
    if pad > 0:
        assert pad < H and pad < W, "reflect padding requires pad < spatial size"
    Hp, Wp = H + 2 * pad, W + 2 * pad
    Ho, Wo = Hp - kh + 1, Wp - kw + 1
    assert Ho > 0 and Wo > 0

    # NCHW -> NHWC + bf16 cast (one fused XLA pass); reflect halo is in-kernel.
    x_nhwc = jnp.transpose(x, (0, 2, 3, 1)).astype(jnp.bfloat16)

    # OIHW -> (kh*kw*Cin, Cout), K order (dy, dx, c) to match the patch build.
    # TODO(synk): for Cout > 128 on v6e/v7x, tile the output N dim to 256 per dot.
    w_r = jnp.transpose(w, (2, 3, 1, 0)).reshape(kh * kw * Cin, Cout)
    w_r = w_r.astype(jnp.bfloat16)
    b_r = b.astype(jnp.float32).reshape(1, Cout)

    nb = _pick_block_batch(N, Ho * Wo)
    grid = (N // nb,)

    # VMEM budget derived from actual block bytes (double-buffered pipeline)
    # plus the two scratch buffers; capped at 64 MiB (v7x-safe).
    est = 2 * (_tile_bytes((nb, H, W, Cin), jnp.bfloat16)
               + _tile_bytes((nb, Ho, Wo, Cout), out_dtype)
               + _tile_bytes((kh * kw * Cin, Cout), jnp.bfloat16)
               + _tile_bytes((1, Cout), jnp.float32))
    est += _tile_bytes((nb, Hp, Wp, Cin), jnp.bfloat16)
    est += _tile_bytes((nb, Ho, Wo, kh * kw * Cin), jnp.bfloat16)
    est += 4 * 1024 * 1024                                   # headroom
    vmem_limit = int(min(64 * 1024 * 1024, max(32 * 1024 * 1024, est)))

    kernel = functools.partial(_conv_kernel, kh=kh, kw=kw, pad=pad, ho=Ho, wo=Wo)

    # TODO(synk): for large images add spatial (Ho) row-tiling with a kh-1 halo
    # so block + scratch bytes stay within v7x's 64 MiB VMEM.
    out = pl.pallas_call(
        kernel,
        out_shape=jax.ShapeDtypeStruct((N, Ho, Wo, Cout), out_dtype),
        grid=grid,
        in_specs=[
            pl.BlockSpec((nb, H, W, Cin), lambda n: (n, 0, 0, 0)),        # x
            pl.BlockSpec((kh * kw * Cin, Cout), lambda n: (0, 0)),        # w
            pl.BlockSpec((1, Cout), lambda n: (0, 0)),                    # bias
        ],
        out_specs=pl.BlockSpec((nb, Ho, Wo, Cout), lambda n: (n, 0, 0, 0)),
        scratch_shapes=[
            pltpu.VMEM((nb, Hp, Wp, Cin), jnp.bfloat16),                  # padded slab
            pltpu.VMEM((nb, Ho, Wo, kh * kw * Cin), jnp.bfloat16),        # patch matrix
        ],
        compiler_params=pltpu.CompilerParams(
            dimension_semantics=("parallel",),           # >=2 steps -> both TCs on v7x
            vmem_limit_bytes=vmem_limit),
    )(x_nhwc, w_r, b_r)

    return jnp.transpose(out, (0, 3, 1, 2))              # NHWC -> NCHW


# ----------------------------------------------------------------------------
if __name__ == "__main__":
    key = jax.random.PRNGKey(0)
    kx, kw_, kb = jax.random.split(key, 3)

    # Small config consistent with the module: 3x3, stride 1, reflect pad 1.
    N, Cin, H, W = 4, 8, 16, 16
    Cout, ksz, stride, pad = 16, 3, 1, 1

    x = jax.random.normal(kx, (N, Cin, H, W), jnp.float32)
    fan_in = Cin * ksz * ksz
    bound = 1.0 / (fan_in ** 0.5)
    w = jax.random.uniform(kw_, (Cout, Cin, ksz, ksz), jnp.float32, -bound, bound)
    b = jax.random.uniform(kb, (Cout,), jnp.float32, -bound, bound)

    fwd = jax.jit(functools.partial(conv2d_reflect_pallas,
                                    stride=stride, padding=pad))
    out = jax.block_until_ready(fwd(x, w, b))

    assert out.shape == (N, Cout, H, W), out.shape
    assert bool(jnp.all(jnp.isfinite(out)))

    # Reference 1: full f32 PyTorch-semantics conv (reflect pad + x-corr + bias).
    xp = jnp.pad(x, ((0, 0), (0, 0), (pad, pad), (pad, pad)), mode="reflect")
    ref = lax.conv_general_dilated(
        xp, w, (stride, stride), "VALID",
        dimension_numbers=("NCHW", "OIHW", "NCHW"),
        precision=lax.Precision.HIGHEST)
    ref = ref + b.reshape(1, Cout, 1, 1)
    assert bool(jnp.allclose(out, ref, atol=3e-2, rtol=3e-2))   # bf16 operands

    # Reference 2: same bf16-cast inputs, f32 accumulation -> tight agreement.
    ref_bf = lax.conv_general_dilated(
        xp.astype(jnp.bfloat16), w.astype(jnp.bfloat16), (stride, stride),
        "VALID", dimension_numbers=("NCHW", "OIHW", "NCHW"),
        preferred_element_type=jnp.float32)
    ref_bf = ref_bf + b.reshape(1, Cout, 1, 1)
    assert bool(jnp.allclose(out, ref_bf, atol=2e-3, rtol=2e-3))

    print("KERNEL_OK")
</pallas_src>

<mosaic_0001>
module attributes {stable_mosaic.version = 11 : i64} {
  func.func @_conv_kernel(%arg0: i32, %arg1: memref<2x16x16x8xbf16, #tpu.memory_space<vmem>>, %arg2: memref<72x16xbf16, #tpu.memory_space<vmem>>, %arg3: memref<1x16xf32, #tpu.memory_space<vmem>>, %arg4: memref<2x16x16x16xf32, #tpu.memory_space<vmem>>, %arg5: memref<2x18x18x8xbf16, #tpu.memory_space<vmem>>, %arg6: memref<2x16x16x72xbf16, #tpu.memory_space<vmem>>) attributes {dimension_semantics = [#tpu.dimension_semantics<parallel>], iteration_bounds = array<i64: 2>, scalar_prefetch = 0 : i64, scratch_operands = 2 : i64, tpu.core_type = #tpu.core_type<tc>, window_params = [{transform_indices = @transform_0, window_bounds = array<i64: 2, 16, 16, 8>}, {pipeline_mode = #tpu.pipeline_mode<synchronous>, transform_indices = @transform_1, window_bounds = array<i64: 72, 16>}, {pipeline_mode = #tpu.pipeline_mode<synchronous>, transform_indices = @transform_2, window_bounds = array<i64: 1, 16>}, {transform_indices = @transform_3, window_bounds = array<i64: 2, 16, 16, 16>}]} {
    %c0 = arith.constant 0 : index
    %c0_0 = arith.constant 0 : index
    %c0_1 = arith.constant 0 : index
    %c0_2 = arith.constant 0 : index
    %0 = vector.load %arg1[%c0, %c0_0, %c0_1, %c0_2] : memref<2x16x16x8xbf16, #tpu.memory_space<vmem>>, vector<2x16x16x8xbf16>
    %c0_3 = arith.constant 0 : index
    %c1 = arith.constant 1 : index
    %c1_4 = arith.constant 1 : index
    %c0_5 = arith.constant 0 : index
    %1 = vector.load %arg5[%c0_3, %c1, %c1_4, %c0_5] : memref<2x18x18x8xbf16, #tpu.memory_space<vmem>>, vector<2x16x16x8xbf16>
    tpu.vector_store %arg5[%c0_3, %c1, %c1_4, %c0_5], %0 {strides = array<i32>} : memref<2x18x18x8xbf16, #tpu.memory_space<vmem>>, vector<2x16x16x8xbf16>,
    %c0_6 = arith.constant 0 : index
    %c1_7 = arith.constant 1 : index
    %c0_8 = arith.constant 0 : index
    %c0_9 = arith.constant 0 : index
    %2 = vector.load %arg1[%c0_6, %c1_7, %c0_8, %c0_9] : memref<2x16x16x8xbf16, #tpu.memory_space<vmem>>, vector<2x1x16x8xbf16>
    %c0_10 = arith.constant 0 : index
    %c0_11 = arith.constant 0 : index
    %c1_12 = arith.constant 1 : index
    %c0_13 = arith.constant 0 : index
    %3 = vector.load %arg5[%c0_10, %c0_11, %c1_12, %c0_13] : memref<2x18x18x8xbf16, #tpu.memory_space<vmem>>, vector<2x1x16x8xbf16>
    tpu.vector_store %arg5[%c0_10, %c0_11, %c1_12, %c0_13], %2 {strides = array<i32>} : memref<2x18x18x8xbf16, #tpu.memory_space<vmem>>, vector<2x1x16x8xbf16>,
    %c0_14 = arith.constant 0 : index
    %c14 = arith.constant 14 : index
    %c0_15 = arith.constant 0 : index
    %c0_16 = arith.constant 0 : index
    %4 = vector.load %arg1[%c0_14, %c14, %c0_15, %c0_16] : memref<2x16x16x8xbf16, #tpu.memory_space<vmem>>, vector<2x1x16x8xbf16>
    %c0_17 = arith.constant 0 : index
    %c17 = arith.constant 17 : index
    %c1_18 = arith.constant 1 : index
    %c0_19 = arith.constant 0 : index
    %5 = vector.load %arg5[%c0_17, %c17, %c1_18, %c0_19] : memref<2x18x18x8xbf16, #tpu.memory_space<vmem>>, vector<2x1x16x8xbf16>
    tpu.vector_store %arg5[%c0_17, %c17, %c1_18, %c0_19], %4 {strides = array<i32>} : memref<2x18x18x8xbf16, #tpu.memory_space<vmem>>, vector<2x1x16x8xbf16>,
    %c0_20 = arith.constant 0 : index
    %c0_21 = arith.constant 0 : index
    %c2 = arith.constant 2 : index
    %c0_22 = arith.constant 0 : index
    %6 = vector.load %arg5[%c0_20, %c0_21, %c2, %c0_22] : memref<2x18x18x8xbf16, #tpu.memory_space<vmem>>, vector<2x18x1x8xbf16>
    %c0_23 = arith.constant 0 : index
    %c0_24 = arith.constant 0 : index
    %c0_25 = arith.constant 0 : index
    %c0_26 = arith.constant 0 : index
    %7 = vector.load %arg5[%c0_23, %c0_24, %c0_25, %c0_26] : memref<2x18x18x8xbf16, #tpu.memory_space<vmem>>, vector<2x18x1x8xbf16>
    tpu.vector_store %arg5[%c0_23, %c0_24, %c0_25, %c0_26], %6 {strides = array<i32>} : memref<2x18x18x8xbf16, #tpu.memory_space<vmem>>, vector<2x18x1x8xbf16>,
    %c0_27 = arith.constant 0 : index
    %c0_28 = arith.constant 0 : index
    %c15 = arith.constant 15 : index
    %c0_29 = arith.constant 0 : index
    %8 = vector.load %arg5[%c0_27, %c0_28, %c15, %c0_29] : memref<2x18x18x8xbf16, #tpu.memory_space<vmem>>, vector<2x18x1x8xbf16>
    %c0_30 = arith.constant 0 : index
    %c0_31 = arith.constant 0 : index
    %c17_32 = arith.constant 17 : index
    %c0_33 = arith.constant 0 : index
    %9 = vector.load %arg5[%c0_30, %c0_31, %c17_32, %c0_33] : memref<2x18x18x8xbf16, #tpu.memory_space<vmem>>, vector<2x18x1x8xbf16>
    tpu.vector_store %arg5[%c0_30, %c0_31, %c17_32, %c0_33], %8 {strides = array<i32>} : memref<2x18x18x8xbf16, #tpu.memory_space<vmem>>, vector<2x18x1x8xbf16>,
    %c0_34 = arith.constant 0 : index
    %c0_35 = arith.constant 0 : index
    %c0_36 = arith.constant 0 : index
    %c0_37 = arith.constant 0 : index
    %10 = vector.load %arg5[%c0_34, %c0_35, %c0_36, %c0_37] : memref<2x18x18x8xbf16, #tpu.memory_space<vmem>>, vector<2x16x16x8xbf16>
    %c0_38 = arith.constant 0 : index
    %c0_39 = arith.constant 0 : index
    %c0_40 = arith.constant 0 : index
    %c0_41 = arith.constant 0 : index
    %11 = vector.load %arg6[%c0_38, %c0_39, %c0_40, %c0_41] : memref<2x16x16x72xbf16, #tpu.memory_space<vmem>>, vector<2x16x16x8xbf16>
    tpu.vector_store %arg6[%c0_38, %c0_39, %c0_40, %c0_41], %10 {strides = array<i32>} : memref<2x16x16x72xbf16, #tpu.memory_space<vmem>>, vector<2x16x16x8xbf16>,
    %c0_42 = arith.constant 0 : index
    %c0_43 = arith.constant 0 : index
    %c1_44 = arith.constant 1 : index
    %c0_45 = arith.constant 0 : index
    %12 = vector.load %arg5[%c0_42, %c0_43, %c1_44, %c0_45] : memref<2x18x18x8xbf16, #tpu.memory_space<vmem>>, vector<2x16x16x8xbf16>
    %c0_46 = arith.constant 0 : index
    %c0_47 = arith.constant 0 : index
    %c0_48 = arith.constant 0 : index
    %c8 = arith.constant 8 : index
    %13 = vector.load %arg6[%c0_46, %c0_47, %c0_48, %c8] : memref<2x16x16x72xbf16, #tpu.memory_space<vmem>>, vector<2x16x16x8xbf16>
    tpu.vector_store %arg6[%c0_46, %c0_47, %c0_48, %c8], %12 {strides = array<i32>} : memref<2x16x16x72xbf16, #tpu.memory_space<vmem>>, vector<2x16x16x8xbf16>,
    %c0_49 = arith.constant 0 : index
    %c0_50 = arith.constant 0 : index
    %c2_51 = arith.constant 2 : index
    %c0_52 = arith.constant 0 : index
    %14 = vector.load %arg5[%c0_49, %c0_50, %c2_51, %c0_52] : memref<2x18x18x8xbf16, #tpu.memory_space<vmem>>, vector<2x16x16x8xbf16>
    %c0_53 = arith.constant 0 : index
    %c0_54 = arith.constant 0 : index
    %c0_55 = arith.constant 0 : index
    %c16 = arith.constant 16 : index
    %15 = vector.load %arg6[%c0_53, %c0_54, %c0_55, %c16] : memref<2x16x16x72xbf16, #tpu.memory_space<vmem>>, vector<2x16x16x8xbf16>
    tpu.vector_store %arg6[%c0_53, %c0_54, %c0_55, %c16], %14 {strides = array<i32>} : memref<2x16x16x72xbf16, #tpu.memory_space<vmem>>, vector<2x16x16x8xbf16>,
    %c0_56 = arith.constant 0 : index
    %c1_57 = arith.constant 1 : index
    %c0_58 = arith.constant 0 : index
    %c0_59 = arith.constant 0 : index
    %16 = vector.load %arg5[%c0_56, %c1_57, %c0_58, %c0_59] : memref<2x18x18x8xbf16, #tpu.memory_space<vmem>>, vector<2x16x16x8xbf16>
    %c0_60 = arith.constant 0 : index
    %c0_61 = arith.constant 0 : index
    %c0_62 = arith.constant 0 : index
    %c24 = arith.constant 24 : index
    %17 = vector.load %arg6[%c0_60, %c0_61, %c0_62, %c24] : memref<2x16x16x72xbf16, #tpu.memory_space<vmem>>, vector<2x16x16x8xbf16>
    tpu.vector_store %arg6[%c0_60, %c0_61, %c0_62, %c24], %16 {strides = array<i32>} : memref<2x16x16x72xbf16, #tpu.memory_space<vmem>>, vector<2x16x16x8xbf16>,
    %c0_63 = arith.constant 0 : index
    %c1_64 = arith.constant 1 : index
    %c1_65 = arith.constant 1 : index
    %c0_66 = arith.constant 0 : index
    %18 = vector.load %arg5[%c0_63, %c1_64, %c1_65, %c0_66] : memref<2x18x18x8xbf16, #tpu.memory_space<vmem>>, vector<2x16x16x8xbf16>
    %c0_67 = arith.constant 0 : index
    %c0_68 = arith.constant 0 : index
    %c0_69 = arith.constant 0 : index
    %c32 = arith.constant 32 : index
    %19 = vector.load %arg6[%c0_67, %c0_68, %c0_69, %c32] : memref<2x16x16x72xbf16, #tpu.memory_space<vmem>>, vector<2x16x16x8xbf16>
    tpu.vector_store %arg6[%c0_67, %c0_68, %c0_69, %c32], %18 {strides = array<i32>} : memref<2x16x16x72xbf16, #tpu.memory_space<vmem>>, vector<2x16x16x8xbf16>,
    %c0_70 = arith.constant 0 : index
    %c1_71 = arith.constant 1 : index
    %c2_72 = arith.constant 2 : index
    %c0_73 = arith.constant 0 : index
    %20 = vector.load %arg5[%c0_70, %c1_71, %c2_72, %c0_73] : memref<2x18x18x8xbf16, #tpu.memory_space<vmem>>, vector<2x16x16x8xbf16>
    %c0_74 = arith.constant 0 : index
    %c0_75 = arith.constant 0 : index
    %c0_76 = arith.constant 0 : index
    %c40 = arith.constant 40 : index
    %21 = vector.load %arg6[%c0_74, %c0_75, %c0_76, %c40] : memref<2x16x16x72xbf16, #tpu.memory_space<vmem>>, vector<2x16x16x8xbf16>
    tpu.vector_store %arg6[%c0_74, %c0_75, %c0_76, %c40], %20 {strides = array<i32>} : memref<2x16x16x72xbf16, #tpu.memory_space<vmem>>, vector<2x16x16x8xbf16>,
    %c0_77 = arith.constant 0 : index
    %c2_78 = arith.constant 2 : index
    %c0_79 = arith.constant 0 : index
    %c0_80 = arith.constant 0 : index
    %22 = vector.load %arg5[%c0_77, %c2_78, %c0_79, %c0_80] : memref<2x18x18x8xbf16, #tpu.memory_space<vmem>>, vector<2x16x16x8xbf16>
    %c0_81 = arith.constant 0 : index
    %c0_82 = arith.constant 0 : index
    %c0_83 = arith.constant 0 : index
    %c48 = arith.constant 48 : index
    %23 = vector.load %arg6[%c0_81, %c0_82, %c0_83, %c48] : memref<2x16x16x72xbf16, #tpu.memory_space<vmem>>, vector<2x16x16x8xbf16>
    tpu.vector_store %arg6[%c0_81, %c0_82, %c0_83, %c48], %22 {strides = array<i32>} : memref<2x16x16x72xbf16, #tpu.memory_space<vmem>>, vector<2x16x16x8xbf16>,
    %c0_84 = arith.constant 0 : index
    %c2_85 = arith.constant 2 : index
    %c1_86 = arith.constant 1 : index
    %c0_87 = arith.constant 0 : index
    %24 = vector.load %arg5[%c0_84, %c2_85, %c1_86, %c0_87] : memref<2x18x18x8xbf16, #tpu.memory_space<vmem>>, vector<2x16x16x8xbf16>
    %c0_88 = arith.constant 0 : index
    %c0_89 = arith.constant 0 : index
    %c0_90 = arith.constant 0 : index
    %c56 = arith.constant 56 : index
    %25 = vector.load %arg6[%c0_88, %c0_89, %c0_90, %c56] : memref<2x16x16x72xbf16, #tpu.memory_space<vmem>>, vector<2x16x16x8xbf16>
    tpu.vector_store %arg6[%c0_88, %c0_89, %c0_90, %c56], %24 {strides = array<i32>} : memref<2x16x16x72xbf16, #tpu.memory_space<vmem>>, vector<2x16x16x8xbf16>,
    %c0_91 = arith.constant 0 : index
    %c2_92 = arith.constant 2 : index
    %c2_93 = arith.constant 2 : index
    %c0_94 = arith.constant 0 : index
    %26 = vector.load %arg5[%c0_91, %c2_92, %c2_93, %c0_94] : memref<2x18x18x8xbf16, #tpu.memory_space<vmem>>, vector<2x16x16x8xbf16>
    %c0_95 = arith.constant 0 : index
    %c0_96 = arith.constant 0 : index
    %c0_97 = arith.constant 0 : index
    %c64 = arith.constant 64 : index
    %27 = vector.load %arg6[%c0_95, %c0_96, %c0_97, %c64] : memref<2x16x16x72xbf16, #tpu.memory_space<vmem>>, vector<2x16x16x8xbf16>
    tpu.vector_store %arg6[%c0_95, %c0_96, %c0_97, %c64], %26 {strides = array<i32>} : memref<2x16x16x72xbf16, #tpu.memory_space<vmem>>, vector<2x16x16x8xbf16>,
    %c0_98 = arith.constant 0 : index
    %c0_99 = arith.constant 0 : index
    %c0_100 = arith.constant 0 : index
    %c0_101 = arith.constant 0 : index
    %28 = vector.load %arg6[%c0_98, %c0_99, %c0_100, %c0_101] : memref<2x16x16x72xbf16, #tpu.memory_space<vmem>>, vector<2x16x16x72xbf16>
    %29 = vector.shape_cast %28 : vector<2x16x16x72xbf16> to vector<512x72xbf16>
    %c0_102 = arith.constant 0 : index
    %c0_103 = arith.constant 0 : index
    %30 = vector.load %arg2[%c0_102, %c0_103] : memref<72x16xbf16, #tpu.memory_space<vmem>>, vector<72x16xbf16>
    %cst = arith.constant dense<0.000000e+00> : vector<512x16xf32>
    %31 = tpu.matmul %29, %30, %cst {dimension_numbers = #tpu.dot_dimension_numbers<[1], [0], [0], [1], [0, 0, 1, 1], [], []>} : vector<512x72xbf16>, vector<72x16xbf16>, vector<512x16xf32> -> vector<512x16xf32>
    %c0_104 = arith.constant 0 : index
    %c0_105 = arith.constant 0 : index
    %32 = vector.load %arg3[%c0_104, %c0_105] : memref<1x16xf32, #tpu.memory_space<vmem>>, vector<1x16xf32>
    %33 = vector.broadcast %32 : vector<1x16xf32> to vector<512x16xf32>
    %34 = arith.addf %31, %33 : vector<512x16xf32>
    %35 = vector.shape_cast %34 : vector<512x16xf32> to vector<2x16x16x16xf32>
    %c0_106 = arith.constant 0 : index
    %c0_107 = arith.constant 0 : index
    %c0_108 = arith.constant 0 : index
    %c0_109 = arith.constant 0 : index
    %36 = vector.load %arg4[%c0_106, %c0_107, %c0_108, %c0_109] : memref<2x16x16x16xf32, #tpu.memory_space<vmem>>, vector<2x16x16x16xf32>
    tpu.vector_store %arg4[%c0_106, %c0_107, %c0_108, %c0_109], %35 {strides = array<i32>} : memref<2x16x16x16xf32, #tpu.memory_space<vmem>>, vector<2x16x16x16xf32>,
    return
  }
  func.func @transform_0(%arg0: i32) -> (i32, i32, i32, i32) {
    %c0_i32 = arith.constant 0 : i32
    %c0_i32_0 = arith.constant 0 : i32
    %c0_i32_1 = arith.constant 0 : i32
    %c0_i32_2 = arith.constant 0 : i32
    return %arg0, %c0_i32, %c0_i32_0, %c0_i32_1 : i32, i32, i32, i32
  }
  func.func @transform_1(%arg0: i32) -> (i32, i32) {
    %c0_i32 = arith.constant 0 : i32
    %c0_i32_0 = arith.constant 0 : i32
    %c0_i32_1 = arith.constant 0 : i32
    return %c0_i32, %c0_i32_0 : i32, i32
  }
  func.func @transform_2(%arg0: i32) -> (i32, i32) {
    %c0_i32 = arith.constant 0 : i32
    %c0_i32_0 = arith.constant 0 : i32
    %c0_i32_1 = arith.constant 0 : i32
    return %c0_i32, %c0_i32_0 : i32, i32
  }
  func.func @transform_3(%arg0: i32) -> (i32, i32, i32, i32) {
    %c0_i32 = arith.constant 0 : i32
    %c0_i32_0 = arith.constant 0 : i32
    %c0_i32_1 = arith.constant 0 : i32
    %c0_i32_2 = arith.constant 0 : i32
    return %arg0, %c0_i32, %c0_i32_0, %c0_i32_1 : i32, i32, i32, i32
  }
}

</mosaic_0001>

<llo_original>
// kernel: conv2d_reflect_pallas.1
$region0: #{conv2d_reflect_pallas.1}
  #allocation0 [shape = 'u32[]', space=smem, size = 0x4, offset = 0x4, fixed_abs, tag = 'smem constant byte address 0x4 - core index']
  #allocation1 [shape = 'u32[144,128]{1,0:T(1,128)}', space=vmem, size = 0x12000, scoped, tag = 'internal scratch']
  #allocation2 [shape = 'bf16[2,18,18,8]{3,2,1,0:T(8,128)(2,1)}', space=vmem, size = 0x36000, scoped, tag = 'scratch operand']
  #allocation3 [shape = 'bf16[2,16,16,72]{3,2,1,0:T(16,128)(2,1)}', space=vmem, size = 0x20000, scoped, tag = 'scratch operand']
  %s0 = inlined_call_operand.vmem [shape: bf16[4,16,16,8], index: 0, kind: input, shape index: {}]
  %s1 = inlined_call_operand.vmem [shape: bf16[72,16], index: 1, kind: input, shape index: {}]
  %s2 = inlined_call_operand.vmem [shape: f32[1,16], index: 2, kind: input, shape index: {}]
  %s3 = inlined_call_operand.vmem [shape: f32[4,16,16,16], index: 3, kind: output, shape index: {}]
  %s4 = sld [smem:[#allocation0]]
  $region45: #{conv2d_reflect_pallas.1} parent=0
    _
  %s6 = ssub.s32 1, %s4
  %s7 = scalar_select 0, %s6, %s4
  loop: start=0, step=1, limit=4
  $region2: #{conv2d_reflect_pallas.1} parent=0 // loop_pre_header
    _
  $region3: #{conv2d_reflect_pallas.1} parent=0 // loop_header
    %s9 = sphi 0, %s13
    %p10 = scmp.ge.s32.totalorder %s9, 4
    %s19 = sphi 0, %s21
    %s22 = sphi 0, %s19
    %s23 = sphi 0, %s22
    %s39 = sphi 0, %s23
    %s43 = sphi 0, %s43
    %s45 = sphi 0, %s43
    %s46 = sphi 0, %s45
    %s60 = sphi 0, %s46
    %s64 = sphi 0, %s64
    %s66 = sphi 0, %s64
    %s67 = sphi 0, %s66
    %s81 = sphi 0, %s67
    %s87 = sphi 0, %s89
    %s90 = sphi 0, %s87
    %s91 = sphi 0, %s90
    %s107 = sphi 0, %s91
  $region4: #{conv2d_reflect_pallas.1} parent=0 // loop_header_branch
    %12 = sbr.rel (%p10) target = $region8
  $region5: #{conv2d_reflect_pallas.1} parent=0 // loop_body
    %s14 = ssub.s32 %s9, 1
    %s15 = ssub.s32 %s9, 2
    %s16 = sadd.s32 %s9, 1
    %s17 = ssub.s32 %s9, %s16
    %p18 = scmp.eq.s32.totalorder %s17, 0
    %s20 = sadd.s32 %s19, 1
    %s21 = scalar_select %p18, %s19, %s20
    %p24 = pneg %p18
    %p25 = scmp.eq.s32.totalorder %s9, 1
    %p26 = por %p24, %p25
    %p27 = scmp.ne.s32.totalorder %s19, %s22
    %p28 = scmp.eq.s32.totalorder %s9, 0
    %p29 = por %p27, %p28
    %p30 = scmp.ne.s32.totalorder %s19, %s22
    %p31 = scmp.eq.s32.totalorder %s14, 1
    %p32 = por %p30, %p31
    %p33 = scmp.ne.s32.totalorder %s22, %s23
    %p34 = scmp.eq.s32.totalorder %s14, 0
    %p35 = por %p33, %p34
    %p36 = scmp.ne.s32.totalorder %s22, %s23
    %p37 = scmp.eq.s32.totalorder %s15, 1
    %p38 = por %p36, %p37
    %p40 = scmp.ne.s32.totalorder %s23, %s39
    %p41 = scmp.eq.s32.totalorder %s15, 0
    %p42 = por %p40, %p41
    %s44 = sadd.s32 %s43, 1
    %p47 = scmp.eq.s32.totalorder %s9, 1
    %p48 = scmp.ne.s32.totalorder %s43, %s45
    %p49 = scmp.eq.s32.totalorder %s9, 0
    %p50 = por %p48, %p49
    %p51 = scmp.ne.s32.totalorder %s43, %s45
    %p52 = scmp.eq.s32.totalorder %s14, 1
    %p53 = por %p51, %p52
    %p54 = scmp.ne.s32.totalorder %s45, %s46
    %p55 = scmp.eq.s32.totalorder %s14, 0
    %p56 = por %p54, %p55
    %p57 = scmp.ne.s32.totalorder %s45, %s46
    %p58 = scmp.eq.s32.totalorder %s15, 1
    %p59 = por %p57, %p58
    %p61 = scmp.ne.s32.totalorder %s46, %s60
    %p62 = scmp.eq.s32.totalorder %s15, 0
    %p63 = por %p61, %p62
    %s65 = sadd.s32 %s64, 1
    %p68 = scmp.eq.s32.totalorder %s9, 1
    %p69 = scmp.ne.s32.totalorder %s64, %s66
    %p70 = scmp.eq.s32.totalorder %s9, 0
    %p71 = por %p69, %p70
    %p72 = scmp.ne.s32.totalorder %s64, %s66
    %p73 = scmp.eq.s32.totalorder %s14, 1
    %p74 = por %p72, %p73
    %p75 = scmp.ne.s32.totalorder %s66, %s67
    %p76 = scmp.eq.s32.totalorder %s14, 0
    %p77 = por %p75, %p76
    %p78 = scmp.ne.s32.totalorder %s66, %s67
    %p79 = scmp.eq.s32.totalorder %s15, 1
    %p80 = por %p78, %p79
    %p82 = scmp.ne.s32.totalorder %s67, %s81
    %p83 = scmp.eq.s32.totalorder %s15, 0
    %p84 = por %p82, %p83
    %s85 = ssub.s32 %s9, %s16
    %p86 = scmp.eq.s32.totalorder %s85, 0
    %s88 = sadd.s32 %s87, 1
    %s89 = scalar_select %p86, %s87, %s88
    %p92 = pneg %p86
    %p93 = scmp.eq.s32.totalorder %s9, 1
    %p94 = por %p92, %p93
    %p95 = scmp.ne.s32.totalorder %s87, %s90
    %p96 = scmp.eq.s32.totalorder %s9, 0
    %p97 = por %p95, %p96
    %p98 = scmp.ne.s32.totalorder %s87, %s90
    %p99 = scmp.eq.s32.totalorder %s14, 1
    %p100 = por %p98, %p99
    %p101 = scmp.ne.s32.totalorder %s90, %s91
    %p102 = scmp.eq.s32.totalorder %s14, 0
    %p103 = por %p101, %p102
    %p104 = scmp.ne.s32.totalorder %s90, %s91
    %p105 = scmp.eq.s32.totalorder %s15, 1
    %p106 = por %p104, %p105
    %p108 = scmp.ne.s32.totalorder %s91, %s107
    %p109 = scmp.eq.s32.totalorder %s15, 0
    %p110 = por %p108, %p109
    %p111 = scmp.le.s32.totalorder 1, %s9
    %p112 = scmp.lt.s32.totalorder %s9, 3
    %p113 = pnand %p111, %p112
    %p114 = pneg %p113
    // Predicated region
    $region9: #{conv2d_reflect_pallas.1} parent=5 // pred_check
      _
    $region10: #{conv2d_reflect_pallas.1} parent=5 // pred_check_branch
      %116 = sbr.rel (%p113) target = $region12
    $region11: #{conv2d_reflect_pallas.1} parent=5 // pred_region
      %s117 = ssub.s32 %s9, 1
      // Predicated region
      $region13: #{conv2d_reflect_pallas.1} parent=11 // pred_check
        %p118 = pneg %p56
      $region14: #{conv2d_reflect_pallas.1} parent=11 // pred_check_branch
        %120 = sbr.rel (%p118) target = $region16
      $region15: #{conv2d_reflect_pallas.1} parent=11 // pred_region
        _
      $region16: #{conv2d_reflect_pallas.1} parent=11 // pred_fallthru
        _
      // Predicated region
      $region17: #{conv2d_reflect_pallas.1} parent=11 // pred_check
        %p121 = pneg %p77
      $region18: #{conv2d_reflect_pallas.1} parent=11 // pred_check_branch
        %123 = sbr.rel (%p121) target = $region20
      $region19: #{conv2d_reflect_pallas.1} parent=11 // pred_region
        _
      $region20: #{conv2d_reflect_pallas.1} parent=11 // pred_fallthru
        _
    $region12: #{conv2d_reflect_pallas.1} parent=5 // pred_fallthru
      _
    %p124 = scmp.lt.s32.totalorder %s9, 2
    // Predicated region
    $region21: #{conv2d_reflect_pallas.1} parent=5 // pred_check
      %p125 = pneg %p124
    $region22: #{conv2d_reflect_pallas.1} parent=5 // pred_check_branch
      %127 = sbr.rel (%p125) target = $region24
    $region23: #{conv2d_reflect_pallas.1} parent=5 // pred_region
      // Predicated region
      $region25: #{conv2d_reflect_pallas.1} parent=23 // pred_check
        %p128 = pneg %p29
      $region26: #{conv2d_reflect_pallas.1} parent=23 // pred_check_branch
        %130 = sbr.rel (%p128) target = $region28
      $region27: #{conv2d_reflect_pallas.1} parent=23 // pred_region
        %s131 = smul.u32 2, %s9
        %p132 = scmp.lt.s32.totalorder %s131, 3
        %s133 = scalar_select %p132, %s131, 3
        %s134 = smul.addr %s133, 32
        %s135 = smul.addr %s134, 4
        %s136 = scalar_lea.vmem %s0, %s135
        %s137 = smul.u32 2, %s9
      $region28: #{conv2d_reflect_pallas.1} parent=23 // pred_fallthru
        _
    $region24: #{conv2d_reflect_pallas.1} parent=5 // pred_fallthru
      _
    %p138 = scmp.le.s32.totalorder 1, %s9
    %p139 = scmp.lt.s32.totalorder %s9, 3
    %p140 = pnand %p138, %p139
    %p141 = pneg %p140
    // Predicated region
    $region29: #{conv2d_reflect_pallas.1} parent=5 // pred_check
      _
    $region30: #{conv2d_reflect_pallas.1} parent=5 // pred_check_branch
      %143 = sbr.rel (%p140) target = $region32
    $region31: #{conv2d_reflect_pallas.1} parent=5 // pred_region
      %s144 = ssub.s32 %s9, 1
      %s145 = smul.u32 2, %s14
      %p146 = scmp.lt.s32.totalorder %s145, 3
      %s147 = scalar_select %p146, %s145, 3
      %s148 = smul.addr %s147, 32
      %s149 = smul.addr %s148, 4
      %s150 = scalar_lea.vmem %s0, %s149
      %p151 = pneg %p35
      %p152 = pneg %p32
      %p153 = pneg %p56
      %p154 = pneg %p53
      %p155 = pneg %p77
      %p156 = pneg %p74
      %p157 = pneg %p103
      %p158 = pneg %p100
      %s159 = smul.u32 2, %s14
      %p160 = scmp.lt.s32.totalorder %s159, 3
      %s161 = scalar_select %p160, %s159, 3
      %s162 = smul.addr %s161, 32
      %s163 = smul.addr %s162, 8
      %s164 = scalar_lea.vmem %s3, %s163
      %s165 = smul.u32 2, %s14
      %p166 = scmp.lt.s32.totalorder %s165, 3
      %s167 = scalar_select %p166, %s165, 3
      %s168 = smul.addr %s167, 32
      %s169 = smul.addr %s168, 4
      %s170 = scalar_lea.vmem %s0, %s169
      %s171 = smul.u32 2, %s14
      %s172 = smul.u32 2, %s14
      %p173 = scmp.lt.s32.totalorder %s172, 3
      %s174 = scalar_select %p173, %s172, 3
      %s175 = smul.addr %s174, 32
      %s176 = smul.addr %s175, 8
      %s177 = scalar_lea.vmem %s3, %s176
      %s178 = smul.u32 2, %s14
      %v180 = vld [vmem:[%s170] sm:$0xf]
      %v181 = vld [vmem:[%s170 + $0x4] sm:$0xf]
      %v182 = vld [vmem:[%s170 + $0x8] sm:$0xf]
      %v183 = vld [vmem:[%s170 + $0xc] sm:$0xf]
      %v184 = vld [vmem:[%s170 + $0x10] sm:$0xf]
      %v185 = vld [vmem:[%s170 + $0x14] sm:$0xf]
      %v186 = vld [vmem:[%s170 + $0x18] sm:$0xf]
      %v187 = vld [vmem:[%s170 + $0x1c] sm:$0xf]
      %v188 = vld [vmem:[%s170 + $0x20] sm:$0xf]
      %v189 = vld [vmem:[%s170 + $0x24] sm:$0xf]
      %v190 = vld [vmem:[%s170 + $0x28] sm:$0xf]
      %v191 = vld [vmem:[%s170 + $0x2c] sm:$0xf]
      %v192 = vld [vmem:[%s170 + $0x30] sm:$0xf]
      %v193 = vld [vmem:[%s170 + $0x34] sm:$0xf]
      %v194 = vld [vmem:[%s170 + $0x38] sm:$0xf]
      %v195 = vld [vmem:[%s170 + $0x3c] sm:$0xf]
      %v196 = vld [vmem:[%s170 + $0x40] sm:$0xf]
      %v197 = vld [vmem:[%s170 + $0x44] sm:$0xf]
      %v198 = vld [vmem:[%s170 + $0x48] sm:$0xf]
      %v199 = vld [vmem:[%s170 + $0x4c] sm:$0xf]
      %v200 = vld [vmem:[%s170 + $0x50] sm:$0xf]
      %v201 = vld [vmem:[%s170 + $0x54] sm:$0xf]
      %v202 = vld [vmem:[%s170 + $0x58] sm:$0xf]
      %v203 = vld [vmem:[%s170 + $0x5c] sm:$0xf]
      %v204 = vld [vmem:[%s170 + $0x60] sm:$0xf]
      %v205 = vld [vmem:[%s170 + $0x64] sm:$0xf]
      %v206 = vld [vmem:[%s170 + $0x68] sm:$0xf]
      %v207 = vld [vmem:[%s170 + $0x6c] sm:$0xf]
      %v208 = vld [vmem:[%s170 + $0x70] sm:$0xf]
      %v209 = vld [vmem:[%s170 + $0x74] sm:$0xf]
      %v210 = vld [vmem:[%s170 + $0x78] sm:$0xf]
      %v211 = vld [vmem:[%s170 + $0x7c] sm:$0xf]
      %v212 = vld [vmem:[%s170 + $0x80] sm:$0xf]
      %v213 = vld [vmem:[%s170 + $0x84] sm:$0xf]
      %v214 = vld [vmem:[%s170 + $0x88] sm:$0xf]
      %v215 = vld [vmem:[%s170 + $0x8c] sm:$0xf]
      %v216 = vld [vmem:[%s170 + $0x90] sm:$0xf]
      %v217 = vld [vmem:[%s170 + $0x94] sm:$0xf]
      %v218 = vld [vmem:[%s170 + $0x98] sm:$0xf]
      %v219 = vld [vmem:[%s170 + $0x9c] sm:$0xf]
      %v220 = vld [vmem:[%s170 + $0xa0] sm:$0xf]
      %v221 = vld [vmem:[%s170 + $0xa4] sm:$0xf]
      %v222 = vld [vmem:[%s170 + $0xa8] sm:$0xf]
      %v223 = vld [vmem:[%s170 + $0xac] sm:$0xf]
      %v224 = vld [vmem:[%s170 + $0xb0] sm:$0xf]
      %v225 = vld [vmem:[%s170 + $0xb4] sm:$0xf]
      %v226 = vld [vmem:[%s170 + $0xb8] sm:$0xf]
      %v227 = vld [vmem:[%s170 + $0xbc] sm:$0xf]
      %v228 = vld [vmem:[%s170 + $0xc0] sm:$0xf]
      %v229 = vld [vmem:[%s170 + $0xc4] sm:$0xf]
      %v230 = vld [vmem:[%s170 + $0xc8] sm:$0xf]
      %v231 = vld [vmem:[%s170 + $0xcc] sm:$0xf]
      %v232 = vld [vmem:[%s170 + $0xd0] sm:$0xf]
      %v233 = vld [vmem:[%s170 + $0xd4] sm:$0xf]
      %v234 = vld [vmem:[%s170 + $0xd8] sm:$0xf]
      %v235 = vld [vmem:[%s170 + $0xdc] sm:$0xf]
      %v236 = vld [vmem:[%s170 + $0xe0] sm:$0xf]
      %v237 = vld [vmem:[%s170 + $0xe4] sm:$0xf]
      %v238 = vld [vmem:[%s170 + $0xe8] sm:$0xf]
      %v239 = vld [vmem:[%s170 + $0xec] sm:$0xf]
      %v240 = vld [vmem:[%s170 + $0xf0] sm:$0xf]
      %v241 = vld [vmem:[%s170 + $0xf4] sm:$0xf]
      %v242 = vld [vmem:[%s170 + $0xf8] sm:$0xf]
      %v243 = vld [vmem:[%s170 + $0xfc] sm:$0xf]
      %vm244 = vsmask.f32 256
      %vm245 = vsmask.f32 4368
      %vm246 = vmor %vm244, %vm245
      %v248 = vshrl.u32 %v180, 16
      %v250 = vrot.slane %v248, 7
      %v251 = vshll.u32 %v180, 16
      %v253 = vor.u32 %v250, %v251
      %v254 = vrot.slane %v250, 4
      %v256 = vshrl.u32 %v181, 16
      %v258 = vrot.slane %v256, 7
      %v259 = vshll.u32 %v181, 16
      %v261 = vor.u32 %v258, %v259
      %v262 = vsel %vm246, %v254, %v261
      %v263 = vrot.slane %v258, 4
      %v265 = vshrl.u32 %v182, 16
      %v267 = vrot.slane %v265, 7
      %v268 = vshll.u32 %v182, 16
      %v270 = vor.u32 %v267, %v268
      %v271 = vrot.slane %v267, 4
      %v273 = vshrl.u32 %v183, 16
      %v275 = vrot.slane %v273, 7
      %v276 = vshll.u32 %v183, 16
      %v278 = vor.u32 %v275, %v276
      %v279 = vsel %vm246, %v271, %v278
      %v280 = vrot.slane %v275, 4
      %v282 = vshrl.u32 %v184, 16
      %v284 = vrot.slane %v282, 7
      %v285 = vshll.u32 %v184, 16
      %v287 = vor.u32 %v284, %v285
      %v288 = vrot.slane %v284, 4
      %v290 = vshrl.u32 %v185, 16
      %v292 = vrot.slane %v290, 7
      %v293 = vshll.u32 %v185, 16
      %v295 = vor.u32 %v292, %v293
      %v296 = vsel %vm246, %v288, %v295
      %v297 = vrot.slane %v292, 4
      %v299 = vshrl.u32 %v186, 16
      %v301 = vrot.slane %v299, 7
      %v302 = vshll.u32 %v186, 16
      %v304 = vor.u32 %v301, %v302
      %v305 = vrot.slane %v301, 4
      %v307 = vshrl.u32 %v187, 16
      %v309 = vrot.slane %v307, 7
      %v310 = vshll.u32 %v187, 16
      %v312 = vor.u32 %v309, %v310
      %v313 = vsel %vm246, %v305, %v312
      %v314 = vrot.slane %v309, 4
      %v316 = vshrl.u32 %v188, 16
      %v318 = vrot.slane %v316, 7
      %v319 = vshll.u32 %v188, 16
      %v321 = vor.u32 %v318, %v319
      %v322 = vrot.slane %v318, 4
      %v324 = vshrl.u32 %v189, 16
      %v326 = vrot.slane %v324, 7
      %v327 = vshll.u32 %v189, 16
      %v329 = vor.u32 %v326, %v327
      %v330 = vsel %vm246, %v322, %v329
      %v331 = vrot.slane %v326, 4
      %v333 = vshrl.u32 %v190, 16
      %v335 = vrot.slane %v333, 7
      %v336 = vshll.u32 %v190, 16
      %v338 = vor.u32 %v335, %v336
      %v339 = vrot.slane %v335, 4
      %v341 = vshrl.u32 %v191, 16
      %v343 = vrot.slane %v341, 7
      %v344 = vshll.u32 %v191, 16
      %v346 = vor.u32 %v343, %v344
      %v347 = vsel %vm246, %v339, %v346
      %v348 = vrot.slane %v343, 4
      %v350 = vshrl.u32 %v192, 16
      %v352 = vrot.slane %v350, 7
      %v353 = vshll.u32 %v192, 16
      %v355 = vor.u32 %v352, %v353
      %v356 = vrot.slane %v352, 4
      %v358 = vshrl.u32 %v193, 16
      %v360 = vrot.slane %v358, 7
      %v361 = vshll.u32 %v193, 16
      %v363 = vor.u32 %v360, %v361
      %v364 = vsel %vm246, %v356, %v363
      %v365 = vrot.slane %v360, 4
      %v367 = vshrl.u32 %v194, 16
      %v369 = vrot.slane %v367, 7
      %v370 = vshll.u32 %v194, 16
      %v372 = vor.u32 %v369, %v370
      %v373 = vrot.slane %v369, 4
      %v375 = vshrl.u32 %v195, 16
      %v377 = vrot.slane %v375, 7
      %v378 = vshll.u32 %v195, 16
      %v380 = vor.u32 %v377, %v378
      %v381 = vsel %vm246, %v373, %v380
      %v382 = vrot.slane %v377, 4
      %v384 = vshrl.u32 %v196, 16
      %v386 = vrot.slane %v384, 7
      %v387 = vshll.u32 %v196, 16
      %v389 = vor.u32 %v386, %v387
      %v390 = vrot.slane %v386, 4
      %v392 = vshrl.u32 %v197, 16
      %v394 = vrot.slane %v392, 7
      %v395 = vshll.u32 %v197, 16
      %v397 = vor.u32 %v394, %v395
      %v398 = vsel %vm246, %v390, %v397
      %v399 = vrot.slane %v394, 4
      %v401 = vshrl.u32 %v198, 16
      %v403 = vrot.slane %v401, 7
      %v404 = vshll.u32 %v198, 16
      %v406 = vor.u32 %v403, %v404
      %v407 = vrot.slane %v403, 4
      %v409 = vshrl.u32 %v199, 16
      %v411 = vrot.slane %v409, 7
      %v412 = vshll.u32 %v199, 16
      %v414 = vor.u32 %v411, %v412
      %v415 = vsel %vm246, %v407, %v414
      %v416 = vrot.slane %v411, 4
      %v418 = vshrl.u32 %v200, 16
      %v420 = vrot.slane %v418, 7
      %v421 = vshll.u32 %v200, 16
      %v423 = vor.u32 %v420, %v421
      %v424 = vrot.slane %v420, 4
      %v426 = vshrl.u32 %v201, 16
      %v428 = vrot.slane %v426, 7
      %v429 = vshll.u32 %v201, 16
      %v431 = vor.u32 %v428, %v429
      %v432 = vsel %vm246, %v424, %v431
      %v433 = vrot.slane %v428, 4
      %v435 = vshrl.u32 %v202, 16
      %v437 = vrot.slane %v435, 7
      %v438 = vshll.u32 %v202, 16
      %v440 = vor.u32 %v437, %v438
      %v441 = vrot.slane %v437, 4
      %v443 = vshrl.u32 %v203, 16
      %v445 = vrot.slane %v443, 7
      %v446 = vshll.u32 %v203, 16
      %v448 = vor.u32 %v445, %v446
      %v449 = vsel %vm246, %v441, %v448
      %v450 = vrot.slane %v445, 4
      %v452 = vshrl.u32 %v204, 16
      %v454 = vrot.slane %v452, 7
      %v455 = vshll.u32 %v204, 16
      %v457 = vor.u32 %v454, %v455
      %v458 = vrot.slane %v454, 4
      %v460 = vshrl.u32 %v205, 16
      %v462 = vrot.slane %v460, 7
      %v463 = vshll.u32 %v205, 16
      %v465 = vor.u32 %v462, %v463
      %v466 = vsel %vm246, %v458, %v465
      %v467 = vrot.slane %v462, 4
      %v469 = vshrl.u32 %v206, 16
      %v471 = vrot.slane %v469, 7
      %v472 = vshll.u32 %v206, 16
      %v474 = vor.u32 %v471, %v472
      %v475 = vrot.slane %v471, 4
      %v477 = vshrl.u32 %v207, 16
      %v479 = vrot.slane %v477, 7
      %v480 = vshll.u32 %v207, 16
      %v482 = vor.u32 %v479, %v480
      %v483 = vsel %vm246, %v475, %v482
      %v484 = vrot.slane %v479, 4
      %v486 = vshrl.u32 %v208, 16
      %v488 = vrot.slane %v486, 7
      %v489 = vshll.u32 %v208, 16
      %v491 = vor.u32 %v488, %v489
      %v492 = vrot.slane %v488, 4
      %v494 = vshrl.u32 %v209, 16
      %v496 = vrot.slane %v494, 7
      %v497 = vshll.u32 %v209, 16
      %v499 = vor.u32 %v496, %v497
      %v500 = vsel %vm246, %v492, %v499
      %v501 = vrot.slane %v496, 4
      %v503 = vshrl.u32 %v210, 16
      %v505 = vrot.slane %v503, 7
      %v506 = vshll.u32 %v210, 16
      %v508 = vor.u32 %v505, %v506
      %v509 = vrot.slane %v505, 4
      %v511 = vshrl.u32 %v211, 16
      %v513 = vrot.slane %v511, 7
      %v514 = vshll.u32 %v211, 16
      %v516 = vor.u32 %v513, %v514
      %v517 = vsel %vm246, %v509, %v516
      %v518 = vrot.slane %v513, 4
      %v520 = vshrl.u32 %v212, 16
      %v522 = vrot.slane %v520, 7
      %v523 = vshll.u32 %v212, 16
      %v525 = vor.u32 %v522, %v523
      %v526 = vrot.slane %v522, 4
      %v528 = vshrl.u32 %v213, 16
      %v530 = vrot.slane %v528, 7
      %v531 = vshll.u32 %v213, 16
      %v533 = vor.u32 %v530, %v531
      %v534 = vsel %vm246, %v526, %v533
      %v535 = vrot.slane %v530, 4
      %v537 = vshrl.u32 %v214, 16
      %v539 = vrot.slane %v537, 7
      %v540 = vshll.u32 %v214, 16
      %v542 = vor.u32 %v539, %v540
      %v543 = vrot.slane %v539, 4
      %v545 = vshrl.u32 %v215, 16
      %v547 = vrot.slane %v545, 7
      %v548 = vshll.u32 %v215, 16
      %v550 = vor.u32 %v547, %v548
      %v551 = vsel %vm246, %v543, %v550
      %v552 = vrot.slane %v547, 4
      %v554 = vshrl.u32 %v216, 16
      %v556 = vrot.slane %v554, 7
      %v557 = vshll.u32 %v216, 16
      %v559 = vor.u32 %v556, %v557
      %v560 = vrot.slane %v556, 4
      %v562 = vshrl.u32 %v217, 16
      %v564 = vrot.slane %v562, 7
      %v565 = vshll.u32 %v217, 16
      %v567 = vor.u32 %v564, %v565
      %v568 = vsel %vm246, %v560, %v567
      %v569 = vrot.slane %v564, 4
      %v571 = vshrl.u32 %v218, 16
      %v573 = vrot.slane %v571, 7
      %v574 = vshll.u32 %v218, 16
      %v576 = vor.u32 %v573, %v574
      %v577 = vrot.slane %v573, 4
      %v579 = vshrl.u32 %v219, 16
      %v581 = vrot.slane %v579, 7
      %v582 = vshll.u32 %v219, 16
      %v584 = vor.u32 %v581, %v582
      %v585 = vsel %vm246, %v577, %v584
      %v586 = vrot.slane %v581, 4
      %v588 = vshrl.u32 %v220, 16
      %v590 = vrot.slane %v588, 7
      %v591 = vshll.u32 %v220, 16
      %v593 = vor.u32 %v590, %v591
      %v594 = vrot.slane %v590, 4
      %v596 = vshrl.u32 %v221, 16
      %v598 = vrot.slane %v596, 7
      %v599 = vshll.u32 %v221, 16
      %v601 = vor.u32 %v598, %v599
      %v602 = vsel %vm246, %v594, %v601
      %v603 = vrot.slane %v598, 4
      %v605 = vshrl.u32 %v222, 16
      %v607 = vrot.slane %v605, 7
      %v608 = vshll.u32 %v222, 16
      %v610 = vor.u32 %v607, %v608
      %v611 = vrot.slane %v607, 4
      %v613 = vshrl.u32 %v223, 16
      %v615 = vrot.slane %v613, 7
      %v616 = vshll.u32 %v223, 16
      %v618 = vor.u32 %v615, %v616
      %v619 = vsel %vm246, %v611, %v618
      %v620 = vrot.slane %v615, 4
      %v622 = vshrl.u32 %v224, 16
      %v624 = vrot.slane %v622, 7
      %v625 = vshll.u32 %v224, 16
      %v627 = vor.u32 %v624, %v625
      %v628 = vrot.slane %v624, 4
      %v630 = vshrl.u32 %v225, 16
      %v632 = vrot.slane %v630, 7
      %v633 = vshll.u32 %v225, 16
      %v635 = vor.u32 %v632, %v633
      %v636 = vsel %vm246, %v628, %v635
      %v637 = vrot.slane %v632, 4
      %v639 = vshrl.u32 %v226, 16
      %v641 = vrot.slane %v639, 7
      %v642 = vshll.u32 %v226, 16
      %v644 = vor.u32 %v641, %v642
      %v645 = vrot.slane %v641, 4
      %v647 = vshrl.u32 %v227, 16
      %v649 = vrot.slane %v647, 7
      %v650 = vshll.u32 %v227, 16
      %v652 = vor.u32 %v649, %v650
      %v653 = vsel %vm246, %v645, %v652
      %v654 = vrot.slane %v649, 4
      %v656 = vshrl.u32 %v228, 16
      %v658 = vrot.slane %v656, 7
      %v659 = vshll.u32 %v228, 16
      %v661 = vor.u32 %v658, %v659
      %v662 = vrot.slane %v658, 4
      %v664 = vshrl.u32 %v229, 16
      %v666 = vrot.slane %v664, 7
      %v667 = vshll.u32 %v229, 16
      %v669 = vor.u32 %v666, %v667
      %v670 = vsel %vm246, %v662, %v669
      %v671 = vrot.slane %v666, 4
      %v673 = vshrl.u32 %v230, 16
      %v675 = vrot.slane %v673, 7
      %v676 = vshll.u32 %v230, 16
      %v678 = vor.u32 %v675, %v676
      %v679 = vrot.slane %v675, 4
      %v681 = vshrl.u32 %v231, 16
      %v683 = vrot.slane %v681, 7
      %v684 = vshll.u32 %v231, 16
      %v686 = vor.u32 %v683, %v684
      %v687 = vsel %vm246, %v679, %v686
      %v688 = vrot.slane %v683, 4
      %v690 = vshrl.u32 %v232, 16
      %v692 = vrot.slane %v690, 7
      %v693 = vshll.u32 %v232, 16
      %v695 = vor.u32 %v692, %v693
      %v696 = vrot.slane %v692, 4
      %v698 = vshrl.u32 %v233, 16
      %v700 = vrot.slane %v698, 7
      %v701 = vshll.u32 %v233, 16
      %v703 = vor.u32 %v700, %v701
      %v704 = vsel %vm246, %v696, %v703
      %v705 = vrot.slane %v700, 4
      %v707 = vshrl.u32 %v234, 16
      %v709 = vrot.slane %v707, 7
      %v710 = vshll.u32 %v234, 16
      %v712 = vor.u32 %v709, %v710
      %v713 = vrot.slane %v709, 4
      %v715 = vshrl.u32 %v235, 16
      %v717 = vrot.slane %v715, 7
      %v718 = vshll.u32 %v235, 16
      %v720 = vor.u32 %v717, %v718
      %v721 = vsel %vm246, %v713, %v720
      %v722 = vrot.slane %v717, 4
      %v724 = vshrl.u32 %v236, 16
      %v726 = vrot.slane %v724, 7
      %v727 = vshll.u32 %v236, 16
      %v729 = vor.u32 %v726, %v727
      %v730 = vrot.slane %v726, 4
      %v732 = vshrl.u32 %v237, 16
      %v734 = vrot.slane %v732, 7
      %v735 = vshll.u32 %v237, 16
      %v737 = vor.u32 %v734, %v735
      %v738 = vsel %vm246, %v730, %v737
      %v739 = vrot.slane %v734, 4
      %v741 = vshrl.u32 %v238, 16
      %v743 = vrot.slane %v741, 7
      %v744 = vshll.u32 %v238, 16
      %v746 = vor.u32 %v743, %v744
      %v747 = vrot.slane %v743, 4
      %v749 = vshrl.u32 %v239, 16
      %v751 = vrot.slane %v749, 7
      %v752 = vshll.u32 %v239, 16
      %v754 = vor.u32 %v751, %v752
      %v755 = vsel %vm246, %v747, %v754
      %v756 = vrot.slane %v751, 4
      %v758 = vshrl.u32 %v240, 16
      %v760 = vrot.slane %v758, 7
      %v761 = vshll.u32 %v240, 16
      %v763 = vor.u32 %v760, %v761
      %v764 = vrot.slane %v760, 4
      %v766 = vshrl.u32 %v241, 16
      %v768 = vrot.slane %v766, 7
      %v769 = vshll.u32 %v241, 16
      %v771 = vor.u32 %v768, %v769
      %v772 = vsel %vm246, %v764, %v771
      %v773 = vrot.slane %v768, 4
      %v775 = vshrl.u32 %v242, 16
      %v777 = vrot.slane %v775, 7
      %v778 = vshll.u32 %v242, 16
      %v780 = vor.u32 %v777, %v778
      %v781 = vrot.slane %v777, 4
      %v783 = vshrl.u32 %v243, 16
      %v785 = vrot.slane %v783, 7
      %v786 = vshll.u32 %v243, 16
      %v788 = vor.u32 %v785, %v786
      %v789 = vsel %vm246, %v781, %v788
      %v790 = vrot.slane %v785, 4
      %s887 = scalar_lea.vmem [#allocation2], 12
      %vm888 = vcmask 60416
      %vm889 = vsmask.f32 7938
      %vm890 = vmand %vm888, %vm889
      %v891 = vld [vmem:[%s887] sm:$0xf]
      %v892 = vsel %vm890, %v253, %v891
      %893 = vst [vmem:[%s887] sm:$0xf] %v892
      %vm894 = vcmask 60416
      %895 = vst.msk [vmem:[%s887 + $0x4] sm:$0xf] %vm894, %v262
      %vm896 = vcmask 57344
      %vm897 = vmand %vm896, %vm244
      %v898 = vld [vmem:[%s887 + $0x8] sm:$0x1]
      %v899 = vsel %vm897, %v263, %v898
      %900 = vst [vmem:[%s887 + $0x8] sm:$0x1] %v899
      %v901 = vld [vmem:[%s887 + $0xc] sm:$0xf]
      %v902 = vsel %vm890, %v270, %v901
      %903 = vst [vmem:[%s887 + $0xc] sm:$0xf] %v902
      %904 = vst.msk [vmem:[%s887 + $0x10] sm:$0xf] %vm894, %v279
      %v905 = vld [vmem:[%s887 + $0x14] sm:$0x1]
      %v906 = vsel %vm897, %v280, %v905
      %907 = vst [vmem:[%s887 + $0x14] sm:$0x1] %v906
      %v908 = vld [vmem:[%s887 + $0x18] sm:$0xf]
      %v909 = vsel %vm890, %v287, %v908
      %910 = vst [vmem:[%s887 + $0x18] sm:$0xf] %v909
      %911 = vst.msk [vmem:[%s887 + $0x1c] sm:$0xf] %vm894, %v296
      %v912 = vld [vmem:[%s887 + $0x20] sm:$0x1]
      %v913 = vsel %vm897, %v297, %v912
      %914 = vst [vmem:[%s887 + $0x20] sm:$0x1] %v913
      %v915 = vld [vmem:[%s887 + $0x24] sm:$0xf]
      %v916 = vsel %vm890, %v304, %v915
      %917 = vst [vmem:[%s887 + $0x24] sm:$0xf] %v916
      %918 = vst.msk [vmem:[%s887 + $0x28] sm:$0xf] %vm894, %v313
      %v919 = vld [vmem:[%s887 + $0x2c] sm:$0x1]
      %v920 = vsel %vm897, %v314, %v919
      %921 = vst [vmem:[%s887 + $0x2c] sm:$0x1] %v920
      %v922 = vld [vmem:[%s887 + $0x30] sm:$0xf]
      %v923 = vsel %vm890, %v321, %v922
      %924 = vst [vmem:[%s887 + $0x30] sm:$0xf] %v923
      %925 = vst.msk [vmem:[%s887 + $0x34] sm:$0xf] %vm894, %v330
      %v926 = vld [vmem:[%s887 + $0x38] sm:$0x1]
      %v927 = vsel %vm897, %v331, %v926
      %928 = vst [vmem:[%s887 + $0x38] sm:$0x1] %v927
      %v929 = vld [vmem:[%s887 + $0x3c] sm:$0xf]
      %v930 = vsel %vm890, %v338, %v929
      %931 = vst [vmem:[%s887 + $0x3c] sm:$0xf] %v930
      %932 = vst.msk [vmem:[%s887 + $0x40] sm:$0xf] %vm894, %v347
      %v933 = vld [vmem:[%s887 + $0x44] sm:$0x1]
      %v934 = vsel %vm897, %v348, %v933
      %935 = vst [vmem:[%s887 + $0x44] sm:$0x1] %v934
      %v936 = vld [vmem:[%s887 + $0x48] sm:$0xf]
      %v937 = vsel %vm890, %v355, %v936
      %938 = vst [vmem:[%s887 + $0x48] sm:$0xf] %v937
      %939 = vst.msk [vmem:[%s887 + $0x4c] sm:$0xf] %vm894, %v364
      %v940 = vld [vmem:[%s887 + $0x50] sm:$0x1]
      %v941 = vsel %vm897, %v365, %v940
      %942 = vst [vmem:[%s887 + $0x50] sm:$0x1] %v941
      %v943 = vld [vmem:[%s887 + $0x54] sm:$0xf]
      %v944 = vsel %vm890, %v372, %v943
      %945 = vst [vmem:[%s887 + $0x54] sm:$0xf] %v944
      %946 = vst.msk [vmem:[%s887 + $0x58] sm:$0xf] %vm894, %v381
      %v947 = vld [vmem:[%s887 + $0x5c] sm:$0x1]
      %v948 = vsel %vm897, %v382, %v947
      %949 = vst [vmem:[%s887 + $0x5c] sm:$0x1] %v948
      %v950 = vld [vmem:[%s887 + $0x60] sm:$0xf]
      %v951 = vsel %vm890, %v389, %v950
      %952 = vst [vmem:[%s887 + $0x60] sm:$0xf] %v951
      %953 = vst.msk [vmem:[%s887 + $0x64] sm:$0xf] %vm894, %v398
      %v954 = vld [vmem:[%s887 + $0x68] sm:$0x1]
      %v955 = vsel %vm897, %v399, %v954
      %956 = vst [vmem:[%s887 + $0x68] sm:$0x1] %v955
      %v957 = vld [vmem:[%s887 + $0x6c] sm:$0xf]
      %v958 = vsel %vm890, %v406, %v957
      %959 = vst [vmem:[%s887 + $0x6c] sm:$0xf] %v958
      %960 = vst.msk [vmem:[%s887 + $0x70] sm:$0xf] %vm894, %v415
      %v961 = vld [vmem:[%s887 + $0x74] sm:$0x1]
      %v962 = vsel %vm897, %v416, %v961
      %963 = vst [vmem:[%s887 + $0x74] sm:$0x1] %v962
      %v964 = vld [vmem:[%s887 + $0x78] sm:$0xf]
      %v965 = vsel %vm890, %v423, %v964
      %966 = vst [vmem:[%s887 + $0x78] sm:$0xf] %v965
      %967 = vst.msk [vmem:[%s887 + $0x7c] sm:$0xf] %vm894, %v432
      %v968 = vld [vmem:[%s887 + $0x80] sm:$0x1]
      %v969 = vsel %vm897, %v433, %v968
      %970 = vst [vmem:[%s887 + $0x80] sm:$0x1] %v969
      %v971 = vld [vmem:[%s887 + $0x84] sm:$0xf]
      %v972 = vsel %vm890, %v440, %v971
      %973 = vst [vmem:[%s887 + $0x84] sm:$0xf] %v972
      %974 = vst.msk [vmem:[%s887 + $0x88] sm:$0xf] %vm894, %v449
      %v975 = vld [vmem:[%s887 + $0x8c] sm:$0x1]
      %v976 = vsel %vm897, %v450, %v975
      %977 = vst [vmem:[%s887 + $0x8c] sm:$0x1] %v976
      %v978 = vld [vmem:[%s887 + $0x90] sm:$0xf]
      %v979 = vsel %vm890, %v457, %v978
      %980 = vst [vmem:[%s887 + $0x90] sm:$0xf] %v979
      %981 = vst.msk [vmem:[%s887 + $0x94] sm:$0xf] %vm894, %v466
      %v982 = vld [vmem:[%s887 + $0x98] sm:$0x1]
      %v983 = vsel %vm897, %v467, %v982
      %984 = vst [vmem:[%s887 + $0x98] sm:$0x1] %v983
      %v985 = vld [vmem:[%s887 + $0x9c] sm:$0xf]
      %v986 = vsel %vm890, %v474, %v985
      %987 = vst [vmem:[%s887 + $0x9c] sm:$0xf] %v986
      %988 = vst.msk [vmem:[%s887 + $0xa0] sm:$0xf] %vm894, %v483
      %v989 = vld [vmem:[%s887 + $0xa4] sm:$0x1]
      %v990 = vsel %vm897, %v484, %v989
      %991 = vst [vmem:[%s887 + $0xa4] sm:$0x1] %v990
      %v992 = vld [vmem:[%s887 + $0xa8] sm:$0xf]
      %v993 = vsel %vm890, %v491, %v992
      %994 = vst [vmem:[%s887 + $0xa8] sm:$0xf] %v993
      %995 = vst.msk [vmem:[%s887 + $0xac] sm:$0xf] %vm894, %v500
      %v996 = vld [vmem:[%s887 + $0xb0] sm:$0x1]
      %v997 = vsel %vm897, %v501, %v996
      %998 = vst [vmem:[%s887 + $0xb0] sm:$0x1] %v997
      %v999 = vld [vmem:[%s887 + $0xb4] sm:$0xf]
      %v1000 = vsel %vm890, %v508, %v999
      %1001 = vst [vmem:[%s887 + $0xb4] sm:$0xf] %v1000
      %1002 = vst.msk [vmem:[%s887 + $0xb8] sm:$0xf] %vm894, %v517
      %v1003 = vld [vmem:[%s887 + $0xbc] sm:$0x1]
      %v1004 = vsel %vm897, %v518, %v1003
      %1005 = vst [vmem:[%s887 + $0xbc] sm:$0x1] %v1004
      %v1006 = vld [vmem:[%s887 + $0xd8] sm:$0xf]
      %v1007 = vsel %vm890, %v525, %v1006
      %1008 = vst [vmem:[%s887 + $0xd8] sm:$0xf] %v1007
      %1009 = vst.msk [vmem:[%s887 + $0xdc] sm:$0xf] %vm894, %v534
      %v1010 = vld [vmem:[%s887 + $0xe0] sm:$0x1]
      %v1011 = vsel %vm897, %v535, %v1010
      %1012 = vst [vmem:[%s887 + $0xe0] sm:$0x1] %v1011
      %v1013 = vld [vmem:[%s887 + $0xe4] sm:$0xf]
      %v1014 = vsel %vm890, %v542, %v1013
      %1015 = vst [vmem:[%s887 + $0xe4] sm:$0xf] %v1014
      %1016 = vst.msk [vmem:[%s887 + $0xe8] sm:$0xf] %vm894, %v551
      %v1017 = vld [vmem:[%s887 + $0xec] sm:$0x1]
      %v1018 = vsel %vm897, %v552, %v1017
      %1019 = vst [vmem:[%s887 + $0xec] sm:$0x1] %v1018
      %v1020 = vld [vmem:[%s887 + $0xf0] sm:$0xf]
      %v1021 = vsel %vm890, %v559, %v1020
      %1022 = vst [vmem:[%s887 + $0xf0] sm:$0xf] %v1021
      %1023 = vst.msk [vmem:[%s887 + $0xf4] sm:$0xf] %vm894, %v568
      %v1024 = vld [vmem:[%s887 + $0xf8] sm:$0x1]
      %v1025 = vsel %vm897, %v569, %v1024
      %1026 = vst [vmem:[%s887 + $0xf8] sm:$0x1] %v1025
      %v1027 = vld [vmem:[%s887 + $0xfc] sm:$0xf]
      %v1028 = vsel %vm890, %v576, %v1027
      %1029 = vst [vmem:[%s887 + $0xfc] sm:$0xf] %v1028
      %1030 = vst.msk [vmem:[%s887 + $0x100] sm:$0xf] %vm894, %v585
      %v1031 = vld [vmem:[%s887 + $0x104] sm:$0x1]
      %v1032 = vsel %vm897, %v586, %v1031
      %1033 = vst [vmem:[%s887 + $0x104] sm:$0x1] %v1032
      %v1034 = vld [vmem:[%s887 + $0x108] sm:$0xf]
      %v1035 = vsel %vm890, %v593, %v1034
      %1036 = vst [vmem:[%s887 + $0x108] sm:$0xf] %v1035
      %1037 = vst.msk [vmem:[%s887 + $0x10c] sm:$0xf] %vm894, %v602
      %v1038 = vld [vmem:[%s887 + $0x110] sm:$0x1]
      %v1039 = vsel %vm897, %v603, %v1038
      %1040 = vst [vmem:[%s887 + $0x110] sm:$0x1] %v1039
      %v1041 = vld [vmem:[%s887 + $0x114] sm:$0xf]
      %v1042 = vsel %vm890, %v610, %v1041
      %1043 = vst [vmem:[%s887 + $0x114] sm:$0xf] %v1042
      %1044 = vst.msk [vmem:[%s887 + $0x118] sm:$0xf] %vm894, %v619
      %v1045 = vld [vmem:[%s887 + $0x11c] sm:$0x1]
      %v1046 = vsel %vm897, %v620, %v1045
      %1047 = vst [vmem:[%s887 + $0x11c] sm:$0x1] %v1046
      %v1048 = vld [vmem:[%s887 + $0x120] sm:$0xf]
      %v1049 = vsel %vm890, %v627, %v1048
      %1050 = vst [vmem:[%s887 + $0x120] sm:$0xf] %v1049
      %1051 = vst.msk [vmem:[%s887 + $0x124] sm:$0xf] %vm894, %v636
      %v1052 = vld [vmem:[%s887 + $0x128] sm:$0x1]
      %v1053 = vsel %vm897, %v637, %v1052
      %1054 = vst [vmem:[%s887 + $0x128] sm:$0x1] %v1053
      %v1055 = vld [vmem:[%s887 + $0x12c] sm:$0xf]
      %v1056 = vsel %vm890, %v644, %v1055
      %1057 = vst [vmem:[%s887 + $0x12c] sm:$0xf] %v1056
      %1058 = vst.msk [vmem:[%s887 + $0x130] sm:$0xf] %vm894, %v653
      %v1059 = vld [vmem:[%s887 + $0x134] sm:$0x1]
      %v1060 = vsel %vm897, %v654, %v1059
      %1061 = vst [vmem:[%s887 + $0x134] sm:$0x1] %v1060
      %v1062 = vld [vmem:[%s887 + $0x138] sm:$0xf]
      %v1063 = vsel %vm890, %v661, %v1062
      %1064 = vst [vmem:[%s887 + $0x138] sm:$0xf] %v1063
      %1065 = vst.msk [vmem:[%s887 + $0x13c] sm:$0xf] %vm894, %v670
      %v1066 = vld [vmem:[%s887 + $0x140] sm:$0x1]
      %v1067 = vsel %vm897, %v671, %v1066
      %1068 = vst [vmem:[%s887 + $0x140] sm:$0x1] %v1067
      %v1069 = vld [vmem:[%s887 + $0x144] sm:$0xf]
      %v1070 = vsel %vm890, %v678, %v1069
      %1071 = vst [vmem:[%s887 + $0x144] sm:$0xf] %v1070
      %1072 = vst.msk [vmem:[%s887 + $0x148] sm:$0xf] %vm894, %v687
      %v1073 = vld [vmem:[%s887 + $0x14c] sm:$0x1]
      %v1074 = vsel %vm897, %v688, %v1073
      %1075 = vst [vmem:[%s887 + $0x14c] sm:$0x1] %v1074
      %v1076 = vld [vmem:[%s887 + $0x150] sm:$0xf]
      %v1077 = vsel %vm890, %v695, %v1076
      %1078 = vst [vmem:[%s887 + $0x150] sm:$0xf] %v1077
      %1079 = vst.msk [vmem:[%s887 + $0x154] sm:$0xf] %vm894, %v704
      %v1080 = vld [vmem:[%s887 + $0x158] sm:$0x1]
      %v1081 = vsel %vm897, %v705, %v1080
      %1082 = vst [vmem:[%s887 + $0x158] sm:$0x1] %v1081
      %v1083 = vld [vmem:[%s887 + $0x15c] sm:$0xf]
      %v1084 = vsel %vm890, %v712, %v1083
      %1085 = vst [vmem:[%s887 + $0x15c] sm:$0xf] %v1084
      %1086 = vst.msk [vmem:[%s887 + $0x160] sm:$0xf] %vm894, %v721
      %v1087 = vld [vmem:[%s887 + $0x164] sm:$0x1]
      %v1088 = vsel %vm897, %v722, %v1087
      %1089 = vst [vmem:[%s887 + $0x164] sm:$0x1] %v1088
      %v1090 = vld [vmem:[%s887 + $0x168] sm:$0xf]
      %v1091 = vsel %vm890, %v729, %v1090
      %1092 = vst [vmem:[%s887 + $0x168] sm:$0xf] %v1091
      %1093 = vst.msk [vmem:[%s887 + $0x16c] sm:$0xf] %vm894, %v738
      %v1094 = vld [vmem:[%s887 + $0x170] sm:$0x1]
      %v1095 = vsel %vm897, %v739, %v1094
      %1096 = vst [vmem:[%s887 + $0x170] sm:$0x1] %v1095
      %v1097 = vld [vmem:[%s887 + $0x174] sm:$0xf]
      %v1098 = vsel %vm890, %v746, %v1097
      %1099 = vst [vmem:[%s887 + $0x174] sm:$0xf] %v1098
      %1100 = vst.msk [vmem:[%s887 + $0x178] sm:$0xf] %vm894, %v755
      %v1101 = vld [vmem:[%s887 + $0x17c] sm:$0x1]
      %v1102 = vsel %vm897, %v756, %v1101
      %1103 = vst [vmem:[%s887 + $0x17c] sm:$0x1] %v1102
      %v1104 = vld [vmem:[%s887 + $0x180] sm:$0xf]
      %v1105 = vsel %vm890, %v763, %v1104
      %1106 = vst [vmem:[%s887 + $0x180] sm:$0xf] %v1105
      %1107 = vst.msk [vmem:[%s887 + $0x184] sm:$0xf] %vm894, %v772
      %v1108 = vld [vmem:[%s887 + $0x188] sm:$0x1]
      %v1109 = vsel %vm897, %v773, %v1108
      %1110 = vst [vmem:[%s887 + $0x188] sm:$0x1] %v1109
      %v1111 = vld [vmem:[%s887 + $0x18c] sm:$0xf]
      %v1112 = vsel %vm890, %v780, %v1111
      %1113 = vst [vmem:[%s887 + $0x18c] sm:$0xf] %v1112
      %1114 = vst.msk [vmem:[%s887 + $0x190] sm:$0xf] %vm894, %v789
      %v1115 = vld [vmem:[%s887 + $0x194] sm:$0x1]
      %v1116 = vsel %vm897, %v790, %v1115
      %1117 = vst [vmem:[%s887 + $0x194] sm:$0x1] %v1116
      %s1118 = scalar_lea.vmem %s170, 8
      %v1119 = vld [vmem:[%s1118] sm:$0xf]
      %v1120 = vld [vmem:[%s1118 + $0x4] sm:$0xf]
      %v1121 = vld [vmem:[%s1118 + $0x80] sm:$0xf]
      %v1122 = vld [vmem:[%s1118 + $0x84] sm:$0xf]
      %v1124 = vshrl.u32 %v1119, 16
      %v1126 = vrot.slane %v1124, 7
      %v1127 = vshll.u32 %v1119, 16
      %v1129 = vor.u32 %v1126, %v1127
      %v1130 = vrot.slane %v1126, 4
      %v1132 = vshrl.u32 %v1120, 16
      %v1134 = vrot.slane %v1132, 7
      %v1135 = vshll.u32 %v1120, 16
      %v1137 = vor.u32 %v1134, %v1135
      %v1138 = vsel %vm246, %v1130, %v1137
      %v1139 = vrot.slane %v1134, 4
      %v1141 = vshrl.u32 %v1121, 16
      %v1143 = vrot.slane %v1141, 7
      %v1144 = vshll.u32 %v1121, 16
      %v1146 = vor.u32 %v1143, %v1144
      %v1147 = vrot.slane %v1143, 4
      %v1149 = vshrl.u32 %v1122, 16
      %v1151 = vrot.slane %v1149, 7
      %v1152 = vshll.u32 %v1122, 16
      %v1154 = vor.u32 %v1151, %v1152
      %v1155 = vsel %vm246, %v1147, %v1154
      %v1156 = vrot.slane %v1151, 4
      %v1163 = vld [vmem:[#allocation2] sm:$0xf]
      %v1164 = vsel %vm890, %v1129, %v1163
      %1165 = vst [vmem:[#allocation2] sm:$0xf] %v1164
      %1166 = vst.msk [vmem:[#allocation2 + $0x4] sm:$0xf] %vm894, %v1138
      %v1167 = vld [vmem:[#allocation2 + $0x8] sm:$0x1]
      %v1168 = vsel %vm897, %v1139, %v1167
      %1169 = vst [vmem:[#allocation2 + $0x8] sm:$0x1] %v1168
      %v1170 = vld [vmem:[#allocation2 + $0xd8] sm:$0xf]
      %v1171 = vsel %vm890, %v1146, %v1170
      %1172 = vst [vmem:[#allocation2 + $0xd8] sm:$0xf] %v1171
      %1173 = vst.msk [vmem:[#allocation2 + $0xdc] sm:$0xf] %vm894, %v1155
      %v1174 = vld [vmem:[#allocation2 + $0xe0] sm:$0x1]
      %v1175 = vsel %vm897, %v1156, %v1174
      %1176 = vst [vmem:[#allocation2 + $0xe0] sm:$0x1] %v1175
      %s1177 = scalar_lea.vmem %s170, 112
      %v1178 = vld [vmem:[%s1177] sm:$0xf]
      %v1179 = vld [vmem:[%s1177 + $0x4] sm:$0xf]
      %v1180 = vld [vmem:[%s1177 + $0x80] sm:$0xf]
      %v1181 = vld [vmem:[%s1177 + $0x84] sm:$0xf]
      %v1183 = vshrl.u32 %v1178, 16
      %v1185 = vrot.slane %v1183, 7
      %v1186 = vshll.u32 %v1178, 16
      %v1188 = vor.u32 %v1185, %v1186
      %v1189 = vrot.slane %v1185, 4
      %v1191 = vshrl.u32 %v1179, 16
      %v1193 = vrot.slane %v1191, 7
      %v1194 = vshll.u32 %v1179, 16
      %v1196 = vor.u32 %v1193, %v1194
      %v1197 = vsel %vm246, %v1189, %v1196
      %v1198 = vrot.slane %v1193, 4
      %v1200 = vshrl.u32 %v1180, 16
      %v1202 = vrot.slane %v1200, 7
      %v1203 = vshll.u32 %v1180, 16
      %v1205 = vor.u32 %v1202, %v1203
      %v1206 = vrot.slane %v1202, 4
      %v1208 = vshrl.u32 %v1181, 16
      %v1210 = vrot.slane %v1208, 7
      %v1211 = vshll.u32 %v1181, 16
      %v1213 = vor.u32 %v1210, %v1211
      %v1214 = vsel %vm246, %v1206, %v1213
      %v1215 = vrot.slane %v1210, 4
      %s1222 = scalar_lea.vmem [#allocation2], 204
      %v1223 = vld [vmem:[%s1222] sm:$0xf]
      %v1224 = vsel %vm890, %v1188, %v1223
      %1225 = vst [vmem:[%s1222] sm:$0xf] %v1224
      %1226 = vst.msk [vmem:[%s1222 + $0x4] sm:$0xf] %vm894, %v1197
      %v1227 = vld [vmem:[%s1222 + $0x8] sm:$0x1]
      %v1228 = vsel %vm897, %v1198, %v1227
      %1229 = vst [vmem:[%s1222 + $0x8] sm:$0x1] %v1228
      %v1230 = vld [vmem:[%s1222 + $0xd8] sm:$0xf]
      %v1231 = vsel %vm890, %v1205, %v1230
      %1232 = vst [vmem:[%s1222 + $0xd8] sm:$0xf] %v1231
      %1233 = vst.msk [vmem:[%s1222 + $0xdc] sm:$0xf] %vm894, %v1214
      %v1234 = vld [vmem:[%s1222 + $0xe0] sm:$0x1]
      %v1235 = vsel %vm897, %v1215, %v1234
      %1236 = vst [vmem:[%s1222 + $0xe0] sm:$0x1] %v1235
      %v1237 = vld [vmem:[#allocation2] sm:$0x2]
      %v1238 = vld [vmem:[#allocation2 + $0xc] sm:$0x2]
      %v1239 = vld [vmem:[#allocation2 + $0x18] sm:$0x2]
      %v1240 = vld [vmem:[#allocation2 + $0x24] sm:$0x2]
      %v1241 = vld [vmem:[#allocation2 + $0x30] sm:$0x2]
      %v1242 = vld [vmem:[#allocation2 + $0x3c] sm:$0x2]
      %v1243 = vld [vmem:[#allocation2 + $0x48] sm:$0x2]
      %v1244 = vld [vmem:[#allocation2 + $0x54] sm:$0x2]
      %v1245 = vld [vmem:[#allocation2 + $0x60] sm:$0x2]
      %v1246 = vld [vmem:[#allocation2 + $0x6c] sm:$0x2]
      %v1247 = vld [vmem:[#allocation2 + $0x78] sm:$0x2]
      %v1248 = vld [vmem:[#allocation2 + $0x84] sm:$0x2]
      %v1249 = vld [vmem:[#allocation2 + $0x90] sm:$0x2]
      %v1250 = vld [vmem:[#allocation2 + $0x9c] sm:$0x2]
      %v1251 = vld [vmem:[#allocation2 + $0xa8] sm:$0x2]
      %v1252 = vld [vmem:[#allocation2 + $0xb4] sm:$0x2]
      %v1253 = vld [vmem:[#allocation2 + $0xc0] sm:$0x2]
      %v1254 = vld [vmem:[#allocation2 + $0xcc] sm:$0x2]
      %v1255 = vld [vmem:[#allocation2 + $0xd8] sm:$0x2]
      %v1256 = vld [vmem:[#allocation2 + $0xe4] sm:$0x2]
      %v1257 = vld [vmem:[#allocation2 + $0xf0] sm:$0x2]
      %v1258 = vld [vmem:[#allocation2 + $0xfc] sm:$0x2]
      %v1259 = vld [vmem:[#allocation2 + $0x108] sm:$0x2]
      %v1260 = vld [vmem:[#allocation2 + $0x114] sm:$0x2]
      %v1261 = vld [vmem:[#allocation2 + $0x120] sm:$0x2]
      %v1262 = vld [vmem:[#allocation2 + $0x12c] sm:$0x2]
      %v1263 = vld [vmem:[#allocation2 + $0x138] sm:$0x2]
      %v1264 = vld [vmem:[#allocation2 + $0x144] sm:$0x2]
      %v1265 = vld [vmem:[#allocation2 + $0x150] sm:$0x2]
      %v1266 = vld [vmem:[#allocation2 + $0x15c] sm:$0x2]
      %v1267 = vld [vmem:[#allocation2 + $0x168] sm:$0x2]
      %v1268 = vld [vmem:[#allocation2 + $0x174] sm:$0x2]
      %v1269 = vld [vmem:[#allocation2 + $0x180] sm:$0x2]
      %v1270 = vld [vmem:[#allocation2 + $0x18c] sm:$0x2]
      %v1271 = vld [vmem:[#allocation2 + $0x198] sm:$0x2]
      %v1272 = vld [vmem:[#allocation2 + $0x1a4] sm:$0x2]
      %v1309 = vrot.slane %v1237, 5
      %v1310 = vrot.slane %v1309, 4
      %v1311 = vrot.slane %v1238, 5
      %v1312 = vrot.slane %v1311, 4
      %v1313 = vrot.slane %v1239, 5
      %v1314 = vrot.slane %v1313, 4
      %v1315 = vrot.slane %v1240, 5
      %v1316 = vrot.slane %v1315, 4
      %v1317 = vrot.slane %v1241, 5
      %v1318 = vrot.slane %v1317, 4
      %v1319 = vrot.slane %v1242, 5
      %v1320 = vrot.slane %v1319, 4
      %v1321 = vrot.slane %v1243, 5
      %v1322 = vrot.slane %v1321, 4
      %v1323 = vrot.slane %v1244, 5
      %v1324 = vrot.slane %v1323, 4
      %v1325 = vrot.slane %v1245, 5
      %v1326 = vrot.slane %v1325, 4
      %v1327 = vrot.slane %v1246, 5
      %v1328 = vrot.slane %v1327, 4
      %v1329 = vrot.slane %v1247, 5
      %v1330 = vrot.slane %v1329, 4
      %v1331 = vrot.slane %v1248, 5
      %v1332 = vrot.slane %v1331, 4
      %v1333 = vrot.slane %v1249, 5
      %v1334 = vrot.slane %v1333, 4
      %v1335 = vrot.slane %v1250, 5
      %v1336 = vrot.slane %v1335, 4
      %v1337 = vrot.slane %v1251, 5
      %v1338 = vrot.slane %v1337, 4
      %v1339 = vrot.slane %v1252, 5
      %v1340 = vrot.slane %v1339, 4
      %v1341 = vrot.slane %v1253, 5
      %v1342 = vrot.slane %v1341, 4
      %v1343 = vrot.slane %v1254, 5
      %v1344 = vrot.slane %v1343, 4
      %v1345 = vrot.slane %v1255, 5
      %v1346 = vrot.slane %v1345, 4
      %v1347 = vrot.slane %v1256, 5
      %v1348 = vrot.slane %v1347, 4
      %v1349 = vrot.slane %v1257, 5
      %v1350 = vrot.slane %v1349, 4
      %v1351 = vrot.slane %v1258, 5
      %v1352 = vrot.slane %v1351, 4
      %v1353 = vrot.slane %v1259, 5
      %v1354 = vrot.slane %v1353, 4
      %v1355 = vrot.slane %v1260, 5
      %v1356 = vrot.slane %v1355, 4
      %v1357 = vrot.slane %v1261, 5
      %v1358 = vrot.slane %v1357, 4
      %v1359 = vrot.slane %v1262, 5
      %v1360 = vrot.slane %v1359, 4
      %v1361 = vrot.slane %v1263, 5
      %v1362 = vrot.slane %v1361, 4
      %v1363 = vrot.slane %v1264, 5
      %v1364 = vrot.slane %v1363, 4
      %v1365 = vrot.slane %v1265, 5
      %v1366 = vrot.slane %v1365, 4
      %v1367 = vrot.slane %v1266, 5
      %v1368 = vrot.slane %v1367, 4
      %v1369 = vrot.slane %v1267, 5
      %v1370 = vrot.slane %v1369, 4
      %v1371 = vrot.slane %v1268, 5
      %v1372 = vrot.slane %v1371, 4
      %v1373 = vrot.slane %v1269, 5
      %v1374 = vrot.slane %v1373, 4
      %v1375 = vrot.slane %v1270, 5
      %v1376 = vrot.slane %v1375, 4
      %v1377 = vrot.slane %v1271, 5
      %v1378 = vrot.slane %v1377, 4
      %v1379 = vrot.slane %v1272, 5
      %v1380 = vrot.slane %v1379, 4
      %v1417 = vld [vmem:[#allocation2] sm:$0x1]
      %v1418 = vsel %vm897, %v1310, %v1417
      %1419 = vst [vmem:[#allocation2] sm:$0x1] %v1418
      %v1420 = vld [vmem:[#allocation2 + $0xc] sm:$0x1]
      %v1421 = vsel %vm897, %v1312, %v1420
      %1422 = vst [vmem:[#allocation2 + $0xc] sm:$0x1] %v1421
      %v1423 = vld [vmem:[#allocation2 + $0x18] sm:$0x1]
      %v1424 = vsel %vm897, %v1314, %v1423
      %1425 = vst [vmem:[#allocation2 + $0x18] sm:$0x1] %v1424
      %v1426 = vld [vmem:[#allocation2 + $0x24] sm:$0x1]
      %v1427 = vsel %vm897, %v1316, %v1426
      %1428 = vst [vmem:[#allocation2 + $0x24] sm:$0x1] %v1427
      %v1429 = vld [vmem:[#allocation2 + $0x30] sm:$0x1]
      %v1430 = vsel %vm897, %v1318, %v1429
      %1431 = vst [vmem:[#allocation2 + $0x30] sm:$0x1] %v1430
      %v1432 = vld [vmem:[#allocation2 + $0x3c] sm:$0x1]
      %v1433 = vsel %vm897, %v1320, %v1432
      %1434 = vst [vmem:[#allocation2 + $0x3c] sm:$0x1] %v1433
      %v1435 = vld [vmem:[#allocation2 + $0x48] sm:$0x1]
      %v1436 = vsel %vm897, %v1322, %v1435
      %1437 = vst [vmem:[#allocation2 + $0x48] sm:$0x1] %v1436
      %v1438 = vld [vmem:[#allocation2 + $0x54] sm:$0x1]
      %v1439 = vsel %vm897, %v1324, %v1438
      %1440 = vst [vmem:[#allocation2 + $0x54] sm:$0x1] %v1439
      %v1441 = vld [vmem:[#allocation2 + $0x60] sm:$0x1]
      %v1442 = vsel %vm897, %v1326, %v1441
      %1443 = vst [vmem:[#allocation2 + $0x60] sm:$0x1] %v1442
      %v1444 = vld [vmem:[#allocation2 + $0x6c] sm:$0x1]
      %v1445 = vsel %vm897, %v1328, %v1444
      %1446 = vst [vmem:[#allocation2 + $0x6c] sm:$0x1] %v1445
      %v1447 = vld [vmem:[#allocation2 + $0x78] sm:$0x1]
      %v1448 = vsel %vm897, %v1330, %v1447
      %1449 = vst [vmem:[#allocation2 + $0x78] sm:$0x1] %v1448
      %v1450 = vld [vmem:[#allocation2 + $0x84] sm:$0x1]
      %v1451 = vsel %vm897, %v1332, %v1450
      %1452 = vst [vmem:[#allocation2 + $0x84] sm:$0x1] %v1451
      %v1453 = vld [vmem:[#allocation2 + $0x90] sm:$0x1]
      %v1454 = vsel %vm897, %v1334, %v1453
      %1455 = vst [vmem:[#allocation2 + $0x90] sm:$0x1] %v1454
      %v1456 = vld [vmem:[#allocation2 + $0x9c] sm:$0x1]
      %v1457 = vsel %vm897, %v1336, %v1456
      %1458 = vst [vmem:[#allocation2 + $0x9c] sm:$0x1] %v1457
      %v1459 = vld [vmem:[#allocation2 + $0xa8] sm:$0x1]
      %v1460 = vsel %vm897, %v1338, %v1459
      %1461 = vst [vmem:[#allocation2 + $0xa8] sm:$0x1] %v1460
      %v1462 = vld [vmem:[#allocation2 + $0xb4] sm:$0x1]
      %v1463 = vsel %vm897, %v1340, %v1462
      %1464 = vst [vmem:[#allocation2 + $0xb4] sm:$0x1] %v1463
      %v1465 = vld [vmem:[#allocation2 + $0xc0] sm:$0x1]
      %v1466 = vsel %vm897, %v1342, %v1465
      %1467 = vst [vmem:[#allocation2 + $0xc0] sm:$0x1] %v1466
      %v1468 = vld [vmem:[#allocation2 + $0xcc] sm:$0x1]
      %v1469 = vsel %vm897, %v1344, %v1468
      %1470 = vst [vmem:[#allocation2 + $0xcc] sm:$0x1] %v1469
      %v1471 = vld [vmem:[#allocation2 + $0xd8] sm:$0x1]
      %v1472 = vsel %vm897, %v1346, %v1471
      %1473 = vst [vmem:[#allocation2 + $0xd8] sm:$0x1] %v1472
      %v1474 = vld [vmem:[#allocation2 + $0xe4] sm:$0x1]
      %v1475 = vsel %vm897, %v1348, %v1474
      %1476 = vst [vmem:[#allocation2 + $0xe4] sm:$0x1] %v1475
      %v1477 = vld [vmem:[#allocation2 + $0xf0] sm:$0x1]
      %v1478 = vsel %vm897, %v1350, %v1477
      %1479 = vst [vmem:[#allocation2 + $0xf0] sm:$0x1] %v1478
      %v1480 = vld [vmem:[#allocation2 + $0xfc] sm:$0x1]
      %v1481 = vsel %vm897, %v1352, %v1480
      %1482 = vst [vmem:[#allocation2 + $0xfc] sm:$0x1] %v1481
      %v1483 = vld [vmem:[#allocation2 + $0x108] sm:$0x1]
      %v1484 = vsel %vm897, %v1354, %v1483
      %1485 = vst [vmem:[#allocation2 + $0x108] sm:$0x1] %v1484
      %v1486 = vld [vmem:[#allocation2 + $0x114] sm:$0x1]
      %v1487 = vsel %vm897, %v1356, %v1486
      %1488 = vst [vmem:[#allocation2 + $0x114] sm:$0x1] %v1487
      %v1489 = vld [vmem:[#allocation2 + $0x120] sm:$0x1]
      %v1490 = vsel %vm897, %v1358, %v1489
      %1491 = vst [vmem:[#allocation2 + $0x120] sm:$0x1] %v1490
      %v1492 = vld [vmem:[#allocation2 + $0x12c] sm:$0x1]
      %v1493 = vsel %vm897, %v1360, %v1492
      %1494 = vst [vmem:[#allocation2 + $0x12c] sm:$0x1] %v1493
      %v1495 = vld [vmem:[#allocation2 + $0x138] sm:$0x1]
      %v1496 = vsel %vm897, %v1362, %v1495
      %1497 = vst [vmem:[#allocation2 + $0x138] sm:$0x1] %v1496
      %v1498 = vld [vmem:[#allocation2 + $0x144] sm:$0x1]
      %v1499 = vsel %vm897, %v1364, %v1498
      %1500 = vst [vmem:[#allocation2 + $0x144] sm:$0x1] %v1499
      %v1501 = vld [vmem:[#allocation2 + $0x150] sm:$0x1]
      %v1502 = vsel %vm897, %v1366, %v1501
      %1503 = vst [vmem:[#allocation2 + $0x150] sm:$0x1] %v1502
      %v1504 = vld [vmem:[#allocation2 + $0x15c] sm:$0x1]
      %v1505 = vsel %vm897, %v1368, %v1504
      %1506 = vst [vmem:[#allocation2 + $0x15c] sm:$0x1] %v1505
      %v1507 = vld [vmem:[#allocation2 + $0x168] sm:$0x1]
      %v1508 = vsel %vm897, %v1370, %v1507
      %1509 = vst [vmem:[#allocation2 + $0x168] sm:$0x1] %v1508
      %v1510 = vld [vmem:[#allocation2 + $0x174] sm:$0x1]
      %v1511 = vsel %vm897, %v1372, %v1510
      %1512 = vst [vmem:[#allocation2 + $0x174] sm:$0x1] %v1511
      %v1513 = vld [vmem:[#allocation2 + $0x180] sm:$0x1]
      %v1514 = vsel %vm897, %v1374, %v1513
      %1515 = vst [vmem:[#allocation2 + $0x180] sm:$0x1] %v1514
      %v1516 = vld [vmem:[#allocation2 + $0x18c] sm:$0x1]
      %v1517 = vsel %vm897, %v1376, %v1516
      %1518 = vst [vmem:[#allocation2 + $0x18c] sm:$0x1] %v1517
      %v1519 = vld [vmem:[#allocation2 + $0x198] sm:$0x1]
      %v1520 = vsel %vm897, %v1378, %v1519
      %1521 = vst [vmem:[#allocation2 + $0x198] sm:$0x1] %v1520
      %v1522 = vld [vmem:[#allocation2 + $0x1a4] sm:$0x1]
      %v1523 = vsel %vm897, %v1380, %v1522
      %1524 = vst [vmem:[#allocation2 + $0x1a4] sm:$0x1] %v1523
      %v1525 = vld [vmem:[#allocation2 + $0x4] sm:$0x8]
      %v1526 = vld [vmem:[#allocation2 + $0x10] sm:$0x8]
      %v1527 = vld [vmem:[#allocation2 + $0x1c] sm:$0x8]
      %v1528 = vld [vmem:[#allocation2 + $0x28] sm:$0x8]
      %v1529 = vld [vmem:[#allocation2 + $0x34] sm:$0x8]
      %v1530 = vld [vmem:[#allocation2 + $0x40] sm:$0x8]
      %v1531 = vld [vmem:[#allocation2 + $0x4c] sm:$0x8]
      %v1532 = vld [vmem:[#allocation2 + $0x58] sm:$0x8]
      %v1533 = vld [vmem:[#allocation2 + $0x64] sm:$0x8]
      %v1534 = vld [vmem:[#allocation2 + $0x70] sm:$0x8]
      %v1535 = vld [vmem:[#allocation2 + $0x7c] sm:$0x8]
      %v1536 = vld [vmem:[#allocation2 + $0x88] sm:$0x8]
      %v1537 = vld [vmem:[#allocation2 + $0x94] sm:$0x8]
      %v1538 = vld [vmem:[#allocation2 + $0xa0] sm:$0x8]
      %v1539 = vld [vmem:[#allocation2 + $0xac] sm:$0x8]
      %v1540 = vld [vmem:[#allocation2 + $0xb8] sm:$0x8]
      %v1541 = vld [vmem:[#allocation2 + $0xc4] sm:$0x8]
      %v1542 = vld [vmem:[#allocation2 + $0xd0] sm:$0x8]
      %v1543 = vld [vmem:[#allocation2 + $0xdc] sm:$0x8]
      %v1544 = vld [vmem:[#allocation2 + $0xe8] sm:$0x8]
      %v1545 = vld [vmem:[#allocation2 + $0xf4] sm:$0x8]
      %v1546 = vld [vmem:[#allocation2 + $0x100] sm:$0x8]
      %v1547 = vld [vmem:[#allocation2 + $0x10c] sm:$0x8]
      %v1548 = vld [vmem:[#allocation2 + $0x118] sm:$0x8]
      %v1549 = vld [vmem:[#allocation2 + $0x124] sm:$0x8]
      %v1550 = vld [vmem:[#allocation2 + $0x130] sm:$0x8]
      %v1551 = vld [vmem:[#allocation2 + $0x13c] sm:$0x8]
      %v1552 = vld [vmem:[#allocation2 + $0x148] sm:$0x8]
      %v1553 = vld [vmem:[#allocation2 + $0x154] sm:$0x8]
      %v1554 = vld [vmem:[#allocation2 + $0x160] sm:$0x8]
      %v1555 = vld [vmem:[#allocation2 + $0x16c] sm:$0x8]
      %v1556 = vld [vmem:[#allocation2 + $0x178] sm:$0x8]
      %v1557 = vld [vmem:[#allocation2 + $0x184] sm:$0x8]
      %v1558 = vld [vmem:[#allocation2 + $0x190] sm:$0x8]
      %v1559 = vld [vmem:[#allocation2 + $0x19c] sm:$0x8]
      %v1560 = vld [vmem:[#allocation2 + $0x1a8] sm:$0x8]
      %v1597 = vrot.slane %v1525, 7
      %v1598 = vrot.slane %v1597, 4
      %v1599 = vrot.slane %v1526, 7
      %v1600 = vrot.slane %v1599, 4
      %v1601 = vrot.slane %v1527, 7
      %v1602 = vrot.slane %v1601, 4
      %v1603 = vrot.slane %v1528, 7
      %v1604 = vrot.slane %v1603, 4
      %v1605 = vrot.slane %v1529, 7
      %v1606 = vrot.slane %v1605, 4
      %v1607 = vrot.slane %v1530, 7
      %v1608 = vrot.slane %v1607, 4
      %v1609 = vrot.slane %v1531, 7
      %v1610 = vrot.slane %v1609, 4
      %v1611 = vrot.slane %v1532, 7
      %v1612 = vrot.slane %v1611, 4
      %v1613 = vrot.slane %v1533, 7
      %v1614 = vrot.slane %v1613, 4
      %v1615 = vrot.slane %v1534, 7
      %v1616 = vrot.slane %v1615, 4
      %v1617 = vrot.slane %v1535, 7
      %v1618 = vrot.slane %v1617, 4
      %v1619 = vrot.slane %v1536, 7
      %v1620 = vrot.slane %v1619, 4
      %v1621 = vrot.slane %v1537, 7
      %v1622 = vrot.slane %v1621, 4
      %v1623 = vrot.slane %v1538, 7
      %v1624 = vrot.slane %v1623, 4
      %v1625 = vrot.slane %v1539, 7
      %v1626 = vrot.slane %v1625, 4
      %v1627 = vrot.slane %v1540, 7
      %v1628 = vrot.slane %v1627, 4
      %v1629 = vrot.slane %v1541, 7
      %v1630 = vrot.slane %v1629, 4
      %v1631 = vrot.slane %v1542, 7
      %v1632 = vrot.slane %v1631, 4
      %v1633 = vrot.slane %v1543, 7
      %v1634 = vrot.slane %v1633, 4
      %v1635 = vrot.slane %v1544, 7
      %v1636 = vrot.slane %v1635, 4
      %v1637 = vrot.slane %v1545, 7
      %v1638 = vrot.slane %v1637, 4
      %v1639 = vrot.slane %v1546, 7
      %v1640 = vrot.slane %v1639, 4
      %v1641 = vrot.slane %v1547, 7
      %v1642 = vrot.slane %v1641, 4
      %v1643 = vrot.slane %v1548, 7
      %v1644 = vrot.slane %v1643, 4
      %v1645 = vrot.slane %v1549, 7
      %v1646 = vrot.slane %v1645, 4
      %v1647 = vrot.slane %v1550, 7
      %v1648 = vrot.slane %v1647, 4
      %v1649 = vrot.slane %v1551, 7
      %v1650 = vrot.slane %v1649, 4
      %v1651 = vrot.slane %v1552, 7
      %v1652 = vrot.slane %v1651, 4
      %v1653 = vrot.slane %v1553, 7
      %v1654 = vrot.slane %v1653, 4
      %v1655 = vrot.slane %v1554, 7
      %v1656 = vrot.slane %v1655, 4
      %v1657 = vrot.slane %v1555, 7
      %v1658 = vrot.slane %v1657, 4
      %v1659 = vrot.slane %v1556, 7
      %v1660 = vrot.slane %v1659, 4
      %v1661 = vrot.slane %v1557, 7
      %v1662 = vrot.slane %v1661, 4
      %v1663 = vrot.slane %v1558, 7
      %v1664 = vrot.slane %v1663, 4
      %v1665 = vrot.slane %v1559, 7
      %v1666 = vrot.slane %v1665, 4
      %v1667 = vrot.slane %v1560, 7
      %v1668 = vrot.slane %v1667, 4
      %vm1705 = vmand %vm896, %vm889
      %v1706 = vld [vmem:[#allocation2 + $0x8] sm:$0x1]
      %v1707 = vsel %vm1705, %v1598, %v1706
      %1708 = vst [vmem:[#allocation2 + $0x8] sm:$0x1] %v1707
      %v1709 = vld [vmem:[#allocation2 + $0x14] sm:$0x1]
      %v1710 = vsel %vm1705, %v1600, %v1709
      %1711 = vst [vmem:[#allocation2 + $0x14] sm:$0x1] %v1710
      %v1712 = vld [vmem:[#allocation2 + $0x20] sm:$0x1]
      %v1713 = vsel %vm1705, %v1602, %v1712
      %1714 = vst [vmem:[#allocation2 + $0x20] sm:$0x1] %v1713
      %v1715 = vld [vmem:[#allocation2 + $0x2c] sm:$0x1]
      %v1716 = vsel %vm1705, %v1604, %v1715
      %1717 = vst [vmem:[#allocation2 + $0x2c] sm:$0x1] %v1716
      %v1718 = vld [vmem:[#allocation2 + $0x38] sm:$0x1]
      %v1719 = vsel %vm1705, %v1606, %v1718
      %1720 = vst [vmem:[#allocation2 + $0x38] sm:$0x1] %v1719
      %v1721 = vld [vmem:[#allocation2 + $0x44] sm:$0x1]
      %v1722 = vsel %vm1705, %v1608, %v1721
      %1723 = vst [vmem:[#allocation2 + $0x44] sm:$0x1] %v1722
      %v1724 = vld [vmem:[#allocation2 + $0x50] sm:$0x1]
      %v1725 = vsel %vm1705, %v1610, %v1724
      %1726 = vst [vmem:[#allocation2 + $0x50] sm:$0x1] %v1725
      %v1727 = vld [vmem:[#allocation2 + $0x5c] sm:$0x1]
      %v1728 = vsel %vm1705, %v1612, %v1727
      %1729 = vst [vmem:[#allocation2 + $0x5c] sm:$0x1] %v1728
      %v1730 = vld [vmem:[#allocation2 + $0x68] sm:$0x1]
      %v1731 = vsel %vm1705, %v1614, %v1730
      %1732 = vst [vmem:[#allocation2 + $0x68] sm:$0x1] %v1731
      %v1733 = vld [vmem:[#allocation2 + $0x74] sm:$0x1]
      %v1734 = vsel %vm1705, %v1616, %v1733
      %1735 = vst [vmem:[#allocation2 + $0x74] sm:$0x1] %v1734
      %v1736 = vld [vmem:[#allocation2 + $0x80] sm:$0x1]
      %v1737 = vsel %vm1705, %v1618, %v1736
      %1738 = vst [vmem:[#allocation2 + $0x80] sm:$0x1] %v1737
      %v1739 = vld [vmem:[#allocation2 + $0x8c] sm:$0x1]
      %v1740 = vsel %vm1705, %v1620, %v1739
      %1741 = vst [vmem:[#allocation2 + $0x8c] sm:$0x1] %v1740
      %v1742 = vld [vmem:[#allocation2 + $0x98] sm:$0x1]
      %v1743 = vsel %vm1705, %v1622, %v1742
      %1744 = vst [vmem:[#allocation2 + $0x98] sm:$0x1] %v1743
      %v1745 = vld [vmem:[#allocation2 + $0xa4] sm:$0x1]
      %v1746 = vsel %vm1705, %v1624, %v1745
      %1747 = vst [vmem:[#allocation2 + $0xa4] sm:$0x1] %v1746
      %v1748 = vld [vmem:[#allocation2 + $0xb0] sm:$0x1]
      %v1749 = vsel %vm1705, %v1626, %v1748
      %1750 = vst [vmem:[#allocation2 + $0xb0] sm:$0x1] %v1749
      %v1751 = vld [vmem:[#allocation2 + $0xbc] sm:$0x1]
      %v1752 = vsel %vm1705, %v1628, %v1751
      %1753 = vst [vmem:[#allocation2 + $0xbc] sm:$0x1] %v1752
      %v1754 = vld [vmem:[#allocation2 + $0xc8] sm:$0x1]
      %v1755 = vsel %vm1705, %v1630, %v1754
      %1756 = vst [vmem:[#allocation2 + $0xc8] sm:$0x1] %v1755
      %v1757 = vld [vmem:[#allocation2 + $0xd4] sm:$0x1]
      %v1758 = vsel %vm1705, %v1632, %v1757
      %1759 = vst [vmem:[#allocation2 + $0xd4] sm:$0x1] %v1758
      %v1760 = vld [vmem:[#allocation2 + $0xe0] sm:$0x1]
      %v1761 = vsel %vm1705, %v1634, %v1760
      %1762 = vst [vmem:[#allocation2 + $0xe0] sm:$0x1] %v1761
      %v1763 = vld [vmem:[#allocation2 + $0xec] sm:$0x1]
      %v1764 = vsel %vm1705, %v1636, %v1763
      %1765 = vst [vmem:[#allocation2 + $0xec] sm:$0x1] %v1764
      %v1766 = vld [vmem:[#allocation2 + $0xf8] sm:$0x1]
      %v1767 = vsel %vm1705, %v1638, %v1766
      %1768 = vst [vmem:[#allocation2 + $0xf8] sm:$0x1] %v1767
      %v1769 = vld [vmem:[#allocation2 + $0x104] sm:$0x1]
      %v1770 = vsel %vm1705, %v1640, %v1769
      %1771 = vst [vmem:[#allocation2 + $0x104] sm:$0x1] %v1770
      %v1772 = vld [vmem:[#allocation2 + $0x110] sm:$0x1]
      %v1773 = vsel %vm1705, %v1642, %v1772
      %1774 = vst [vmem:[#allocation2 + $0x110] sm:$0x1] %v1773
      %v1775 = vld [vmem:[#allocation2 + $0x11c] sm:$0x1]
      %v1776 = vsel %vm1705, %v1644, %v1775
      %1777 = vst [vmem:[#allocation2 + $0x11c] sm:$0x1] %v1776
      %v1778 = vld [vmem:[#allocation2 + $0x128] sm:$0x1]
      %v1779 = vsel %vm1705, %v1646, %v1778
      %1780 = vst [vmem:[#allocation2 + $0x128] sm:$0x1] %v1779
      %v1781 = vld [vmem:[#allocation2 + $0x134] sm:$0x1]
      %v1782 = vsel %vm1705, %v1648, %v1781
      %1783 = vst [vmem:[#allocation2 + $0x134] sm:$0x1] %v1782
      %v1784 = vld [vmem:[#allocation2 + $0x140] sm:$0x1]
      %v1785 = vsel %vm1705, %v1650, %v1784
      %1786 = vst [vmem:[#allocation2 + $0x140] sm:$0x1] %v1785
      %v1787 = vld [vmem:[#allocation2 + $0x14c] sm:$0x1]
      %v1788 = vsel %vm1705, %v1652, %v1787
      %1789 = vst [vmem:[#allocation2 + $0x14c] sm:$0x1] %v1788
      %v1790 = vld [vmem:[#allocation2 + $0x158] sm:$0x1]
      %v1791 = vsel %vm1705, %v1654, %v1790
      %1792 = vst [vmem:[#allocation2 + $0x158] sm:$0x1] %v1791
      %v1793 = vld [vmem:[#allocation2 + $0x164] sm:$0x1]
      %v1794 = vsel %vm1705, %v1656, %v1793
      %1795 = vst [vmem:[#allocation2 + $0x164] sm:$0x1] %v1794
      %v1796 = vld [vmem:[#allocation2 + $0x170] sm:$0x1]
      %v1797 = vsel %vm1705, %v1658, %v1796
      %1798 = vst [vmem:[#allocation2 + $0x170] sm:$0x1] %v1797
      %v1799 = vld [vmem:[#allocation2 + $0x17c] sm:$0x1]
      %v1800 = vsel %vm1705, %v1660, %v1799
      %1801 = vst [vmem:[#allocation2 + $0x17c] sm:$0x1] %v1800
      %v1802 = vld [vmem:[#allocation2 + $0x188] sm:$0x1]
      %v1803 = vsel %vm1705, %v1662, %v1802
      %1804 = vst [vmem:[#allocation2 + $0x188] sm:$0x1] %v1803
      %v1805 = vld [vmem:[#allocation2 + $0x194] sm:$0x1]
      %v1806 = vsel %vm1705, %v1664, %v1805
      %1807 = vst [vmem:[#allocation2 + $0x194] sm:$0x1] %v1806
      %v1808 = vld [vmem:[#allocation2 + $0x1a0] sm:$0x1]
      %v1809 = vsel %vm1705, %v1666, %v1808
      %1810 = vst [vmem:[#allocation2 + $0x1a0] sm:$0x1] %v1809
      %v1811 = vld [vmem:[#allocation2 + $0x1ac] sm:$0x1]
      %v1812 = vsel %vm1705, %v1668, %v1811
      %1813 = vst [vmem:[#allocation2 + $0x1ac] sm:$0x1] %v1812
      %v1814 = vld [vmem:[#allocation2] sm:$0xf]
      %v1815 = vld [vmem:[#allocation2 + $0x4] sm:$0xf]
      %v1816 = vld [vmem:[#allocation2 + $0xc] sm:$0xf]
      %v1817 = vld [vmem:[#allocation2 + $0x10] sm:$0xf]
      %v1818 = vld [vmem:[#allocation2 + $0x18] sm:$0xf]
      %v1819 = vld [vmem:[#allocation2 + $0x1c] sm:$0xf]
      %v1820 = vld [vmem:[#allocation2 + $0x24] sm:$0xf]
      %v1821 = vld [vmem:[#allocation2 + $0x28] sm:$0xf]
      %v1822 = vld [vmem:[#allocation2 + $0x30] sm:$0xf]
      %v1823 = vld [vmem:[#allocation2 + $0x34] sm:$0xf]
      %v1824 = vld [vmem:[#allocation2 + $0x3c] sm:$0xf]
      %v1825 = vld [vmem:[#allocation2 + $0x40] sm:$0xf]
      %v1826 = vld [vmem:[#allocation2 + $0x48] sm:$0xf]
      %v1827 = vld [vmem:[#allocation2 + $0x4c] sm:$0xf]
      %v1828 = vld [vmem:[#allocation2 + $0x54] sm:$0xf]
      %v1829 = vld [vmem:[#allocation2 + $0x58] sm:$0xf]
      %v1830 = vld [vmem:[#allocation2 + $0x60] sm:$0xf]
      %v1831 = vld [vmem:[#allocation2 + $0x64] sm:$0xf]
      %v1832 = vld [vmem:[#allocation2 + $0x6c] sm:$0xf]
      %v1833 = vld [vmem:[#allocation2 + $0x70] sm:$0xf]
      %v1834 = vld [vmem:[#allocation2 + $0x78] sm:$0xf]
      %v1835 = vld [vmem:[#allocation2 + $0x7c] sm:$0xf]
      %v1836 = vld [vmem:[#allocation2 + $0x84] sm:$0xf]
      %v1837 = vld [vmem:[#allocation2 + $0x88] sm:$0xf]
      %v1838 = vld [vmem:[#allocation2 + $0x90] sm:$0xf]
      %v1839 = vld [vmem:[#allocation2 + $0x94] sm:$0xf]
      %v1840 = vld [vmem:[#allocation2 + $0x9c] sm:$0xf]
      %v1841 = vld [vmem:[#allocation2 + $0xa0] sm:$0xf]
      %v1842 = vld [vmem:[#allocation2 + $0xa8] sm:$0xf]
      %v1843 = vld [vmem:[#allocation2 + $0xac] sm:$0xf]
      %v1844 = vld [vmem:[#allocation2 + $0xb4] sm:$0xf]
      %v1845 = vld [vmem:[#allocation2 + $0xb8] sm:$0xf]
      %v1846 = vld [vmem:[#allocation2 + $0xd8] sm:$0xf]
      %v1847 = vld [vmem:[#allocation2 + $0xdc] sm:$0xf]
      %v1848 = vld [vmem:[#allocation2 + $0xe4] sm:$0xf]
      %v1849 = vld [vmem:[#allocation2 + $0xe8] sm:$0xf]
      %v1850 = vld [vmem:[#allocation2 + $0xf0] sm:$0xf]
      %v1851 = vld [vmem:[#allocation2 + $0xf4] sm:$0xf]
      %v1852 = vld [vmem:[#allocation2 + $0xfc] sm:$0xf]
      %v1853 = vld [vmem:[#allocation2 + $0x100] sm:$0xf]
      %v1854 = vld [vmem:[#allocation2 + $0x108] sm:$0xf]
      %v1855 = vld [vmem:[#allocation2 + $0x10c] sm:$0xf]
      %v1856 = vld [vmem:[#allocation2 + $0x114] sm:$0xf]
      %v1857 = vld [vmem:[#allocation2 + $0x118] sm:$0xf]
      %v1858 = vld [vmem:[#allocation2 + $0x120] sm:$0xf]
      %v1859 = vld [vmem:[#allocation2 + $0x124] sm:$0xf]
      %v1860 = vld [vmem:[#allocation2 + $0x12c] sm:$0xf]
      %v1861 = vld [vmem:[#allocation2 + $0x130] sm:$0xf]
      %v1862 = vld [vmem:[#allocation2 + $0x138] sm:$0xf]
      %v1863 = vld [vmem:[#allocation2 + $0x13c] sm:$0xf]
      %v1864 = vld [vmem:[#allocation2 + $0x144] sm:$0xf]
      %v1865 = vld [vmem:[#allocation2 + $0x148] sm:$0xf]
      %v1866 = vld [vmem:[#allocation2 + $0x150] sm:$0xf]
      %v1867 = vld [vmem:[#allocation2 + $0x154] sm:$0xf]
      %v1868 = vld [vmem:[#allocation2 + $0x15c] sm:$0xf]
      %v1869 = vld [vmem:[#allocation2 + $0x160] sm:$0xf]
      %v1870 = vld [vmem:[#allocation2 + $0x168] sm:$0xf]
      %v1871 = vld [vmem:[#allocation2 + $0x16c] sm:$0xf]
      %v1872 = vld [vmem:[#allocation2 + $0x174] sm:$0xf]
      %v1873 = vld [vmem:[#allocation2 + $0x178] sm:$0xf]
      %v1874 = vld [vmem:[#allocation2 + $0x180] sm:$0xf]
      %v1875 = vld [vmem:[#allocation2 + $0x184] sm:$0xf]
      %v1876 = vld [vmem:[#allocation2 + $0x18c] sm:$0xf]
      %v1877 = vld [vmem:[#allocation2 + $0x190] sm:$0xf]
      %v1942 = vunpack.c.l.b16 %v1814
      %v1943 = vunpack.c.l.b16 %v1815
      %v1944 = vunpack.c.l.b16 %v1816
      %v1945 = vunpack.c.l.b16 %v1817
      %v1946 = vunpack.c.l.b16 %v1818
      %v1947 = vunpack.c.l.b16 %v1819
      %v1948 = vunpack.c.l.b16 %v1820
      %v1949 = vunpack.c.l.b16 %v1821
      %v1950 = vunpack.c.l.b16 %v1822
      %v1951 = vunpack.c.l.b16 %v1823
      %v1952 = vunpack.c.l.b16 %v1824
      %v1953 = vunpack.c.l.b16 %v1825
      %v1954 = vunpack.c.l.b16 %v1826
      %v1955 = vunpack.c.l.b16 %v1827
      %v1956 = vunpack.c.l.b16 %v1828
      %v1957 = vunpack.c.l.b16 %v1829
      %v1958 = vunpack.c.l.b16 %v1830
      %v1959 = vunpack.c.l.b16 %v1831
      %v1960 = vunpack.c.l.b16 %v1832
      %v1961 = vunpack.c.l.b16 %v1833
      %v1962 = vunpack.c.l.b16 %v1834
      %v1963 = vunpack.c.l.b16 %v1835
      %v1964 = vunpack.c.l.b16 %v1836
      %v1965 = vunpack.c.l.b16 %v1837
      %v1966 = vunpack.c.l.b16 %v1838
      %v1967 = vunpack.c.l.b16 %v1839
      %v1968 = vunpack.c.l.b16 %v1840
      %v1969 = vunpack.c.l.b16 %v1841
      %v1970 = vunpack.c.l.b16 %v1842
      %v1971 = vunpack.c.l.b16 %v1843
      %v1972 = vunpack.c.l.b16 %v1844
      %v1973 = vunpack.c.l.b16 %v1845
      %v1974 = vunpack.c.l.b16 %v1846
      %v1975 = vunpack.c.l.b16 %v1847
      %v1976 = vunpack.c.l.b16 %v1848
      %v1977 = vunpack.c.l.b16 %v1849
      %v1978 = vunpack.c.l.b16 %v1850
      %v1979 = vunpack.c.l.b16 %v1851
      %v1980 = vunpack.c.l.b16 %v1852
      %v1981 = vunpack.c.l.b16 %v1853
      %v1982 = vunpack.c.l.b16 %v1854
      %v1983 = vunpack.c.l.b16 %v1855
      %v1984 = vunpack.c.l.b16 %v1856
      %v1985 = vunpack.c.l.b16 %v1857
      %v1986 = vunpack.c.l.b16 %v1858
      %v1987 = vunpack.c.l.b16 %v1859
      %v1988 = vunpack.c.l.b16 %v1860
      %v1989 = vunpack.c.l.b16 %v1861
      %v1990 = vunpack.c.l.b16 %v1862
      %v1991 = vunpack.c.l.b16 %v1863
      %v1992 = vunpack.c.l.b16 %v1864
      %v1993 = vunpack.c.l.b16 %v1865
      %v1994 = vunpack.c.l.b16 %v1866
      %v1995 = vunpack.c.l.b16 %v1867
      %v1996 = vunpack.c.l.b16 %v1868
      %v1997 = vunpack.c.l.b16 %v1869
      %v1998 = vunpack.c.l.b16 %v1870
      %v1999 = vunpack.c.l.b16 %v1871
      %v2000 = vunpack.c.l.b16 %v1872
      %v2001 = vunpack.c.l.b16 %v1873
      %v2002 = vunpack.c.l.b16 %v1874
      %v2003 = vunpack.c.l.b16 %v1875
      %v2004 = vunpack.c.l.b16 %v1876
      %v2005 = vunpack.c.l.b16 %v1877
      %v2006 = vpack.c.b16 %v1943, %v1942
      %v2007 = vpack.c.b16 %v1945, %v1944
      %v2008 = vpack.c.b16 %v1947, %v1946
      %v2009 = vpack.c.b16 %v1949, %v1948
      %v2010 = vpack.c.b16 %v1951, %v1950
      %v2011 = vpack.c.b16 %v1953, %v1952
      %v2012 = vpack.c.b16 %v1955, %v1954
      %v2013 = vpack.c.b16 %v1957, %v1956
      %v2014 = vpack.c.b16 %v1959, %v1958
      %v2015 = vpack.c.b16 %v1961, %v1960
      %v2016 = vpack.c.b16 %v1963, %v1962
      %v2017 = vpack.c.b16 %v1965, %v1964
      %v2018 = vpack.c.b16 %v1967, %v1966
      %v2019 = vpack.c.b16 %v1969, %v1968
      %v2020 = vpack.c.b16 %v1971, %v1970
      %v2021 = vpack.c.b16 %v1973, %v1972
      %v2022 = vpack.c.b16 %v1975, %v1974
      %v2023 = vpack.c.b16 %v1977, %v1976
      %v2024 = vpack.c.b16 %v1979, %v1978
      %v2025 = vpack.c.b16 %v1981, %v1980
      %v2026 = vpack.c.b16 %v1983, %v1982
      %v2027 = vpack.c.b16 %v1985, %v1984
      %v2028 = vpack.c.b16 %v1987, %v1986
      %v2029 = vpack.c.b16 %v1989, %v1988
      %v2030 = vpack.c.b16 %v1991, %v1990
      %v2031 = vpack.c.b16 %v1993, %v1992
      %v2032 = vpack.c.b16 %v1995, %v1994
      %v2033 = vpack.c.b16 %v1997, %v1996
      %v2034 = vpack.c.b16 %v1999, %v1998
      %v2035 = vpack.c.b16 %v2001, %v2000
      %v2036 = vpack.c.b16 %v2003, %v2002
      %v2037 = vpack.c.b16 %v2005, %v2004
      %vm2070 = vcmask 64512
      %2071 = vst.msk [vmem:[#allocation3] sm:$0xff] %vm2070, %v2006
      %2072 = vst.msk [vmem:[#allocation3 + $0x8] sm:$0xff] %vm2070, %v2007
      %2073 = vst.msk [vmem:[#allocation3 + $0x10] sm:$0xff] %vm2070, %v2008
      %2074 = vst.msk [vmem:[#allocation3 + $0x18] sm:$0xff] %vm2070, %v2009
      %2075 = vst.msk [vmem:[#allocation3 + $0x20] sm:$0xff] %vm2070, %v2010
      %2076 = vst.msk [vmem:[#allocation3 + $0x28] sm:$0xff] %vm2070, %v2011
      %2077 = vst.msk [vmem:[#allocation3 + $0x30] sm:$0xff] %vm2070, %v2012
      %2078 = vst.msk [vmem:[#allocation3 + $0x38] sm:$0xff] %vm2070, %v2013
      %2079 = vst.msk [vmem:[#allocation3 + $0x40] sm:$0xff] %vm2070, %v2014
      %2080 = vst.msk [vmem:[#allocation3 + $0x48] sm:$0xff] %vm2070, %v2015
      %2081 = vst.msk [vmem:[#allocation3 + $0x50] sm:$0xff] %vm2070, %v2016
      %2082 = vst.msk [vmem:[#allocation3 + $0x58] sm:$0xff] %vm2070, %v2017
      %2083 = vst.msk [vmem:[#allocation3 + $0x60] sm:$0xff] %vm2070, %v2018
      %2084 = vst.msk [vmem:[#allocation3 + $0x68] sm:$0xff] %vm2070, %v2019
      %2085 = vst.msk [vmem:[#allocation3 + $0x70] sm:$0xff] %vm2070, %v2020
      %2086 = vst.msk [vmem:[#allocation3 + $0x78] sm:$0xff] %vm2070, %v2021
      %2087 = vst.msk [vmem:[#allocation3 + $0x80] sm:$0xff] %vm2070, %v2022
      %2088 = vst.msk [vmem:[#allocation3 + $0x88] sm:$0xff] %vm2070, %v2023
      %2089 = vst.msk [vmem:[#allocation3 + $0x90] sm:$0xff] %vm2070, %v2024
      %2090 = vst.msk [vmem:[#allocation3 + $0x98] sm:$0xff] %vm2070, %v2025
      %2091 = vst.msk [vmem:[#allocation3 + $0xa0] sm:$0xff] %vm2070, %v2026
      %2092 = vst.msk [vmem:[#allocation3 + $0xa8] sm:$0xff] %vm2070, %v2027
      %2093 = vst.msk [vmem:[#allocation3 + $0xb0] sm:$0xff] %vm2070, %v2028
      %2094 = vst.msk [vmem:[#allocation3 + $0xb8] sm:$0xff] %vm2070, %v2029
      %2095 = vst.msk [vmem:[#allocation3 + $0xc0] sm:$0xff] %vm2070, %v2030
      %2096 = vst.msk [vmem:[#allocation3 + $0xc8] sm:$0xff] %vm2070, %v2031
      %2097 = vst.msk [vmem:[#allocation3 + $0xd0] sm:$0xff] %vm2070, %v2032
      %2098 = vst.msk [vmem:[#allocation3 + $0xd8] sm:$0xff] %vm2070, %v2033
      %2099 = vst.msk [vmem:[#allocation3 + $0xe0] sm:$0xff] %vm2070, %v2034
      %2100 = vst.msk [vmem:[#allocation3 + $0xe8] sm:$0xff] %vm2070, %v2035
      %2101 = vst.msk [vmem:[#allocation3 + $0xf0] sm:$0xff] %vm2070, %v2036
      %2102 = vst.msk [vmem:[#allocation3 + $0xf8] sm:$0xff] %vm2070, %v2037
      %v2103 = vld [vmem:[#allocation2] sm:$0xf]
      %v2104 = vld [vmem:[#allocation2 + $0x4] sm:$0xf]
      %v2105 = vld [vmem:[#allocation2 + $0x8] sm:$0x1]
      %v2106 = vld [vmem:[#allocation2 + $0xc] sm:$0xf]
      %v2107 = vld [vmem:[#allocation2 + $0x10] sm:$0xf]
      %v2108 = vld [vmem:[#allocation2 + $0x14] sm:$0x1]
      %v2109 = vld [vmem:[#allocation2 + $0x18] sm:$0xf]
      %v2110 = vld [vmem:[#allocation2 + $0x1c] sm:$0xf]
      %v2111 = vld [vmem:[#allocation2 + $0x20] sm:$0x1]
      %v2112 = vld [vmem:[#allocation2 + $0x24] sm:$0xf]
      %v2113 = vld [vmem:[#allocation2 + $0x28] sm:$0xf]
      %v2114 = vld [vmem:[#allocation2 + $0x2c] sm:$0x1]
      %v2115 = vld [vmem:[#allocation2 + $0x30] sm:$0xf]
      %v2116 = vld [vmem:[#allocation2 + $0x34] sm:$0xf]
      %v2117 = vld [vmem:[#allocation2 + $0x38] sm:$0x1]
      %v2118 = vld [vmem:[#allocation2 + $0x3c] sm:$0xf]
      %v2119 = vld [vmem:[#allocation2 + $0x40] sm:$0xf]
      %v2120 = vld [vmem:[#allocation2 + $0x44] sm:$0x1]
      %v2121 = vld [vmem:[#allocation2 + $0x48] sm:$0xf]
      %v2122 = vld [vmem:[#allocation2 + $0x4c] sm:$0xf]
      %v2123 = vld [vmem:[#allocation2 + $0x50] sm:$0x1]
      %v2124 = vld [vmem:[#allocation2 + $0x54] sm:$0xf]
      %v2125 = vld [vmem:[#allocation2 + $0x58] sm:$0xf]
      %v2126 = vld [vmem:[#allocation2 + $0x5c] sm:$0x1]
      %v2127 = vld [vmem:[#allocation2 + $0x60] sm:$0xf]
      %v2128 = vld [vmem:[#allocation2 + $0x64] sm:$0xf]
      %v2129 = vld [vmem:[#allocation2 + $0x68] sm:$0x1]
      %v2130 = vld [vmem:[#allocation2 + $0x6c] sm:$0xf]
      %v2131 = vld [vmem:[#allocation2 + $0x70] sm:$0xf]
      %v2132 = vld [vmem:[#allocation2 + $0x74] sm:$0x1]
      %v2133 = vld [vmem:[#allocation2 + $0x78] sm:$0xf]
      %v2134 = vld [vmem:[#allocation2 + $0x7c] sm:$0xf]
      %v2135 = vld [vmem:[#allocation2 + $0x80] sm:$0x1]
      %v2136 = vld [vmem:[#allocation2 + $0x84] sm:$0xf]
      %v2137 = vld [vmem:[#allocation2 + $0x88] sm:$0xf]
      %v2138 = vld [vmem:[#allocation2 + $0x8c] sm:$0x1]
      %v2139 = vld [vmem:[#allocation2 + $0x90] sm:$0xf]
      %v2140 = vld [vmem:[#allocation2 + $0x94] sm:$0xf]
      %v2141 = vld [vmem:[#allocation2 + $0x98] sm:$0x1]
      %v2142 = vld [vmem:[#allocation2 + $0x9c] sm:$0xf]
      %v2143 = vld [vmem:[#allocation2 + $0xa0] sm:$0xf]
      %v2144 = vld [vmem:[#allocation2 + $0xa4] sm:$0x1]
      %v2145 = vld [vmem:[#allocation2 + $0xa8] sm:$0xf]
      %v2146 = vld [vmem:[#allocation2 + $0xac] sm:$0xf]
      %v2147 = vld [vmem:[#allocation2 + $0xb0] sm:$0x1]
      %v2148 = vld [vmem:[#allocation2 + $0xb4] sm:$0xf]
      %v2149 = vld [vmem:[#allocation2 + $0xb8] sm:$0xf]
      %v2150 = vld [vmem:[#allocation2 + $0xbc] sm:$0x1]
      %v2151 = vld [vmem:[#allocation2 + $0xd8] sm:$0xf]
      %v2152 = vld [vmem:[#allocation2 + $0xdc] sm:$0xf]
      %v2153 = vld [vmem:[#allocation2 + $0xe0] sm:$0x1]
      %v2154 = vld [vmem:[#allocation2 + $0xe4] sm:$0xf]
      %v2155 = vld [vmem:[#allocation2 + $0xe8] sm:$0xf]
      %v2156 = vld [vmem:[#allocation2 + $0xec] sm:$0x1]
      %v2157 = vld [vmem:[#allocation2 + $0xf0] sm:$0xf]
      %v2158 = vld [vmem:[#allocation2 + $0xf4] sm:$0xf]
      %v2159 = vld [vmem:[#allocation2 + $0xf8] sm:$0x1]
      %v2160 = vld [vmem:[#allocation2 + $0xfc] sm:$0xf]
      %v2161 = vld [vmem:[#allocation2 + $0x100] sm:$0xf]
      %v2162 = vld [vmem:[#allocation2 + $0x104] sm:$0x1]
      %v2163 = vld [vmem:[#allocation2 + $0x108] sm:$0xf]
      %v2164 = vld [vmem:[#allocation2 + $0x10c] sm:$0xf]
      %v2165 = vld [vmem:[#allocation2 + $0x110] sm:$0x1]
      %v2166 = vld [vmem:[#allocation2 + $0x114] sm:$0xf]
      %v2167 = vld [vmem:[#allocation2 + $0x118] sm:$0xf]
      %v2168 = vld [vmem:[#allocation2 + $0x11c] sm:$0x1]
      %v2169 = vld [vmem:[#allocation2 + $0x120] sm:$0xf]
      %v2170 = vld [vmem:[#allocation2 + $0x124] sm:$0xf]
      %v2171 = vld [vmem:[#allocation2 + $0x128] sm:$0x1]
      %v2172 = vld [vmem:[#allocation2 + $0x12c] sm:$0xf]
      %v2173 = vld [vmem:[#allocation2 + $0x130] sm:$0xf]
      %v2174 = vld [vmem:[#allocation2 + $0x134] sm:$0x1]
      %v2175 = vld [vmem:[#allocation2 + $0x138] sm:$0xf]
      %v2176 = vld [vmem:[#allocation2 + $0x13c] sm:$0xf]
      %v2177 = vld [vmem:[#allocation2 + $0x140] sm:$0x1]
      %v2178 = vld [vmem:[#allocation2 + $0x144] sm:$0xf]
      %v2179 = vld [vmem:[#allocation2 + $0x148] sm:$0xf]
      %v2180 = vld [vmem:[#allocation2 + $0x14c] sm:$0x1]
      %v2181 = vld [vmem:[#allocation2 + $0x150] sm:$0xf]
      %v2182 = vld [vmem:[#allocation2 + $0x154] sm:$0xf]
      %v2183 = vld [vmem:[#allocation2 + $0x158] sm:$0x1]
      %v2184 = vld [vmem:[#allocation2 + $0x15c] sm:$0xf]
      %v2185 = vld [vmem:[#allocation2 + $0x160] sm:$0xf]
      %v2186 = vld [vmem:[#allocation2 + $0x164] sm:$0x1]
      %v2187 = vld [vmem:[#allocation2 + $0x168] sm:$0xf]
      %v2188 = vld [vmem:[#allocation2 + $0x16c] sm:$0xf]
      %v2189 = vld [vmem:[#allocation2 + $0x170] sm:$0x1]
      %v2190 = vld [vmem:[#allocation2 + $0x174] sm:$0xf]
      %v2191 = vld [vmem:[#allocation2 + $0x178] sm:$0xf]
      %v2192 = vld [vmem:[#allocation2 + $0x17c] sm:$0x1]
      %v2193 = vld [vmem:[#allocation2 + $0x180] sm:$0xf]
      %v2194 = vld [vmem:[#allocation2 + $0x184] sm:$0xf]
      %v2195 = vld [vmem:[#allocation2 + $0x188] sm:$0x1]
      %v2196 = vld [vmem:[#allocation2 + $0x18c] sm:$0xf]
      %v2197 = vld [vmem:[#allocation2 + $0x190] sm:$0xf]
      %v2198 = vld [vmem:[#allocation2 + $0x194] sm:$0x1]
      %v2295 = vunpack.c.l.b16 %v2103
      %v2296 = vunpack.c.l.b16 %v2104
      %v2297 = vunpack.c.l.b16 %v2105
      %v2298 = vunpack.c.l.b16 %v2106
      %v2299 = vunpack.c.l.b16 %v2107
      %v2300 = vunpack.c.l.b16 %v2108
      %v2301 = vunpack.c.l.b16 %v2109
      %v2302 = vunpack.c.l.b16 %v2110
      %v2303 = vunpack.c.l.b16 %v2111
      %v2304 = vunpack.c.l.b16 %v2112
      %v2305 = vunpack.c.l.b16 %v2113
      %v2306 = vunpack.c.l.b16 %v2114
      %v2307 = vunpack.c.l.b16 %v2115
      %v2308 = vunpack.c.l.b16 %v2116
      %v2309 = vunpack.c.l.b16 %v2117
      %v2310 = vunpack.c.l.b16 %v2118
      %v2311 = vunpack.c.l.b16 %v2119
      %v2312 = vunpack.c.l.b16 %v2120
      %v2313 = vunpack.c.l.b16 %v2121
      %v2314 = vunpack.c.l.b16 %v2122
      %v2315 = vunpack.c.l.b16 %v2123
      %v2316 = vunpack.c.l.b16 %v2124
      %v2317 = vunpack.c.l.b16 %v2125
      %v2318 = vunpack.c.l.b16 %v2126
      %v2319 = vunpack.c.l.b16 %v2127
      %v2320 = vunpack.c.l.b16 %v2128
      %v2321 = vunpack.c.l.b16 %v2129
      %v2322 = vunpack.c.l.b16 %v2130
      %v2323 = vunpack.c.l.b16 %v2131
      %v2324 = vunpack.c.l.b16 %v2132
      %v2325 = vunpack.c.l.b16 %v2133
      %v2326 = vunpack.c.l.b16 %v2134
      %v2327 = vunpack.c.l.b16 %v2135
      %v2328 = vunpack.c.l.b16 %v2136
      %v2329 = vunpack.c.l.b16 %v2137
      %v2330 = vunpack.c.l.b16 %v2138
      %v2331 = vunpack.c.l.b16 %v2139
      %v2332 = vunpack.c.l.b16 %v2140
      %v2333 = vunpack.c.l.b16 %v2141
      %v2334 = vunpack.c.l.b16 %v2142
      %v2335 = vunpack.c.l.b16 %v2143
      %v2336 = vunpack.c.l.b16 %v2144
      %v2337 = vunpack.c.l.b16 %v2145
      %v2338 = vunpack.c.l.b16 %v2146
      %v2339 = vunpack.c.l.b16 %v2147
      %v2340 = vunpack.c.l.b16 %v2148
      %v2341 = vunpack.c.l.b16 %v2149
      %v2342 = vunpack.c.l.b16 %v2150
      %v2343 = vunpack.c.l.b16 %v2151
      %v2344 = vunpack.c.l.b16 %v2152
      %v2345 = vunpack.c.l.b16 %v2153
      %v2346 = vunpack.c.l.b16 %v2154
      %v2347 = vunpack.c.l.b16 %v2155
      %v2348 = vunpack.c.l.b16 %v2156
      %v2349 = vunpack.c.l.b16 %v2157
      %v2350 = vunpack.c.l.b16 %v2158
      %v2351 = vunpack.c.l.b16 %v2159
      %v2352 = vunpack.c.l.b16 %v2160
      %v2353 = vunpack.c.l.b16 %v2161
      %v2354 = vunpack.c.l.b16 %v2162
      %v2355 = vunpack.c.l.b16 %v2163
      %v2356 = vunpack.c.l.b16 %v2164
      %v2357 = vunpack.c.l.b16 %v2165
      %v2358 = vunpack.c.l.b16 %v2166
      %v2359 = vunpack.c.l.b16 %v2167
      %v2360 = vunpack.c.l.b16 %v2168
      %v2361 = vunpack.c.l.b16 %v2169
      %v2362 = vunpack.c.l.b16 %v2170
      %v2363 = vunpack.c.l.b16 %v2171
      %v2364 = vunpack.c.l.b16 %v2172
      %v2365 = vunpack.c.l.b16 %v2173
      %v2366 = vunpack.c.l.b16 %v2174
      %v2367 = vunpack.c.l.b16 %v2175
      %v2368 = vunpack.c.l.b16 %v2176
      %v2369 = vunpack.c.l.b16 %v2177
      %v2370 = vunpack.c.l.b16 %v2178
      %v2371 = vunpack.c.l.b16 %v2179
      %v2372 = vunpack.c.l.b16 %v2180
      %v2373 = vunpack.c.l.b16 %v2181
      %v2374 = vunpack.c.l.b16 %v2182
      %v2375 = vunpack.c.l.b16 %v2183
      %v2376 = vunpack.c.l.b16 %v2184
      %v2377 = vunpack.c.l.b16 %v2185
      %v2378 = vunpack.c.l.b16 %v2186
      %v2379 = vunpack.c.l.b16 %v2187
      %v2380 = vunpack.c.l.b16 %v2188
      %v2381 = vunpack.c.l.b16 %v2189
      %v2382 = vunpack.c.l.b16 %v2190
      %v2383 = vunpack.c.l.b16 %v2191
      %v2384 = vunpack.c.l.b16 %v2192
      %v2385 = vunpack.c.l.b16 %v2193
      %v2386 = vunpack.c.l.b16 %v2194
      %v2387 = vunpack.c.l.b16 %v2195
      %v2388 = vunpack.c.l.b16 %v2196
      %v2389 = vunpack.c.l.b16 %v2197
      %v2390 = vunpack.c.l.b16 %v2198
      %v2391 = vpack.c.b16 %v2296, %v2295
      %v2392 = vpack.c.b16 %v2297, %v2297
      %v2393 = vpack.c.b16 %v2299, %v2298
      %v2394 = vpack.c.b16 %v2300, %v2300
      %v2395 = vpack.c.b16 %v2302, %v2301
      %v2396 = vpack.c.b16 %v2303, %v2303
      %v2397 = vpack.c.b16 %v2305, %v2304
      %v2398 = vpack.c.b16 %v2306, %v2306
      %v2399 = vpack.c.b16 %v2308, %v2307
      %v2400 = vpack.c.b16 %v2309, %v2309
      %v2401 = vpack.c.b16 %v2311, %v2310
      %v2402 = vpack.c.b16 %v2312, %v2312
      %v2403 = vpack.c.b16 %v2314, %v2313
      %v2404 = vpack.c.b16 %v2315, %v2315
      %v2405 = vpack.c.b16 %v2317, %v2316
      %v2406 = vpack.c.b16 %v2318, %v2318
      %v2407 = vpack.c.b16 %v2320, %v2319
      %v2408 = vpack.c.b16 %v2321, %v2321
      %v2409 = vpack.c.b16 %v2323, %v2322
      %v2410 = vpack.c.b16 %v2324, %v2324
      %v2411 = vpack.c.b16 %v2326, %v2325
      %v2412 = vpack.c.b16 %v2327, %v2327
      %v2413 = vpack.c.b16 %v2329, %v2328
      %v2414 = vpack.c.b16 %v2330, %v2330
      %v2415 = vpack.c.b16 %v2332, %v2331
      %v2416 = vpack.c.b16 %v2333, %v2333
      %v2417 = vpack.c.b16 %v2335, %v2334
      %v2418 = vpack.c.b16 %v2336, %v2336
      %v2419 = vpack.c.b16 %v2338, %v2337
      %v2420 = vpack.c.b16 %v2339, %v2339
      %v2421 = vpack.c.b16 %v2341, %v2340
      %v2422 = vpack.c.b16 %v2342, %v2342
      %v2423 = vpack.c.b16 %v2344, %v2343
      %v2424 = vpack.c.b16 %v2345, %v2345
      %v2425 = vpack.c.b16 %v2347, %v2346
      %v2426 = vpack.c.b16 %v2348, %v2348
      %v2427 = vpack.c.b16 %v2350, %v2349
      %v2428 = vpack.c.b16 %v2351, %v2351
      %v2429 = vpack.c.b16 %v2353, %v2352
      %v2430 = vpack.c.b16 %v2354, %v2354
      %v2431 = vpack.c.b16 %v2356, %v2355
      %v2432 = vpack.c.b16 %v2357, %v2357
      %v2433 = vpack.c.b16 %v2359, %v2358
      %v2434 = vpack.c.b16 %v2360, %v2360
      %v2435 = vpack.c.b16 %v2362, %v2361
      %v2436 = vpack.c.b16 %v2363, %v2363
      %v2437 = vpack.c.b16 %v2365, %v2364
      %v2438 = vpack.c.b16 %v2366, %v2366
      %v2439 = vpack.c.b16 %v2368, %v2367
      %v2440 = vpack.c.b16 %v2369, %v2369
      %v2441 = vpack.c.b16 %v2371, %v2370
      %v2442 = vpack.c.b16 %v2372, %v2372
      %v2443 = vpack.c.b16 %v2374, %v2373
      %v2444 = vpack.c.b16 %v2375, %v2375
      %v2445 = vpack.c.b16 %v2377, %v2376
      %v2446 = vpack.c.b16 %v2378, %v2378
      %v2447 = vpack.c.b16 %v2380, %v2379
      %v2448 = vpack.c.b16 %v2381, %v2381
      %v2449 = vpack.c.b16 %v2383, %v2382
      %v2450 = vpack.c.b16 %v2384, %v2384
      %v2451 = vpack.c.b16 %v2386, %v2385
      %v2452 = vpack.c.b16 %v2387, %v2387
      %v2453 = vpack.c.b16 %v2389, %v2388
      %v2454 = vpack.c.b16 %v2390, %v2390
      %vm2455 = vsmask.f32 7424
      %v2457 = vshrl.u32 %v2391, 16
      %v2459 = vshll.u32 %v2391, 16
      %v2461 = vrot.slane %v2459, 1
      %v2462 = vor.u32 %v2457, %v2461
      %v2464 = vshll.u32 %v2392, 16
      %v2466 = vrot.slane %v2464, 1
      %v2467 = vsel %vm2455, %v2462, %v2466
      %v2469 = vshrl.u32 %v2393, 16
      %v2471 = vshll.u32 %v2393, 16
      %v2473 = vrot.slane %v2471, 1
      %v2474 = vor.u32 %v2469, %v2473
      %v2476 = vshll.u32 %v2394, 16
      %v2478 = vrot.slane %v2476, 1
      %v2479 = vsel %vm2455, %v2474, %v2478
      %v2481 = vshrl.u32 %v2395, 16
      %v2483 = vshll.u32 %v2395, 16
      %v2485 = vrot.slane %v2483, 1
      %v2486 = vor.u32 %v2481, %v2485
      %v2488 = vshll.u32 %v2396, 16
      %v2490 = vrot.slane %v2488, 1
      %v2491 = vsel %vm2455, %v2486, %v2490
      %v2493 = vshrl.u32 %v2397, 16
      %v2495 = vshll.u32 %v2397, 16
      %v2497 = vrot.slane %v2495, 1
      %v2498 = vor.u32 %v2493, %v2497
      %v2500 = vshll.u32 %v2398, 16
      %v2502 = vrot.slane %v2500, 1
      %v2503 = vsel %vm2455, %v2498, %v2502
      %v2505 = vshrl.u32 %v2399, 16
      %v2507 = vshll.u32 %v2399, 16
      %v2509 = vrot.slane %v2507, 1
      %v2510 = vor.u32 %v2505, %v2509
      %v2512 = vshll.u32 %v2400, 16
      %v2514 = vrot.slane %v2512, 1
      %v2515 = vsel %vm2455, %v2510, %v2514
      %v2517 = vshrl.u32 %v2401, 16
      %v2519 = vshll.u32 %v2401, 16
      %v2521 = vrot.slane %v2519, 1
      %v2522 = vor.u32 %v2517, %v2521
      %v2524 = vshll.u32 %v2402, 16
      %v2526 = vrot.slane %v2524, 1
      %v2527 = vsel %vm2455, %v2522, %v2526
      %v2529 = vshrl.u32 %v2403, 16
      %v2531 = vshll.u32 %v2403, 16
      %v2533 = vrot.slane %v2531, 1
      %v2534 = vor.u32 %v2529, %v2533
      %v2536 = vshll.u32 %v2404, 16
      %v2538 = vrot.slane %v2536, 1
      %v2539 = vsel %vm2455, %v2534, %v2538
      %v2541 = vshrl.u32 %v2405, 16
      %v2543 = vshll.u32 %v2405, 16
      %v2545 = vrot.slane %v2543, 1
      %v2546 = vor.u32 %v2541, %v2545
      %v2548 = vshll.u32 %v2406, 16
      %v2550 = vrot.slane %v2548, 1
      %v2551 = vsel %vm2455, %v2546, %v2550
      %v2553 = vshrl.u32 %v2407, 16
      %v2555 = vshll.u32 %v2407, 16
      %v2557 = vrot.slane %v2555, 1
      %v2558 = vor.u32 %v2553, %v2557
      %v2560 = vshll.u32 %v2408, 16
      %v2562 = vrot.slane %v2560, 1
      %v2563 = vsel %vm2455, %v2558, %v2562
      %v2565 = vshrl.u32 %v2409, 16
      %v2567 = vshll.u32 %v2409, 16
      %v2569 = vrot.slane %v2567, 1
      %v2570 = vor.u32 %v2565, %v2569
      %v2572 = vshll.u32 %v2410, 16
      %v2574 = vrot.slane %v2572, 1
      %v2575 = vsel %vm2455, %v2570, %v2574
      %v2577 = vshrl.u32 %v2411, 16
      %v2579 = vshll.u32 %v2411, 16
      %v2581 = vrot.slane %v2579, 1
      %v2582 = vor.u32 %v2577, %v2581
      %v2584 = vshll.u32 %v2412, 16
      %v2586 = vrot.slane %v2584, 1
      %v2587 = vsel %vm2455, %v2582, %v2586
      %v2589 = vshrl.u32 %v2413, 16
      %v2591 = vshll.u32 %v2413, 16
      %v2593 = vrot.slane %v2591, 1
      %v2594 = vor.u32 %v2589, %v2593
      %v2596 = vshll.u32 %v2414, 16
      %v2598 = vrot.slane %v2596, 1
      %v2599 = vsel %vm2455, %v2594, %v2598
      %v2601 = vshrl.u32 %v2415, 16
      %v2603 = vshll.u32 %v2415, 16
      %v2605 = vrot.slane %v2603, 1
      %v2606 = vor.u32 %v2601, %v2605
      %v2608 = vshll.u32 %v2416, 16
      %v2610 = vrot.slane %v2608, 1
      %v2611 = vsel %vm2455, %v2606, %v2610
      %v2613 = vshrl.u32 %v2417, 16
      %v2615 = vshll.u32 %v2417, 16
      %v2617 = vrot.slane %v2615, 1
      %v2618 = vor.u32 %v2613, %v2617
      %v2620 = vshll.u32 %v2418, 16
      %v2622 = vrot.slane %v2620, 1
      %v2623 = vsel %vm2455, %v2618, %v2622
      %v2625 = vshrl.u32 %v2419, 16
      %v2627 = vshll.u32 %v2419, 16
      %v2629 = vrot.slane %v2627, 1
      %v2630 = vor.u32 %v2625, %v2629
      %v2632 = vshll.u32 %v2420, 16
      %v2634 = vrot.slane %v2632, 1
      %v2635 = vsel %vm2455, %v2630, %v2634
      %v2637 = vshrl.u32 %v2421, 16
      %v2639 = vshll.u32 %v2421, 16
      %v2641 = vrot.slane %v2639, 1
      %v2642 = vor.u32 %v2637, %v2641
      %v2644 = vshll.u32 %v2422, 16
      %v2646 = vrot.slane %v2644, 1
      %v2647 = vsel %vm2455, %v2642, %v2646
      %v2649 = vshrl.u32 %v2423, 16
      %v2651 = vshll.u32 %v2423, 16
      %v2653 = vrot.slane %v2651, 1
      %v2654 = vor.u32 %v2649, %v2653
      %v2656 = vshll.u32 %v2424, 16
      %v2658 = vrot.slane %v2656, 1
      %v2659 = vsel %vm2455, %v2654, %v2658
      %v2661 = vshrl.u32 %v2425, 16
      %v2663 = vshll.u32 %v2425, 16
      %v2665 = vrot.slane %v2663, 1
      %v2666 = vor.u32 %v2661, %v2665
      %v2668 = vshll.u32 %v2426, 16
      %v2670 = vrot.slane %v2668, 1
      %v2671 = vsel %vm2455, %v2666, %v2670
      %v2673 = vshrl.u32 %v2427, 16
      %v2675 = vshll.u32 %v2427, 16
      %v2677 = vrot.slane %v2675, 1
      %v2678 = vor.u32 %v2673, %v2677
      %v2680 = vshll.u32 %v2428, 16
      %v2682 = vrot.slane %v2680, 1
      %v2683 = vsel %vm2455, %v2678, %v2682
      %v2685 = vshrl.u32 %v2429, 16
      %v2687 = vshll.u32 %v2429, 16
      %v2689 = vrot.slane %v2687, 1
      %v2690 = vor.u32 %v2685, %v2689
      %v2692 = vshll.u32 %v2430, 16
      %v2694 = vrot.slane %v2692, 1
      %v2695 = vsel %vm2455, %v2690, %v2694
      %v2697 = vshrl.u32 %v2431, 16
      %v2699 = vshll.u32 %v2431, 16
      %v2701 = vrot.slane %v2699, 1
      %v2702 = vor.u32 %v2697, %v2701
      %v2704 = vshll.u32 %v2432, 16
      %v2706 = vrot.slane %v2704, 1
      %v2707 = vsel %vm2455, %v2702, %v2706
      %v2709 = vshrl.u32 %v2433, 16
      %v2711 = vshll.u32 %v2433, 16
      %v2713 = vrot.slane %v2711, 1
      %v2714 = vor.u32 %v2709, %v2713
      %v2716 = vshll.u32 %v2434, 16
      %v2718 = vrot.slane %v2716, 1
      %v2719 = vsel %vm2455, %v2714, %v2718
      %v2721 = vshrl.u32 %v2435, 16
      %v2723 = vshll.u32 %v2435, 16
      %v2725 = vrot.slane %v2723, 1
      %v2726 = vor.u32 %v2721, %v2725
      %v2728 = vshll.u32 %v2436, 16
      %v2730 = vrot.slane %v2728, 1
      %v2731 = vsel %vm2455, %v2726, %v2730
      %v2733 = vshrl.u32 %v2437, 16
      %v2735 = vshll.u32 %v2437, 16
      %v2737 = vrot.slane %v2735, 1
      %v2738 = vor.u32 %v2733, %v2737
      %v2740 = vshll.u32 %v2438, 16
      %v2742 = vrot.slane %v2740, 1
      %v2743 = vsel %vm2455, %v2738, %v2742
      %v2745 = vshrl.u32 %v2439, 16
      %v2747 = vshll.u32 %v2439, 16
      %v2749 = vrot.slane %v2747, 1
      %v2750 = vor.u32 %v2745, %v2749
      %v2752 = vshll.u32 %v2440, 16
      %v2754 = vrot.slane %v2752, 1
      %v2755 = vsel %vm2455, %v2750, %v2754
      %v2757 = vshrl.u32 %v2441, 16
      %v2759 = vshll.u32 %v2441, 16
      %v2761 = vrot.slane %v2759, 1
      %v2762 = vor.u32 %v2757, %v2761
      %v2764 = vshll.u32 %v2442, 16
      %v2766 = vrot.slane %v2764, 1
      %v2767 = vsel %vm2455, %v2762, %v2766
      %v2769 = vshrl.u32 %v2443, 16
      %v2771 = vshll.u32 %v2443, 16
      %v2773 = vrot.slane %v2771, 1
      %v2774 = vor.u32 %v2769, %v2773
      %v2776 = vshll.u32 %v2444, 16
      %v2778 = vrot.slane %v2776, 1
      %v2779 = vsel %vm2455, %v2774, %v2778
      %v2781 = vshrl.u32 %v2445, 16
      %v2783 = vshll.u32 %v2445, 16
      %v2785 = vrot.slane %v2783, 1
      %v2786 = vor.u32 %v2781, %v2785
      %v2788 = vshll.u32 %v2446, 16
      %v2790 = vrot.slane %v2788, 1
      %v2791 = vsel %vm2455, %v2786, %v2790
      %v2793 = vshrl.u32 %v2447, 16
      %v2795 = vshll.u32 %v2447, 16
      %v2797 = vrot.slane %v2795, 1
      %v2798 = vor.u32 %v2793, %v2797
      %v2800 = vshll.u32 %v2448, 16
      %v2802 = vrot.slane %v2800, 1
      %v2803 = vsel %vm2455, %v2798, %v2802
      %v2805 = vshrl.u32 %v2449, 16
      %v2807 = vshll.u32 %v2449, 16
      %v2809 = vrot.slane %v2807, 1
      %v2810 = vor.u32 %v2805, %v2809
      %v2812 = vshll.u32 %v2450, 16
      %v2814 = vrot.slane %v2812, 1
      %v2815 = vsel %vm2455, %v2810, %v2814
      %v2817 = vshrl.u32 %v2451, 16
      %v2819 = vshll.u32 %v2451, 16
      %v2821 = vrot.slane %v2819, 1
      %v2822 = vor.u32 %v2817, %v2821
      %v2824 = vshll.u32 %v2452, 16
      %v2826 = vrot.slane %v2824, 1
      %v2827 = vsel %vm2455, %v2822, %v2826
      %v2829 = vshrl.u32 %v2453, 16
      %v2831 = vshll.u32 %v2453, 16
      %v2833 = vrot.slane %v2831, 1
      %v2834 = vor.u32 %v2829, %v2833
      %v2836 = vshll.u32 %v2454, 16
      %v2838 = vrot.slane %v2836, 1
      %v2839 = vsel %vm2455, %v2834, %v2838
      %2840 = vrot.lane.b32.xlu0 %v2467, 8
      %v2841 = vpop.permute.xlu0 %2840
      %2842 = vrot.lane.b32.xlu0 %v2479, 8
      %v2843 = vpop.permute.xlu0 %2842
      %2844 = vrot.lane.b32.xlu0 %v2491, 8
      %v2845 = vpop.permute.xlu0 %2844
      %2846 = vrot.lane.b32.xlu0 %v2503, 8
      %v2847 = vpop.permute.xlu0 %2846
      %2848 = vrot.lane.b32.xlu0 %v2515, 8
      %v2849 = vpop.permute.xlu0 %2848
      %2850 = vrot.lane.b32.xlu0 %v2527, 8
      %v2851 = vpop.permute.xlu0 %2850
      %2852 = vrot.lane.b32.xlu0 %v2539, 8
      %v2853 = vpop.permute.xlu0 %2852
      %2854 = vrot.lane.b32.xlu0 %v2551, 8
      %v2855 = vpop.permute.xlu0 %2854
      %2856 = vrot.lane.b32.xlu0 %v2563, 8
      %v2857 = vpop.permute.xlu0 %2856
      %2858 = vrot.lane.b32.xlu0 %v2575, 8
      %v2859 = vpop.permute.xlu0 %2858
      %2860 = vrot.lane.b32.xlu0 %v2587, 8
      %v2861 = vpop.permute.xlu0 %2860
      %2862 = vrot.lane.b32.xlu0 %v2599, 8
      %v2863 = vpop.permute.xlu0 %2862
      %2864 = vrot.lane.b32.xlu0 %v2611, 8
      %v2865 = vpop.permute.xlu0 %2864
      %2866 = vrot.lane.b32.xlu0 %v2623, 8
      %v2867 = vpop.permute.xlu0 %2866
      %2868 = vrot.lane.b32.xlu0 %v2635, 8
      %v2869 = vpop.permute.xlu0 %2868
      %2870 = vrot.lane.b32.xlu0 %v2647, 8
      %v2871 = vpop.permute.xlu0 %2870
      %2872 = vrot.lane.b32.xlu0 %v2659, 8
      %v2873 = vpop.permute.xlu0 %2872
      %2874 = vrot.lane.b32.xlu0 %v2671, 8
      %v2875 = vpop.permute.xlu0 %2874
      %2876 = vrot.lane.b32.xlu0 %v2683, 8
      %v2877 = vpop.permute.xlu0 %2876
      %2878 = vrot.lane.b32.xlu0 %v2695, 8
      %v2879 = vpop.permute.xlu0 %2878
      %2880 = vrot.lane.b32.xlu0 %v2707, 8
      %v2881 = vpop.permute.xlu0 %2880
      %2882 = vrot.lane.b32.xlu0 %v2719, 8
      %v2883 = vpop.permute.xlu0 %2882
      %2884 = vrot.lane.b32.xlu0 %v2731, 8
      %v2885 = vpop.permute.xlu0 %2884
      %2886 = vrot.lane.b32.xlu0 %v2743, 8
      %v2887 = vpop.permute.xlu0 %2886
      %2888 = vrot.lane.b32.xlu0 %v2755, 8
      %v2889 = vpop.permute.xlu0 %2888
      %2890 = vrot.lane.b32.xlu0 %v2767, 8
      %v2891 = vpop.permute.xlu0 %2890
      %2892 = vrot.lane.b32.xlu0 %v2779, 8
      %v2893 = vpop.permute.xlu0 %2892
      %2894 = vrot.lane.b32.xlu0 %v2791, 8
      %v2895 = vpop.permute.xlu0 %2894
      %2896 = vrot.lane.b32.xlu0 %v2803, 8
      %v2897 = vpop.permute.xlu0 %2896
      %2898 = vrot.lane.b32.xlu0 %v2815, 8
      %v2899 = vpop.permute.xlu0 %2898
      %2900 = vrot.lane.b32.xlu0 %v2827, 8
      %v2901 = vpop.permute.xlu0 %2900
      %2902 = vrot.lane.b32.xlu0 %v2839, 8
      %v2903 = vpop.permute.xlu0 %2902
      %vm2936 = vcmask 130112
      %2937 = vst.msk [vmem:[#allocation3] sm:$0xff] %vm2936, %v2841
      %2938 = vst.msk [vmem:[#allocation3 + $0x8] sm:$0xff] %vm2936, %v2843
      %2939 = vst.msk [vmem:[#allocation3 + $0x10] sm:$0xff] %vm2936, %v2845
      %2940 = vst.msk [vmem:[#allocation3 + $0x18] sm:$0xff] %vm2936, %v2847
      %2941 = vst.msk [vmem:[#allocation3 + $0x20] sm:$0xff] %vm2936, %v2849
      %2942 = vst.msk [vmem:[#allocation3 + $0x28] sm:$0xff] %vm2936, %v2851
      %2943 = vst.msk [vmem:[#allocation3 + $0x30] sm:$0xff] %vm2936, %v2853
      %2944 = vst.msk [vmem:[#allocation3 + $0x38] sm:$0xff] %vm2936, %v2855
      %2945 = vst.msk [vmem:[#allocation3 + $0x40] sm:$0xff] %vm2936, %v2857
      %2946 = vst.msk [vmem:[#allocation3 + $0x48] sm:$0xff] %vm2936, %v2859
      %2947 = vst.msk [vmem:[#allocation3 + $0x50] sm:$0xff] %vm2936, %v2861
      %2948 = vst.msk [vmem:[#allocation3 + $0x58] sm:$0xff] %vm2936, %v2863
      %2949 = vst.msk [vmem:[#allocation3 + $0x60] sm:$0xff] %vm2936, %v2865
      %2950 = vst.msk [vmem:[#allocation3 + $0x68] sm:$0xff] %vm2936, %v2867
      %2951 = vst.msk [vmem:[#allocation3 + $0x70] sm:$0xff] %vm2936, %v2869
      %2952 = vst.msk [vmem:[#allocation3 + $0x78] sm:$0xff] %vm2936, %v2871
      %2953 = vst.msk [vmem:[#allocation3 + $0x80] sm:$0xff] %vm2936, %v2873
      %2954 = vst.msk [vmem:[#allocation3 + $0x88] sm:$0xff] %vm2936, %v2875
      %2955 = vst.msk [vmem:[#allocation3 + $0x90] sm:$0xff] %vm2936, %v2877
      %2956 = vst.msk [vmem:[#allocation3 + $0x98] sm:$0xff] %vm2936, %v2879
      %2957 = vst.msk [vmem:[#allocation3 + $0xa0] sm:$0xff] %vm2936, %v2881
      %2958 = vst.msk [vmem:[#allocation3 + $0xa8] sm:$0xff] %vm2936, %v2883
      %2959 = vst.msk [vmem:[#allocation3 + $0xb0] sm:$0xff] %vm2936, %v2885
      %2960 = vst.msk [vmem:[#allocation3 + $0xb8] sm:$0xff] %vm2936, %v2887
      %2961 = vst.msk [vmem:[#allocation3 + $0xc0] sm:$0xff] %vm2936, %v2889
      %2962 = vst.msk [vmem:[#allocation3 + $0xc8] sm:$0xff] %vm2936, %v2891
      %2963 = vst.msk [vmem:[#allocation3 + $0xd0] sm:$0xff] %vm2936, %v2893
      %2964 = vst.msk [vmem:[#allocation3 + $0xd8] sm:$0xff] %vm2936, %v2895
      %2965 = vst.msk [vmem:[#allocation3 + $0xe0] sm:$0xff] %vm2936, %v2897
      %2966 = vst.msk [vmem:[#allocation3 + $0xe8] sm:$0xff] %vm2936, %v2899
      %2967 = vst.msk [vmem:[#allocation3 + $0xf0] sm:$0xff] %vm2936, %v2901
      %2968 = vst.msk [vmem:[#allocation3 + $0xf8] sm:$0xff] %vm2936, %v2903
      %v2969 = vld [vmem:[#allocation2] sm:$0xe]
      %v2970 = vld [vmem:[#allocation2 + $0x4] sm:$0xf]
      %v2971 = vld [vmem:[#allocation2 + $0x8] sm:$0x1]
      %v2972 = vld [vmem:[#allocation2 + $0xc] sm:$0xe]
      %v2973 = vld [vmem:[#allocation2 + $0x10] sm:$0xf]
      %v2974 = vld [vmem:[#allocation2 + $0x14] sm:$0x1]
      %v2975 = vld [vmem:[#allocation2 + $0x18] sm:$0xe]
      %v2976 = vld [vmem:[#allocation2 + $0x1c] sm:$0xf]
      %v2977 = vld [vmem:[#allocation2 + $0x20] sm:$0x1]
      %v2978 = vld [vmem:[#allocation2 + $0x24] sm:$0xe]
      %v2979 = vld [vmem:[#allocation2 + $0x28] sm:$0xf]
      %v2980 = vld [vmem:[#allocation2 + $0x2c] sm:$0x1]
      %v2981 = vld [vmem:[#allocation2 + $0x30] sm:$0xe]
      %v2982 = vld [vmem:[#allocation2 + $0x34] sm:$0xf]
      %v2983 = vld [vmem:[#allocation2 + $0x38] sm:$0x1]
      %v2984 = vld [vmem:[#allocation2 + $0x3c] sm:$0xe]
      %v2985 = vld [vmem:[#allocation2 + $0x40] sm:$0xf]
      %v2986 = vld [vmem:[#allocation2 + $0x44] sm:$0x1]
      %v2987 = vld [vmem:[#allocation2 + $0x48] sm:$0xe]
      %v2988 = vld [vmem:[#allocation2 + $0x4c] sm:$0xf]
      %v2989 = vld [vmem:[#allocation2 + $0x50] sm:$0x1]
      %v2990 = vld [vmem:[#allocation2 + $0x54] sm:$0xe]
      %v2991 = vld [vmem:[#allocation2 + $0x58] sm:$0xf]
      %v2992 = vld [vmem:[#allocation2 + $0x5c] sm:$0x1]
      %v2993 = vld [vmem:[#allocation2 + $0x60] sm:$0xe]
      %v2994 = vld [vmem:[#allocation2 + $0x64] sm:$0xf]
      %v2995 = vld [vmem:[#allocation2 + $0x68] sm:$0x1]
      %v2996 = vld [vmem:[#allocation2 + $0x6c] sm:$0xe]
      %v2997 = vld [vmem:[#allocation2 + $0x70] sm:$0xf]
      %v2998 = vld [vmem:[#allocation2 + $0x74] sm:$0x1]
      %v2999 = vld [vmem:[#allocation2 + $0x78] sm:$0xe]
      %v3000 = vld [vmem:[#allocation2 + $0x7c] sm:$0xf]
      %v3001 = vld [vmem:[#allocation2 + $0x80] sm:$0x1]
      %v3002 = vld [vmem:[#allocation2 + $0x84] sm:$0xe]
      %v3003 = vld [vmem:[#allocation2 + $0x88] sm:$0xf]
      %v3004 = vld [vmem:[#allocation2 + $0x8c] sm:$0x1]
      %v3005 = vld [vmem:[#allocation2 + $0x90] sm:$0xe]
      %v3006 = vld [vmem:[#allocation2 + $0x94] sm:$0xf]
      %v3007 = vld [vmem:[#allocation2 + $0x98] sm:$0x1]
      %v3008 = vld [vmem:[#allocation2 + $0x9c] sm:$0xe]
      %v3009 = vld [vmem:[#allocation2 + $0xa0] sm:$0xf]
      %v3010 = vld [vmem:[#allocation2 + $0xa4] sm:$0x1]
      %v3011 = vld [vmem:[#allocation2 + $0xa8] sm:$0xe]
      %v3012 = vld [vmem:[#allocation2 + $0xac] sm:$0xf]
      %v3013 = vld [vmem:[#allocation2 + $0xb0] sm:$0x1]
      %v3014 = vld [vmem:[#allocation2 + $0xb4] sm:$0xe]
      %v3015 = vld [vmem:[#allocation2 + $0xb8] sm:$0xf]
      %v3016 = vld [vmem:[#allocation2 + $0xbc] sm:$0x1]
      %v3017 = vld [vmem:[#allocation2 + $0xd8] sm:$0xe]
      %v3018 = vld [vmem:[#allocation2 + $0xdc] sm:$0xf]
      %v3019 = vld [vmem:[#allocation2 + $0xe0] sm:$0x1]
      %v3020 = vld [vmem:[#allocation2 + $0xe4] sm:$0xe]
      %v3021 = vld [vmem:[#allocation2 + $0xe8] sm:$0xf]
      %v3022 = vld [vmem:[#allocation2 + $0xec] sm:$0x1]
      %v3023 = vld [vmem:[#allocation2 + $0xf0] sm:$0xe]
      %v3024 = vld [vmem:[#allocation2 + $0xf4] sm:$0xf]
      %v3025 = vld [vmem:[#allocation2 + $0xf8] sm:$0x1]
      %v3026 = vld [vmem:[#allocation2 + $0xfc] sm:$0xe]
      %v3027 = vld [vmem:[#allocation2 + $0x100] sm:$0xf]
      %v3028 = vld [vmem:[#allocation2 + $0x104] sm:$0x1]
      %v3029 = vld [vmem:[#allocation2 + $0x108] sm:$0xe]
      %v3030 = vld [vmem:[#allocation2 + $0x10c] sm:$0xf]
      %v3031 = vld [vmem:[#allocation2 + $0x110] sm:$0x1]
      %v3032 = vld [vmem:[#allocation2 + $0x114] sm:$0xe]
      %v3033 = vld [vmem:[#allocation2 + $0x118] sm:$0xf]
      %v3034 = vld [vmem:[#allocation2 + $0x11c] sm:$0x1]
      %v3035 = vld [vmem:[#allocation2 + $0x120] sm:$0xe]
      %v3036 = vld [vmem:[#allocation2 + $0x124] sm:$0xf]
      %v3037 = vld [vmem:[#allocation2 + $0x128] sm:$0x1]
      %v3038 = vld [vmem:[#allocation2 + $0x12c] sm:$0xe]
      %v3039 = vld [vmem:[#allocation2 + $0x130] sm:$0xf]
      %v3040 = vld [vmem:[#allocation2 + $0x134] sm:$0x1]
      %v3041 = vld [vmem:[#allocation2 + $0x138] sm:$0xe]
      %v3042 = vld [vmem:[#allocation2 + $0x13c] sm:$0xf]
      %v3043 = vld [vmem:[#allocation2 + $0x140] sm:$0x1]
      %v3044 = vld [vmem:[#allocation2 + $0x144] sm:$0xe]
      %v3045 = vld [vmem:[#allocation2 + $0x148] sm:$0xf]
      %v3046 = vld [vmem:[#allocation2 + $0x14c] sm:$0x1]
      %v3047 = vld [vmem:[#allocation2 + $0x150] sm:$0xe]
      %v3048 = vld [vmem:[#allocation2 + $0x154] sm:$0xf]
      %v3049 = vld [vmem:[#allocation2 + $0x158] sm:$0x1]
      %v3050 = vld [vmem:[#allocation2 + $0x15c] sm:$0xe]
      %v3051 = vld [vmem:[#allocation2 + $0x160] sm:$0xf]
      %v3052 = vld [vmem:[#allocation2 + $0x164] sm:$0x1]
      %v3053 = vld [vmem:[#allocation2 + $0x168] sm:$0xe]
      %v3054 = vld [vmem:[#allocation2 + $0x16c] sm:$0xf]
      %v3055 = vld [vmem:[#allocation2 + $0x170] sm:$0x1]
      %v3056 = vld [vmem:[#allocation2 + $0x174] sm:$0xe]
      %v3057 = vld [vmem:[#allocation2 + $0x178] sm:$0xf]
      %v3058 = vld [vmem:[#allocation2 + $0x17c] sm:$0x1]
      %v3059 = vld [vmem:[#allocation2 + $0x180] sm:$0xe]
      %v3060 = vld [vmem:[#allocation2 + $0x184] sm:$0xf]
      %v3061 = vld [vmem:[#allocation2 + $0x188] sm:$0x1]
      %v3062 = vld [vmem:[#allocation2 + $0x18c] sm:$0xe]
      %v3063 = vld [vmem:[#allocation2 + $0x190] sm:$0xf]
      %v3064 = vld [vmem:[#allocation2 + $0x194] sm:$0x1]
      %v3161 = vunpack.c.l.b16 %v2969
      %v3162 = vunpack.c.l.b16 %v2970
      %v3163 = vunpack.c.l.b16 %v2971
      %v3164 = vunpack.c.l.b16 %v2972
      %v3165 = vunpack.c.l.b16 %v2973
      %v3166 = vunpack.c.l.b16 %v2974
      %v3167 = vunpack.c.l.b16 %v2975
      %v3168 = vunpack.c.l.b16 %v2976
      %v3169 = vunpack.c.l.b16 %v2977
      %v3170 = vunpack.c.l.b16 %v2978
      %v3171 = vunpack.c.l.b16 %v2979
      %v3172 = vunpack.c.l.b16 %v2980
      %v3173 = vunpack.c.l.b16 %v2981
      %v3174 = vunpack.c.l.b16 %v2982
      %v3175 = vunpack.c.l.b16 %v2983
      %v3176 = vunpack.c.l.b16 %v2984
      %v3177 = vunpack.c.l.b16 %v2985
      %v3178 = vunpack.c.l.b16 %v2986
      %v3179 = vunpack.c.l.b16 %v2987
      %v3180 = vunpack.c.l.b16 %v2988
      %v3181 = vunpack.c.l.b16 %v2989
      %v3182 = vunpack.c.l.b16 %v2990
      %v3183 = vunpack.c.l.b16 %v2991
      %v3184 = vunpack.c.l.b16 %v2992
      %v3185 = vunpack.c.l.b16 %v2993
      %v3186 = vunpack.c.l.b16 %v2994
      %v3187 = vunpack.c.l.b16 %v2995
      %v3188 = vunpack.c.l.b16 %v2996
      %v3189 = vunpack.c.l.b16 %v2997
      %v3190 = vunpack.c.l.b16 %v2998
      %v3191 = vunpack.c.l.b16 %v2999
      %v3192 = vunpack.c.l.b16 %v3000
      %v3193 = vunpack.c.l.b16 %v3001
      %v3194 = vunpack.c.l.b16 %v3002
      %v3195 = vunpack.c.l.b16 %v3003
      %v3196 = vunpack.c.l.b16 %v3004
      %v3197 = vunpack.c.l.b16 %v3005
      %v3198 = vunpack.c.l.b16 %v3006
      %v3199 = vunpack.c.l.b16 %v3007
      %v3200 = vunpack.c.l.b16 %v3008
      %v3201 = vunpack.c.l.b16 %v3009
      %v3202 = vunpack.c.l.b16 %v3010
      %v3203 = vunpack.c.l.b16 %v3011
      %v3204 = vunpack.c.l.b16 %v3012
      %v3205 = vunpack.c.l.b16 %v3013
      %v3206 = vunpack.c.l.b16 %v3014
      %v3207 = vunpack.c.l.b16 %v3015
      %v3208 = vunpack.c.l.b16 %v3016
      %v3209 = vunpack.c.l.b16 %v3017
      %v3210 = vunpack.c.l.b16 %v3018
      %v3211 = vunpack.c.l.b16 %v3019
      %v3212 = vunpack.c.l.b16 %v3020
      %v3213 = vunpack.c.l.b16 %v3021
      %v3214 = vunpack.c.l.b16 %v3022
      %v3215 = vunpack.c.l.b16 %v3023
      %v3216 = vunpack.c.l.b16 %v3024
      %v3217 = vunpack.c.l.b16 %v3025
      %v3218 = vunpack.c.l.b16 %v3026
      %v3219 = vunpack.c.l.b16 %v3027
      %v3220 = vunpack.c.l.b16 %v3028
      %v3221 = vunpack.c.l.b16 %v3029
      %v3222 = vunpack.c.l.b16 %v3030
      %v3223 = vunpack.c.l.b16 %v3031
      %v3224 = vunpack.c.l.b16 %v3032
      %v3225 = vunpack.c.l.b16 %v3033
      %v3226 = vunpack.c.l.b16 %v3034
      %v3227 = vunpack.c.l.b16 %v3035
      %v3228 = vunpack.c.l.b16 %v3036
      %v3229 = vunpack.c.l.b16 %v3037
      %v3230 = vunpack.c.l.b16 %v3038
      %v3231 = vunpack.c.l.b16 %v3039
      %v3232 = vunpack.c.l.b16 %v3040
      %v3233 = vunpack.c.l.b16 %v3041
      %v3234 = vunpack.c.l.b16 %v3042
      %v3235 = vunpack.c.l.b16 %v3043
      %v3236 = vunpack.c.l.b16 %v3044
      %v3237 = vunpack.c.l.b16 %v3045
      %v3238 = vunpack.c.l.b16 %v3046
      %v3239 = vunpack.c.l.b16 %v3047
      %v3240 = vunpack.c.l.b16 %v3048
      %v3241 = vunpack.c.l.b16 %v3049
      %v3242 = vunpack.c.l.b16 %v3050
      %v3243 = vunpack.c.l.b16 %v3051
      %v3244 = vunpack.c.l.b16 %v3052
      %v3245 = vunpack.c.l.b16 %v3053
      %v3246 = vunpack.c.l.b16 %v3054
      %v3247 = vunpack.c.l.b16 %v3055
      %v3248 = vunpack.c.l.b16 %v3056
      %v3249 = vunpack.c.l.b16 %v3057
      %v3250 = vunpack.c.l.b16 %v3058
      %v3251 = vunpack.c.l.b16 %v3059
      %v3252 = vunpack.c.l.b16 %v3060
      %v3253 = vunpack.c.l.b16 %v3061
      %v3254 = vunpack.c.l.b16 %v3062
      %v3255 = vunpack.c.l.b16 %v3063
      %v3256 = vunpack.c.l.b16 %v3064
      %v3257 = vpack.c.b16 %v3162, %v3161
      %v3258 = vpack.c.b16 %v3163, %v3163
      %v3259 = vpack.c.b16 %v3165, %v3164
      %v3260 = vpack.c.b16 %v3166, %v3166
      %v3261 = vpack.c.b16 %v3168, %v3167
      %v3262 = vpack.c.b16 %v3169, %v3169
      %v3263 = vpack.c.b16 %v3171, %v3170
      %v3264 = vpack.c.b16 %v3172, %v3172
      %v3265 = vpack.c.b16 %v3174, %v3173
      %v3266 = vpack.c.b16 %v3175, %v3175
      %v3267 = vpack.c.b16 %v3177, %v3176
      %v3268 = vpack.c.b16 %v3178, %v3178
      %v3269 = vpack.c.b16 %v3180, %v3179
      %v3270 = vpack.c.b16 %v3181, %v3181
      %v3271 = vpack.c.b16 %v3183, %v3182
      %v3272 = vpack.c.b16 %v3184, %v3184
      %v3273 = vpack.c.b16 %v3186, %v3185
      %v3274 = vpack.c.b16 %v3187, %v3187
      %v3275 = vpack.c.b16 %v3189, %v3188
      %v3276 = vpack.c.b16 %v3190, %v3190
      %v3277 = vpack.c.b16 %v3192, %v3191
      %v3278 = vpack.c.b16 %v3193, %v3193
      %v3279 = vpack.c.b16 %v3195, %v3194
      %v3280 = vpack.c.b16 %v3196, %v3196
      %v3281 = vpack.c.b16 %v3198, %v3197
      %v3282 = vpack.c.b16 %v3199, %v3199
      %v3283 = vpack.c.b16 %v3201, %v3200
      %v3284 = vpack.c.b16 %v3202, %v3202
      %v3285 = vpack.c.b16 %v3204, %v3203
      %v3286 = vpack.c.b16 %v3205, %v3205
      %v3287 = vpack.c.b16 %v3207, %v3206
      %v3288 = vpack.c.b16 %v3208, %v3208
      %v3289 = vpack.c.b16 %v3210, %v3209
      %v3290 = vpack.c.b16 %v3211, %v3211
      %v3291 = vpack.c.b16 %v3213, %v3212
      %v3292 = vpack.c.b16 %v3214, %v3214
      %v3293 = vpack.c.b16 %v3216, %v3215
      %v3294 = vpack.c.b16 %v3217, %v3217
      %v3295 = vpack.c.b16 %v3219, %v3218
      %v3296 = vpack.c.b16 %v3220, %v3220
      %v3297 = vpack.c.b16 %v3222, %v3221
      %v3298 = vpack.c.b16 %v3223, %v3223
      %v3299 = vpack.c.b16 %v3225, %v3224
      %v3300 = vpack.c.b16 %v3226, %v3226
      %v3301 = vpack.c.b16 %v3228, %v3227
      %v3302 = vpack.c.b16 %v3229, %v3229
      %v3303 = vpack.c.b16 %v3231, %v3230
      %v3304 = vpack.c.b16 %v3232, %v3232
      %v3305 = vpack.c.b16 %v3234, %v3233
      %v3306 = vpack.c.b16 %v3235, %v3235
      %v3307 = vpack.c.b16 %v3237, %v3236
      %v3308 = vpack.c.b16 %v3238, %v3238
      %v3309 = vpack.c.b16 %v3240, %v3239
      %v3310 = vpack.c.b16 %v3241, %v3241
      %v3311 = vpack.c.b16 %v3243, %v3242
      %v3312 = vpack.c.b16 %v3244, %v3244
      %v3313 = vpack.c.b16 %v3246, %v3245
      %v3314 = vpack.c.b16 %v3247, %v3247
      %v3315 = vpack.c.b16 %v3249, %v3248
      %v3316 = vpack.c.b16 %v3250, %v3250
      %v3317 = vpack.c.b16 %v3252, %v3251
      %v3318 = vpack.c.b16 %v3253, %v3253
      %v3319 = vpack.c.b16 %v3255, %v3254
      %v3320 = vpack.c.b16 %v3256, %v3256
      %vm3321 = vcmask 1046528
      %v3322 = vrot.slane %v3257, 1
      %v3323 = vrot.slane %v3258, 1
      %v3324 = vsel %vm3321, %v3322, %v3323
      %v3325 = vrot.slane %v3259, 1
      %v3326 = vrot.slane %v3260, 1
      %v3327 = vsel %vm3321, %v3325, %v3326
      %v3328 = vrot.slane %v3261, 1
      %v3329 = vrot.slane %v3262, 1
      %v3330 = vsel %vm3321, %v3328, %v3329
      %v3331 = vrot.slane %v3263, 1
      %v3332 = vrot.slane %v3264, 1
      %v3333 = vsel %vm3321, %v3331, %v3332
      %v3334 = vrot.slane %v3265, 1
      %v3335 = vrot.slane %v3266, 1
      %v3336 = vsel %vm3321, %v3334, %v3335
      %v3337 = vrot.slane %v3267, 1
      %v3338 = vrot.slane %v3268, 1
      %v3339 = vsel %vm3321, %v3337, %v3338
      %v3340 = vrot.slane %v3269, 1
      %v3341 = vrot.slane %v3270, 1
      %v3342 = vsel %vm3321, %v3340, %v3341
      %v3343 = vrot.slane %v3271, 1
      %v3344 = vrot.slane %v3272, 1
      %v3345 = vsel %vm3321, %v3343, %v3344
      %v3346 = vrot.slane %v3273, 1
      %v3347 = vrot.slane %v3274, 1
      %v3348 = vsel %vm3321, %v3346, %v3347
      %v3349 = vrot.slane %v3275, 1
      %v3350 = vrot.slane %v3276, 1
      %v3351 = vsel %vm3321, %v3349, %v3350
      %v3352 = vrot.slane %v3277, 1
      %v3353 = vrot.slane %v3278, 1
      %v3354 = vsel %vm3321, %v3352, %v3353
      %v3355 = vrot.slane %v3279, 1
      %v3356 = vrot.slane %v3280, 1
      %v3357 = vsel %vm3321, %v3355, %v3356
      %v3358 = vrot.slane %v3281, 1
      %v3359 = vrot.slane %v3282, 1
      %v3360 = vsel %vm3321, %v3358, %v3359
      %v3361 = vrot.slane %v3283, 1
      %v3362 = vrot.slane %v3284, 1
      %v3363 = vsel %vm3321, %v3361, %v3362
      %v3364 = vrot.slane %v3285, 1
      %v3365 = vrot.slane %v3286, 1
      %v3366 = vsel %vm3321, %v3364, %v3365
      %v3367 = vrot.slane %v3287, 1
      %v3368 = vrot.slane %v3288, 1
      %v3369 = vsel %vm3321, %v3367, %v3368
      %v3370 = vrot.slane %v3289, 1
      %v3371 = vrot.slane %v3290, 1
      %v3372 = vsel %vm3321, %v3370, %v3371
      %v3373 = vrot.slane %v3291, 1
      %v3374 = vrot.slane %v3292, 1
      %v3375 = vsel %vm3321, %v3373, %v3374
      %v3376 = vrot.slane %v3293, 1
      %v3377 = vrot.slane %v3294, 1
      %v3378 = vsel %vm3321, %v3376, %v3377
      %v3379 = vrot.slane %v3295, 1
      %v3380 = vrot.slane %v3296, 1
      %v3381 = vsel %vm3321, %v3379, %v3380
      %v3382 = vrot.slane %v3297, 1
      %v3383 = vrot.slane %v3298, 1
      %v3384 = vsel %vm3321, %v3382, %v3383
      %v3385 = vrot.slane %v3299, 1
      %v3386 = vrot.slane %v3300, 1
      %v3387 = vsel %vm3321, %v3385, %v3386
      %v3388 = vrot.slane %v3301, 1
      %v3389 = vrot.slane %v3302, 1
      %v3390 = vsel %vm3321, %v3388, %v3389
      %v3391 = vrot.slane %v3303, 1
      %v3392 = vrot.slane %v3304, 1
      %v3393 = vsel %vm3321, %v3391, %v3392
      %v3394 = vrot.slane %v3305, 1
      %v3395 = vrot.slane %v3306, 1
      %v3396 = vsel %vm3321, %v3394, %v3395
      %v3397 = vrot.slane %v3307, 1
      %v3398 = vrot.slane %v3308, 1
      %v3399 = vsel %vm3321, %v3397, %v3398
      %v3400 = vrot.slane %v3309, 1
      %v3401 = vrot.slane %v3310, 1
      %v3402 = vsel %vm3321, %v3400, %v3401
      %v3403 = vrot.slane %v3311, 1
      %v3404 = vrot.slane %v3312, 1
      %v3405 = vsel %vm3321, %v3403, %v3404
      %v3406 = vrot.slane %v3313, 1
      %v3407 = vrot.slane %v3314, 1
      %v3408 = vsel %vm3321, %v3406, %v3407
      %v3409 = vrot.slane %v3315, 1
      %v3410 = vrot.slane %v3316, 1
      %v3411 = vsel %vm3321, %v3409, %v3410
      %v3412 = vrot.slane %v3317, 1
      %v3413 = vrot.slane %v3318, 1
      %v3414 = vsel %vm3321, %v3412, %v3413
      %v3415 = vrot.slane %v3319, 1
      %v3416 = vrot.slane %v3320, 1
      %v3417 = vsel %vm3321, %v3415, %v3416
      %3418 = vrot.lane.b32.xlu0 %v3324, 16
      %v3419 = vpop.permute.xlu0 %3418
      %3420 = vrot.lane.b32.xlu0 %v3327, 16
      %v3421 = vpop.permute.xlu0 %3420
      %3422 = vrot.lane.b32.xlu0 %v3330, 16
      %v3423 = vpop.permute.xlu0 %3422
      %3424 = vrot.lane.b32.xlu0 %v3333, 16
      %v3425 = vpop.permute.xlu0 %3424
      %3426 = vrot.lane.b32.xlu0 %v3336, 16
      %v3427 = vpop.permute.xlu0 %3426
      %3428 = vrot.lane.b32.xlu0 %v3339, 16
      %v3429 = vpop.permute.xlu0 %3428
      %3430 = vrot.lane.b32.xlu0 %v3342, 16
      %v3431 = vpop.permute.xlu0 %3430
      %3432 = vrot.lane.b32.xlu0 %v3345, 16
      %v3433 = vpop.permute.xlu0 %3432
      %3434 = vrot.lane.b32.xlu0 %v3348, 16
      %v3435 = vpop.permute.xlu0 %3434
      %3436 = vrot.lane.b32.xlu0 %v3351, 16
      %v3437 = vpop.permute.xlu0 %3436
      %3438 = vrot.lane.b32.xlu0 %v3354, 16
      %v3439 = vpop.permute.xlu0 %3438
      %3440 = vrot.lane.b32.xlu0 %v3357, 16
      %v3441 = vpop.permute.xlu0 %3440
      %3442 = vrot.lane.b32.xlu0 %v3360, 16
      %v3443 = vpop.permute.xlu0 %3442
      %3444 = vrot.lane.b32.xlu0 %v3363, 16
      %v3445 = vpop.permute.xlu0 %3444
      %3446 = vrot.lane.b32.xlu0 %v3366, 16
      %v3447 = vpop.permute.xlu0 %3446
      %3448 = vrot.lane.b32.xlu0 %v3369, 16
      %v3449 = vpop.permute.xlu0 %3448
      %3450 = vrot.lane.b32.xlu0 %v3372, 16
      %v3451 = vpop.permute.xlu0 %3450
      %3452 = vrot.lane.b32.xlu0 %v3375, 16
      %v3453 = vpop.permute.xlu0 %3452
      %3454 = vrot.lane.b32.xlu0 %v3378, 16
      %v3455 = vpop.permute.xlu0 %3454
      %3456 = vrot.lane.b32.xlu0 %v3381, 16
      %v3457 = vpop.permute.xlu0 %3456
      %3458 = vrot.lane.b32.xlu0 %v3384, 16
      %v3459 = vpop.permute.xlu0 %3458
      %3460 = vrot.lane.b32.xlu0 %v3387, 16
      %v3461 = vpop.permute.xlu0 %3460
      %3462 = vrot.lane.b32.xlu0 %v3390, 16
      %v3463 = vpop.permute.xlu0 %3462
      %3464 = vrot.lane.b32.xlu0 %v3393, 16
      %v3465 = vpop.permute.xlu0 %3464
      %3466 = vrot.lane.b32.xlu0 %v3396, 16
      %v3467 = vpop.permute.xlu0 %3466
      %3468 = vrot.lane.b32.xlu0 %v3399, 16
      %v3469 = vpop.permute.xlu0 %3468
      %3470 = vrot.lane.b32.xlu0 %v3402, 16
      %v3471 = vpop.permute.xlu0 %3470
      %3472 = vrot.lane.b32.xlu0 %v3405, 16
      %v3473 = vpop.permute.xlu0 %3472
      %3474 = vrot.lane.b32.xlu0 %v3408, 16
      %v3475 = vpop.permute.xlu0 %3474
      %3476 = vrot.lane.b32.xlu0 %v3411, 16
      %v3477 = vpop.permute.xlu0 %3476
      %3478 = vrot.lane.b32.xlu0 %v3414, 16
      %v3479 = vpop.permute.xlu0 %3478
      %3480 = vrot.lane.b32.xlu0 %v3417, 16
      %v3481 = vpop.permute.xlu0 %3480
      %vm3514 = vcmask 195712
      %3515 = vst.msk [vmem:[#allocation3] sm:$0xff] %vm3514, %v3419
      %3516 = vst.msk [vmem:[#allocation3 + $0x8] sm:$0xff] %vm3514, %v3421
      %3517 = vst.msk [vmem:[#allocation3 + $0x10] sm:$0xff] %vm3514, %v3423
      %3518 = vst.msk [vmem:[#allocation3 + $0x18] sm:$0xff] %vm3514, %v3425
      %3519 = vst.msk [vmem:[#allocation3 + $0x20] sm:$0xff] %vm3514, %v3427
      %3520 = vst.msk [vmem:[#allocation3 + $0x28] sm:$0xff] %vm3514, %v3429
      %3521 = vst.msk [vmem:[#allocation3 + $0x30] sm:$0xff] %vm3514, %v3431
      %3522 = vst.msk [vmem:[#allocation3 + $0x38] sm:$0xff] %vm3514, %v3433
      %3523 = vst.msk [vmem:[#allocation3 + $0x40] sm:$0xff] %vm3514, %v3435
      %3524 = vst.msk [vmem:[#allocation3 + $0x48] sm:$0xff] %vm3514, %v3437
      %3525 = vst.msk [vmem:[#allocation3 + $0x50] sm:$0xff] %vm3514, %v3439
      %3526 = vst.msk [vmem:[#allocation3 + $0x58] sm:$0xff] %vm3514, %v3441
      %3527 = vst.msk [vmem:[#allocation3 + $0x60] sm:$0xff] %vm3514, %v3443
      %3528 = vst.msk [vmem:[#allocation3 + $0x68] sm:$0xff] %vm3514, %v3445
      %3529 = vst.msk [vmem:[#allocation3 + $0x70] sm:$0xff] %vm3514, %v3447
      %3530 = vst.msk [vmem:[#allocation3 + $0x78] sm:$0xff] %vm3514, %v3449
      %3531 = vst.msk [vmem:[#allocation3 + $0x80] sm:$0xff] %vm3514, %v3451
      %3532 = vst.msk [vmem:[#allocation3 + $0x88] sm:$0xff] %vm3514, %v3453
      %3533 = vst.msk [vmem:[#allocation3 + $0x90] sm:$0xff] %vm3514, %v3455
      %3534 = vst.msk [vmem:[#allocation3 + $0x98] sm:$0xff] %vm3514, %v3457
      %3535 = vst.msk [vmem:[#allocation3 + $0xa0] sm:$0xff] %vm3514, %v3459
      %3536 = vst.msk [vmem:[#allocation3 + $0xa8] sm:$0xff] %vm3514, %v3461
      %3537 = vst.msk [vmem:[#allocation3 + $0xb0] sm:$0xff] %vm3514, %v3463
      %3538 = vst.msk [vmem:[#allocation3 + $0xb8] sm:$0xff] %vm3514, %v3465
      %3539 = vst.msk [vmem:[#allocation3 + $0xc0] sm:$0xff] %vm3514, %v3467
      %3540 = vst.msk [vmem:[#allocation3 + $0xc8] sm:$0xff] %vm3514, %v3469
      %3541 = vst.msk [vmem:[#allocation3 + $0xd0] sm:$0xff] %vm3514, %v3471
      %3542 = vst.msk [vmem:[#allocation3 + $0xd8] sm:$0xff] %vm3514, %v3473
      %3543 = vst.msk [vmem:[#allocation3 + $0xe0] sm:$0xff] %vm3514, %v3475
      %3544 = vst.msk [vmem:[#allocation3 + $0xe8] sm:$0xff] %vm3514, %v3477
      %3545 = vst.msk [vmem:[#allocation3 + $0xf0] sm:$0xff] %vm3514, %v3479
      %3546 = vst.msk [vmem:[#allocation3 + $0xf8] sm:$0xff] %vm3514, %v3481
      %v3547 = vld [vmem:[%s887] sm:$0xf]
      %v3548 = vld [vmem:[%s887 + $0x4] sm:$0xf]
      %v3549 = vld [vmem:[%s887 + $0xc] sm:$0xf]
      %v3550 = vld [vmem:[%s887 + $0x10] sm:$0xf]
      %v3551 = vld [vmem:[%s887 + $0x18] sm:$0xf]
      %v3552 = vld [vmem:[%s887 + $0x1c] sm:$0xf]
      %v3553 = vld [vmem:[%s887 + $0x24] sm:$0xf]
      %v3554 = vld [vmem:[%s887 + $0x28] sm:$0xf]
      %v3555 = vld [vmem:[%s887 + $0x30] sm:$0xf]
      %v3556 = vld [vmem:[%s887 + $0x34] sm:$0xf]
      %v3557 = vld [vmem:[%s887 + $0x3c] sm:$0xf]
      %v3558 = vld [vmem:[%s887 + $0x40] sm:$0xf]
      %v3559 = vld [vmem:[%s887 + $0x48] sm:$0xf]
      %v3560 = vld [vmem:[%s887 + $0x4c] sm:$0xf]
      %v3561 = vld [vmem:[%s887 + $0x54] sm:$0xf]
      %v3562 = vld [vmem:[%s887 + $0x58] sm:$0xf]
      %v3563 = vld [vmem:[%s887 + $0x60] sm:$0xf]
      %v3564 = vld [vmem:[%s887 + $0x64] sm:$0xf]
      %v3565 = vld [vmem:[%s887 + $0x6c] sm:$0xf]
      %v3566 = vld [vmem:[%s887 + $0x70] sm:$0xf]
      %v3567 = vld [vmem:[%s887 + $0x78] sm:$0xf]
      %v3568 = vld [vmem:[%s887 + $0x7c] sm:$0xf]
      %v3569 = vld [vmem:[%s887 + $0x84] sm:$0xf]
      %v3570 = vld [vmem:[%s887 + $0x88] sm:$0xf]
      %v3571 = vld [vmem:[%s887 + $0x90] sm:$0xf]
      %v3572 = vld [vmem:[%s887 + $0x94] sm:$0xf]
      %v3573 = vld [vmem:[%s887 + $0x9c] sm:$0xf]
      %v3574 = vld [vmem:[%s887 + $0xa0] sm:$0xf]
      %v3575 = vld [vmem:[%s887 + $0xa8] sm:$0xf]
      %v3576 = vld [vmem:[%s887 + $0xac] sm:$0xf]
      %v3577 = vld [vmem:[%s887 + $0xb4] sm:$0xf]
      %v3578 = vld [vmem:[%s887 + $0xb8] sm:$0xf]
      %v3579 = vld [vmem:[%s887 + $0xd8] sm:$0xf]
      %v3580 = vld [vmem:[%s887 + $0xdc] sm:$0xf]
      %v3581 = vld [vmem:[%s887 + $0xe4] sm:$0xf]
      %v3582 = vld [vmem:[%s887 + $0xe8] sm:$0xf]
      %v3583 = vld [vmem:[%s887 + $0xf0] sm:$0xf]
      %v3584 = vld [vmem:[%s887 + $0xf4] sm:$0xf]
      %v3585 = vld [vmem:[%s887 + $0xfc] sm:$0xf]
      %v3586 = vld [vmem:[%s887 + $0x100] sm:$0xf]
      %v3587 = vld [vmem:[%s887 + $0x108] sm:$0xf]
      %v3588 = vld [vmem:[%s887 + $0x10c] sm:$0xf]
      %v3589 = vld [vmem:[%s887 + $0x114] sm:$0xf]
      %v3590 = vld [vmem:[%s887 + $0x118] sm:$0xf]
      %v3591 = vld [vmem:[%s887 + $0x120] sm:$0xf]
      %v3592 = vld [vmem:[%s887 + $0x124] sm:$0xf]
      %v3593 = vld [vmem:[%s887 + $0x12c] sm:$0xf]
      %v3594 = vld [vmem:[%s887 + $0x130] sm:$0xf]
      %v3595 = vld [vmem:[%s887 + $0x138] sm:$0xf]
      %v3596 = vld [vmem:[%s887 + $0x13c] sm:$0xf]
      %v3597 = vld [vmem:[%s887 + $0x144] sm:$0xf]
      %v3598 = vld [vmem:[%s887 + $0x148] sm:$0xf]
      %v3599 = vld [vmem:[%s887 + $0x150] sm:$0xf]
      %v3600 = vld [vmem:[%s887 + $0x154] sm:$0xf]
      %v3601 = vld [vmem:[%s887 + $0x15c] sm:$0xf]
      %v3602 = vld [vmem:[%s887 + $0x160] sm:$0xf]
      %v3603 = vld [vmem:[%s887 + $0x168] sm:$0xf]
      %v3604 = vld [vmem:[%s887 + $0x16c] sm:$0xf]
      %v3605 = vld [vmem:[%s887 + $0x174] sm:$0xf]
      %v3606 = vld [vmem:[%s887 + $0x178] sm:$0xf]
      %v3607 = vld [vmem:[%s887 + $0x180] sm:$0xf]
      %v3608 = vld [vmem:[%s887 + $0x184] sm:$0xf]
      %v3609 = vld [vmem:[%s887 + $0x18c] sm:$0xf]
      %v3610 = vld [vmem:[%s887 + $0x190] sm:$0xf]
      %v3675 = vunpack.c.l.b16 %v3547
      %v3676 = vunpack.c.l.b16 %v3548
      %v3677 = vunpack.c.l.b16 %v3549
      %v3678 = vunpack.c.l.b16 %v3550
      %v3679 = vunpack.c.l.b16 %v3551
      %v3680 = vunpack.c.l.b16 %v3552
      %v3681 = vunpack.c.l.b16 %v3553
      %v3682 = vunpack.c.l.b16 %v3554
      %v3683 = vunpack.c.l.b16 %v3555
      %v3684 = vunpack.c.l.b16 %v3556
      %v3685 = vunpack.c.l.b16 %v3557
      %v3686 = vunpack.c.l.b16 %v3558
      %v3687 = vunpack.c.l.b16 %v3559
      %v3688 = vunpack.c.l.b16 %v3560
      %v3689 = vunpack.c.l.b16 %v3561
      %v3690 = vunpack.c.l.b16 %v3562
      %v3691 = vunpack.c.l.b16 %v3563
      %v3692 = vunpack.c.l.b16 %v3564
      %v3693 = vunpack.c.l.b16 %v3565
      %v3694 = vunpack.c.l.b16 %v3566
      %v3695 = vunpack.c.l.b16 %v3567
      %v3696 = vunpack.c.l.b16 %v3568
      %v3697 = vunpack.c.l.b16 %v3569
      %v3698 = vunpack.c.l.b16 %v3570
      %v3699 = vunpack.c.l.b16 %v3571
      %v3700 = vunpack.c.l.b16 %v3572
      %v3701 = vunpack.c.l.b16 %v3573
      %v3702 = vunpack.c.l.b16 %v3574
      %v3703 = vunpack.c.l.b16 %v3575
      %v3704 = vunpack.c.l.b16 %v3576
      %v3705 = vunpack.c.l.b16 %v3577
      %v3706 = vunpack.c.l.b16 %v3578
      %v3707 = vunpack.c.l.b16 %v3579
      %v3708 = vunpack.c.l.b16 %v3580
      %v3709 = vunpack.c.l.b16 %v3581
      %v3710 = vunpack.c.l.b16 %v3582
      %v3711 = vunpack.c.l.b16 %v3583
      %v3712 = vunpack.c.l.b16 %v3584
      %v3713 = vunpack.c.l.b16 %v3585
      %v3714 = vunpack.c.l.b16 %v3586
      %v3715 = vunpack.c.l.b16 %v3587
      %v3716 = vunpack.c.l.b16 %v3588
      %v3717 = vunpack.c.l.b16 %v3589
      %v3718 = vunpack.c.l.b16 %v3590
      %v3719 = vunpack.c.l.b16 %v3591
      %v3720 = vunpack.c.l.b16 %v3592
      %v3721 = vunpack.c.l.b16 %v3593
      %v3722 = vunpack.c.l.b16 %v3594
      %v3723 = vunpack.c.l.b16 %v3595
      %v3724 = vunpack.c.l.b16 %v3596
      %v3725 = vunpack.c.l.b16 %v3597
      %v3726 = vunpack.c.l.b16 %v3598
      %v3727 = vunpack.c.l.b16 %v3599
      %v3728 = vunpack.c.l.b16 %v3600
      %v3729 = vunpack.c.l.b16 %v3601
      %v3730 = vunpack.c.l.b16 %v3602
      %v3731 = vunpack.c.l.b16 %v3603
      %v3732 = vunpack.c.l.b16 %v3604
      %v3733 = vunpack.c.l.b16 %v3605
      %v3734 = vunpack.c.l.b16 %v3606
      %v3735 = vunpack.c.l.b16 %v3607
      %v3736 = vunpack.c.l.b16 %v3608
      %v3737 = vunpack.c.l.b16 %v3609
      %v3738 = vunpack.c.l.b16 %v3610
      %v3739 = vpack.c.b16 %v3676, %v3675
      %v3740 = vpack.c.b16 %v3678, %v3677
      %v3741 = vpack.c.b16 %v3680, %v3679
      %v3742 = vpack.c.b16 %v3682, %v3681
      %v3743 = vpack.c.b16 %v3684, %v3683
      %v3744 = vpack.c.b16 %v3686, %v3685
      %v3745 = vpack.c.b16 %v3688, %v3687
      %v3746 = vpack.c.b16 %v3690, %v3689
      %v3747 = vpack.c.b16 %v3692, %v3691
      %v3748 = vpack.c.b16 %v3694, %v3693
      %v3749 = vpack.c.b16 %v3696, %v3695
      %v3750 = vpack.c.b16 %v3698, %v3697
      %v3751 = vpack.c.b16 %v3700, %v3699
      %v3752 = vpack.c.b16 %v3702, %v3701
      %v3753 = vpack.c.b16 %v3704, %v3703
      %v3754 = vpack.c.b16 %v3706, %v3705
      %v3755 = vpack.c.b16 %v3708, %v3707
      %v3756 = vpack.c.b16 %v3710, %v3709
      %v3757 = vpack.c.b16 %v3712, %v3711
      %v3758 = vpack.c.b16 %v3714, %v3713
      %v3759 = vpack.c.b16 %v3716, %v3715
      %v3760 = vpack.c.b16 %v3718, %v3717
      %v3761 = vpack.c.b16 %v3720, %v3719
      %v3762 = vpack.c.b16 %v3722, %v3721
      %v3763 = vpack.c.b16 %v3724, %v3723
      %v3764 = vpack.c.b16 %v3726, %v3725
      %v3765 = vpack.c.b16 %v3728, %v3727
      %v3766 = vpack.c.b16 %v3730, %v3729
      %v3767 = vpack.c.b16 %v3732, %v3731
      %v3768 = vpack.c.b16 %v3734, %v3733
      %v3769 = vpack.c.b16 %v3736, %v3735
      %v3770 = vpack.c.b16 %v3738, %v3737
      %3771 = vrot.lane.b32.xlu0 %v3739, 24
      %v3772 = vpop.permute.xlu0 %3771
      %3773 = vrot.lane.b32.xlu0 %v3740, 24
      %v3774 = vpop.permute.xlu0 %3773
      %3775 = vrot.lane.b32.xlu0 %v3741, 24
      %v3776 = vpop.permute.xlu0 %3775
      %3777 = vrot.lane.b32.xlu0 %v3742, 24
      %v3778 = vpop.permute.xlu0 %3777
      %3779 = vrot.lane.b32.xlu0 %v3743, 24
      %v3780 = vpop.permute.xlu0 %3779
      %3781 = vrot.lane.b32.xlu0 %v3744, 24
      %v3782 = vpop.permute.xlu0 %3781
      %3783 = vrot.lane.b32.xlu0 %v3745, 24
      %v3784 = vpop.permute.xlu0 %3783
      %3785 = vrot.lane.b32.xlu0 %v3746, 24
      %v3786 = vpop.permute.xlu0 %3785
      %3787 = vrot.lane.b32.xlu0 %v3747, 24
      %v3788 = vpop.permute.xlu0 %3787
      %3789 = vrot.lane.b32.xlu0 %v3748, 24
      %v3790 = vpop.permute.xlu0 %3789
      %3791 = vrot.lane.b32.xlu0 %v3749, 24
      %v3792 = vpop.permute.xlu0 %3791
      %3793 = vrot.lane.b32.xlu0 %v3750, 24
      %v3794 = vpop.permute.xlu0 %3793
      %3795 = vrot.lane.b32.xlu0 %v3751, 24
      %v3796 = vpop.permute.xlu0 %3795
      %3797 = vrot.lane.b32.xlu0 %v3752, 24
      %v3798 = vpop.permute.xlu0 %3797
      %3799 = vrot.lane.b32.xlu0 %v3753, 24
      %v3800 = vpop.permute.xlu0 %3799
      %3801 = vrot.lane.b32.xlu0 %v3754, 24
      %v3802 = vpop.permute.xlu0 %3801
      %3803 = vrot.lane.b32.xlu0 %v3755, 24
      %v3804 = vpop.permute.xlu0 %3803
      %3805 = vrot.lane.b32.xlu0 %v3756, 24
      %v3806 = vpop.permute.xlu0 %3805
      %3807 = vrot.lane.b32.xlu0 %v3757, 24
      %v3808 = vpop.permute.xlu0 %3807
      %3809 = vrot.lane.b32.xlu0 %v3758, 24
      %v3810 = vpop.permute.xlu0 %3809
      %3811 = vrot.lane.b32.xlu0 %v3759, 24
      %v3812 = vpop.permute.xlu0 %3811
      %3813 = vrot.lane.b32.xlu0 %v3760, 24
      %v3814 = vpop.permute.xlu0 %3813
      %3815 = vrot.lane.b32.xlu0 %v3761, 24
      %v3816 = vpop.permute.xlu0 %3815
      %3817 = vrot.lane.b32.xlu0 %v3762, 24
      %v3818 = vpop.permute.xlu0 %3817
      %3819 = vrot.lane.b32.xlu0 %v3763, 24
      %v3820 = vpop.permute.xlu0 %3819
      %3821 = vrot.lane.b32.xlu0 %v3764, 24
      %v3822 = vpop.permute.xlu0 %3821
      %3823 = vrot.lane.b32.xlu0 %v3765, 24
      %v3824 = vpop.permute.xlu0 %3823
      %3825 = vrot.lane.b32.xlu0 %v3766, 24
      %v3826 = vpop.permute.xlu0 %3825
      %3827 = vrot.lane.b32.xlu0 %v3767, 24
      %v3828 = vpop.permute.xlu0 %3827
      %3829 = vrot.lane.b32.xlu0 %v3768, 24
      %v3830 = vpop.permute.xlu0 %3829
      %3831 = vrot.lane.b32.xlu0 %v3769, 24
      %v3832 = vpop.permute.xlu0 %3831
      %3833 = vrot.lane.b32.xlu0 %v3770, 24
      %v3834 = vpop.permute.xlu0 %3833
      %vm3867 = vcmask 261312
      %3868 = vst.msk [vmem:[#allocation3] sm:$0xff] %vm3867, %v3772
      %3869 = vst.msk [vmem:[#allocation3 + $0x8] sm:$0xff] %vm3867, %v3774
      %3870 = vst.msk [vmem:[#allocation3 + $0x10] sm:$0xff] %vm3867, %v3776
      %3871 = vst.msk [vmem:[#allocation3 + $0x18] sm:$0xff] %vm3867, %v3778
      %3872 = vst.msk [vmem:[#allocation3 + $0x20] sm:$0xff] %vm3867, %v3780
      %3873 = vst.msk [vmem:[#allocation3 + $0x28] sm:$0xff] %vm3867, %v3782
      %3874 = vst.msk [vmem:[#allocation3 + $0x30] sm:$0xff] %vm3867, %v3784
      %3875 = vst.msk [vmem:[#allocation3 + $0x38] sm:$0xff] %vm3867, %v3786
      %3876 = vst.msk [vmem:[#allocation3 + $0x40] sm:$0xff] %vm3867, %v3788
      %3877 = vst.msk [vmem:[#allocation3 + $0x48] sm:$0xff] %vm3867, %v3790
      %3878 = vst.msk [vmem:[#allocation3 + $0x50] sm:$0xff] %vm3867, %v3792
      %3879 = vst.msk [vmem:[#allocation3 + $0x58] sm:$0xff] %vm3867, %v3794
      %3880 = vst.msk [vmem:[#allocation3 + $0x60] sm:$0xff] %vm3867, %v3796
      %3881 = vst.msk [vmem:[#allocation3 + $0x68] sm:$0xff] %vm3867, %v3798
      %3882 = vst.msk [vmem:[#allocation3 + $0x70] sm:$0xff] %vm3867, %v3800
      %3883 = vst.msk [vmem:[#allocation3 + $0x78] sm:$0xff] %vm3867, %v3802
      %3884 = vst.msk [vmem:[#allocation3 + $0x80] sm:$0xff] %vm3867, %v3804
      %3885 = vst.msk [vmem:[#allocation3 + $0x88] sm:$0xff] %vm3867, %v3806
      %3886 = vst.msk [vmem:[#allocation3 + $0x90] sm:$0xff] %vm3867, %v3808
      %3887 = vst.msk [vmem:[#allocation3 + $0x98] sm:$0xff] %vm3867, %v3810
      %3888 = vst.msk [vmem:[#allocation3 + $0xa0] sm:$0xff] %vm3867, %v3812
      %3889 = vst.msk [vmem:[#allocation3 + $0xa8] sm:$0xff] %vm3867, %v3814
      %3890 = vst.msk [vmem:[#allocation3 + $0xb0] sm:$0xff] %vm3867, %v3816
      %3891 = vst.msk [vmem:[#allocation3 + $0xb8] sm:$0xff] %vm3867, %v3818
      %3892 = vst.msk [vmem:[#allocation3 + $0xc0] sm:$0xff] %vm3867, %v3820
      %3893 = vst.msk [vmem:[#allocation3 + $0xc8] sm:$0xff] %vm3867, %v3822
      %3894 = vst.msk [vmem:[#allocation3 + $0xd0] sm:$0xff] %vm3867, %v3824
      %3895 = vst.msk [vmem:[#allocation3 + $0xd8] sm:$0xff] %vm3867, %v3826
      %3896 = vst.msk [vmem:[#allocation3 + $0xe0] sm:$0xff] %vm3867, %v3828
      %3897 = vst.msk [vmem:[#allocation3 + $0xe8] sm:$0xff] %vm3867, %v3830
      %3898 = vst.msk [vmem:[#allocation3 + $0xf0] sm:$0xff] %vm3867, %v3832
      %3899 = vst.msk [vmem:[#allocation3 + $0xf8] sm:$0xff] %vm3867, %v3834
      %v3900 = vld [vmem:[%s887] sm:$0xf]
      %v3901 = vld [vmem:[%s887 + $0x4] sm:$0xf]
      %v3902 = vld [vmem:[%s887 + $0x8] sm:$0x1]
      %v3903 = vld [vmem:[%s887 + $0xc] sm:$0xf]
      %v3904 = vld [vmem:[%s887 + $0x10] sm:$0xf]
      %v3905 = vld [vmem:[%s887 + $0x14] sm:$0x1]
      %v3906 = vld [vmem:[%s887 + $0x18] sm:$0xf]
      %v3907 = vld [vmem:[%s887 + $0x1c] sm:$0xf]
      %v3908 = vld [vmem:[%s887 + $0x20] sm:$0x1]
      %v3909 = vld [vmem:[%s887 + $0x24] sm:$0xf]
      %v3910 = vld [vmem:[%s887 + $0x28] sm:$0xf]
      %v3911 = vld [vmem:[%s887 + $0x2c] sm:$0x1]
      %v3912 = vld [vmem:[%s887 + $0x30] sm:$0xf]
      %v3913 = vld [vmem:[%s887 + $0x34] sm:$0xf]
      %v3914 = vld [vmem:[%s887 + $0x38] sm:$0x1]
      %v3915 = vld [vmem:[%s887 + $0x3c] sm:$0xf]
      %v3916 = vld [vmem:[%s887 + $0x40] sm:$0xf]
      %v3917 = vld [vmem:[%s887 + $0x44] sm:$0x1]
      %v3918 = vld [vmem:[%s887 + $0x48] sm:$0xf]
      %v3919 = vld [vmem:[%s887 + $0x4c] sm:$0xf]
      %v3920 = vld [vmem:[%s887 + $0x50] sm:$0x1]
      %v3921 = vld [vmem:[%s887 + $0x54] sm:$0xf]
      %v3922 = vld [vmem:[%s887 + $0x58] sm:$0xf]
      %v3923 = vld [vmem:[%s887 + $0x5c] sm:$0x1]
      %v3924 = vld [vmem:[%s887 + $0x60] sm:$0xf]
      %v3925 = vld [vmem:[%s887 + $0x64] sm:$0xf]
      %v3926 = vld [vmem:[%s887 + $0x68] sm:$0x1]
      %v3927 = vld [vmem:[%s887 + $0x6c] sm:$0xf]
      %v3928 = vld [vmem:[%s887 + $0x70] sm:$0xf]
      %v3929 = vld [vmem:[%s887 + $0x74] sm:$0x1]
      %v3930 = vld [vmem:[%s887 + $0x78] sm:$0xf]
      %v3931 = vld [vmem:[%s887 + $0x7c] sm:$0xf]
      %v3932 = vld [vmem:[%s887 + $0x80] sm:$0x1]
      %v3933 = vld [vmem:[%s887 + $0x84] sm:$0xf]
      %v3934 = vld [vmem:[%s887 + $0x88] sm:$0xf]
      %v3935 = vld [vmem:[%s887 + $0x8c] sm:$0x1]
      %v3936 = vld [vmem:[%s887 + $0x90] sm:$0xf]
      %v3937 = vld [vmem:[%s887 + $0x94] sm:$0xf]
      %v3938 = vld [vmem:[%s887 + $0x98] sm:$0x1]
      %v3939 = vld [vmem:[%s887 + $0x9c] sm:$0xf]
      %v3940 = vld [vmem:[%s887 + $0xa0] sm:$0xf]
      %v3941 = vld [vmem:[%s887 + $0xa4] sm:$0x1]
      %v3942 = vld [vmem:[%s887 + $0xa8] sm:$0xf]
      %v3943 = vld [vmem:[%s887 + $0xac] sm:$0xf]
      %v3944 = vld [vmem:[%s887 + $0xb0] sm:$0x1]
      %v3945 = vld [vmem:[%s887 + $0xb4] sm:$0xf]
      %v3946 = vld [vmem:[%s887 + $0xb8] sm:$0xf]
      %v3947 = vld [vmem:[%s887 + $0xbc] sm:$0x1]
      %v3948 = vld [vmem:[%s887 + $0xd8] sm:$0xf]
      %v3949 = vld [vmem:[%s887 + $0xdc] sm:$0xf]
      %v3950 = vld [vmem:[%s887 + $0xe0] sm:$0x1]
      %v3951 = vld [vmem:[%s887 + $0xe4] sm:$0xf]
      %v3952 = vld [vmem:[%s887 + $0xe8] sm:$0xf]
      %v3953 = vld [vmem:[%s887 + $0xec] sm:$0x1]
      %v3954 = vld [vmem:[%s887 + $0xf0] sm:$0xf]
      %v3955 = vld [vmem:[%s887 + $0xf4] sm:$0xf]
      %v3956 = vld [vmem:[%s887 + $0xf8] sm:$0x1]
      %v3957 = vld [vmem:[%s887 + $0xfc] sm:$0xf]
      %v3958 = vld [vmem:[%s887 + $0x100] sm:$0xf]
      %v3959 = vld [vmem:[%s887 + $0x104] sm:$0x1]
      %v3960 = vld [vmem:[%s887 + $0x108] sm:$0xf]
      %v3961 = vld [vmem:[%s887 + $0x10c] sm:$0xf]
      %v3962 = vld [vmem:[%s887 + $0x110] sm:$0x1]
      %v3963 = vld [vmem:[%s887 + $0x114] sm:$0xf]
      %v3964 = vld [vmem:[%s887 + $0x118] sm:$0xf]
      %v3965 = vld [vmem:[%s887 + $0x11c] sm:$0x1]
      %v3966 = vld [vmem:[%s887 + $0x120] sm:$0xf]
      %v3967 = vld [vmem:[%s887 + $0x124] sm:$0xf]
      %v3968 = vld [vmem:[%s887 + $0x128] sm:$0x1]
      %v3969 = vld [vmem:[%s887 + $0x12c] sm:$0xf]
      %v3970 = vld [vmem:[%s887 + $0x130] sm:$0xf]
      %v3971 = vld [vmem:[%s887 + $0x134] sm:$0x1]
      %v3972 = vld [vmem:[%s887 + $0x138] sm:$0xf]
      %v3973 = vld [vmem:[%s887 + $0x13c] sm:$0xf]
      %v3974 = vld [vmem:[%s887 + $0x140] sm:$0x1]
      %v3975 = vld [vmem:[%s887 + $0x144] sm:$0xf]
      %v3976 = vld [vmem:[%s887 + $0x148] sm:$0xf]
      %v3977 = vld [vmem:[%s887 + $0x14c] sm:$0x1]
      %v3978 = vld [vmem:[%s887 + $0x150] sm:$0xf]
      %v3979 = vld [vmem:[%s887 + $0x154] sm:$0xf]
      %v3980 = vld [vmem:[%s887 + $0x158] sm:$0x1]
      %v3981 = vld [vmem:[%s887 + $0x15c] sm:$0xf]
      %v3982 = vld [vmem:[%s887 + $0x160] sm:$0xf]
      %v3983 = vld [vmem:[%s887 + $0x164] sm:$0x1]
      %v3984 = vld [vmem:[%s887 + $0x168] sm:$0xf]
      %v3985 = vld [vmem:[%s887 + $0x16c] sm:$0xf]
      %v3986 = vld [vmem:[%s887 + $0x170] sm:$0x1]
      %v3987 = vld [vmem:[%s887 + $0x174] sm:$0xf]
      %v3988 = vld [vmem:[%s887 + $0x178] sm:$0xf]
      %v3989 = vld [vmem:[%s887 + $0x17c] sm:$0x1]
      %v3990 = vld [vmem:[%s887 + $0x180] sm:$0xf]
      %v3991 = vld [vmem:[%s887 + $0x184] sm:$0xf]
      %v3992 = vld [vmem:[%s887 + $0x188] sm:$0x1]
      %v3993 = vld [vmem:[%s887 + $0x18c] sm:$0xf]
      %v3994 = vld [vmem:[%s887 + $0x190] sm:$0xf]
      %v3995 = vld [vmem:[%s887 + $0x194] sm:$0x1]
      %v4092 = vunpack.c.l.b16 %v3900
      %v4093 = vunpack.c.l.b16 %v3901
      %v4094 = vunpack.c.l.b16 %v3902
      %v4095 = vunpack.c.l.b16 %v3903
      %v4096 = vunpack.c.l.b16 %v3904
      %v4097 = vunpack.c.l.b16 %v3905
      %v4098 = vunpack.c.l.b16 %v3906
      %v4099 = vunpack.c.l.b16 %v3907
      %v4100 = vunpack.c.l.b16 %v3908
      %v4101 = vunpack.c.l.b16 %v3909
      %v4102 = vunpack.c.l.b16 %v3910
      %v4103 = vunpack.c.l.b16 %v3911
      %v4104 = vunpack.c.l.b16 %v3912
      %v4105 = vunpack.c.l.b16 %v3913
      %v4106 = vunpack.c.l.b16 %v3914
      %v4107 = vunpack.c.l.b16 %v3915
      %v4108 = vunpack.c.l.b16 %v3916
      %v4109 = vunpack.c.l.b16 %v3917
      %v4110 = vunpack.c.l.b16 %v3918
      %v4111 = vunpack.c.l.b16 %v3919
      %v4112 = vunpack.c.l.b16 %v3920
      %v4113 = vunpack.c.l.b16 %v3921
      %v4114 = vunpack.c.l.b16 %v3922
      %v4115 = vunpack.c.l.b16 %v3923
      %v4116 = vunpack.c.l.b16 %v3924
      %v4117 = vunpack.c.l.b16 %v3925
      %v4118 = vunpack.c.l.b16 %v3926
      %v4119 = vunpack.c.l.b16 %v3927
      %v4120 = vunpack.c.l.b16 %v3928
      %v4121 = vunpack.c.l.b16 %v3929
      %v4122 = vunpack.c.l.b16 %v3930
      %v4123 = vunpack.c.l.b16 %v3931
      %v4124 = vunpack.c.l.b16 %v3932
      %v4125 = vunpack.c.l.b16 %v3933
      %v4126 = vunpack.c.l.b16 %v3934
      %v4127 = vunpack.c.l.b16 %v3935
      %v4128 = vunpack.c.l.b16 %v3936
      %v4129 = vunpack.c.l.b16 %v3937
      %v4130 = vunpack.c.l.b16 %v3938
      %v4131 = vunpack.c.l.b16 %v3939
      %v4132 = vunpack.c.l.b16 %v3940
      %v4133 = vunpack.c.l.b16 %v3941
      %v4134 = vunpack.c.l.b16 %v3942
      %v4135 = vunpack.c.l.b16 %v3943
      %v4136 = vunpack.c.l.b16 %v3944
      %v4137 = vunpack.c.l.b16 %v3945
      %v4138 = vunpack.c.l.b16 %v3946
      %v4139 = vunpack.c.l.b16 %v3947
      %v4140 = vunpack.c.l.b16 %v3948
      %v4141 = vunpack.c.l.b16 %v3949
      %v4142 = vunpack.c.l.b16 %v3950
      %v4143 = vunpack.c.l.b16 %v3951
      %v4144 = vunpack.c.l.b16 %v3952
      %v4145 = vunpack.c.l.b16 %v3953
      %v4146 = vunpack.c.l.b16 %v3954
      %v4147 = vunpack.c.l.b16 %v3955
      %v4148 = vunpack.c.l.b16 %v3956
      %v4149 = vunpack.c.l.b16 %v3957
      %v4150 = vunpack.c.l.b16 %v3958
      %v4151 = vunpack.c.l.b16 %v3959
      %v4152 = vunpack.c.l.b16 %v3960
      %v4153 = vunpack.c.l.b16 %v3961
      %v4154 = vunpack.c.l.b16 %v3962
      %v4155 = vunpack.c.l.b16 %v3963
      %v4156 = vunpack.c.l.b16 %v3964
      %v4157 = vunpack.c.l.b16 %v3965
      %v4158 = vunpack.c.l.b16 %v3966
      %v4159 = vunpack.c.l.b16 %v3967
      %v4160 = vunpack.c.l.b16 %v3968
      %v4161 = vunpack.c.l.b16 %v3969
      %v4162 = vunpack.c.l.b16 %v3970
      %v4163 = vunpack.c.l.b16 %v3971
      %v4164 = vunpack.c.l.b16 %v3972
      %v4165 = vunpack.c.l.b16 %v3973
      %v4166 = vunpack.c.l.b16 %v3974
      %v4167 = vunpack.c.l.b16 %v3975
      %v4168 = vunpack.c.l.b16 %v3976
      %v4169 = vunpack.c.l.b16 %v3977
      %v4170 = vunpack.c.l.b16 %v3978
      %v4171 = vunpack.c.l.b16 %v3979
      %v4172 = vunpack.c.l.b16 %v3980
      %v4173 = vunpack.c.l.b16 %v3981
      %v4174 = vunpack.c.l.b16 %v3982
      %v4175 = vunpack.c.l.b16 %v3983
      %v4176 = vunpack.c.l.b16 %v3984
      %v4177 = vunpack.c.l.b16 %v3985
      %v4178 = vunpack.c.l.b16 %v3986
      %v4179 = vunpack.c.l.b16 %v3987
      %v4180 = vunpack.c.l.b16 %v3988
      %v4181 = vunpack.c.l.b16 %v3989
      %v4182 = vunpack.c.l.b16 %v3990
      %v4183 = vunpack.c.l.b16 %v3991
      %v4184 = vunpack.c.l.b16 %v3992
      %v4185 = vunpack.c.l.b16 %v3993
      %v4186 = vunpack.c.l.b16 %v3994
      %v4187 = vunpack.c.l.b16 %v3995
      %v4188 = vpack.c.b16 %v4093, %v4092
      %v4189 = vpack.c.b16 %v4094, %v4094
      %v4190 = vpack.c.b16 %v4096, %v4095
      %v4191 = vpack.c.b16 %v4097, %v4097
      %v4192 = vpack.c.b16 %v4099, %v4098
      %v4193 = vpack.c.b16 %v4100, %v4100
      %v4194 = vpack.c.b16 %v4102, %v4101
      %v4195 = vpack.c.b16 %v4103, %v4103
      %v4196 = vpack.c.b16 %v4105, %v4104
      %v4197 = vpack.c.b16 %v4106, %v4106
      %v4198 = vpack.c.b16 %v4108, %v4107
      %v4199 = vpack.c.b16 %v4109, %v4109
      %v4200 = vpack.c.b16 %v4111, %v4110
      %v4201 = vpack.c.b16 %v4112, %v4112
      %v4202 = vpack.c.b16 %v4114, %v4113
      %v4203 = vpack.c.b16 %v4115, %v4115
      %v4204 = vpack.c.b16 %v4117, %v4116
      %v4205 = vpack.c.b16 %v4118, %v4118
      %v4206 = vpack.c.b16 %v4120, %v4119
      %v4207 = vpack.c.b16 %v4121, %v4121
      %v4208 = vpack.c.b16 %v4123, %v4122
      %v4209 = vpack.c.b16 %v4124, %v4124
      %v4210 = vpack.c.b16 %v4126, %v4125
      %v4211 = vpack.c.b16 %v4127, %v4127
      %v4212 = vpack.c.b16 %v4129, %v4128
      %v4213 = vpack.c.b16 %v4130, %v4130
      %v4214 = vpack.c.b16 %v4132, %v4131
      %v4215 = vpack.c.b16 %v4133, %v4133
      %v4216 = vpack.c.b16 %v4135, %v4134
      %v4217 = vpack.c.b16 %v4136, %v4136
      %v4218 = vpack.c.b16 %v4138, %v4137
      %v4219 = vpack.c.b16 %v4139, %v4139
      %v4220 = vpack.c.b16 %v4141, %v4140
      %v4221 = vpack.c.b16 %v4142, %v4142
      %v4222 = vpack.c.b16 %v4144, %v4143
      %v4223 = vpack.c.b16 %v4145, %v4145
      %v4224 = vpack.c.b16 %v4147, %v4146
      %v4225 = vpack.c.b16 %v4148, %v4148
      %v4226 = vpack.c.b16 %v4150, %v4149
      %v4227 = vpack.c.b16 %v4151, %v4151
      %v4228 = vpack.c.b16 %v4153, %v4152
      %v4229 = vpack.c.b16 %v4154, %v4154
      %v4230 = vpack.c.b16 %v4156, %v4155
      %v4231 = vpack.c.b16 %v4157, %v4157
      %v4232 = vpack.c.b16 %v4159, %v4158
      %v4233 = vpack.c.b16 %v4160, %v4160
      %v4234 = vpack.c.b16 %v4162, %v4161
      %v4235 = vpack.c.b16 %v4163, %v4163
      %v4236 = vpack.c.b16 %v4165, %v4164
      %v4237 = vpack.c.b16 %v4166, %v4166
      %v4238 = vpack.c.b16 %v4168, %v4167
      %v4239 = vpack.c.b16 %v4169, %v4169
      %v4240 = vpack.c.b16 %v4171, %v4170
      %v4241 = vpack.c.b16 %v4172, %v4172
      %v4242 = vpack.c.b16 %v4174, %v4173
      %v4243 = vpack.c.b16 %v4175, %v4175
      %v4244 = vpack.c.b16 %v4177, %v4176
      %v4245 = vpack.c.b16 %v4178, %v4178
      %v4246 = vpack.c.b16 %v4180, %v4179
      %v4247 = vpack.c.b16 %v4181, %v4181
      %v4248 = vpack.c.b16 %v4183, %v4182
      %v4249 = vpack.c.b16 %v4184, %v4184
      %v4250 = vpack.c.b16 %v4186, %v4185
      %v4251 = vpack.c.b16 %v4187, %v4187
      %v4253 = vshrl.u32 %v4188, 16
      %v4255 = vshll.u32 %v4188, 16
      %v4257 = vrot.slane %v4255, 1
      %v4258 = vor.u32 %v4253, %v4257
      %v4260 = vshll.u32 %v4189, 16
      %v4262 = vrot.slane %v4260, 1
      %v4263 = vsel %vm2455, %v4258, %v4262
      %v4265 = vshrl.u32 %v4190, 16
      %v4267 = vshll.u32 %v4190, 16
      %v4269 = vrot.slane %v4267, 1
      %v4270 = vor.u32 %v4265, %v4269
      %v4272 = vshll.u32 %v4191, 16
      %v4274 = vrot.slane %v4272, 1
      %v4275 = vsel %vm2455, %v4270, %v4274
      %v4277 = vshrl.u32 %v4192, 16
      %v4279 = vshll.u32 %v4192, 16
      %v4281 = vrot.slane %v4279, 1
      %v4282 = vor.u32 %v4277, %v4281
      %v4284 = vshll.u32 %v4193, 16
      %v4286 = vrot.slane %v4284, 1
      %v4287 = vsel %vm2455, %v4282, %v4286
      %v4289 = vshrl.u32 %v4194, 16
      %v4291 = vshll.u32 %v4194, 16
      %v4293 = vrot.slane %v4291, 1
      %v4294 = vor.u32 %v4289, %v4293
      %v4296 = vshll.u32 %v4195, 16
      %v4298 = vrot.slane %v4296, 1
      %v4299 = vsel %vm2455, %v4294, %v4298
      %v4301 = vshrl.u32 %v4196, 16
      %v4303 = vshll.u32 %v4196, 16
      %v4305 = vrot.slane %v4303, 1
      %v4306 = vor.u32 %v4301, %v4305
      %v4308 = vshll.u32 %v4197, 16
      %v4310 = vrot.slane %v4308, 1
      %v4311 = vsel %vm2455, %v4306, %v4310
      %v4313 = vshrl.u32 %v4198, 16
      %v4315 = vshll.u32 %v4198, 16
      %v4317 = vrot.slane %v4315, 1
      %v4318 = vor.u32 %v4313, %v4317
      %v4320 = vshll.u32 %v4199, 16
      %v4322 = vrot.slane %v4320, 1
      %v4323 = vsel %vm2455, %v4318, %v4322
      %v4325 = vshrl.u32 %v4200, 16
      %v4327 = vshll.u32 %v4200, 16
      %v4329 = vrot.slane %v4327, 1
      %v4330 = vor.u32 %v4325, %v4329
      %v4332 = vshll.u32 %v4201, 16
      %v4334 = vrot.slane %v4332, 1
      %v4335 = vsel %vm2455, %v4330, %v4334
      %v4337 = vshrl.u32 %v4202, 16
      %v4339 = vshll.u32 %v4202, 16
      %v4341 = vrot.slane %v4339, 1
      %v4342 = vor.u32 %v4337, %v4341
      %v4344 = vshll.u32 %v4203, 16
      %v4346 = vrot.slane %v4344, 1
      %v4347 = vsel %vm2455, %v4342, %v4346
      %v4349 = vshrl.u32 %v4204, 16
      %v4351 = vshll.u32 %v4204, 16
      %v4353 = vrot.slane %v4351, 1
      %v4354 = vor.u32 %v4349, %v4353
      %v4356 = vshll.u32 %v4205, 16
      %v4358 = vrot.slane %v4356, 1
      %v4359 = vsel %vm2455, %v4354, %v4358
      %v4361 = vshrl.u32 %v4206, 16
      %v4363 = vshll.u32 %v4206, 16
      %v4365 = vrot.slane %v4363, 1
      %v4366 = vor.u32 %v4361, %v4365
      %v4368 = vshll.u32 %v4207, 16
      %v4370 = vrot.slane %v4368, 1
      %v4371 = vsel %vm2455, %v4366, %v4370
      %v4373 = vshrl.u32 %v4208, 16
      %v4375 = vshll.u32 %v4208, 16
      %v4377 = vrot.slane %v4375, 1
      %v4378 = vor.u32 %v4373, %v4377
      %v4380 = vshll.u32 %v4209, 16
      %v4382 = vrot.slane %v4380, 1
      %v4383 = vsel %vm2455, %v4378, %v4382
      %v4385 = vshrl.u32 %v4210, 16
      %v4387 = vshll.u32 %v4210, 16
      %v4389 = vrot.slane %v4387, 1
      %v4390 = vor.u32 %v4385, %v4389
      %v4392 = vshll.u32 %v4211, 16
      %v4394 = vrot.slane %v4392, 1
      %v4395 = vsel %vm2455, %v4390, %v4394
      %v4397 = vshrl.u32 %v4212, 16
      %v4399 = vshll.u32 %v4212, 16
      %v4401 = vrot.slane %v4399, 1
      %v4402 = vor.u32 %v4397, %v4401
      %v4404 = vshll.u32 %v4213, 16
      %v4406 = vrot.slane %v4404, 1
      %v4407 = vsel %vm2455, %v4402, %v4406
      %v4409 = vshrl.u32 %v4214, 16
      %v4411 = vshll.u32 %v4214, 16
      %v4413 = vrot.slane %v4411, 1
      %v4414 = vor.u32 %v4409, %v4413
      %v4416 = vshll.u32 %v4215, 16
      %v4418 = vrot.slane %v4416, 1
      %v4419 = vsel %vm2455, %v4414, %v4418
      %v4421 = vshrl.u32 %v4216, 16
      %v4423 = vshll.u32 %v4216, 16
      %v4425 = vrot.slane %v4423, 1
      %v4426 = vor.u32 %v4421, %v4425
      %v4428 = vshll.u32 %v4217, 16
      %v4430 = vrot.slane %v4428, 1
      %v4431 = vsel %vm2455, %v4426, %v4430
      %v4433 = vshrl.u32 %v4218, 16
      %v4435 = vshll.u32 %v4218, 16
      %v4437 = vrot.slane %v4435, 1
      %v4438 = vor.u32 %v4433, %v4437
      %v4440 = vshll.u32 %v4219, 16
      %v4442 = vrot.slane %v4440, 1
      %v4443 = vsel %vm2455, %v4438, %v4442
      %v4445 = vshrl.u32 %v4220, 16
      %v4447 = vshll.u32 %v4220, 16
      %v4449 = vrot.slane %v4447, 1
      %v4450 = vor.u32 %v4445, %v4449
      %v4452 = vshll.u32 %v4221, 16
      %v4454 = vrot.slane %v4452, 1
      %v4455 = vsel %vm2455, %v4450, %v4454
      %v4457 = vshrl.u32 %v4222, 16
      %v4459 = vshll.u32 %v4222, 16
      %v4461 = vrot.slane %v4459, 1
      %v4462 = vor.u32 %v4457, %v4461
      %v4464 = vshll.u32 %v4223, 16
      %v4466 = vrot.slane %v4464, 1
      %v4467 = vsel %vm2455, %v4462, %v4466
      %v4469 = vshrl.u32 %v4224, 16
      %v4471 = vshll.u32 %v4224, 16
      %v4473 = vrot.slane %v4471, 1
      %v4474 = vor.u32 %v4469, %v4473
      %v4476 = vshll.u32 %v4225, 16
      %v4478 = vrot.slane %v4476, 1
      %v4479 = vsel %vm2455, %v4474, %v4478
      %v4481 = vshrl.u32 %v4226, 16
      %v4483 = vshll.u32 %v4226, 16
      %v4485 = vrot.slane %v4483, 1
      %v4486 = vor.u32 %v4481, %v4485
      %v4488 = vshll.u32 %v4227, 16
      %v4490 = vrot.slane %v4488, 1
      %v4491 = vsel %vm2455, %v4486, %v4490
      %v4493 = vshrl.u32 %v4228, 16
      %v4495 = vshll.u32 %v4228, 16
      %v4497 = vrot.slane %v4495, 1
      %v4498 = vor.u32 %v4493, %v4497
      %v4500 = vshll.u32 %v4229, 16
      %v4502 = vrot.slane %v4500, 1
      %v4503 = vsel %vm2455, %v4498, %v4502
      %v4505 = vshrl.u32 %v4230, 16
      %v4507 = vshll.u32 %v4230, 16
      %v4509 = vrot.slane %v4507, 1
      %v4510 = vor.u32 %v4505, %v4509
      %v4512 = vshll.u32 %v4231, 16
      %v4514 = vrot.slane %v4512, 1
      %v4515 = vsel %vm2455, %v4510, %v4514
      %v4517 = vshrl.u32 %v4232, 16
      %v4519 = vshll.u32 %v4232, 16
      %v4521 = vrot.slane %v4519, 1
      %v4522 = vor.u32 %v4517, %v4521
      %v4524 = vshll.u32 %v4233, 16
      %v4526 = vrot.slane %v4524, 1
      %v4527 = vsel %vm2455, %v4522, %v4526
      %v4529 = vshrl.u32 %v4234, 16
      %v4531 = vshll.u32 %v4234, 16
      %v4533 = vrot.slane %v4531, 1
      %v4534 = vor.u32 %v4529, %v4533
      %v4536 = vshll.u32 %v4235, 16
      %v4538 = vrot.slane %v4536, 1
      %v4539 = vsel %vm2455, %v4534, %v4538
      %v4541 = vshrl.u32 %v4236, 16
      %v4543 = vshll.u32 %v4236, 16
      %v4545 = vrot.slane %v4543, 1
      %v4546 = vor.u32 %v4541, %v4545
      %v4548 = vshll.u32 %v4237, 16
      %v4550 = vrot.slane %v4548, 1
      %v4551 = vsel %vm2455, %v4546, %v4550
      %v4553 = vshrl.u32 %v4238, 16
      %v4555 = vshll.u32 %v4238, 16
      %v4557 = vrot.slane %v4555, 1
      %v4558 = vor.u32 %v4553, %v4557
      %v4560 = vshll.u32 %v4239, 16
      %v4562 = vrot.slane %v4560, 1
      %v4563 = vsel %vm2455, %v4558, %v4562
      %v4565 = vshrl.u32 %v4240, 16
      %v4567 = vshll.u32 %v4240, 16
      %v4569 = vrot.slane %v4567, 1
      %v4570 = vor.u32 %v4565, %v4569
      %v4572 = vshll.u32 %v4241, 16
      %v4574 = vrot.slane %v4572, 1
      %v4575 = vsel %vm2455, %v4570, %v4574
      %v4577 = vshrl.u32 %v4242, 16
      %v4579 = vshll.u32 %v4242, 16
      %v4581 = vrot.slane %v4579, 1
      %v4582 = vor.u32 %v4577, %v4581
      %v4584 = vshll.u32 %v4243, 16
      %v4586 = vrot.slane %v4584, 1
      %v4587 = vsel %vm2455, %v4582, %v4586
      %v4589 = vshrl.u32 %v4244, 16
      %v4591 = vshll.u32 %v4244, 16
      %v4593 = vrot.slane %v4591, 1
      %v4594 = vor.u32 %v4589, %v4593
      %v4596 = vshll.u32 %v4245, 16
      %v4598 = vrot.slane %v4596, 1
      %v4599 = vsel %vm2455, %v4594, %v4598
      %v4601 = vshrl.u32 %v4246, 16
      %v4603 = vshll.u32 %v4246, 16
      %v4605 = vrot.slane %v4603, 1
      %v4606 = vor.u32 %v4601, %v4605
      %v4608 = vshll.u32 %v4247, 16
      %v4610 = vrot.slane %v4608, 1
      %v4611 = vsel %vm2455, %v4606, %v4610
      %v4613 = vshrl.u32 %v4248, 16
      %v4615 = vshll.u32 %v4248, 16
      %v4617 = vrot.slane %v4615, 1
      %v4618 = vor.u32 %v4613, %v4617
      %v4620 = vshll.u32 %v4249, 16
      %v4622 = vrot.slane %v4620, 1
      %v4623 = vsel %vm2455, %v4618, %v4622
      %v4625 = vshrl.u32 %v4250, 16
      %v4627 = vshll.u32 %v4250, 16
      %v4629 = vrot.slane %v4627, 1
      %v4630 = vor.u32 %v4625, %v4629
      %v4632 = vshll.u32 %v4251, 16
      %v4634 = vrot.slane %v4632, 1
      %v4635 = vsel %vm2455, %v4630, %v4634
      %4636 = vrot.lane.b32.xlu0 %v4263, 32
      %v4637 = vpop.permute.xlu0 %4636
      %4638 = vrot.lane.b32.xlu0 %v4275, 32
      %v4639 = vpop.permute.xlu0 %4638
      %4640 = vrot.lane.b32.xlu0 %v4287, 32
      %v4641 = vpop.permute.xlu0 %4640
      %4642 = vrot.lane.b32.xlu0 %v4299, 32
      %v4643 = vpop.permute.xlu0 %4642
      %4644 = vrot.lane.b32.xlu0 %v4311, 32
      %v4645 = vpop.permute.xlu0 %4644
      %4646 = vrot.lane.b32.xlu0 %v4323, 32
      %v4647 = vpop.permute.xlu0 %4646
      %4648 = vrot.lane.b32.xlu0 %v4335, 32
      %v4649 = vpop.permute.xlu0 %4648
      %4650 = vrot.lane.b32.xlu0 %v4347, 32
      %v4651 = vpop.permute.xlu0 %4650
      %4652 = vrot.lane.b32.xlu0 %v4359, 32
      %v4653 = vpop.permute.xlu0 %4652
      %4654 = vrot.lane.b32.xlu0 %v4371, 32
      %v4655 = vpop.permute.xlu0 %4654
      %4656 = vrot.lane.b32.xlu0 %v4383, 32
      %v4657 = vpop.permute.xlu0 %4656
      %4658 = vrot.lane.b32.xlu0 %v4395, 32
      %v4659 = vpop.permute.xlu0 %4658
      %4660 = vrot.lane.b32.xlu0 %v4407, 32
      %v4661 = vpop.permute.xlu0 %4660
      %4662 = vrot.lane.b32.xlu0 %v4419, 32
      %v4663 = vpop.permute.xlu0 %4662
      %4664 = vrot.lane.b32.xlu0 %v4431, 32
      %v4665 = vpop.permute.xlu0 %4664
      %4666 = vrot.lane.b32.xlu0 %v4443, 32
      %v4667 = vpop.permute.xlu0 %4666
      %4668 = vrot.lane.b32.xlu0 %v4455, 32
      %v4669 = vpop.permute.xlu0 %4668
      %4670 = vrot.lane.b32.xlu0 %v4467, 32
      %v4671 = vpop.permute.xlu0 %4670
      %4672 = vrot.lane.b32.xlu0 %v4479, 32
      %v4673 = vpop.permute.xlu0 %4672
      %4674 = vrot.lane.b32.xlu0 %v4491, 32
      %v4675 = vpop.permute.xlu0 %4674
      %4676 = vrot.lane.b32.xlu0 %v4503, 32
      %v4677 = vpop.permute.xlu0 %4676
      %4678 = vrot.lane.b32.xlu0 %v4515, 32
      %v4679 = vpop.permute.xlu0 %4678
      %4680 = vrot.lane.b32.xlu0 %v4527, 32
      %v4681 = vpop.permute.xlu0 %4680
      %4682 = vrot.lane.b32.xlu0 %v4539, 32
      %v4683 = vpop.permute.xlu0 %4682
      %4684 = vrot.lane.b32.xlu0 %v4551, 32
      %v4685 = vpop.permute.xlu0 %4684
      %4686 = vrot.lane.b32.xlu0 %v4563, 32
      %v4687 = vpop.permute.xlu0 %4686
      %4688 = vrot.lane.b32.xlu0 %v4575, 32
      %v4689 = vpop.permute.xlu0 %4688
      %4690 = vrot.lane.b32.xlu0 %v4587, 32
      %v4691 = vpop.permute.xlu0 %4690
      %4692 = vrot.lane.b32.xlu0 %v4599, 32
      %v4693 = vpop.permute.xlu0 %4692
      %4694 = vrot.lane.b32.xlu0 %v4611, 32
      %v4695 = vpop.permute.xlu0 %4694
      %4696 = vrot.lane.b32.xlu0 %v4623, 32
      %v4697 = vpop.permute.xlu0 %4696
      %4698 = vrot.lane.b32.xlu0 %v4635, 32
      %v4699 = vpop.permute.xlu0 %4698
      %vm4732 = vcmask 326912
      %4733 = vst.msk [vmem:[#allocation3] sm:$0xff] %vm4732, %v4637
      %4734 = vst.msk [vmem:[#allocation3 + $0x8] sm:$0xff] %vm4732, %v4639
      %4735 = vst.msk [vmem:[#allocation3 + $0x10] sm:$0xff] %vm4732, %v4641
      %4736 = vst.msk [vmem:[#allocation3 + $0x18] sm:$0xff] %vm4732, %v4643
      %4737 = vst.msk [vmem:[#allocation3 + $0x20] sm:$0xff] %vm4732, %v4645
      %4738 = vst.msk [vmem:[#allocation3 + $0x28] sm:$0xff] %vm4732, %v4647
      %4739 = vst.msk [vmem:[#allocation3 + $0x30] sm:$0xff] %vm4732, %v4649
      %4740 = vst.msk [vmem:[#allocation3 + $0x38] sm:$0xff] %vm4732, %v4651
      %4741 = vst.msk [vmem:[#allocation3 + $0x40] sm:$0xff] %vm4732, %v4653
      %4742 = vst.msk [vmem:[#allocation3 + $0x48] sm:$0xff] %vm4732, %v4655
      %4743 = vst.msk [vmem:[#allocation3 + $0x50] sm:$0xff] %vm4732, %v4657
      %4744 = vst.msk [vmem:[#allocation3 + $0x58] sm:$0xff] %vm4732, %v4659
      %4745 = vst.msk [vmem:[#allocation3 + $0x60] sm:$0xff] %vm4732, %v4661
      %4746 = vst.msk [vmem:[#allocation3 + $0x68] sm:$0xff] %vm4732, %v4663
      %4747 = vst.msk [vmem:[#allocation3 + $0x70] sm:$0xff] %vm4732, %v4665
      %4748 = vst.msk [vmem:[#allocation3 + $0x78] sm:$0xff] %vm4732, %v4667
      %4749 = vst.msk [vmem:[#allocation3 + $0x80] sm:$0xff] %vm4732, %v4669
      %4750 = vst.msk [vmem:[#allocation3 + $0x88] sm:$0xff] %vm4732, %v4671
      %4751 = vst.msk [vmem:[#allocation3 + $0x90] sm:$0xff] %vm4732, %v4673
      %4752 = vst.msk [vmem:[#allocation3 + $0x98] sm:$0xff] %vm4732, %v4675
      %4753 = vst.msk [vmem:[#allocation3 + $0xa0] sm:$0xff] %vm4732, %v4677
      %4754 = vst.msk [vmem:[#allocation3 + $0xa8] sm:$0xff] %vm4732, %v4679
      %4755 = vst.msk [vmem:[#allocation3 + $0xb0] sm:$0xff] %vm4732, %v4681
      %4756 = vst.msk [vmem:[#allocation3 + $0xb8] sm:$0xff] %vm4732, %v4683
      %4757 = vst.msk [vmem:[#allocation3 + $0xc0] sm:$0xff] %vm4732, %v4685
      %4758 = vst.msk [vmem:[#allocation3 + $0xc8] sm:$0xff] %vm4732, %v4687
      %4759 = vst.msk [vmem:[#allocation3 + $0xd0] sm:$0xff] %vm4732, %v4689
      %4760 = vst.msk [vmem:[#allocation3 + $0xd8] sm:$0xff] %vm4732, %v4691
      %4761 = vst.msk [vmem:[#allocation3 + $0xe0] sm:$0xff] %vm4732, %v4693
      %4762 = vst.msk [vmem:[#allocation3 + $0xe8] sm:$0xff] %vm4732, %v4695
      %4763 = vst.msk [vmem:[#allocation3 + $0xf0] sm:$0xff] %vm4732, %v4697
      %4764 = vst.msk [vmem:[#allocation3 + $0xf8] sm:$0xff] %vm4732, %v4699
      %v4765 = vld [vmem:[%s887] sm:$0xe]
      %v4766 = vld [vmem:[%s887 + $0x4] sm:$0xf]
      %v4767 = vld [vmem:[%s887 + $0x8] sm:$0x1]
      %v4768 = vld [vmem:[%s887 + $0xc] sm:$0xe]
      %v4769 = vld [vmem:[%s887 + $0x10] sm:$0xf]
      %v4770 = vld [vmem:[%s887 + $0x14] sm:$0x1]
      %v4771 = vld [vmem:[%s887 + $0x18] sm:$0xe]
      %v4772 = vld [vmem:[%s887 + $0x1c] sm:$0xf]
      %v4773 = vld [vmem:[%s887 + $0x20] sm:$0x1]
      %v4774 = vld [vmem:[%s887 + $0x24] sm:$0xe]
      %v4775 = vld [vmem:[%s887 + $0x28] sm:$0xf]
      %v4776 = vld [vmem:[%s887 + $0x2c] sm:$0x1]
      %v4777 = vld [vmem:[%s887 + $0x30] sm:$0xe]
      %v4778 = vld [vmem:[%s887 + $0x34] sm:$0xf]
      %v4779 = vld [vmem:[%s887 + $0x38] sm:$0x1]
      %v4780 = vld [vmem:[%s887 + $0x3c] sm:$0xe]
      %v4781 = vld [vmem:[%s887 + $0x40] sm:$0xf]
      %v4782 = vld [vmem:[%s887 + $0x44] sm:$0x1]
      %v4783 = vld [vmem:[%s887 + $0x48] sm:$0xe]
      %v4784 = vld [vmem:[%s887 + $0x4c] sm:$0xf]
      %v4785 = vld [vmem:[%s887 + $0x50] sm:$0x1]
      %v4786 = vld [vmem:[%s887 + $0x54] sm:$0xe]
      %v4787 = vld [vmem:[%s887 + $0x58] sm:$0xf]
      %v4788 = vld [vmem:[%s887 + $0x5c] sm:$0x1]
      %v4789 = vld [vmem:[%s887 + $0x60] sm:$0xe]
      %v4790 = vld [vmem:[%s887 + $0x64] sm:$0xf]
      %v4791 = vld [vmem:[%s887 + $0x68] sm:$0x1]
      %v4792 = vld [vmem:[%s887 + $0x6c] sm:$0xe]
      %v4793 = vld [vmem:[%s887 + $0x70] sm:$0xf]
      %v4794 = vld [vmem:[%s887 + $0x74] sm:$0x1]
      %v4795 = vld [vmem:[%s887 + $0x78] sm:$0xe]
      %v4796 = vld [vmem:[%s887 + $0x7c] sm:$0xf]
      %v4797 = vld [vmem:[%s887 + $0x80] sm:$0x1]
      %v4798 = vld [vmem:[%s887 + $0x84] sm:$0xe]
      %v4799 = vld [vmem:[%s887 + $0x88] sm:$0xf]
      %v4800 = vld [vmem:[%s887 + $0x8c] sm:$0x1]
      %v4801 = vld [vmem:[%s887 + $0x90] sm:$0xe]
      %v4802 = vld [vmem:[%s887 + $0x94] sm:$0xf]
      %v4803 = vld [vmem:[%s887 + $0x98] sm:$0x1]
      %v4804 = vld [vmem:[%s887 + $0x9c] sm:$0xe]
      %v4805 = vld [vmem:[%s887 + $0xa0] sm:$0xf]
      %v4806 = vld [vmem:[%s887 + $0xa4] sm:$0x1]
      %v4807 = vld [vmem:[%s887 + $0xa8] sm:$0xe]
      %v4808 = vld [vmem:[%s887 + $0xac] sm:$0xf]
      %v4809 = vld [vmem:[%s887 + $0xb0] sm:$0x1]
      %v4810 = vld [vmem:[%s887 + $0xb4] sm:$0xe]
      %v4811 = vld [vmem:[%s887 + $0xb8] sm:$0xf]
      %v4812 = vld [vmem:[%s887 + $0xbc] sm:$0x1]
      %v4813 = vld [vmem:[%s887 + $0xd8] sm:$0xe]
      %v4814 = vld [vmem:[%s887 + $0xdc] sm:$0xf]
      %v4815 = vld [vmem:[%s887 + $0xe0] sm:$0x1]
      %v4816 = vld [vmem:[%s887 + $0xe4] sm:$0xe]
      %v4817 = vld [vmem:[%s887 + $0xe8] sm:$0xf]
      %v4818 = vld [vmem:[%s887 + $0xec] sm:$0x1]
      %v4819 = vld [vmem:[%s887 + $0xf0] sm:$0xe]
      %v4820 = vld [vmem:[%s887 + $0xf4] sm:$0xf]
      %v4821 = vld [vmem:[%s887 + $0xf8] sm:$0x1]
      %v4822 = vld [vmem:[%s887 + $0xfc] sm:$0xe]
      %v4823 = vld [vmem:[%s887 + $0x100] sm:$0xf]
      %v4824 = vld [vmem:[%s887 + $0x104] sm:$0x1]
      %v4825 = vld [vmem:[%s887 + $0x108] sm:$0xe]
      %v4826 = vld [vmem:[%s887 + $0x10c] sm:$0xf]
      %v4827 = vld [vmem:[%s887 + $0x110] sm:$0x1]
      %v4828 = vld [vmem:[%s887 + $0x114] sm:$0xe]
      %v4829 = vld [vmem:[%s887 + $0x118] sm:$0xf]
      %v4830 = vld [vmem:[%s887 + $0x11c] sm:$0x1]
      %v4831 = vld [vmem:[%s887 + $0x120] sm:$0xe]
      %v4832 = vld [vmem:[%s887 + $0x124] sm:$0xf]
      %v4833 = vld [vmem:[%s887 + $0x128] sm:$0x1]
      %v4834 = vld [vmem:[%s887 + $0x12c] sm:$0xe]
      %v4835 = vld [vmem:[%s887 + $0x130] sm:$0xf]
      %v4836 = vld [vmem:[%s887 + $0x134] sm:$0x1]
      %v4837 = vld [vmem:[%s887 + $0x138] sm:$0xe]
      %v4838 = vld [vmem:[%s887 + $0x13c] sm:$0xf]
      %v4839 = vld [vmem:[%s887 + $0x140] sm:$0x1]
      %v4840 = vld [vmem:[%s887 + $0x144] sm:$0xe]
      %v4841 = vld [vmem:[%s887 + $0x148] sm:$0xf]
      %v4842 = vld [vmem:[%s887 + $0x14c] sm:$0x1]
      %v4843 = vld [vmem:[%s887 + $0x150] sm:$0xe]
      %v4844 = vld [vmem:[%s887 + $0x154] sm:$0xf]
      %v4845 = vld [vmem:[%s887 + $0x158] sm:$0x1]
      %v4846 = vld [vmem:[%s887 + $0x15c] sm:$0xe]
      %v4847 = vld [vmem:[%s887 + $0x160] sm:$0xf]
      %v4848 = vld [vmem:[%s887 + $0x164] sm:$0x1]
      %v4849 = vld [vmem:[%s887 + $0x168] sm:$0xe]
      %v4850 = vld [vmem:[%s887 + $0x16c] sm:$0xf]
      %v4851 = vld [vmem:[%s887 + $0x170] sm:$0x1]
      %v4852 = vld [vmem:[%s887 + $0x174] sm:$0xe]
      %v4853 = vld [vmem:[%s887 + $0x178] sm:$0xf]
      %v4854 = vld [vmem:[%s887 + $0x17c] sm:$0x1]
      %v4855 = vld [vmem:[%s887 + $0x180] sm:$0xe]
      %v4856 = vld [vmem:[%s887 + $0x184] sm:$0xf]
      %v4857 = vld [vmem:[%s887 + $0x188] sm:$0x1]
      %v4858 = vld [vmem:[%s887 + $0x18c] sm:$0xe]
      %v4859 = vld [vmem:[%s887 + $0x190] sm:$0xf]
      %v4860 = vld [vmem:[%s887 + $0x194] sm:$0x1]
      %v4957 = vunpack.c.l.b16 %v4765
      %v4958 = vunpack.c.l.b16 %v4766
      %v4959 = vunpack.c.l.b16 %v4767
      %v4960 = vunpack.c.l.b16 %v4768
      %v4961 = vunpack.c.l.b16 %v4769
      %v4962 = vunpack.c.l.b16 %v4770
      %v4963 = vunpack.c.l.b16 %v4771
      %v4964 = vunpack.c.l.b16 %v4772
      %v4965 = vunpack.c.l.b16 %v4773
      %v4966 = vunpack.c.l.b16 %v4774
      %v4967 = vunpack.c.l.b16 %v4775
      %v4968 = vunpack.c.l.b16 %v4776
      %v4969 = vunpack.c.l.b16 %v4777
      %v4970 = vunpack.c.l.b16 %v4778
      %v4971 = vunpack.c.l.b16 %v4779
      %v4972 = vunpack.c.l.b16 %v4780
      %v4973 = vunpack.c.l.b16 %v4781
      %v4974 = vunpack.c.l.b16 %v4782
      %v4975 = vunpack.c.l.b16 %v4783
      %v4976 = vunpack.c.l.b16 %v4784
      %v4977 = vunpack.c.l.b16 %v4785
      %v4978 = vunpack.c.l.b16 %v4786
      %v4979 = vunpack.c.l.b16 %v4787
      %v4980 = vunpack.c.l.b16 %v4788
      %v4981 = vunpack.c.l.b16 %v4789
      %v4982 = vunpack.c.l.b16 %v4790
      %v4983 = vunpack.c.l.b16 %v4791
      %v4984 = vunpack.c.l.b16 %v4792
      %v4985 = vunpack.c.l.b16 %v4793
      %v4986 = vunpack.c.l.b16 %v4794
      %v4987 = vunpack.c.l.b16 %v4795
      %v4988 = vunpack.c.l.b16 %v4796
      %v4989 = vunpack.c.l.b16 %v4797
      %v4990 = vunpack.c.l.b16 %v4798
      %v4991 = vunpack.c.l.b16 %v4799
      %v4992 = vunpack.c.l.b16 %v4800
      %v4993 = vunpack.c.l.b16 %v4801
      %v4994 = vunpack.c.l.b16 %v4802
      %v4995 = vunpack.c.l.b16 %v4803
      %v4996 = vunpack.c.l.b16 %v4804
      %v4997 = vunpack.c.l.b16 %v4805
      %v4998 = vunpack.c.l.b16 %v4806
      %v4999 = vunpack.c.l.b16 %v4807
      %v5000 = vunpack.c.l.b16 %v4808
      %v5001 = vunpack.c.l.b16 %v4809
      %v5002 = vunpack.c.l.b16 %v4810
      %v5003 = vunpack.c.l.b16 %v4811
      %v5004 = vunpack.c.l.b16 %v4812
      %v5005 = vunpack.c.l.b16 %v4813
      %v5006 = vunpack.c.l.b16 %v4814
      %v5007 = vunpack.c.l.b16 %v4815
      %v5008 = vunpack.c.l.b16 %v4816
      %v5009 = vunpack.c.l.b16 %v4817
      %v5010 = vunpack.c.l.b16 %v4818
      %v5011 = vunpack.c.l.b16 %v4819
      %v5012 = vunpack.c.l.b16 %v4820
      %v5013 = vunpack.c.l.b16 %v4821
      %v5014 = vunpack.c.l.b16 %v4822
      %v5015 = vunpack.c.l.b16 %v4823
      %v5016 = vunpack.c.l.b16 %v4824
      %v5017 = vunpack.c.l.b16 %v4825
      %v5018 = vunpack.c.l.b16 %v4826
      %v5019 = vunpack.c.l.b16 %v4827
      %v5020 = vunpack.c.l.b16 %v4828
      %v5021 = vunpack.c.l.b16 %v4829
      %v5022 = vunpack.c.l.b16 %v4830
      %v5023 = vunpack.c.l.b16 %v4831
      %v5024 = vunpack.c.l.b16 %v4832
      %v5025 = vunpack.c.l.b16 %v4833
      %v5026 = vunpack.c.l.b16 %v4834
      %v5027 = vunpack.c.l.b16 %v4835
      %v5028 = vunpack.c.l.b16 %v4836
      %v5029 = vunpack.c.l.b16 %v4837
      %v5030 = vunpack.c.l.b16 %v4838
      %v5031 = vunpack.c.l.b16 %v4839
      %v5032 = vunpack.c.l.b16 %v4840
      %v5033 = vunpack.c.l.b16 %v4841
      %v5034 = vunpack.c.l.b16 %v4842
      %v5035 = vunpack.c.l.b16 %v4843
      %v5036 = vunpack.c.l.b16 %v4844
      %v5037 = vunpack.c.l.b16 %v4845
      %v5038 = vunpack.c.l.b16 %v4846
      %v5039 = vunpack.c.l.b16 %v4847
      %v5040 = vunpack.c.l.b16 %v4848
      %v5041 = vunpack.c.l.b16 %v4849
      %v5042 = vunpack.c.l.b16 %v4850
      %v5043 = vunpack.c.l.b16 %v4851
      %v5044 = vunpack.c.l.b16 %v4852
      %v5045 = vunpack.c.l.b16 %v4853
      %v5046 = vunpack.c.l.b16 %v4854
      %v5047 = vunpack.c.l.b16 %v4855
      %v5048 = vunpack.c.l.b16 %v4856
      %v5049 = vunpack.c.l.b16 %v4857
      %v5050 = vunpack.c.l.b16 %v4858
      %v5051 = vunpack.c.l.b16 %v4859
      %v5052 = vunpack.c.l.b16 %v4860
      %v5053 = vpack.c.b16 %v4958, %v4957
      %v5054 = vpack.c.b16 %v4959, %v4959
      %v5055 = vpack.c.b16 %v4961, %v4960
      %v5056 = vpack.c.b16 %v4962, %v4962
      %v5057 = vpack.c.b16 %v4964, %v4963
      %v5058 = vpack.c.b16 %v4965, %v4965
      %v5059 = vpack.c.b16 %v4967, %v4966
      %v5060 = vpack.c.b16 %v4968, %v4968
      %v5061 = vpack.c.b16 %v4970, %v4969
      %v5062 = vpack.c.b16 %v4971, %v4971
      %v5063 = vpack.c.b16 %v4973, %v4972
      %v5064 = vpack.c.b16 %v4974, %v4974
      %v5065 = vpack.c.b16 %v4976, %v4975
      %v5066 = vpack.c.b16 %v4977, %v4977
      %v5067 = vpack.c.b16 %v4979, %v4978
      %v5068 = vpack.c.b16 %v4980, %v4980
      %v5069 = vpack.c.b16 %v4982, %v4981
      %v5070 = vpack.c.b16 %v4983, %v4983
      %v5071 = vpack.c.b16 %v4985, %v4984
      %v5072 = vpack.c.b16 %v4986, %v4986
      %v5073 = vpack.c.b16 %v4988, %v4987
      %v5074 = vpack.c.b16 %v4989, %v4989
      %v5075 = vpack.c.b16 %v4991, %v4990
      %v5076 = vpack.c.b16 %v4992, %v4992
      %v5077 = vpack.c.b16 %v4994, %v4993
      %v5078 = vpack.c.b16 %v4995, %v4995
      %v5079 = vpack.c.b16 %v4997, %v4996
      %v5080 = vpack.c.b16 %v4998, %v4998
      %v5081 = vpack.c.b16 %v5000, %v4999
      %v5082 = vpack.c.b16 %v5001, %v5001
      %v5083 = vpack.c.b16 %v5003, %v5002
      %v5084 = vpack.c.b16 %v5004, %v5004
      %v5085 = vpack.c.b16 %v5006, %v5005
      %v5086 = vpack.c.b16 %v5007, %v5007
      %v5087 = vpack.c.b16 %v5009, %v5008
      %v5088 = vpack.c.b16 %v5010, %v5010
      %v5089 = vpack.c.b16 %v5012, %v5011
      %v5090 = vpack.c.b16 %v5013, %v5013
      %v5091 = vpack.c.b16 %v5015, %v5014
      %v5092 = vpack.c.b16 %v5016, %v5016
      %v5093 = vpack.c.b16 %v5018, %v5017
      %v5094 = vpack.c.b16 %v5019, %v5019
      %v5095 = vpack.c.b16 %v5021, %v5020
      %v5096 = vpack.c.b16 %v5022, %v5022
      %v5097 = vpack.c.b16 %v5024, %v5023
      %v5098 = vpack.c.b16 %v5025, %v5025
      %v5099 = vpack.c.b16 %v5027, %v5026
      %v5100 = vpack.c.b16 %v5028, %v5028
      %v5101 = vpack.c.b16 %v5030, %v5029
      %v5102 = vpack.c.b16 %v5031, %v5031
      %v5103 = vpack.c.b16 %v5033, %v5032
      %v5104 = vpack.c.b16 %v5034, %v5034
      %v5105 = vpack.c.b16 %v5036, %v5035
      %v5106 = vpack.c.b16 %v5037, %v5037
      %v5107 = vpack.c.b16 %v5039, %v5038
      %v5108 = vpack.c.b16 %v5040, %v5040
      %v5109 = vpack.c.b16 %v5042, %v5041
      %v5110 = vpack.c.b16 %v5043, %v5043
      %v5111 = vpack.c.b16 %v5045, %v5044
      %v5112 = vpack.c.b16 %v5046, %v5046
      %v5113 = vpack.c.b16 %v5048, %v5047
      %v5114 = vpack.c.b16 %v5049, %v5049
      %v5115 = vpack.c.b16 %v5051, %v5050
      %v5116 = vpack.c.b16 %v5052, %v5052
      %v5117 = vrot.slane %v5053, 1
      %v5118 = vrot.slane %v5054, 1
      %v5119 = vsel %vm3321, %v5117, %v5118
      %v5120 = vrot.slane %v5055, 1
      %v5121 = vrot.slane %v5056, 1
      %v5122 = vsel %vm3321, %v5120, %v5121
      %v5123 = vrot.slane %v5057, 1
      %v5124 = vrot.slane %v5058, 1
      %v5125 = vsel %vm3321, %v5123, %v5124
      %v5126 = vrot.slane %v5059, 1
      %v5127 = vrot.slane %v5060, 1
      %v5128 = vsel %vm3321, %v5126, %v5127
      %v5129 = vrot.slane %v5061, 1
      %v5130 = vrot.slane %v5062, 1
      %v5131 = vsel %vm3321, %v5129, %v5130
      %v5132 = vrot.slane %v5063, 1
      %v5133 = vrot.slane %v5064, 1
      %v5134 = vsel %vm3321, %v5132, %v5133
      %v5135 = vrot.slane %v5065, 1
      %v5136 = vrot.slane %v5066, 1
      %v5137 = vsel %vm3321, %v5135, %v5136
      %v5138 = vrot.slane %v5067, 1
      %v5139 = vrot.slane %v5068, 1
      %v5140 = vsel %vm3321, %v5138, %v5139
      %v5141 = vrot.slane %v5069, 1
      %v5142 = vrot.slane %v5070, 1
      %v5143 = vsel %vm3321, %v5141, %v5142
      %v5144 = vrot.slane %v5071, 1
      %v5145 = vrot.slane %v5072, 1
      %v5146 = vsel %vm3321, %v5144, %v5145
      %v5147 = vrot.slane %v5073, 1
      %v5148 = vrot.slane %v5074, 1
      %v5149 = vsel %vm3321, %v5147, %v5148
      %v5150 = vrot.slane %v5075, 1
      %v5151 = vrot.slane %v5076, 1
      %v5152 = vsel %vm3321, %v5150, %v5151
      %v5153 = vrot.slane %v5077, 1
      %v5154 = vrot.slane %v5078, 1
      %v5155 = vsel %vm3321, %v5153, %v5154
      %v5156 = vrot.slane %v5079, 1
      %v5157 = vrot.slane %v5080, 1
      %v5158 = vsel %vm3321, %v5156, %v5157
      %v5159 = vrot.slane %v5081, 1
      %v5160 = vrot.slane %v5082, 1
      %v5161 = vsel %vm3321, %v5159, %v5160
      %v5162 = vrot.slane %v5083, 1
      %v5163 = vrot.slane %v5084, 1
      %v5164 = vsel %vm3321, %v5162, %v5163
      %v5165 = vrot.slane %v5085, 1
      %v5166 = vrot.slane %v5086, 1
      %v5167 = vsel %vm3321, %v5165, %v5166
      %v5168 = vrot.slane %v5087, 1
      %v5169 = vrot.slane %v5088, 1
      %v5170 = vsel %vm3321, %v5168, %v5169
      %v5171 = vrot.slane %v5089, 1
      %v5172 = vrot.slane %v5090, 1
      %v5173 = vsel %vm3321, %v5171, %v5172
      %v5174 = vrot.slane %v5091, 1
      %v5175 = vrot.slane %v5092, 1
      %v5176 = vsel %vm3321, %v5174, %v5175
      %v5177 = vrot.slane %v5093, 1
      %v5178 = vrot.slane %v5094, 1
      %v5179 = vsel %vm3321, %v5177, %v5178
      %v5180 = vrot.slane %v5095, 1
      %v5181 = vrot.slane %v5096, 1
      %v5182 = vsel %vm3321, %v5180, %v5181
      %v5183 = vrot.slane %v5097, 1
      %v5184 = vrot.slane %v5098, 1
      %v5185 = vsel %vm3321, %v5183, %v5184
      %v5186 = vrot.slane %v5099, 1
      %v5187 = vrot.slane %v5100, 1
      %v5188 = vsel %vm3321, %v5186, %v5187
      %v5189 = vrot.slane %v5101, 1
      %v5190 = vrot.slane %v5102, 1
      %v5191 = vsel %vm3321, %v5189, %v5190
      %v5192 = vrot.slane %v5103, 1
      %v5193 = vrot.slane %v5104, 1
      %v5194 = vsel %vm3321, %v5192, %v5193
      %v5195 = vrot.slane %v5105, 1
      %v5196 = vrot.slane %v5106, 1
      %v5197 = vsel %vm3321, %v5195, %v5196
      %v5198 = vrot.slane %v5107, 1
      %v5199 = vrot.slane %v5108, 1
      %v5200 = vsel %vm3321, %v5198, %v5199
      %v5201 = vrot.slane %v5109, 1
      %v5202 = vrot.slane %v5110, 1
      %v5203 = vsel %vm3321, %v5201, %v5202
      %v5204 = vrot.slane %v5111, 1
      %v5205 = vrot.slane %v5112, 1
      %v5206 = vsel %vm3321, %v5204, %v5205
      %v5207 = vrot.slane %v5113, 1
      %v5208 = vrot.slane %v5114, 1
      %v5209 = vsel %vm3321, %v5207, %v5208
      %v5210 = vrot.slane %v5115, 1
      %v5211 = vrot.slane %v5116, 1
      %v5212 = vsel %vm3321, %v5210, %v5211
      %5213 = vrot.lane.b32.xlu0 %v5119, 40
      %v5214 = vpop.permute.xlu0 %5213
      %5215 = vrot.lane.b32.xlu0 %v5122, 40
      %v5216 = vpop.permute.xlu0 %5215
      %5217 = vrot.lane.b32.xlu0 %v5125, 40
      %v5218 = vpop.permute.xlu0 %5217
      %5219 = vrot.lane.b32.xlu0 %v5128, 40
      %v5220 = vpop.permute.xlu0 %5219
      %5221 = vrot.lane.b32.xlu0 %v5131, 40
      %v5222 = vpop.permute.xlu0 %5221
      %5223 = vrot.lane.b32.xlu0 %v5134, 40
      %v5224 = vpop.permute.xlu0 %5223
      %5225 = vrot.lane.b32.xlu0 %v5137, 40
      %v5226 = vpop.permute.xlu0 %5225
      %5227 = vrot.lane.b32.xlu0 %v5140, 40
      %v5228 = vpop.permute.xlu0 %5227
      %5229 = vrot.lane.b32.xlu0 %v5143, 40
      %v5230 = vpop.permute.xlu0 %5229
      %5231 = vrot.lane.b32.xlu0 %v5146, 40
      %v5232 = vpop.permute.xlu0 %5231
      %5233 = vrot.lane.b32.xlu0 %v5149, 40
      %v5234 = vpop.permute.xlu0 %5233
      %5235 = vrot.lane.b32.xlu0 %v5152, 40
      %v5236 = vpop.permute.xlu0 %5235
      %5237 = vrot.lane.b32.xlu0 %v5155, 40
      %v5238 = vpop.permute.xlu0 %5237
      %5239 = vrot.lane.b32.xlu0 %v5158, 40
      %v5240 = vpop.permute.xlu0 %5239
      %5241 = vrot.lane.b32.xlu0 %v5161, 40
      %v5242 = vpop.permute.xlu0 %5241
      %5243 = vrot.lane.b32.xlu0 %v5164, 40
      %v5244 = vpop.permute.xlu0 %5243
      %5245 = vrot.lane.b32.xlu0 %v5167, 40
      %v5246 = vpop.permute.xlu0 %5245
      %5247 = vrot.lane.b32.xlu0 %v5170, 40
      %v5248 = vpop.permute.xlu0 %5247
      %5249 = vrot.lane.b32.xlu0 %v5173, 40
      %v5250 = vpop.permute.xlu0 %5249
      %5251 = vrot.lane.b32.xlu0 %v5176, 40
      %v5252 = vpop.permute.xlu0 %5251
      %5253 = vrot.lane.b32.xlu0 %v5179, 40
      %v5254 = vpop.permute.xlu0 %5253
      %5255 = vrot.lane.b32.xlu0 %v5182, 40
      %v5256 = vpop.permute.xlu0 %5255
      %5257 = vrot.lane.b32.xlu0 %v5185, 40
      %v5258 = vpop.permute.xlu0 %5257
      %5259 = vrot.lane.b32.xlu0 %v5188, 40
      %v5260 = vpop.permute.xlu0 %5259
      %5261 = vrot.lane.b32.xlu0 %v5191, 40
      %v5262 = vpop.permute.xlu0 %5261
      %5263 = vrot.lane.b32.xlu0 %v5194, 40
      %v5264 = vpop.permute.xlu0 %5263
      %5265 = vrot.lane.b32.xlu0 %v5197, 40
      %v5266 = vpop.permute.xlu0 %5265
      %5267 = vrot.lane.b32.xlu0 %v5200, 40
      %v5268 = vpop.permute.xlu0 %5267
      %5269 = vrot.lane.b32.xlu0 %v5203, 40
      %v5270 = vpop.permute.xlu0 %5269
      %5271 = vrot.lane.b32.xlu0 %v5206, 40
      %v5272 = vpop.permute.xlu0 %5271
      %5273 = vrot.lane.b32.xlu0 %v5209, 40
      %v5274 = vpop.permute.xlu0 %5273
      %5275 = vrot.lane.b32.xlu0 %v5212, 40
      %v5276 = vpop.permute.xlu0 %5275
      %vm5309 = vcmask 392512
      %5310 = vst.msk [vmem:[#allocation3] sm:$0xff] %vm5309, %v5214
      %5311 = vst.msk [vmem:[#allocation3 + $0x8] sm:$0xff] %vm5309, %v5216
      %5312 = vst.msk [vmem:[#allocation3 + $0x10] sm:$0xff] %vm5309, %v5218
      %5313 = vst.msk [vmem:[#allocation3 + $0x18] sm:$0xff] %vm5309, %v5220
      %5314 = vst.msk [vmem:[#allocation3 + $0x20] sm:$0xff] %vm5309, %v5222
      %5315 = vst.msk [vmem:[#allocation3 + $0x28] sm:$0xff] %vm5309, %v5224
      %5316 = vst.msk [vmem:[#allocation3 + $0x30] sm:$0xff] %vm5309, %v5226
      %5317 = vst.msk [vmem:[#allocation3 + $0x38] sm:$0xff] %vm5309, %v5228
      %5318 = vst.msk [vmem:[#allocation3 + $0x40] sm:$0xff] %vm5309, %v5230
      %5319 = vst.msk [vmem:[#allocation3 + $0x48] sm:$0xff] %vm5309, %v5232
      %5320 = vst.msk [vmem:[#allocation3 + $0x50] sm:$0xff] %vm5309, %v5234
      %5321 = vst.msk [vmem:[#allocation3 + $0x58] sm:$0xff] %vm5309, %v5236
      %5322 = vst.msk [vmem:[#allocation3 + $0x60] sm:$0xff] %vm5309, %v5238
      %5323 = vst.msk [vmem:[#allocation3 + $0x68] sm:$0xff] %vm5309, %v5240
      %5324 = vst.msk [vmem:[#allocation3 + $0x70] sm:$0xff] %vm5309, %v5242
      %5325 = vst.msk [vmem:[#allocation3 + $0x78] sm:$0xff] %vm5309, %v5244
      %5326 = vst.msk [vmem:[#allocation3 + $0x80] sm:$0xff] %vm5309, %v5246
      %5327 = vst.msk [vmem:[#allocation3 + $0x88] sm:$0xff] %vm5309, %v5248
      %5328 = vst.msk [vmem:[#allocation3 + $0x90] sm:$0xff] %vm5309, %v5250
      %5329 = vst.msk [vmem:[#allocation3 + $0x98] sm:$0xff] %vm5309, %v5252
      %5330 = vst.msk [vmem:[#allocation3 + $0xa0] sm:$0xff] %vm5309, %v5254
      %5331 = vst.msk [vmem:[#allocation3 + $0xa8] sm:$0xff] %vm5309, %v5256
      %5332 = vst.msk [vmem:[#allocation3 + $0xb0] sm:$0xff] %vm5309, %v5258
      %5333 = vst.msk [vmem:[#allocation3 + $0xb8] sm:$0xff] %vm5309, %v5260
      %5334 = vst.msk [vmem:[#allocation3 + $0xc0] sm:$0xff] %vm5309, %v5262
      %5335 = vst.msk [vmem:[#allocation3 + $0xc8] sm:$0xff] %vm5309, %v5264
      %5336 = vst.msk [vmem:[#allocation3 + $0xd0] sm:$0xff] %vm5309, %v5266
      %5337 = vst.msk [vmem:[#allocation3 + $0xd8] sm:$0xff] %vm5309, %v5268
      %5338 = vst.msk [vmem:[#allocation3 + $0xe0] sm:$0xff] %vm5309, %v5270
      %5339 = vst.msk [vmem:[#allocation3 + $0xe8] sm:$0xff] %vm5309, %v5272
      %5340 = vst.msk [vmem:[#allocation3 + $0xf0] sm:$0xff] %vm5309, %v5274
      %5341 = vst.msk [vmem:[#allocation3 + $0xf8] sm:$0xff] %vm5309, %v5276
      %s5342 = scalar_lea.vmem [#allocation2], 24
      %v5343 = vld [vmem:[%s5342] sm:$0xf]
      %v5344 = vld [vmem:[%s5342 + $0x4] sm:$0xf]
      %v5345 = vld [vmem:[%s5342 + $0xc] sm:$0xf]
      %v5346 = vld [vmem:[%s5342 + $0x10] sm:$0xf]
      %v5347 = vld [vmem:[%s5342 + $0x18] sm:$0xf]
      %v5348 = vld [vmem:[%s5342 + $0x1c] sm:$0xf]
      %v5349 = vld [vmem:[%s5342 + $0x24] sm:$0xf]
      %v5350 = vld [vmem:[%s5342 + $0x28] sm:$0xf]
      %v5351 = vld [vmem:[%s5342 + $0x30] sm:$0xf]
      %v5352 = vld [vmem:[%s5342 + $0x34] sm:$0xf]
      %v5353 = vld [vmem:[%s5342 + $0x3c] sm:$0xf]
      %v5354 = vld [vmem:[%s5342 + $0x40] sm:$0xf]
      %v5355 = vld [vmem:[%s5342 + $0x48] sm:$0xf]
      %v5356 = vld [vmem:[%s5342 + $0x4c] sm:$0xf]
      %v5357 = vld [vmem:[%s5342 + $0x54] sm:$0xf]
      %v5358 = vld [vmem:[%s5342 + $0x58] sm:$0xf]
      %v5359 = vld [vmem:[%s5342 + $0x60] sm:$0xf]
      %v5360 = vld [vmem:[%s5342 + $0x64] sm:$0xf]
      %v5361 = vld [vmem:[%s5342 + $0x6c] sm:$0xf]
      %v5362 = vld [vmem:[%s5342 + $0x70] sm:$0xf]
      %v5363 = vld [vmem:[%s5342 + $0x78] sm:$0xf]
      %v5364 = vld [vmem:[%s5342 + $0x7c] sm:$0xf]
      %v5365 = vld [vmem:[%s5342 + $0x84] sm:$0xf]
      %v5366 = vld [vmem:[%s5342 + $0x88] sm:$0xf]
      %v5367 = vld [vmem:[%s5342 + $0x90] sm:$0xf]
      %v5368 = vld [vmem:[%s5342 + $0x94] sm:$0xf]
      %v5369 = vld [vmem:[%s5342 + $0x9c] sm:$0xf]
      %v5370 = vld [vmem:[%s5342 + $0xa0] sm:$0xf]
      %v5371 = vld [vmem:[%s5342 + $0xa8] sm:$0xf]
      %v5372 = vld [vmem:[%s5342 + $0xac] sm:$0xf]
      %v5373 = vld [vmem:[%s5342 + $0xb4] sm:$0xf]
      %v5374 = vld [vmem:[%s5342 + $0xb8] sm:$0xf]
      %v5375 = vld [vmem:[%s5342 + $0xd8] sm:$0xf]
      %v5376 = vld [vmem:[%s5342 + $0xdc] sm:$0xf]
      %v5377 = vld [vmem:[%s5342 + $0xe4] sm:$0xf]
      %v5378 = vld [vmem:[%s5342 + $0xe8] sm:$0xf]
      %v5379 = vld [vmem:[%s5342 + $0xf0] sm:$0xf]
      %v5380 = vld [vmem:[%s5342 + $0xf4] sm:$0xf]
      %v5381 = vld [vmem:[%s5342 + $0xfc] sm:$0xf]
      %v5382 = vld [vmem:[%s5342 + $0x100] sm:$0xf]
      %v5383 = vld [vmem:[%s5342 + $0x108] sm:$0xf]
      %v5384 = vld [vmem:[%s5342 + $0x10c] sm:$0xf]
      %v5385 = vld [vmem:[%s5342 + $0x114] sm:$0xf]
      %v5386 = vld [vmem:[%s5342 + $0x118] sm:$0xf]
      %v5387 = vld [vmem:[%s5342 + $0x120] sm:$0xf]
      %v5388 = vld [vmem:[%s5342 + $0x124] sm:$0xf]
      %v5389 = vld [vmem:[%s5342 + $0x12c] sm:$0xf]
      %v5390 = vld [vmem:[%s5342 + $0x130] sm:$0xf]
      %v5391 = vld [vmem:[%s5342 + $0x138] sm:$0xf]
      %v5392 = vld [vmem:[%s5342 + $0x13c] sm:$0xf]
      %v5393 = vld [vmem:[%s5342 + $0x144] sm:$0xf]
      %v5394 = vld [vmem:[%s5342 + $0x148] sm:$0xf]
      %v5395 = vld [vmem:[%s5342 + $0x150] sm:$0xf]
      %v5396 = vld [vmem:[%s5342 + $0x154] sm:$0xf]
      %v5397 = vld [vmem:[%s5342 + $0x15c] sm:$0xf]
      %v5398 = vld [vmem:[%s5342 + $0x160] sm:$0xf]
      %v5399 = vld [vmem:[%s5342 + $0x168] sm:$0xf]
      %v5400 = vld [vmem:[%s5342 + $0x16c] sm:$0xf]
      %v5401 = vld [vmem:[%s5342 + $0x174] sm:$0xf]
      %v5402 = vld [vmem:[%s5342 + $0x178] sm:$0xf]
      %v5403 = vld [vmem:[%s5342 + $0x180] sm:$0xf]
      %v5404 = vld [vmem:[%s5342 + $0x184] sm:$0xf]
      %v5405 = vld [vmem:[%s5342 + $0x18c] sm:$0xf]
      %v5406 = vld [vmem:[%s5342 + $0x190] sm:$0xf]
      %v5471 = vunpack.c.l.b16 %v5343
      %v5472 = vunpack.c.l.b16 %v5344
      %v5473 = vunpack.c.l.b16 %v5345
      %v5474 = vunpack.c.l.b16 %v5346
      %v5475 = vunpack.c.l.b16 %v5347
      %v5476 = vunpack.c.l.b16 %v5348
      %v5477 = vunpack.c.l.b16 %v5349
      %v5478 = vunpack.c.l.b16 %v5350
      %v5479 = vunpack.c.l.b16 %v5351
      %v5480 = vunpack.c.l.b16 %v5352
      %v5481 = vunpack.c.l.b16 %v5353
      %v5482 = vunpack.c.l.b16 %v5354
      %v5483 = vunpack.c.l.b16 %v5355
      %v5484 = vunpack.c.l.b16 %v5356
      %v5485 = vunpack.c.l.b16 %v5357
      %v5486 = vunpack.c.l.b16 %v5358
      %v5487 = vunpack.c.l.b16 %v5359
      %v5488 = vunpack.c.l.b16 %v5360
      %v5489 = vunpack.c.l.b16 %v5361
      %v5490 = vunpack.c.l.b16 %v5362
      %v5491 = vunpack.c.l.b16 %v5363
      %v5492 = vunpack.c.l.b16 %v5364
      %v5493 = vunpack.c.l.b16 %v5365
      %v5494 = vunpack.c.l.b16 %v5366
      %v5495 = vunpack.c.l.b16 %v5367
      %v5496 = vunpack.c.l.b16 %v5368
      %v5497 = vunpack.c.l.b16 %v5369
      %v5498 = vunpack.c.l.b16 %v5370
      %v5499 = vunpack.c.l.b16 %v5371
      %v5500 = vunpack.c.l.b16 %v5372
      %v5501 = vunpack.c.l.b16 %v5373
      %v5502 = vunpack.c.l.b16 %v5374
      %v5503 = vunpack.c.l.b16 %v5375
      %v5504 = vunpack.c.l.b16 %v5376
      %v5505 = vunpack.c.l.b16 %v5377
      %v5506 = vunpack.c.l.b16 %v5378
      %v5507 = vunpack.c.l.b16 %v5379
      %v5508 = vunpack.c.l.b16 %v5380
      %v5509 = vunpack.c.l.b16 %v5381
      %v5510 = vunpack.c.l.b16 %v5382
      %v5511 = vunpack.c.l.b16 %v5383
      %v5512 = vunpack.c.l.b16 %v5384
      %v5513 = vunpack.c.l.b16 %v5385
      %v5514 = vunpack.c.l.b16 %v5386
      %v5515 = vunpack.c.l.b16 %v5387
      %v5516 = vunpack.c.l.b16 %v5388
      %v5517 = vunpack.c.l.b16 %v5389
      %v5518 = vunpack.c.l.b16 %v5390
      %v5519 = vunpack.c.l.b16 %v5391
      %v5520 = vunpack.c.l.b16 %v5392
      %v5521 = vunpack.c.l.b16 %v5393
      %v5522 = vunpack.c.l.b16 %v5394
      %v5523 = vunpack.c.l.b16 %v5395
      %v5524 = vunpack.c.l.b16 %v5396
      %v5525 = vunpack.c.l.b16 %v5397
      %v5526 = vunpack.c.l.b16 %v5398
      %v5527 = vunpack.c.l.b16 %v5399
      %v5528 = vunpack.c.l.b16 %v5400
      %v5529 = vunpack.c.l.b16 %v5401
      %v5530 = vunpack.c.l.b16 %v5402
      %v5531 = vunpack.c.l.b16 %v5403
      %v5532 = vunpack.c.l.b16 %v5404
      %v5533 = vunpack.c.l.b16 %v5405
      %v5534 = vunpack.c.l.b16 %v5406
      %v5535 = vpack.c.b16 %v5472, %v5471
      %v5536 = vpack.c.b16 %v5474, %v5473
      %v5537 = vpack.c.b16 %v5476, %v5475
      %v5538 = vpack.c.b16 %v5478, %v5477
      %v5539 = vpack.c.b16 %v5480, %v5479
      %v5540 = vpack.c.b16 %v5482, %v5481
      %v5541 = vpack.c.b16 %v5484, %v5483
      %v5542 = vpack.c.b16 %v5486, %v5485
      %v5543 = vpack.c.b16 %v5488, %v5487
      %v5544 = vpack.c.b16 %v5490, %v5489
      %v5545 = vpack.c.b16 %v5492, %v5491
      %v5546 = vpack.c.b16 %v5494, %v5493
      %v5547 = vpack.c.b16 %v5496, %v5495
      %v5548 = vpack.c.b16 %v5498, %v5497
      %v5549 = vpack.c.b16 %v5500, %v5499
      %v5550 = vpack.c.b16 %v5502, %v5501
      %v5551 = vpack.c.b16 %v5504, %v5503
      %v5552 = vpack.c.b16 %v5506, %v5505
      %v5553 = vpack.c.b16 %v5508, %v5507
      %v5554 = vpack.c.b16 %v5510, %v5509
      %v5555 = vpack.c.b16 %v5512, %v5511
      %v5556 = vpack.c.b16 %v5514, %v5513
      %v5557 = vpack.c.b16 %v5516, %v5515
      %v5558 = vpack.c.b16 %v5518, %v5517
      %v5559 = vpack.c.b16 %v5520, %v5519
      %v5560 = vpack.c.b16 %v5522, %v5521
      %v5561 = vpack.c.b16 %v5524, %v5523
      %v5562 = vpack.c.b16 %v5526, %v5525
      %v5563 = vpack.c.b16 %v5528, %v5527
      %v5564 = vpack.c.b16 %v5530, %v5529
      %v5565 = vpack.c.b16 %v5532, %v5531
      %v5566 = vpack.c.b16 %v5534, %v5533
      %5567 = vrot.lane.b32.xlu0 %v5535, 48
      %v5568 = vpop.permute.xlu0 %5567
      %5569 = vrot.lane.b32.xlu0 %v5536, 48
      %v5570 = vpop.permute.xlu0 %5569
      %5571 = vrot.lane.b32.xlu0 %v5537, 48
      %v5572 = vpop.permute.xlu0 %5571
      %5573 = vrot.lane.b32.xlu0 %v5538, 48
      %v5574 = vpop.permute.xlu0 %5573
      %5575 = vrot.lane.b32.xlu0 %v5539, 48
      %v5576 = vpop.permute.xlu0 %5575
      %5577 = vrot.lane.b32.xlu0 %v5540, 48
      %v5578 = vpop.permute.xlu0 %5577
      %5579 = vrot.lane.b32.xlu0 %v5541, 48
      %v5580 = vpop.permute.xlu0 %5579
      %5581 = vrot.lane.b32.xlu0 %v5542, 48
      %v5582 = vpop.permute.xlu0 %5581
      %5583 = vrot.lane.b32.xlu0 %v5543, 48
      %v5584 = vpop.permute.xlu0 %5583
      %5585 = vrot.lane.b32.xlu0 %v5544, 48
      %v5586 = vpop.permute.xlu0 %5585
      %5587 = vrot.lane.b32.xlu0 %v5545, 48
      %v5588 = vpop.permute.xlu0 %5587
      %5589 = vrot.lane.b32.xlu0 %v5546, 48
      %v5590 = vpop.permute.xlu0 %5589
      %5591 = vrot.lane.b32.xlu0 %v5547, 48
      %v5592 = vpop.permute.xlu0 %5591
      %5593 = vrot.lane.b32.xlu0 %v5548, 48
      %v5594 = vpop.permute.xlu0 %5593
      %5595 = vrot.lane.b32.xlu0 %v5549, 48
      %v5596 = vpop.permute.xlu0 %5595
      %5597 = vrot.lane.b32.xlu0 %v5550, 48
      %v5598 = vpop.permute.xlu0 %5597
      %5599 = vrot.lane.b32.xlu0 %v5551, 48
      %v5600 = vpop.permute.xlu0 %5599
      %5601 = vrot.lane.b32.xlu0 %v5552, 48
      %v5602 = vpop.permute.xlu0 %5601
      %5603 = vrot.lane.b32.xlu0 %v5553, 48
      %v5604 = vpop.permute.xlu0 %5603
      %5605 = vrot.lane.b32.xlu0 %v5554, 48
      %v5606 = vpop.permute.xlu0 %5605
      %5607 = vrot.lane.b32.xlu0 %v5555, 48
      %v5608 = vpop.permute.xlu0 %5607
      %5609 = vrot.lane.b32.xlu0 %v5556, 48
      %v5610 = vpop.permute.xlu0 %5609
      %5611 = vrot.lane.b32.xlu0 %v5557, 48
      %v5612 = vpop.permute.xlu0 %5611
      %5613 = vrot.lane.b32.xlu0 %v5558, 48
      %v5614 = vpop.permute.xlu0 %5613
      %5615 = vrot.lane.b32.xlu0 %v5559, 48
      %v5616 = vpop.permute.xlu0 %5615
      %5617 = vrot.lane.b32.xlu0 %v5560, 48
      %v5618 = vpop.permute.xlu0 %5617
      %5619 = vrot.lane.b32.xlu0 %v5561, 48
      %v5620 = vpop.permute.xlu0 %5619
      %5621 = vrot.lane.b32.xlu0 %v5562, 48
      %v5622 = vpop.permute.xlu0 %5621
      %5623 = vrot.lane.b32.xlu0 %v5563, 48
      %v5624 = vpop.permute.xlu0 %5623
      %5625 = vrot.lane.b32.xlu0 %v5564, 48
      %v5626 = vpop.permute.xlu0 %5625
      %5627 = vrot.lane.b32.xlu0 %v5565, 48
      %v5628 = vpop.permute.xlu0 %5627
      %5629 = vrot.lane.b32.xlu0 %v5566, 48
      %v5630 = vpop.permute.xlu0 %5629
      %vm5663 = vcmask 458112
      %5664 = vst.msk [vmem:[#allocation3] sm:$0xff] %vm5663, %v5568
      %5665 = vst.msk [vmem:[#allocation3 + $0x8] sm:$0xff] %vm5663, %v5570
      %5666 = vst.msk [vmem:[#allocation3 + $0x10] sm:$0xff] %vm5663, %v5572
      %5667 = vst.msk [vmem:[#allocation3 + $0x18] sm:$0xff] %vm5663, %v5574
      %5668 = vst.msk [vmem:[#allocation3 + $0x20] sm:$0xff] %vm5663, %v5576
      %5669 = vst.msk [vmem:[#allocation3 + $0x28] sm:$0xff] %vm5663, %v5578
      %5670 = vst.msk [vmem:[#allocation3 + $0x30] sm:$0xff] %vm5663, %v5580
      %5671 = vst.msk [vmem:[#allocation3 + $0x38] sm:$0xff] %vm5663, %v5582
      %5672 = vst.msk [vmem:[#allocation3 + $0x40] sm:$0xff] %vm5663, %v5584
      %5673 = vst.msk [vmem:[#allocation3 + $0x48] sm:$0xff] %vm5663, %v5586
      %5674 = vst.msk [vmem:[#allocation3 + $0x50] sm:$0xff] %vm5663, %v5588
      %5675 = vst.msk [vmem:[#allocation3 + $0x58] sm:$0xff] %vm5663, %v5590
      %5676 = vst.msk [vmem:[#allocation3 + $0x60] sm:$0xff] %vm5663, %v5592
      %5677 = vst.msk [vmem:[#allocation3 + $0x68] sm:$0xff] %vm5663, %v5594
      %5678 = vst.msk [vmem:[#allocation3 + $0x70] sm:$0xff] %vm5663, %v5596
      %5679 = vst.msk [vmem:[#allocation3 + $0x78] sm:$0xff] %vm5663, %v5598
      %5680 = vst.msk [vmem:[#allocation3 + $0x80] sm:$0xff] %vm5663, %v5600
      %5681 = vst.msk [vmem:[#allocation3 + $0x88] sm:$0xff] %vm5663, %v5602
      %5682 = vst.msk [vmem:[#allocation3 + $0x90] sm:$0xff] %vm5663, %v5604
      %5683 = vst.msk [vmem:[#allocation3 + $0x98] sm:$0xff] %vm5663, %v5606
      %5684 = vst.msk [vmem:[#allocation3 + $0xa0] sm:$0xff] %vm5663, %v5608
      %5685 = vst.msk [vmem:[#allocation3 + $0xa8] sm:$0xff] %vm5663, %v5610
      %5686 = vst.msk [vmem:[#allocation3 + $0xb0] sm:$0xff] %vm5663, %v5612
      %5687 = vst.msk [vmem:[#allocation3 + $0xb8] sm:$0xff] %vm5663, %v5614
      %5688 = vst.msk [vmem:[#allocation3 + $0xc0] sm:$0xff] %vm5663, %v5616
      %5689 = vst.msk [vmem:[#allocation3 + $0xc8] sm:$0xff] %vm5663, %v5618
      %5690 = vst.msk [vmem:[#allocation3 + $0xd0] sm:$0xff] %vm5663, %v5620
      %5691 = vst.msk [vmem:[#allocation3 + $0xd8] sm:$0xff] %vm5663, %v5622
      %5692 = vst.msk [vmem:[#allocation3 + $0xe0] sm:$0xff] %vm5663, %v5624
      %5693 = vst.msk [vmem:[#allocation3 + $0xe8] sm:$0xff] %vm5663, %v5626
      %5694 = vst.msk [vmem:[#allocation3 + $0xf0] sm:$0xff] %vm5663, %v5628
      %5695 = vst.msk [vmem:[#allocation3 + $0xf8] sm:$0xff] %vm5663, %v5630
      %v5696 = vld [vmem:[%s5342] sm:$0xf]
      %v5697 = vld [vmem:[%s5342 + $0x4] sm:$0xf]
      %v5698 = vld [vmem:[%s5342 + $0x8] sm:$0x1]
      %v5699 = vld [vmem:[%s5342 + $0xc] sm:$0xf]
      %v5700 = vld [vmem:[%s5342 + $0x10] sm:$0xf]
      %v5701 = vld [vmem:[%s5342 + $0x14] sm:$0x1]
      %v5702 = vld [vmem:[%s5342 + $0x18] sm:$0xf]
      %v5703 = vld [vmem:[%s5342 + $0x1c] sm:$0xf]
      %v5704 = vld [vmem:[%s5342 + $0x20] sm:$0x1]
      %v5705 = vld [vmem:[%s5342 + $0x24] sm:$0xf]
      %v5706 = vld [vmem:[%s5342 + $0x28] sm:$0xf]
      %v5707 = vld [vmem:[%s5342 + $0x2c] sm:$0x1]
      %v5708 = vld [vmem:[%s5342 + $0x30] sm:$0xf]
      %v5709 = vld [vmem:[%s5342 + $0x34] sm:$0xf]
      %v5710 = vld [vmem:[%s5342 + $0x38] sm:$0x1]
      %v5711 = vld [vmem:[%s5342 + $0x3c] sm:$0xf]
      %v5712 = vld [vmem:[%s5342 + $0x40] sm:$0xf]
      %v5713 = vld [vmem:[%s5342 + $0x44] sm:$0x1]
      %v5714 = vld [vmem:[%s5342 + $0x48] sm:$0xf]
      %v5715 = vld [vmem:[%s5342 + $0x4c] sm:$0xf]
      %v5716 = vld [vmem:[%s5342 + $0x50] sm:$0x1]
      %v5717 = vld [vmem:[%s5342 + $0x54] sm:$0xf]
      %v5718 = vld [vmem:[%s5342 + $0x58] sm:$0xf]
      %v5719 = vld [vmem:[%s5342 + $0x5c] sm:$0x1]
      %v5720 = vld [vmem:[%s5342 + $0x60] sm:$0xf]
      %v5721 = vld [vmem:[%s5342 + $0x64] sm:$0xf]
      %v5722 = vld [vmem:[%s5342 + $0x68] sm:$0x1]
      %v5723 = vld [vmem:[%s5342 + $0x6c] sm:$0xf]
      %v5724 = vld [vmem:[%s5342 + $0x70] sm:$0xf]
      %v5725 = vld [vmem:[%s5342 + $0x74] sm:$0x1]
      %v5726 = vld [vmem:[%s5342 + $0x78] sm:$0xf]
      %v5727 = vld [vmem:[%s5342 + $0x7c] sm:$0xf]
      %v5728 = vld [vmem:[%s5342 + $0x80] sm:$0x1]
      %v5729 = vld [vmem:[%s5342 + $0x84] sm:$0xf]
      %v5730 = vld [vmem:[%s5342 + $0x88] sm:$0xf]
      %v5731 = vld [vmem:[%s5342 + $0x8c] sm:$0x1]
      %v5732 = vld [vmem:[%s5342 + $0x90] sm:$0xf]
      %v5733 = vld [vmem:[%s5342 + $0x94] sm:$0xf]
      %v5734 = vld [vmem:[%s5342 + $0x98] sm:$0x1]
      %v5735 = vld [vmem:[%s5342 + $0x9c] sm:$0xf]
      %v5736 = vld [vmem:[%s5342 + $0xa0] sm:$0xf]
      %v5737 = vld [vmem:[%s5342 + $0xa4] sm:$0x1]
      %v5738 = vld [vmem:[%s5342 + $0xa8] sm:$0xf]
      %v5739 = vld [vmem:[%s5342 + $0xac] sm:$0xf]
      %v5740 = vld [vmem:[%s5342 + $0xb0] sm:$0x1]
      %v5741 = vld [vmem:[%s5342 + $0xb4] sm:$0xf]
      %v5742 = vld [vmem:[%s5342 + $0xb8] sm:$0xf]
      %v5743 = vld [vmem:[%s5342 + $0xbc] sm:$0x1]
      %v5744 = vld [vmem:[%s5342 + $0xd8] sm:$0xf]
      %v5745 = vld [vmem:[%s5342 + $0xdc] sm:$0xf]
      %v5746 = vld [vmem:[%s5342 + $0xe0] sm:$0x1]
      %v5747 = vld [vmem:[%s5342 + $0xe4] sm:$0xf]
      %v5748 = vld [vmem:[%s5342 + $0xe8] sm:$0xf]
      %v5749 = vld [vmem:[%s5342 + $0xec] sm:$0x1]
      %v5750 = vld [vmem:[%s5342 + $0xf0] sm:$0xf]
      %v5751 = vld [vmem:[%s5342 + $0xf4] sm:$0xf]
      %v5752 = vld [vmem:[%s5342 + $0xf8] sm:$0x1]
      %v5753 = vld [vmem:[%s5342 + $0xfc] sm:$0xf]
      %v5754 = vld [vmem:[%s5342 + $0x100] sm:$0xf]
      %v5755 = vld [vmem:[%s5342 + $0x104] sm:$0x1]
      %v5756 = vld [vmem:[%s5342 + $0x108] sm:$0xf]
      %v5757 = vld [vmem:[%s5342 + $0x10c] sm:$0xf]
      %v5758 = vld [vmem:[%s5342 + $0x110] sm:$0x1]
      %v5759 = vld [vmem:[%s5342 + $0x114] sm:$0xf]
      %v5760 = vld [vmem:[%s5342 + $0x118] sm:$0xf]
      %v5761 = vld [vmem:[%s5342 + $0x11c] sm:$0x1]
      %v5762 = vld [vmem:[%s5342 + $0x120] sm:$0xf]
      %v5763 = vld [vmem:[%s5342 + $0x124] sm:$0xf]
      %v5764 = vld [vmem:[%s5342 + $0x128] sm:$0x1]
      %v5765 = vld [vmem:[%s5342 + $0x12c] sm:$0xf]
      %v5766 = vld [vmem:[%s5342 + $0x130] sm:$0xf]
      %v5767 = vld [vmem:[%s5342 + $0x134] sm:$0x1]
      %v5768 = vld [vmem:[%s5342 + $0x138] sm:$0xf]
      %v5769 = vld [vmem:[%s5342 + $0x13c] sm:$0xf]
      %v5770 = vld [vmem:[%s5342 + $0x140] sm:$0x1]
      %v5771 = vld [vmem:[%s5342 + $0x144] sm:$0xf]
      %v5772 = vld [vmem:[%s5342 + $0x148] sm:$0xf]
      %v5773 = vld [vmem:[%s5342 + $0x14c] sm:$0x1]
      %v5774 = vld [vmem:[%s5342 + $0x150] sm:$0xf]
      %v5775 = vld [vmem:[%s5342 + $0x154] sm:$0xf]
      %v5776 = vld [vmem:[%s5342 + $0x158] sm:$0x1]
      %v5777 = vld [vmem:[%s5342 + $0x15c] sm:$0xf]
      %v5778 = vld [vmem:[%s5342 + $0x160] sm:$0xf]
      %v5779 = vld [vmem:[%s5342 + $0x164] sm:$0x1]
      %v5780 = vld [vmem:[%s5342 + $0x168] sm:$0xf]
      %v5781 = vld [vmem:[%s5342 + $0x16c] sm:$0xf]
      %v5782 = vld [vmem:[%s5342 + $0x170] sm:$0x1]
      %v5783 = vld [vmem:[%s5342 + $0x174] sm:$0xf]
      %v5784 = vld [vmem:[%s5342 + $0x178] sm:$0xf]
      %v5785 = vld [vmem:[%s5342 + $0x17c] sm:$0x1]
      %v5786 = vld [vmem:[%s5342 + $0x180] sm:$0xf]
      %v5787 = vld [vmem:[%s5342 + $0x184] sm:$0xf]
      %v5788 = vld [vmem:[%s5342 + $0x188] sm:$0x1]
      %v5789 = vld [vmem:[%s5342 + $0x18c] sm:$0xf]
      %v5790 = vld [vmem:[%s5342 + $0x190] sm:$0xf]
      %v5791 = vld [vmem:[%s5342 + $0x194] sm:$0x1]
      %v5888 = vunpack.c.l.b16 %v5696
      %v5889 = vunpack.c.l.b16 %v5697
      %v5890 = vunpack.c.l.b16 %v5698
      %v5891 = vunpack.c.l.b16 %v5699
      %v5892 = vunpack.c.l.b16 %v5700
      %v5893 = vunpack.c.l.b16 %v5701
      %v5894 = vunpack.c.l.b16 %v5702
      %v5895 = vunpack.c.l.b16 %v5703
      %v5896 = vunpack.c.l.b16 %v5704
      %v5897 = vunpack.c.l.b16 %v5705
      %v5898 = vunpack.c.l.b16 %v5706
      %v5899 = vunpack.c.l.b16 %v5707
      %v5900 = vunpack.c.l.b16 %v5708
      %v5901 = vunpack.c.l.b16 %v5709
      %v5902 = vunpack.c.l.b16 %v5710
      %v5903 = vunpack.c.l.b16 %v5711
      %v5904 = vunpack.c.l.b16 %v5712
      %v5905 = vunpack.c.l.b16 %v5713
      %v5906 = vunpack.c.l.b16 %v5714
      %v5907 = vunpack.c.l.b16 %v5715
      %v5908 = vunpack.c.l.b16 %v5716
      %v5909 = vunpack.c.l.b16 %v5717
      %v5910 = vunpack.c.l.b16 %v5718
      %v5911 = vunpack.c.l.b16 %v5719
      %v5912 = vunpack.c.l.b16 %v5720
      %v5913 = vunpack.c.l.b16 %v5721
      %v5914 = vunpack.c.l.b16 %v5722
      %v5915 = vunpack.c.l.b16 %v5723
      %v5916 = vunpack.c.l.b16 %v5724
      %v5917 = vunpack.c.l.b16 %v5725
      %v5918 = vunpack.c.l.b16 %v5726
      %v5919 = vunpack.c.l.b16 %v5727
      %v5920 = vunpack.c.l.b16 %v5728
      %v5921 = vunpack.c.l.b16 %v5729
      %v5922 = vunpack.c.l.b16 %v5730
      %v5923 = vunpack.c.l.b16 %v5731
      %v5924 = vunpack.c.l.b16 %v5732
      %v5925 = vunpack.c.l.b16 %v5733
      %v5926 = vunpack.c.l.b16 %v5734
      %v5927 = vunpack.c.l.b16 %v5735
      %v5928 = vunpack.c.l.b16 %v5736
      %v5929 = vunpack.c.l.b16 %v5737
      %v5930 = vunpack.c.l.b16 %v5738
      %v5931 = vunpack.c.l.b16 %v5739
      %v5932 = vunpack.c.l.b16 %v5740
      %v5933 = vunpack.c.l.b16 %v5741
      %v5934 = vunpack.c.l.b16 %v5742
      %v5935 = vunpack.c.l.b16 %v5743
      %v5936 = vunpack.c.l.b16 %v5744
      %v5937 = vunpack.c.l.b16 %v5745
      %v5938 = vunpack.c.l.b16 %v5746
      %v5939 = vunpack.c.l.b16 %v5747
      %v5940 = vunpack.c.l.b16 %v5748
      %v5941 = vunpack.c.l.b16 %v5749
      %v5942 = vunpack.c.l.b16 %v5750
      %v5943 = vunpack.c.l.b16 %v5751
      %v5944 = vunpack.c.l.b16 %v5752
      %v5945 = vunpack.c.l.b16 %v5753
      %v5946 = vunpack.c.l.b16 %v5754
      %v5947 = vunpack.c.l.b16 %v5755
      %v5948 = vunpack.c.l.b16 %v5756
      %v5949 = vunpack.c.l.b16 %v5757
      %v5950 = vunpack.c.l.b16 %v5758
      %v5951 = vunpack.c.l.b16 %v5759
      %v5952 = vunpack.c.l.b16 %v5760
      %v5953 = vunpack.c.l.b16 %v5761
      %v5954 = vunpack.c.l.b16 %v5762
      %v5955 = vunpack.c.l.b16 %v5763
      %v5956 = vunpack.c.l.b16 %v5764
      %v5957 = vunpack.c.l.b16 %v5765
      %v5958 = vunpack.c.l.b16 %v5766
      %v5959 = vunpack.c.l.b16 %v5767
      %v5960 = vunpack.c.l.b16 %v5768
      %v5961 = vunpack.c.l.b16 %v5769
      %v5962 = vunpack.c.l.b16 %v5770
      %v5963 = vunpack.c.l.b16 %v5771
      %v5964 = vunpack.c.l.b16 %v5772
      %v5965 = vunpack.c.l.b16 %v5773
      %v5966 = vunpack.c.l.b16 %v5774
      %v5967 = vunpack.c.l.b16 %v5775
      %v5968 = vunpack.c.l.b16 %v5776
      %v5969 = vunpack.c.l.b16 %v5777
      %v5970 = vunpack.c.l.b16 %v5778
      %v5971 = vunpack.c.l.b16 %v5779
      %v5972 = vunpack.c.l.b16 %v5780
      %v5973 = vunpack.c.l.b16 %v5781
      %v5974 = vunpack.c.l.b16 %v5782
      %v5975 = vunpack.c.l.b16 %v5783
      %v5976 = vunpack.c.l.b16 %v5784
      %v5977 = vunpack.c.l.b16 %v5785
      %v5978 = vunpack.c.l.b16 %v5786
      %v5979 = vunpack.c.l.b16 %v5787
      %v5980 = vunpack.c.l.b16 %v5788
      %v5981 = vunpack.c.l.b16 %v5789
      %v5982 = vunpack.c.l.b16 %v5790
      %v5983 = vunpack.c.l.b16 %v5791
      %v5984 = vpack.c.b16 %v5889, %v5888
      %v5985 = vpack.c.b16 %v5890, %v5890
      %v5986 = vpack.c.b16 %v5892, %v5891
      %v5987 = vpack.c.b16 %v5893, %v5893
      %v5988 = vpack.c.b16 %v5895, %v5894
      %v5989 = vpack.c.b16 %v5896, %v5896
      %v5990 = vpack.c.b16 %v5898, %v5897
      %v5991 = vpack.c.b16 %v5899, %v5899
      %v5992 = vpack.c.b16 %v5901, %v5900
      %v5993 = vpack.c.b16 %v5902, %v5902
      %v5994 = vpack.c.b16 %v5904, %v5903
      %v5995 = vpack.c.b16 %v5905, %v5905
      %v5996 = vpack.c.b16 %v5907, %v5906
      %v5997 = vpack.c.b16 %v5908, %v5908
      %v5998 = vpack.c.b16 %v5910, %v5909
      %v5999 = vpack.c.b16 %v5911, %v5911
      %v6000 = vpack.c.b16 %v5913, %v5912
      %v6001 = vpack.c.b16 %v5914, %v5914
      %v6002 = vpack.c.b16 %v5916, %v5915
      %v6003 = vpack.c.b16 %v5917, %v5917
      %v6004 = vpack.c.b16 %v5919, %v5918
      %v6005 = vpack.c.b16 %v5920, %v5920
      %v6006 = vpack.c.b16 %v5922, %v5921
      %v6007 = vpack.c.b16 %v5923, %v5923
      %v6008 = vpack.c.b16 %v5925, %v5924
      %v6009 = vpack.c.b16 %v5926, %v5926
      %v6010 = vpack.c.b16 %v5928, %v5927
      %v6011 = vpack.c.b16 %v5929, %v5929
      %v6012 = vpack.c.b16 %v5931, %v5930
      %v6013 = vpack.c.b16 %v5932, %v5932
      %v6014 = vpack.c.b16 %v5934, %v5933
      %v6015 = vpack.c.b16 %v5935, %v5935
      %v6016 = vpack.c.b16 %v5937, %v5936
      %v6017 = vpack.c.b16 %v5938, %v5938
      %v6018 = vpack.c.b16 %v5940, %v5939
      %v6019 = vpack.c.b16 %v5941, %v5941
      %v6020 = vpack.c.b16 %v5943, %v5942
      %v6021 = vpack.c.b16 %v5944, %v5944
      %v6022 = vpack.c.b16 %v5946, %v5945
      %v6023 = vpack.c.b16 %v5947, %v5947
      %v6024 = vpack.c.b16 %v5949, %v5948
      %v6025 = vpack.c.b16 %v5950, %v5950
      %v6026 = vpack.c.b16 %v5952, %v5951
      %v6027 = vpack.c.b16 %v5953, %v5953
      %v6028 = vpack.c.b16 %v5955, %v5954
      %v6029 = vpack.c.b16 %v5956, %v5956
      %v6030 = vpack.c.b16 %v5958, %v5957
      %v6031 = vpack.c.b16 %v5959, %v5959
      %v6032 = vpack.c.b16 %v5961, %v5960
      %v6033 = vpack.c.b16 %v5962, %v5962
      %v6034 = vpack.c.b16 %v5964, %v5963
      %v6035 = vpack.c.b16 %v5965, %v5965
      %v6036 = vpack.c.b16 %v5967, %v5966
      %v6037 = vpack.c.b16 %v5968, %v5968
      %v6038 = vpack.c.b16 %v5970, %v5969
      %v6039 = vpack.c.b16 %v5971, %v5971
      %v6040 = vpack.c.b16 %v5973, %v5972
      %v6041 = vpack.c.b16 %v5974, %v5974
      %v6042 = vpack.c.b16 %v5976, %v5975
      %v6043 = vpack.c.b16 %v5977, %v5977
      %v6044 = vpack.c.b16 %v5979, %v5978
      %v6045 = vpack.c.b16 %v5980, %v5980
      %v6046 = vpack.c.b16 %v5982, %v5981
      %v6047 = vpack.c.b16 %v5983, %v5983
      %v6049 = vshrl.u32 %v5984, 16
      %v6051 = vshll.u32 %v5984, 16
      %v6053 = vrot.slane %v6051, 1
      %v6054 = vor.u32 %v6049, %v6053
      %v6056 = vshll.u32 %v5985, 16
      %v6058 = vrot.slane %v6056, 1
      %v6059 = vsel %vm2455, %v6054, %v6058
      %v6061 = vshrl.u32 %v5986, 16
      %v6063 = vshll.u32 %v5986, 16
      %v6065 = vrot.slane %v6063, 1
      %v6066 = vor.u32 %v6061, %v6065
      %v6068 = vshll.u32 %v5987, 16
      %v6070 = vrot.slane %v6068, 1
      %v6071 = vsel %vm2455, %v6066, %v6070
      %v6073 = vshrl.u32 %v5988, 16
      %v6075 = vshll.u32 %v5988, 16
      %v6077 = vrot.slane %v6075, 1
      %v6078 = vor.u32 %v6073, %v6077
      %v6080 = vshll.u32 %v5989, 16
      %v6082 = vrot.slane %v6080, 1
      %v6083 = vsel %vm2455, %v6078, %v6082
      %v6085 = vshrl.u32 %v5990, 16
      %v6087 = vshll.u32 %v5990, 16
      %v6089 = vrot.slane %v6087, 1
      %v6090 = vor.u32 %v6085, %v6089
      %v6092 = vshll.u32 %v5991, 16
      %v6094 = vrot.slane %v6092, 1
      %v6095 = vsel %vm2455, %v6090, %v6094
      %v6097 = vshrl.u32 %v5992, 16
      %v6099 = vshll.u32 %v5992, 16
      %v6101 = vrot.slane %v6099, 1
      %v6102 = vor.u32 %v6097, %v6101
      %v6104 = vshll.u32 %v5993, 16
      %v6106 = vrot.slane %v6104, 1
      %v6107 = vsel %vm2455, %v6102, %v6106
      %v6109 = vshrl.u32 %v5994, 16
      %v6111 = vshll.u32 %v5994, 16
      %v6113 = vrot.slane %v6111, 1
      %v6114 = vor.u32 %v6109, %v6113
      %v6116 = vshll.u32 %v5995, 16
      %v6118 = vrot.slane %v6116, 1
      %v6119 = vsel %vm2455, %v6114, %v6118
      %v6121 = vshrl.u32 %v5996, 16
      %v6123 = vshll.u32 %v5996, 16
      %v6125 = vrot.slane %v6123, 1
      %v6126 = vor.u32 %v6121, %v6125
      %v6128 = vshll.u32 %v5997, 16
      %v6130 = vrot.slane %v6128, 1
      %v6131 = vsel %vm2455, %v6126, %v6130
      %v6133 = vshrl.u32 %v5998, 16
      %v6135 = vshll.u32 %v5998, 16
      %v6137 = vrot.slane %v6135, 1
      %v6138 = vor.u32 %v6133, %v6137
      %v6140 = vshll.u32 %v5999, 16
      %v6142 = vrot.slane %v6140, 1
      %v6143 = vsel %vm2455, %v6138, %v6142
      %v6145 = vshrl.u32 %v6000, 16
      %v6147 = vshll.u32 %v6000, 16
      %v6149 = vrot.slane %v6147, 1
      %v6150 = vor.u32 %v6145, %v6149
      %v6152 = vshll.u32 %v6001, 16
      %v6154 = vrot.slane %v6152, 1
      %v6155 = vsel %vm2455, %v6150, %v6154
      %v6157 = vshrl.u32 %v6002, 16
      %v6159 = vshll.u32 %v6002, 16
      %v6161 = vrot.slane %v6159, 1
      %v6162 = vor.u32 %v6157, %v6161
      %v6164 = vshll.u32 %v6003, 16
      %v6166 = vrot.slane %v6164, 1
      %v6167 = vsel %vm2455, %v6162, %v6166
      %v6169 = vshrl.u32 %v6004, 16
      %v6171 = vshll.u32 %v6004, 16
      %v6173 = vrot.slane %v6171, 1
      %v6174 = vor.u32 %v6169, %v6173
      %v6176 = vshll.u32 %v6005, 16
      %v6178 = vrot.slane %v6176, 1
      %v6179 = vsel %vm2455, %v6174, %v6178
      %v6181 = vshrl.u32 %v6006, 16
      %v6183 = vshll.u32 %v6006, 16
      %v6185 = vrot.slane %v6183, 1
      %v6186 = vor.u32 %v6181, %v6185
      %v6188 = vshll.u32 %v6007, 16
      %v6190 = vrot.slane %v6188, 1
      %v6191 = vsel %vm2455, %v6186, %v6190
      %v6193 = vshrl.u32 %v6008, 16
      %v6195 = vshll.u32 %v6008, 16
      %v6197 = vrot.slane %v6195, 1
      %v6198 = vor.u32 %v6193, %v6197
      %v6200 = vshll.u32 %v6009, 16
      %v6202 = vrot.slane %v6200, 1
      %v6203 = vsel %vm2455, %v6198, %v6202
      %v6205 = vshrl.u32 %v6010, 16
      %v6207 = vshll.u32 %v6010, 16
      %v6209 = vrot.slane %v6207, 1
      %v6210 = vor.u32 %v6205, %v6209
      %v6212 = vshll.u32 %v6011, 16
      %v6214 = vrot.slane %v6212, 1
      %v6215 = vsel %vm2455, %v6210, %v6214
      %v6217 = vshrl.u32 %v6012, 16
      %v6219 = vshll.u32 %v6012, 16
      %v6221 = vrot.slane %v6219, 1
      %v6222 = vor.u32 %v6217, %v6221
      %v6224 = vshll.u32 %v6013, 16
      %v6226 = vrot.slane %v6224, 1
      %v6227 = vsel %vm2455, %v6222, %v6226
      %v6229 = vshrl.u32 %v6014, 16
      %v6231 = vshll.u32 %v6014, 16
      %v6233 = vrot.slane %v6231, 1
      %v6234 = vor.u32 %v6229, %v6233
      %v6236 = vshll.u32 %v6015, 16
      %v6238 = vrot.slane %v6236, 1
      %v6239 = vsel %vm2455, %v6234, %v6238
      %v6241 = vshrl.u32 %v6016, 16
      %v6243 = vshll.u32 %v6016, 16
      %v6245 = vrot.slane %v6243, 1
      %v6246 = vor.u32 %v6241, %v6245
      %v6248 = vshll.u32 %v6017, 16
      %v6250 = vrot.slane %v6248, 1
      %v6251 = vsel %vm2455, %v6246, %v6250
      %v6253 = vshrl.u32 %v6018, 16
      %v6255 = vshll.u32 %v6018, 16
      %v6257 = vrot.slane %v6255, 1
      %v6258 = vor.u32 %v6253, %v6257
      %v6260 = vshll.u32 %v6019, 16
      %v6262 = vrot.slane %v6260, 1
      %v6263 = vsel %vm2455, %v6258, %v6262
      %v6265 = vshrl.u32 %v6020, 16
      %v6267 = vshll.u32 %v6020, 16
      %v6269 = vrot.slane %v6267, 1
      %v6270 = vor.u32 %v6265, %v6269
      %v6272 = vshll.u32 %v6021, 16
      %v6274 = vrot.slane %v6272, 1
      %v6275 = vsel %vm2455, %v6270, %v6274
      %v6277 = vshrl.u32 %v6022, 16
      %v6279 = vshll.u32 %v6022, 16
      %v6281 = vrot.slane %v6279, 1
      %v6282 = vor.u32 %v6277, %v6281
      %v6284 = vshll.u32 %v6023, 16
      %v6286 = vrot.slane %v6284, 1
      %v6287 = vsel %vm2455, %v6282, %v6286
      %v6289 = vshrl.u32 %v6024, 16
      %v6291 = vshll.u32 %v6024, 16
      %v6293 = vrot.slane %v6291, 1
      %v6294 = vor.u32 %v6289, %v6293
      %v6296 = vshll.u32 %v6025, 16
      %v6298 = vrot.slane %v6296, 1
      %v6299 = vsel %vm2455, %v6294, %v6298
      %v6301 = vshrl.u32 %v6026, 16
      %v6303 = vshll.u32 %v6026, 16
      %v6305 = vrot.slane %v6303, 1
      %v6306 = vor.u32 %v6301, %v6305
      %v6308 = vshll.u32 %v6027, 16
      %v6310 = vrot.slane %v6308, 1
      %v6311 = vsel %vm2455, %v6306, %v6310
      %v6313 = vshrl.u32 %v6028, 16
      %v6315 = vshll.u32 %v6028, 16
      %v6317 = vrot.slane %v6315, 1
      %v6318 = vor.u32 %v6313, %v6317
      %v6320 = vshll.u32 %v6029, 16
      %v6322 = vrot.slane %v6320, 1
      %v6323 = vsel %vm2455, %v6318, %v6322
      %v6325 = vshrl.u32 %v6030, 16
      %v6327 = vshll.u32 %v6030, 16
      %v6329 = vrot.slane %v6327, 1
      %v6330 = vor.u32 %v6325, %v6329
      %v6332 = vshll.u32 %v6031, 16
      %v6334 = vrot.slane %v6332, 1
      %v6335 = vsel %vm2455, %v6330, %v6334
      %v6337 = vshrl.u32 %v6032, 16
      %v6339 = vshll.u32 %v6032, 16
      %v6341 = vrot.slane %v6339, 1
      %v6342 = vor.u32 %v6337, %v6341
      %v6344 = vshll.u32 %v6033, 16
      %v6346 = vrot.slane %v6344, 1
      %v6347 = vsel %vm2455, %v6342, %v6346
      %v6349 = vshrl.u32 %v6034, 16
      %v6351 = vshll.u32 %v6034, 16
      %v6353 = vrot.slane %v6351, 1
      %v6354 = vor.u32 %v6349, %v6353
      %v6356 = vshll.u32 %v6035, 16
      %v6358 = vrot.slane %v6356, 1
      %v6359 = vsel %vm2455, %v6354, %v6358
      %v6361 = vshrl.u32 %v6036, 16
      %v6363 = vshll.u32 %v6036, 16
      %v6365 = vrot.slane %v6363, 1
      %v6366 = vor.u32 %v6361, %v6365
      %v6368 = vshll.u32 %v6037, 16
      %v6370 = vrot.slane %v6368, 1
      %v6371 = vsel %vm2455, %v6366, %v6370
      %v6373 = vshrl.u32 %v6038, 16
      %v6375 = vshll.u32 %v6038, 16
      %v6377 = vrot.slane %v6375, 1
      %v6378 = vor.u32 %v6373, %v6377
      %v6380 = vshll.u32 %v6039, 16
      %v6382 = vrot.slane %v6380, 1
      %v6383 = vsel %vm2455, %v6378, %v6382
      %v6385 = vshrl.u32 %v6040, 16
      %v6387 = vshll.u32 %v6040, 16
      %v6389 = vrot.slane %v6387, 1
      %v6390 = vor.u32 %v6385, %v6389
      %v6392 = vshll.u32 %v6041, 16
      %v6394 = vrot.slane %v6392, 1
      %v6395 = vsel %vm2455, %v6390, %v6394
      %v6397 = vshrl.u32 %v6042, 16
      %v6399 = vshll.u32 %v6042, 16
      %v6401 = vrot.slane %v6399, 1
      %v6402 = vor.u32 %v6397, %v6401
      %v6404 = vshll.u32 %v6043, 16
      %v6406 = vrot.slane %v6404, 1
      %v6407 = vsel %vm2455, %v6402, %v6406
      %v6409 = vshrl.u32 %v6044, 16
      %v6411 = vshll.u32 %v6044, 16
      %v6413 = vrot.slane %v6411, 1
      %v6414 = vor.u32 %v6409, %v6413
      %v6416 = vshll.u32 %v6045, 16
      %v6418 = vrot.slane %v6416, 1
      %v6419 = vsel %vm2455, %v6414, %v6418
      %v6421 = vshrl.u32 %v6046, 16
      %v6423 = vshll.u32 %v6046, 16
      %v6425 = vrot.slane %v6423, 1
      %v6426 = vor.u32 %v6421, %v6425
      %v6428 = vshll.u32 %v6047, 16
      %v6430 = vrot.slane %v6428, 1
      %v6431 = vsel %vm2455, %v6426, %v6430
      %6432 = vrot.lane.b32.xlu0 %v6059, 56
      %v6433 = vpop.permute.xlu0 %6432
      %6434 = vrot.lane.b32.xlu0 %v6071, 56
      %v6435 = vpop.permute.xlu0 %6434
      %6436 = vrot.lane.b32.xlu0 %v6083, 56
      %v6437 = vpop.permute.xlu0 %6436
      %6438 = vrot.lane.b32.xlu0 %v6095, 56
      %v6439 = vpop.permute.xlu0 %6438
      %6440 = vrot.lane.b32.xlu0 %v6107, 56
      %v6441 = vpop.permute.xlu0 %6440
      %6442 = vrot.lane.b32.xlu0 %v6119, 56
      %v6443 = vpop.permute.xlu0 %6442
      %6444 = vrot.lane.b32.xlu0 %v6131, 56
      %v6445 = vpop.permute.xlu0 %6444
      %6446 = vrot.lane.b32.xlu0 %v6143, 56
      %v6447 = vpop.permute.xlu0 %6446
      %6448 = vrot.lane.b32.xlu0 %v6155, 56
      %v6449 = vpop.permute.xlu0 %6448
      %6450 = vrot.lane.b32.xlu0 %v6167, 56
      %v6451 = vpop.permute.xlu0 %6450
      %6452 = vrot.lane.b32.xlu0 %v6179, 56
      %v6453 = vpop.permute.xlu0 %6452
      %6454 = vrot.lane.b32.xlu0 %v6191, 56
      %v6455 = vpop.permute.xlu0 %6454
      %6456 = vrot.lane.b32.xlu0 %v6203, 56
      %v6457 = vpop.permute.xlu0 %6456
      %6458 = vrot.lane.b32.xlu0 %v6215, 56
      %v6459 = vpop.permute.xlu0 %6458
      %6460 = vrot.lane.b32.xlu0 %v6227, 56
      %v6461 = vpop.permute.xlu0 %6460
      %6462 = vrot.lane.b32.xlu0 %v6239, 56
      %v6463 = vpop.permute.xlu0 %6462
      %6464 = vrot.lane.b32.xlu0 %v6251, 56
      %v6465 = vpop.permute.xlu0 %6464
      %6466 = vrot.lane.b32.xlu0 %v6263, 56
      %v6467 = vpop.permute.xlu0 %6466
      %6468 = vrot.lane.b32.xlu0 %v6275, 56
      %v6469 = vpop.permute.xlu0 %6468
      %6470 = vrot.lane.b32.xlu0 %v6287, 56
      %v6471 = vpop.permute.xlu0 %6470
      %6472 = vrot.lane.b32.xlu0 %v6299, 56
      %v6473 = vpop.permute.xlu0 %6472
      %6474 = vrot.lane.b32.xlu0 %v6311, 56
      %v6475 = vpop.permute.xlu0 %6474
      %6476 = vrot.lane.b32.xlu0 %v6323, 56
      %v6477 = vpop.permute.xlu0 %6476
      %6478 = vrot.lane.b32.xlu0 %v6335, 56
      %v6479 = vpop.permute.xlu0 %6478
      %6480 = vrot.lane.b32.xlu0 %v6347, 56
      %v6481 = vpop.permute.xlu0 %6480
      %6482 = vrot.lane.b32.xlu0 %v6359, 56
      %v6483 = vpop.permute.xlu0 %6482
      %6484 = vrot.lane.b32.xlu0 %v6371, 56
      %v6485 = vpop.permute.xlu0 %6484
      %6486 = vrot.lane.b32.xlu0 %v6383, 56
      %v6487 = vpop.permute.xlu0 %6486
      %6488 = vrot.lane.b32.xlu0 %v6395, 56
      %v6489 = vpop.permute.xlu0 %6488
      %6490 = vrot.lane.b32.xlu0 %v6407, 56
      %v6491 = vpop.permute.xlu0 %6490
      %6492 = vrot.lane.b32.xlu0 %v6419, 56
      %v6493 = vpop.permute.xlu0 %6492
      %6494 = vrot.lane.b32.xlu0 %v6431, 56
      %v6495 = vpop.permute.xlu0 %6494
      %vm6528 = vcmask 523712
      %6529 = vst.msk [vmem:[#allocation3] sm:$0xff] %vm6528, %v6433
      %6530 = vst.msk [vmem:[#allocation3 + $0x8] sm:$0xff] %vm6528, %v6435
      %6531 = vst.msk [vmem:[#allocation3 + $0x10] sm:$0xff] %vm6528, %v6437
      %6532 = vst.msk [vmem:[#allocation3 + $0x18] sm:$0xff] %vm6528, %v6439
      %6533 = vst.msk [vmem:[#allocation3 + $0x20] sm:$0xff] %vm6528, %v6441
      %6534 = vst.msk [vmem:[#allocation3 + $0x28] sm:$0xff] %vm6528, %v6443
      %6535 = vst.msk [vmem:[#allocation3 + $0x30] sm:$0xff] %vm6528, %v6445
      %6536 = vst.msk [vmem:[#allocation3 + $0x38] sm:$0xff] %vm6528, %v6447
      %6537 = vst.msk [vmem:[#allocation3 + $0x40] sm:$0xff] %vm6528, %v6449
      %6538 = vst.msk [vmem:[#allocation3 + $0x48] sm:$0xff] %vm6528, %v6451
      %6539 = vst.msk [vmem:[#allocation3 + $0x50] sm:$0xff] %vm6528, %v6453
      %6540 = vst.msk [vmem:[#allocation3 + $0x58] sm:$0xff] %vm6528, %v6455
      %6541 = vst.msk [vmem:[#allocation3 + $0x60] sm:$0xff] %vm6528, %v6457
      %6542 = vst.msk [vmem:[#allocation3 + $0x68] sm:$0xff] %vm6528, %v6459
      %6543 = vst.msk [vmem:[#allocation3 + $0x70] sm:$0xff] %vm6528, %v6461
      %6544 = vst.msk [vmem:[#allocation3 + $0x78] sm:$0xff] %vm6528, %v6463
      %6545 = vst.msk [vmem:[#allocation3 + $0x80] sm:$0xff] %vm6528, %v6465
      %6546 = vst.msk [vmem:[#allocation3 + $0x88] sm:$0xff] %vm6528, %v6467
      %6547 = vst.msk [vmem:[#allocation3 + $0x90] sm:$0xff] %vm6528, %v6469
      %6548 = vst.msk [vmem:[#allocation3 + $0x98] sm:$0xff] %vm6528, %v6471
      %6549 = vst.msk [vmem:[#allocation3 + $0xa0] sm:$0xff] %vm6528, %v6473
      %6550 = vst.msk [vmem:[#allocation3 + $0xa8] sm:$0xff] %vm6528, %v6475
      %6551 = vst.msk [vmem:[#allocation3 + $0xb0] sm:$0xff] %vm6528, %v6477
      %6552 = vst.msk [vmem:[#allocation3 + $0xb8] sm:$0xff] %vm6528, %v6479
      %6553 = vst.msk [vmem:[#allocation3 + $0xc0] sm:$0xff] %vm6528, %v6481
      %6554 = vst.msk [vmem:[#allocation3 + $0xc8] sm:$0xff] %vm6528, %v6483
      %6555 = vst.msk [vmem:[#allocation3 + $0xd0] sm:$0xff] %vm6528, %v6485
      %6556 = vst.msk [vmem:[#allocation3 + $0xd8] sm:$0xff] %vm6528, %v6487
      %6557 = vst.msk [vmem:[#allocation3 + $0xe0] sm:$0xff] %vm6528, %v6489
      %6558 = vst.msk [vmem:[#allocation3 + $0xe8] sm:$0xff] %vm6528, %v6491
      %6559 = vst.msk [vmem:[#allocation3 + $0xf0] sm:$0xff] %vm6528, %v6493
      %6560 = vst.msk [vmem:[#allocation3 + $0xf8] sm:$0xff] %vm6528, %v6495
      %v6561 = vld [vmem:[%s5342] sm:$0xe]
      %v6562 = vld [vmem:[%s5342 + $0x4] sm:$0xf]
      %v6563 = vld [vmem:[%s5342 + $0x8] sm:$0x1]
      %v6564 = vld [vmem:[%s5342 + $0xc] sm:$0xe]
      %v6565 = vld [vmem:[%s5342 + $0x10] sm:$0xf]
      %v6566 = vld [vmem:[%s5342 + $0x14] sm:$0x1]
      %v6567 = vld [vmem:[%s5342 + $0x18] sm:$0xe]
      %v6568 = vld [vmem:[%s5342 + $0x1c] sm:$0xf]
      %v6569 = vld [vmem:[%s5342 + $0x20] sm:$0x1]
      %v6570 = vld [vmem:[%s5342 + $0x24] sm:$0xe]
      %v6571 = vld [vmem:[%s5342 + $0x28] sm:$0xf]
      %v6572 = vld [vmem:[%s5342 + $0x2c] sm:$0x1]
      %v6573 = vld [vmem:[%s5342 + $0x30] sm:$0xe]
      %v6574 = vld [vmem:[%s5342 + $0x34] sm:$0xf]
      %v6575 = vld [vmem:[%s5342 + $0x38] sm:$0x1]
      %v6576 = vld [vmem:[%s5342 + $0x3c] sm:$0xe]
      %v6577 = vld [vmem:[%s5342 + $0x40] sm:$0xf]
      %v6578 = vld [vmem:[%s5342 + $0x44] sm:$0x1]
      %v6579 = vld [vmem:[%s5342 + $0x48] sm:$0xe]
      %v6580 = vld [vmem:[%s5342 + $0x4c] sm:$0xf]
      %v6581 = vld [vmem:[%s5342 + $0x50] sm:$0x1]
      %v6582 = vld [vmem:[%s5342 + $0x54] sm:$0xe]
      %v6583 = vld [vmem:[%s5342 + $0x58] sm:$0xf]
      %v6584 = vld [vmem:[%s5342 + $0x5c] sm:$0x1]
      %v6585 = vld [vmem:[%s5342 + $0x60] sm:$0xe]
      %v6586 = vld [vmem:[%s5342 + $0x64] sm:$0xf]
      %v6587 = vld [vmem:[%s5342 + $0x68] sm:$0x1]
      %v6588 = vld [vmem:[%s5342 + $0x6c] sm:$0xe]
      %v6589 = vld [vmem:[%s5342 + $0x70] sm:$0xf]
      %v6590 = vld [vmem:[%s5342 + $0x74] sm:$0x1]
      %v6591 = vld [vmem:[%s5342 + $0x78] sm:$0xe]
      %v6592 = vld [vmem:[%s5342 + $0x7c] sm:$0xf]
      %v6593 = vld [vmem:[%s5342 + $0x80] sm:$0x1]
      %v6594 = vld [vmem:[%s5342 + $0x84] sm:$0xe]
      %v6595 = vld [vmem:[%s5342 + $0x88] sm:$0xf]
      %v6596 = vld [vmem:[%s5342 + $0x8c] sm:$0x1]
      %v6597 = vld [vmem:[%s5342 + $0x90] sm:$0xe]
      %v6598 = vld [vmem:[%s5342 + $0x94] sm:$0xf]
      %v6599 = vld [vmem:[%s5342 + $0x98] sm:$0x1]
      %v6600 = vld [vmem:[%s5342 + $0x9c] sm:$0xe]
      %v6601 = vld [vmem:[%s5342 + $0xa0] sm:$0xf]
      %v6602 = vld [vmem:[%s5342 + $0xa4] sm:$0x1]
      %v6603 = vld [vmem:[%s5342 + $0xa8] sm:$0xe]
      %v6604 = vld [vmem:[%s5342 + $0xac] sm:$0xf]
      %v6605 = vld [vmem:[%s5342 + $0xb0] sm:$0x1]
      %v6606 = vld [vmem:[%s5342 + $0xb4] sm:$0xe]
      %v6607 = vld [vmem:[%s5342 + $0xb8] sm:$0xf]
      %v6608 = vld [vmem:[%s5342 + $0xbc] sm:$0x1]
      %v6609 = vld [vmem:[%s5342 + $0xd8] sm:$0xe]
      %v6610 = vld [vmem:[%s5342 + $0xdc] sm:$0xf]
      %v6611 = vld [vmem:[%s5342 + $0xe0] sm:$0x1]
      %v6612 = vld [vmem:[%s5342 + $0xe4] sm:$0xe]
      %v6613 = vld [vmem:[%s5342 + $0xe8] sm:$0xf]
      %v6614 = vld [vmem:[%s5342 + $0xec] sm:$0x1]
      %v6615 = vld [vmem:[%s5342 + $0xf0] sm:$0xe]
      %v6616 = vld [vmem:[%s5342 + $0xf4] sm:$0xf]
      %v6617 = vld [vmem:[%s5342 + $0xf8] sm:$0x1]
      %v6618 = vld [vmem:[%s5342 + $0xfc] sm:$0xe]
      %v6619 = vld [vmem:[%s5342 + $0x100] sm:$0xf]
      %v6620 = vld [vmem:[%s5342 + $0x104] sm:$0x1]
      %v6621 = vld [vmem:[%s5342 + $0x108] sm:$0xe]
      %v6622 = vld [vmem:[%s5342 + $0x10c] sm:$0xf]
      %v6623 = vld [vmem:[%s5342 + $0x110] sm:$0x1]
      %v6624 = vld [vmem:[%s5342 + $0x114] sm:$0xe]
      %v6625 = vld [vmem:[%s5342 + $0x118] sm:$0xf]
      %v6626 = vld [vmem:[%s5342 + $0x11c] sm:$0x1]
      %v6627 = vld [vmem:[%s5342 + $0x120] sm:$0xe]
      %v6628 = vld [vmem:[%s5342 + $0x124] sm:$0xf]
      %v6629 = vld [vmem:[%s5342 + $0x128] sm:$0x1]
      %v6630 = vld [vmem:[%s5342 + $0x12c] sm:$0xe]
      %v6631 = vld [vmem:[%s5342 + $0x130] sm:$0xf]
      %v6632 = vld [vmem:[%s5342 + $0x134] sm:$0x1]
      %v6633 = vld [vmem:[%s5342 + $0x138] sm:$0xe]
      %v6634 = vld [vmem:[%s5342 + $0x13c] sm:$0xf]
      %v6635 = vld [vmem:[%s5342 + $0x140] sm:$0x1]
      %v6636 = vld [vmem:[%s5342 + $0x144] sm:$0xe]
      %v6637 = vld [vmem:[%s5342 + $0x148] sm:$0xf]
      %v6638 = vld [vmem:[%s5342 + $0x14c] sm:$0x1]
      %v6639 = vld [vmem:[%s5342 + $0x150] sm:$0xe]
      %v6640 = vld [vmem:[%s5342 + $0x154] sm:$0xf]
      %v6641 = vld [vmem:[%s5342 + $0x158] sm:$0x1]
      %v6642 = vld [vmem:[%s5342 + $0x15c] sm:$0xe]
      %v6643 = vld [vmem:[%s5342 + $0x160] sm:$0xf]
      %v6644 = vld [vmem:[%s5342 + $0x164] sm:$0x1]
      %v6645 = vld [vmem:[%s5342 + $0x168] sm:$0xe]
      %v6646 = vld [vmem:[%s5342 + $0x16c] sm:$0xf]
      %v6647 = vld [vmem:[%s5342 + $0x170] sm:$0x1]
      %v6648 = vld [vmem:[%s5342 + $0x174] sm:$0xe]
      %v6649 = vld [vmem:[%s5342 + $0x178] sm:$0xf]
      %v6650 = vld [vmem:[%s5342 + $0x17c] sm:$0x1]
      %v6651 = vld [vmem:[%s5342 + $0x180] sm:$0xe]
      %v6652 = vld [vmem:[%s5342 + $0x184] sm:$0xf]
      %v6653 = vld [vmem:[%s5342 + $0x188] sm:$0x1]
      %v6654 = vld [vmem:[%s5342 + $0x18c] sm:$0xe]
      %v6655 = vld [vmem:[%s5342 + $0x190] sm:$0xf]
      %v6656 = vld [vmem:[%s5342 + $0x194] sm:$0x1]
      %v6753 = vunpack.c.l.b16 %v6561
      %v6754 = vunpack.c.l.b16 %v6562
      %v6755 = vunpack.c.l.b16 %v6563
      %v6756 = vunpack.c.l.b16 %v6564
      %v6757 = vunpack.c.l.b16 %v6565
      %v6758 = vunpack.c.l.b16 %v6566
      %v6759 = vunpack.c.l.b16 %v6567
      %v6760 = vunpack.c.l.b16 %v6568
      %v6761 = vunpack.c.l.b16 %v6569
      %v6762 = vunpack.c.l.b16 %v6570
      %v6763 = vunpack.c.l.b16 %v6571
      %v6764 = vunpack.c.l.b16 %v6572
      %v6765 = vunpack.c.l.b16 %v6573
      %v6766 = vunpack.c.l.b16 %v6574
      %v6767 = vunpack.c.l.b16 %v6575
      %v6768 = vunpack.c.l.b16 %v6576
      %v6769 = vunpack.c.l.b16 %v6577
      %v6770 = vunpack.c.l.b16 %v6578
      %v6771 = vunpack.c.l.b16 %v6579
      %v6772 = vunpack.c.l.b16 %v6580
      %v6773 = vunpack.c.l.b16 %v6581
      %v6774 = vunpack.c.l.b16 %v6582
      %v6775 = vunpack.c.l.b16 %v6583
      %v6776 = vunpack.c.l.b16 %v6584
      %v6777 = vunpack.c.l.b16 %v6585
      %v6778 = vunpack.c.l.b16 %v6586
      %v6779 = vunpack.c.l.b16 %v6587
      %v6780 = vunpack.c.l.b16 %v6588
      %v6781 = vunpack.c.l.b16 %v6589
      %v6782 = vunpack.c.l.b16 %v6590
      %v6783 = vunpack.c.l.b16 %v6591
      %v6784 = vunpack.c.l.b16 %v6592
      %v6785 = vunpack.c.l.b16 %v6593
      %v6786 = vunpack.c.l.b16 %v6594
      %v6787 = vunpack.c.l.b16 %v6595
      %v6788 = vunpack.c.l.b16 %v6596
      %v6789 = vunpack.c.l.b16 %v6597
      %v6790 = vunpack.c.l.b16 %v6598
      %v6791 = vunpack.c.l.b16 %v6599
      %v6792 = vunpack.c.l.b16 %v6600
      %v6793 = vunpack.c.l.b16 %v6601
      %v6794 = vunpack.c.l.b16 %v6602
      %v6795 = vunpack.c.l.b16 %v6603
      %v6796 = vunpack.c.l.b16 %v6604
      %v6797 = vunpack.c.l.b16 %v6605
      %v6798 = vunpack.c.l.b16 %v6606
      %v6799 = vunpack.c.l.b16 %v6607
      %v6800 = vunpack.c.l.b16 %v6608
      %v6801 = vunpack.c.l.b16 %v6609
      %v6802 = vunpack.c.l.b16 %v6610
      %v6803 = vunpack.c.l.b16 %v6611
      %v6804 = vunpack.c.l.b16 %v6612
      %v6805 = vunpack.c.l.b16 %v6613
      %v6806 = vunpack.c.l.b16 %v6614
      %v6807 = vunpack.c.l.b16 %v6615
      %v6808 = vunpack.c.l.b16 %v6616
      %v6809 = vunpack.c.l.b16 %v6617
      %v6810 = vunpack.c.l.b16 %v6618
      %v6811 = vunpack.c.l.b16 %v6619
      %v6812 = vunpack.c.l.b16 %v6620
      %v6813 = vunpack.c.l.b16 %v6621
      %v6814 = vunpack.c.l.b16 %v6622
      %v6815 = vunpack.c.l.b16 %v6623
      %v6816 = vunpack.c.l.b16 %v6624
      %v6817 = vunpack.c.l.b16 %v6625
      %v6818 = vunpack.c.l.b16 %v6626
      %v6819 = vunpack.c.l.b16 %v6627
      %v6820 = vunpack.c.l.b16 %v6628
      %v6821 = vunpack.c.l.b16 %v6629
      %v6822 = vunpack.c.l.b16 %v6630
      %v6823 = vunpack.c.l.b16 %v6631
      %v6824 = vunpack.c.l.b16 %v6632
      %v6825 = vunpack.c.l.b16 %v6633
      %v6826 = vunpack.c.l.b16 %v6634
      %v6827 = vunpack.c.l.b16 %v6635
      %v6828 = vunpack.c.l.b16 %v6636
      %v6829 = vunpack.c.l.b16 %v6637
      %v6830 = vunpack.c.l.b16 %v6638
      %v6831 = vunpack.c.l.b16 %v6639
      %v6832 = vunpack.c.l.b16 %v6640
      %v6833 = vunpack.c.l.b16 %v6641
      %v6834 = vunpack.c.l.b16 %v6642
      %v6835 = vunpack.c.l.b16 %v6643
      %v6836 = vunpack.c.l.b16 %v6644
      %v6837 = vunpack.c.l.b16 %v6645
      %v6838 = vunpack.c.l.b16 %v6646
      %v6839 = vunpack.c.l.b16 %v6647
      %v6840 = vunpack.c.l.b16 %v6648
      %v6841 = vunpack.c.l.b16 %v6649
      %v6842 = vunpack.c.l.b16 %v6650
      %v6843 = vunpack.c.l.b16 %v6651
      %v6844 = vunpack.c.l.b16 %v6652
      %v6845 = vunpack.c.l.b16 %v6653
      %v6846 = vunpack.c.l.b16 %v6654
      %v6847 = vunpack.c.l.b16 %v6655
      %v6848 = vunpack.c.l.b16 %v6656
      %v6849 = vpack.c.b16 %v6754, %v6753
      %v6850 = vpack.c.b16 %v6755, %v6755
      %v6851 = vpack.c.b16 %v6757, %v6756
      %v6852 = vpack.c.b16 %v6758, %v6758
      %v6853 = vpack.c.b16 %v6760, %v6759
      %v6854 = vpack.c.b16 %v6761, %v6761
      %v6855 = vpack.c.b16 %v6763, %v6762
      %v6856 = vpack.c.b16 %v6764, %v6764
      %v6857 = vpack.c.b16 %v6766, %v6765
      %v6858 = vpack.c.b16 %v6767, %v6767
      %v6859 = vpack.c.b16 %v6769, %v6768
      %v6860 = vpack.c.b16 %v6770, %v6770
      %v6861 = vpack.c.b16 %v6772, %v6771
      %v6862 = vpack.c.b16 %v6773, %v6773
      %v6863 = vpack.c.b16 %v6775, %v6774
      %v6864 = vpack.c.b16 %v6776, %v6776
      %v6865 = vpack.c.b16 %v6778, %v6777
      %v6866 = vpack.c.b16 %v6779, %v6779
      %v6867 = vpack.c.b16 %v6781, %v6780
      %v6868 = vpack.c.b16 %v6782, %v6782
      %v6869 = vpack.c.b16 %v6784, %v6783
      %v6870 = vpack.c.b16 %v6785, %v6785
      %v6871 = vpack.c.b16 %v6787, %v6786
      %v6872 = vpack.c.b16 %v6788, %v6788
      %v6873 = vpack.c.b16 %v6790, %v6789
      %v6874 = vpack.c.b16 %v6791, %v6791
      %v6875 = vpack.c.b16 %v6793, %v6792
      %v6876 = vpack.c.b16 %v6794, %v6794
      %v6877 = vpack.c.b16 %v6796, %v6795
      %v6878 = vpack.c.b16 %v6797, %v6797
      %v6879 = vpack.c.b16 %v6799, %v6798
      %v6880 = vpack.c.b16 %v6800, %v6800
      %v6881 = vpack.c.b16 %v6802, %v6801
      %v6882 = vpack.c.b16 %v6803, %v6803
      %v6883 = vpack.c.b16 %v6805, %v6804
      %v6884 = vpack.c.b16 %v6806, %v6806
      %v6885 = vpack.c.b16 %v6808, %v6807
      %v6886 = vpack.c.b16 %v6809, %v6809
      %v6887 = vpack.c.b16 %v6811, %v6810
      %v6888 = vpack.c.b16 %v6812, %v6812
      %v6889 = vpack.c.b16 %v6814, %v6813
      %v6890 = vpack.c.b16 %v6815, %v6815
      %v6891 = vpack.c.b16 %v6817, %v6816
      %v6892 = vpack.c.b16 %v6818, %v6818
      %v6893 = vpack.c.b16 %v6820, %v6819
      %v6894 = vpack.c.b16 %v6821, %v6821
      %v6895 = vpack.c.b16 %v6823, %v6822
      %v6896 = vpack.c.b16 %v6824, %v6824
      %v6897 = vpack.c.b16 %v6826, %v6825
      %v6898 = vpack.c.b16 %v6827, %v6827
      %v6899 = vpack.c.b16 %v6829, %v6828
      %v6900 = vpack.c.b16 %v6830, %v6830
      %v6901 = vpack.c.b16 %v6832, %v6831
      %v6902 = vpack.c.b16 %v6833, %v6833
      %v6903 = vpack.c.b16 %v6835, %v6834
      %v6904 = vpack.c.b16 %v6836, %v6836
      %v6905 = vpack.c.b16 %v6838, %v6837
      %v6906 = vpack.c.b16 %v6839, %v6839
      %v6907 = vpack.c.b16 %v6841, %v6840
      %v6908 = vpack.c.b16 %v6842, %v6842
      %v6909 = vpack.c.b16 %v6844, %v6843
      %v6910 = vpack.c.b16 %v6845, %v6845
      %v6911 = vpack.c.b16 %v6847, %v6846
      %v6912 = vpack.c.b16 %v6848, %v6848
      %v6913 = vrot.slane %v6849, 1
      %v6914 = vrot.slane %v6850, 1
      %v6915 = vsel %vm3321, %v6913, %v6914
      %v6916 = vrot.slane %v6851, 1
      %v6917 = vrot.slane %v6852, 1
      %v6918 = vsel %vm3321, %v6916, %v6917
      %v6919 = vrot.slane %v6853, 1
      %v6920 = vrot.slane %v6854, 1
      %v6921 = vsel %vm3321, %v6919, %v6920
      %v6922 = vrot.slane %v6855, 1
      %v6923 = vrot.slane %v6856, 1
      %v6924 = vsel %vm3321, %v6922, %v6923
      %v6925 = vrot.slane %v6857, 1
      %v6926 = vrot.slane %v6858, 1
      %v6927 = vsel %vm3321, %v6925, %v6926
      %v6928 = vrot.slane %v6859, 1
      %v6929 = vrot.slane %v6860, 1
      %v6930 = vsel %vm3321, %v6928, %v6929
      %v6931 = vrot.slane %v6861, 1
      %v6932 = vrot.slane %v6862, 1
      %v6933 = vsel %vm3321, %v6931, %v6932
      %v6934 = vrot.slane %v6863, 1
      %v6935 = vrot.slane %v6864, 1
      %v6936 = vsel %vm3321, %v6934, %v6935
      %v6937 = vrot.slane %v6865, 1
      %v6938 = vrot.slane %v6866, 1
      %v6939 = vsel %vm3321, %v6937, %v6938
      %v6940 = vrot.slane %v6867, 1
      %v6941 = vrot.slane %v6868, 1
      %v6942 = vsel %vm3321, %v6940, %v6941
      %v6943 = vrot.slane %v6869, 1
      %v6944 = vrot.slane %v6870, 1
      %v6945 = vsel %vm3321, %v6943, %v6944
      %v6946 = vrot.slane %v6871, 1
      %v6947 = vrot.slane %v6872, 1
      %v6948 = vsel %vm3321, %v6946, %v6947
      %v6949 = vrot.slane %v6873, 1
      %v6950 = vrot.slane %v6874, 1
      %v6951 = vsel %vm3321, %v6949, %v6950
      %v6952 = vrot.slane %v6875, 1
      %v6953 = vrot.slane %v6876, 1
      %v6954 = vsel %vm3321, %v6952, %v6953
      %v6955 = vrot.slane %v6877, 1
      %v6956 = vrot.slane %v6878, 1
      %v6957 = vsel %vm3321, %v6955, %v6956
      %v6958 = vrot.slane %v6879, 1
      %v6959 = vrot.slane %v6880, 1
      %v6960 = vsel %vm3321, %v6958, %v6959
      %v6961 = vrot.slane %v6881, 1
      %v6962 = vrot.slane %v6882, 1
      %v6963 = vsel %vm3321, %v6961, %v6962
      %v6964 = vrot.slane %v6883, 1
      %v6965 = vrot.slane %v6884, 1
      %v6966 = vsel %vm3321, %v6964, %v6965
      %v6967 = vrot.slane %v6885, 1
      %v6968 = vrot.slane %v6886, 1
      %v6969 = vsel %vm3321, %v6967, %v6968
      %v6970 = vrot.slane %v6887, 1
      %v6971 = vrot.slane %v6888, 1
      %v6972 = vsel %vm3321, %v6970, %v6971
      %v6973 = vrot.slane %v6889, 1
      %v6974 = vrot.slane %v6890, 1
      %v6975 = vsel %vm3321, %v6973, %v6974
      %v6976 = vrot.slane %v6891, 1
      %v6977 = vrot.slane %v6892, 1
      %v6978 = vsel %vm3321, %v6976, %v6977
      %v6979 = vrot.slane %v6893, 1
      %v6980 = vrot.slane %v6894, 1
      %v6981 = vsel %vm3321, %v6979, %v6980
      %v6982 = vrot.slane %v6895, 1
      %v6983 = vrot.slane %v6896, 1
      %v6984 = vsel %vm3321, %v6982, %v6983
      %v6985 = vrot.slane %v6897, 1
      %v6986 = vrot.slane %v6898, 1
      %v6987 = vsel %vm3321, %v6985, %v6986
      %v6988 = vrot.slane %v6899, 1
      %v6989 = vrot.slane %v6900, 1
      %v6990 = vsel %vm3321, %v6988, %v6989
      %v6991 = vrot.slane %v6901, 1
      %v6992 = vrot.slane %v6902, 1
      %v6993 = vsel %vm3321, %v6991, %v6992
      %v6994 = vrot.slane %v6903, 1
      %v6995 = vrot.slane %v6904, 1
      %v6996 = vsel %vm3321, %v6994, %v6995
      %v6997 = vrot.slane %v6905, 1
      %v6998 = vrot.slane %v6906, 1
      %v6999 = vsel %vm3321, %v6997, %v6998
      %v7000 = vrot.slane %v6907, 1
      %v7001 = vrot.slane %v6908, 1
      %v7002 = vsel %vm3321, %v7000, %v7001
      %v7003 = vrot.slane %v6909, 1
      %v7004 = vrot.slane %v6910, 1
      %v7005 = vsel %vm3321, %v7003, %v7004
      %v7006 = vrot.slane %v6911, 1
      %v7007 = vrot.slane %v6912, 1
      %v7008 = vsel %vm3321, %v7006, %v7007
      %7009 = vrot.lane.b32.xlu0 %v6915, 64
      %v7010 = vpop.permute.xlu0 %7009
      %7011 = vrot.lane.b32.xlu0 %v6918, 64
      %v7012 = vpop.permute.xlu0 %7011
      %7013 = vrot.lane.b32.xlu0 %v6921, 64
      %v7014 = vpop.permute.xlu0 %7013
      %7015 = vrot.lane.b32.xlu0 %v6924, 64
      %v7016 = vpop.permute.xlu0 %7015
      %7017 = vrot.lane.b32.xlu0 %v6927, 64
      %v7018 = vpop.permute.xlu0 %7017
      %7019 = vrot.lane.b32.xlu0 %v6930, 64
      %v7020 = vpop.permute.xlu0 %7019
      %7021 = vrot.lane.b32.xlu0 %v6933, 64
      %v7022 = vpop.permute.xlu0 %7021
      %7023 = vrot.lane.b32.xlu0 %v6936, 64
      %v7024 = vpop.permute.xlu0 %7023
      %7025 = vrot.lane.b32.xlu0 %v6939, 64
      %v7026 = vpop.permute.xlu0 %7025
      %7027 = vrot.lane.b32.xlu0 %v6942, 64
      %v7028 = vpop.permute.xlu0 %7027
      %7029 = vrot.lane.b32.xlu0 %v6945, 64
      %v7030 = vpop.permute.xlu0 %7029
      %7031 = vrot.lane.b32.xlu0 %v6948, 64
      %v7032 = vpop.permute.xlu0 %7031
      %7033 = vrot.lane.b32.xlu0 %v6951, 64
      %v7034 = vpop.permute.xlu0 %7033
      %7035 = vrot.lane.b32.xlu0 %v6954, 64
      %v7036 = vpop.permute.xlu0 %7035
      %7037 = vrot.lane.b32.xlu0 %v6957, 64
      %v7038 = vpop.permute.xlu0 %7037
      %7039 = vrot.lane.b32.xlu0 %v6960, 64
      %v7040 = vpop.permute.xlu0 %7039
      %7041 = vrot.lane.b32.xlu0 %v6963, 64
      %v7042 = vpop.permute.xlu0 %7041
      %7043 = vrot.lane.b32.xlu0 %v6966, 64
      %v7044 = vpop.permute.xlu0 %7043
      %7045 = vrot.lane.b32.xlu0 %v6969, 64
      %v7046 = vpop.permute.xlu0 %7045
      %7047 = vrot.lane.b32.xlu0 %v6972, 64
      %v7048 = vpop.permute.xlu0 %7047
      %7049 = vrot.lane.b32.xlu0 %v6975, 64
      %v7050 = vpop.permute.xlu0 %7049
      %7051 = vrot.lane.b32.xlu0 %v6978, 64
      %v7052 = vpop.permute.xlu0 %7051
      %7053 = vrot.lane.b32.xlu0 %v6981, 64
      %v7054 = vpop.permute.xlu0 %7053
      %7055 = vrot.lane.b32.xlu0 %v6984, 64
      %v7056 = vpop.permute.xlu0 %7055
      %7057 = vrot.lane.b32.xlu0 %v6987, 64
      %v7058 = vpop.permute.xlu0 %7057
      %7059 = vrot.lane.b32.xlu0 %v6990, 64
      %v7060 = vpop.permute.xlu0 %7059
      %7061 = vrot.lane.b32.xlu0 %v6993, 64
      %v7062 = vpop.permute.xlu0 %7061
      %7063 = vrot.lane.b32.xlu0 %v6996, 64
      %v7064 = vpop.permute.xlu0 %7063
      %7065 = vrot.lane.b32.xlu0 %v6999, 64
      %v7066 = vpop.permute.xlu0 %7065
      %7067 = vrot.lane.b32.xlu0 %v7002, 64
      %v7068 = vpop.permute.xlu0 %7067
      %7069 = vrot.lane.b32.xlu0 %v7005, 64
      %v7070 = vpop.permute.xlu0 %7069
      %7071 = vrot.lane.b32.xlu0 %v7008, 64
      %v7072 = vpop.permute.xlu0 %7071
      %vm7105 = vcmask 589312
      %7106 = vst.msk [vmem:[#allocation3] sm:$0xff] %vm7105, %v7010
      %7107 = vst.msk [vmem:[#allocation3 + $0x8] sm:$0xff] %vm7105, %v7012
      %7108 = vst.msk [vmem:[#allocation3 + $0x10] sm:$0xff] %vm7105, %v7014
      %7109 = vst.msk [vmem:[#allocation3 + $0x18] sm:$0xff] %vm7105, %v7016
      %7110 = vst.msk [vmem:[#allocation3 + $0x20] sm:$0xff] %vm7105, %v7018
      %7111 = vst.msk [vmem:[#allocation3 + $0x28] sm:$0xff] %vm7105, %v7020
      %7112 = vst.msk [vmem:[#allocation3 + $0x30] sm:$0xff] %vm7105, %v7022
      %7113 = vst.msk [vmem:[#allocation3 + $0x38] sm:$0xff] %vm7105, %v7024
      %7114 = vst.msk [vmem:[#allocation3 + $0x40] sm:$0xff] %vm7105, %v7026
      %7115 = vst.msk [vmem:[#allocation3 + $0x48] sm:$0xff] %vm7105, %v7028
      %7116 = vst.msk [vmem:[#allocation3 + $0x50] sm:$0xff] %vm7105, %v7030
      %7117 = vst.msk [vmem:[#allocation3 + $0x58] sm:$0xff] %vm7105, %v7032
      %7118 = vst.msk [vmem:[#allocation3 + $0x60] sm:$0xff] %vm7105, %v7034
      %7119 = vst.msk [vmem:[#allocation3 + $0x68] sm:$0xff] %vm7105, %v7036
      %7120 = vst.msk [vmem:[#allocation3 + $0x70] sm:$0xff] %vm7105, %v7038
      %7121 = vst.msk [vmem:[#allocation3 + $0x78] sm:$0xff] %vm7105, %v7040
      %7122 = vst.msk [vmem:[#allocation3 + $0x80] sm:$0xff] %vm7105, %v7042
      %7123 = vst.msk [vmem:[#allocation3 + $0x88] sm:$0xff] %vm7105, %v7044
      %7124 = vst.msk [vmem:[#allocation3 + $0x90] sm:$0xff] %vm7105, %v7046
      %7125 = vst.msk [vmem:[#allocation3 + $0x98] sm:$0xff] %vm7105, %v7048
      %7126 = vst.msk [vmem:[#allocation3 + $0xa0] sm:$0xff] %vm7105, %v7050
      %7127 = vst.msk [vmem:[#allocation3 + $0xa8] sm:$0xff] %vm7105, %v7052
      %7128 = vst.msk [vmem:[#allocation3 + $0xb0] sm:$0xff] %vm7105, %v7054
      %7129 = vst.msk [vmem:[#allocation3 + $0xb8] sm:$0xff] %vm7105, %v7056
      %7130 = vst.msk [vmem:[#allocation3 + $0xc0] sm:$0xff] %vm7105, %v7058
      %7131 = vst.msk [vmem:[#allocation3 + $0xc8] sm:$0xff] %vm7105, %v7060
      %7132 = vst.msk [vmem:[#allocation3 + $0xd0] sm:$0xff] %vm7105, %v7062
      %7133 = vst.msk [vmem:[#allocation3 + $0xd8] sm:$0xff] %vm7105, %v7064
      %7134 = vst.msk [vmem:[#allocation3 + $0xe0] sm:$0xff] %vm7105, %v7066
      %7135 = vst.msk [vmem:[#allocation3 + $0xe8] sm:$0xff] %vm7105, %v7068
      %7136 = vst.msk [vmem:[#allocation3 + $0xf0] sm:$0xff] %vm7105, %v7070
      %7137 = vst.msk [vmem:[#allocation3 + $0xf8] sm:$0xff] %vm7105, %v7072
      %v7138 = vld [vmem:[#allocation3] sm:$0xff]
      %v7139 = vld [vmem:[#allocation3 + $0x8] sm:$0xff]
      %v7140 = vld [vmem:[#allocation3 + $0x10] sm:$0xff]
      %v7141 = vld [vmem:[#allocation3 + $0x18] sm:$0xff]
      %v7142 = vld [vmem:[#allocation3 + $0x20] sm:$0xff]
      %v7143 = vld [vmem:[#allocation3 + $0x28] sm:$0xff]
      %v7144 = vld [vmem:[#allocation3 + $0x30] sm:$0xff]
      %v7145 = vld [vmem:[#allocation3 + $0x38] sm:$0xff]
      %v7146 = vld [vmem:[#allocation3 + $0x40] sm:$0xff]
      %v7147 = vld [vmem:[#allocation3 + $0x48] sm:$0xff]
      %v7148 = vld [vmem:[#allocation3 + $0x50] sm:$0xff]
      %v7149 = vld [vmem:[#allocation3 + $0x58] sm:$0xff]
      %v7150 = vld [vmem:[#allocation3 + $0x60] sm:$0xff]
      %v7151 = vld [vmem:[#allocation3 + $0x68] sm:$0xff]
      %v7152 = vld [vmem:[#allocation3 + $0x70] sm:$0xff]
      %v7153 = vld [vmem:[#allocation3 + $0x78] sm:$0xff]
      %v7154 = vld [vmem:[#allocation3 + $0x80] sm:$0xff]
      %v7155 = vld [vmem:[#allocation3 + $0x88] sm:$0xff]
      %v7156 = vld [vmem:[#allocation3 + $0x90] sm:$0xff]
      %v7157 = vld [vmem:[#allocation3 + $0x98] sm:$0xff]
      %v7158 = vld [vmem:[#allocation3 + $0xa0] sm:$0xff]
      %v7159 = vld [vmem:[#allocation3 + $0xa8] sm:$0xff]
      %v7160 = vld [vmem:[#allocation3 + $0xb0] sm:$0xff]
      %v7161 = vld [vmem:[#allocation3 + $0xb8] sm:$0xff]
      %v7162 = vld [vmem:[#allocation3 + $0xc0] sm:$0xff]
      %v7163 = vld [vmem:[#allocation3 + $0xc8] sm:$0xff]
      %v7164 = vld [vmem:[#allocation3 + $0xd0] sm:$0xff]
      %v7165 = vld [vmem:[#allocation3 + $0xd8] sm:$0xff]
      %v7166 = vld [vmem:[#allocation3 + $0xe0] sm:$0xff]
      %v7167 = vld [vmem:[#allocation3 + $0xe8] sm:$0xff]
      %v7168 = vld [vmem:[#allocation3 + $0xf0] sm:$0xff]
      %v7169 = vld [vmem:[#allocation3 + $0xf8] sm:$0xff]
      %v7170 = vld [vmem:[%s1] sm:$0xf]
      %v7171 = vld [vmem:[%s1 + $0x4] sm:$0xf]
      %v7172 = vld [vmem:[%s1 + $0x8] sm:$0xf]
      %v7173 = vld [vmem:[%s1 + $0xc] sm:$0xf]
      %v7174 = vld [vmem:[%s1 + $0x10] sm:$0xf]
      %v7175 = vld [vmem:[%s1 + $0x14] sm:$0xf]
      %v7176 = vld [vmem:[%s1 + $0x18] sm:$0xf]
      %v7177 = vld [vmem:[%s1 + $0x1c] sm:$0xf]
      %v7178 = vld [vmem:[%s1 + $0x20] sm:$0xf]
      %v7179 = vld [vmem:[%s2] sm:$0x1]
      %v7181 = vlaneseq
      %v7182 = vshrl.u32 %v7181, 7
      %v7183 = vsub.s32 0, %v7182
      %v7184 = vrot.slane %v7179, %v7183
      %v7195 = vunpack.c.l.b16 %v7170
      %v7196 = vunpack.c.l.b16 %v7171
      %v7197 = vunpack.c.l.b16 %v7172
      %v7198 = vunpack.c.l.b16 %v7173
      %v7199 = vunpack.c.l.b16 %v7174
      %v7200 = vunpack.c.l.b16 %v7175
      %v7201 = vunpack.c.l.b16 %v7176
      %v7202 = vunpack.c.l.b16 %v7177
      %v7203 = vunpack.c.l.b16 %v7178
      %v7204 = vpack.c.b16 %v7196, %v7195
      %v7205 = vpack.c.b16 %v7198, %v7197
      %v7206 = vpack.c.b16 %v7200, %v7199
      %v7207 = vpack.c.b16 %v7202, %v7201
      %v7208 = vpack.c.b16 %v7203, %v7203
      %vm7213 = vcmask 588800
      %v7215 = vsel %vm7213, %v7138, 0
      %v7218 = vsel %vm7213, %v7139, 0
      %v7221 = vsel %vm7213, %v7140, 0
      %v7224 = vsel %vm7213, %v7141, 0
      %v7227 = vsel %vm7213, %v7142, 0
      %v7230 = vsel %vm7213, %v7143, 0
      %v7233 = vsel %vm7213, %v7144, 0
      %v7236 = vsel %vm7213, %v7145, 0
      %v7239 = vsel %vm7213, %v7146, 0
      %v7242 = vsel %vm7213, %v7147, 0
      %v7245 = vsel %vm7213, %v7148, 0
      %v7248 = vsel %vm7213, %v7149, 0
      %v7251 = vsel %vm7213, %v7150, 0
      %v7254 = vsel %vm7213, %v7151, 0
      %v7257 = vsel %vm7213, %v7152, 0
      %v7260 = vsel %vm7213, %v7153, 0
      %v7263 = vsel %vm7213, %v7154, 0
      %v7266 = vsel %vm7213, %v7155, 0
      %v7269 = vsel %vm7213, %v7156, 0
      %v7272 = vsel %vm7213, %v7157, 0
      %v7275 = vsel %vm7213, %v7158, 0
      %v7278 = vsel %vm7213, %v7159, 0
      %v7281 = vsel %vm7213, %v7160, 0
      %v7284 = vsel %vm7213, %v7161, 0
      %v7287 = vsel %vm7213, %v7162, 0
      %v7290 = vsel %vm7213, %v7163, 0
      %v7293 = vsel %vm7213, %v7164, 0
      %v7296 = vsel %vm7213, %v7165, 0
      %v7299 = vsel %vm7213, %v7166, 0
      %v7302 = vsel %vm7213, %v7167, 0
      %v7305 = vsel %vm7213, %v7168, 0
      %v7308 = vsel %vm7213, %v7169, 0
      %vm7310 = vcmask 1043456
      %v7312 = vsel %vm7310, %v7208, 0
      %7314 = vmatprep.subr.bf16.mxu0 0
      %7315 = vmatpush1.bf16.msra.mxu0 %v7204
      %7316 = vmatprep.subr.bf16.mxu0 0
      %7317 = vmatpush1.bf16.msra.mxu0 %v7205
      %7318 = vmatprep.subr.bf16.mxu0 0
      %7319 = vmatpush1.bf16.msra.mxu0 %v7206
      %7320 = vmatprep.subr.bf16.mxu0 0
      %7321 = vmatpush1.bf16.msra.mxu0 %v7207
      %7322 = vmatprep.subr.bf16.mxu0 0
      %7323 = vmatpush1.bf16.msra.mxu0 %v7312
      %7324 = vmatprep.subr.bf16.mxu0 0
      %7325 = vmatpush1.bf16.msra.mxu0 0
      %7326 = vmatprep.subr.bf16.mxu0 0
      %7327 = vmatpush1.bf16.msra.mxu0 0
      %7328 = vmatprep.subr.bf16.mxu0 0
      %7329 = vmatpush1.bf16.msra.mxu0 0
      %7330 = vmatprep.subr.bf16.mxu0 0
      %7331 = vmatpush1.bf16.msra.mxu0 0
      %7332 = vmatprep.subr.bf16.mxu0 0
      %7333 = vmatpush1.bf16.msra.mxu0 0
      %7334 = vmatprep.subr.bf16.mxu0 0
      %7335 = vmatpush1.bf16.msra.mxu0 0
      %7336 = vmatprep.subr.bf16.mxu0 0
      %7337 = vmatpush1.bf16.msra.mxu0 0
      %7338 = vmatprep.subr.bf16.mxu0 0
      %7339 = vmatpush1.bf16.msra.mxu0 0
      %7340 = vmatprep.subr.bf16.mxu0 0
      %7341 = vmatpush1.bf16.msra.mxu0 0
      %7342 = vmatprep.subr.bf16.mxu0 0
      %7343 = vmatpush1.bf16.msra.mxu0 0
      %7344 = vmatprep.subr.bf16.mxu0 0
      %7345 = vmatpush1.bf16.msra.mxu0 0
      %7346 = vmatprep.mubr.bf16.mxu0 0
      %7347 = vmatmul.mubr.bf16.gmra.mrb[0].mxu0 %v7215
      %v7348 = vpop.f32.mrb[0].mxu0
      %v7349 = vadd.f32 %v7184, %v7348
      %v7350 = vpop.f32.mrb[0].mxu0
      %v7351 = vpop.f32.mrb[0].mxu0
      %v7352 = vadd.f32 %v7184, %v7351
      %v7353 = vpop.f32.mrb[0].mxu0
      %7354 = vmatprep.mubr.bf16.mxu0 0
      %7355 = vmatmul.mubr.bf16.gmra.mrb[0].mxu0 %v7218
      %v7356 = vpop.f32.mrb[0].mxu0
      %v7357 = vadd.f32 %v7184, %v7356
      %v7358 = vpop.f32.mrb[0].mxu0
      %v7359 = vpop.f32.mrb[0].mxu0
      %v7360 = vadd.f32 %v7184, %v7359
      %v7361 = vpop.f32.mrb[0].mxu0
      %7362 = vmatprep.mubr.bf16.mxu0 0
      %7363 = vmatmul.mubr.bf16.gmra.mrb[0].mxu0 %v7221
      %v7364 = vpop.f32.mrb[0].mxu0
      %v7365 = vadd.f32 %v7184, %v7364
      %v7366 = vpop.f32.mrb[0].mxu0
      %v7367 = vpop.f32.mrb[0].mxu0
      %v7368 = vadd.f32 %v7184, %v7367
      %v7369 = vpop.f32.mrb[0].mxu0
      %7370 = vmatprep.mubr.bf16.mxu0 0
      %7371 = vmatmul.mubr.bf16.gmra.mrb[0].mxu0 %v7224
      %v7372 = vpop.f32.mrb[0].mxu0
      %v7373 = vadd.f32 %v7184, %v7372
      %v7374 = vpop.f32.mrb[0].mxu0
      %v7375 = vpop.f32.mrb[0].mxu0
      %v7376 = vadd.f32 %v7184, %v7375
      %v7377 = vpop.f32.mrb[0].mxu0
      %7378 = vmatprep.mubr.bf16.mxu0 0
      %7379 = vmatmul.mubr.bf16.gmra.mrb[0].mxu0 %v7227
      %v7380 = vpop.f32.mrb[0].mxu0
      %v7381 = vadd.f32 %v7184, %v7380
      %v7382 = vpop.f32.mrb[0].mxu0
      %v7383 = vpop.f32.mrb[0].mxu0
      %v7384 = vadd.f32 %v7184, %v7383
      %v7385 = vpop.f32.mrb[0].mxu0
      %7386 = vmatprep.mubr.bf16.mxu0 0
      %7387 = vmatmul.mubr.bf16.gmra.mrb[0].mxu0 %v7230
      %v7388 = vpop.f32.mrb[0].mxu0
      %v7389 = vadd.f32 %v7184, %v7388
      %v7390 = vpop.f32.mrb[0].mxu0
      %v7391 = vpop.f32.mrb[0].mxu0
      %v7392 = vadd.f32 %v7184, %v7391
      %v7393 = vpop.f32.mrb[0].mxu0
      %7394 = vmatprep.mubr.bf16.mxu0 0
      %7395 = vmatmul.mubr.bf16.gmra.mrb[0].mxu0 %v7233
      %v7396 = vpop.f32.mrb[0].mxu0
      %v7397 = vadd.f32 %v7184, %v7396
      %v7398 = vpop.f32.mrb[0].mxu0
      %v7399 = vpop.f32.mrb[0].mxu0
      %v7400 = vadd.f32 %v7184, %v7399
      %v7401 = vpop.f32.mrb[0].mxu0
      %7402 = vmatprep.mubr.bf16.mxu0 0
      %7403 = vmatmul.mubr.bf16.gmra.mrb[0].mxu0 %v7236
      %v7404 = vpop.f32.mrb[0].mxu0
      %v7405 = vadd.f32 %v7184, %v7404
      %v7406 = vpop.f32.mrb[0].mxu0
      %v7407 = vpop.f32.mrb[0].mxu0
      %v7408 = vadd.f32 %v7184, %v7407
      %v7409 = vpop.f32.mrb[0].mxu0
      %7410 = vmatprep.mubr.bf16.mxu0 0
      %7411 = vmatmul.mubr.bf16.gmra.mrb[0].mxu0 %v7239
      %v7412 = vpop.f32.mrb[0].mxu0
      %v7413 = vadd.f32 %v7184, %v7412
      %v7414 = vpop.f32.mrb[0].mxu0
      %v7415 = vpop.f32.mrb[0].mxu0
      %v7416 = vadd.f32 %v7184, %v7415
      %v7417 = vpop.f32.mrb[0].mxu0
      %7418 = vmatprep.mubr.bf16.mxu0 0
      %7419 = vmatmul.mubr.bf16.gmra.mrb[0].mxu0 %v7242
      %v7420 = vpop.f32.mrb[0].mxu0
      %v7421 = vadd.f32 %v7184, %v7420
      %v7422 = vpop.f32.mrb[0].mxu0
      %v7423 = vpop.f32.mrb[0].mxu0
      %v7424 = vadd.f32 %v7184, %v7423
      %v7425 = vpop.f32.mrb[0].mxu0
      %7426 = vmatprep.mubr.bf16.mxu0 0
      %7427 = vmatmul.mubr.bf16.gmra.mrb[0].mxu0 %v7245
      %v7428 = vpop.f32.mrb[0].mxu0
      %v7429 = vadd.f32 %v7184, %v7428
      %v7430 = vpop.f32.mrb[0].mxu0
      %v7431 = vpop.f32.mrb[0].mxu0
      %v7432 = vadd.f32 %v7184, %v7431
      %v7433 = vpop.f32.mrb[0].mxu0
      %7434 = vmatprep.mubr.bf16.mxu0 0
      %7435 = vmatmul.mubr.bf16.gmra.mrb[0].mxu0 %v7248
      %v7436 = vpop.f32.mrb[0].mxu0
      %v7437 = vadd.f32 %v7184, %v7436
      %v7438 = vpop.f32.mrb[0].mxu0
      %v7439 = vpop.f32.mrb[0].mxu0
      %v7440 = vadd.f32 %v7184, %v7439
      %v7441 = vpop.f32.mrb[0].mxu0
      %7442 = vmatprep.mubr.bf16.mxu0 0
      %7443 = vmatmul.mubr.bf16.gmra.mrb[0].mxu0 %v7251
      %v7444 = vpop.f32.mrb[0].mxu0
      %v7445 = vadd.f32 %v7184, %v7444
      %v7446 = vpop.f32.mrb[0].mxu0
      %v7447 = vpop.f32.mrb[0].mxu0
      %v7448 = vadd.f32 %v7184, %v7447
      %v7449 = vpop.f32.mrb[0].mxu0
      %7450 = vmatprep.mubr.bf16.mxu0 0
      %7451 = vmatmul.mubr.bf16.gmra.mrb[0].mxu0 %v7254
      %v7452 = vpop.f32.mrb[0].mxu0
      %v7453 = vadd.f32 %v7184, %v7452
      %v7454 = vpop.f32.mrb[0].mxu0
      %v7455 = vpop.f32.mrb[0].mxu0
      %v7456 = vadd.f32 %v7184, %v7455
      %v7457 = vpop.f32.mrb[0].mxu0
      %7458 = vmatprep.mubr.bf16.mxu0 0
      %7459 = vmatmul.mubr.bf16.gmra.mrb[0].mxu0 %v7257
      %v7460 = vpop.f32.mrb[0].mxu0
      %v7461 = vadd.f32 %v7184, %v7460
      %v7462 = vpop.f32.mrb[0].mxu0
      %v7463 = vpop.f32.mrb[0].mxu0
      %v7464 = vadd.f32 %v7184, %v7463
      %v7465 = vpop.f32.mrb[0].mxu0
      %7466 = vmatprep.mubr.bf16.mxu0 0
      %7467 = vmatmul.mubr.bf16.gmra.mrb[0].mxu0 %v7260
      %v7468 = vpop.f32.mrb[0].mxu0
      %v7469 = vadd.f32 %v7184, %v7468
      %v7470 = vpop.f32.mrb[0].mxu0
      %v7471 = vpop.f32.mrb[0].mxu0
      %v7472 = vadd.f32 %v7184, %v7471
      %v7473 = vpop.f32.mrb[0].mxu0
      %7474 = vmatprep.mubr.bf16.mxu0 0
      %7475 = vmatmul.mubr.bf16.gmra.mrb[0].mxu0 %v7263
      %v7476 = vpop.f32.mrb[0].mxu0
      %v7477 = vadd.f32 %v7184, %v7476
      %v7478 = vpop.f32.mrb[0].mxu0
      %v7479 = vpop.f32.mrb[0].mxu0
      %v7480 = vadd.f32 %v7184, %v7479
      %v7481 = vpop.f32.mrb[0].mxu0
      %7482 = vmatprep.mubr.bf16.mxu0 0
      %7483 = vmatmul.mubr.bf16.gmra.mrb[0].mxu0 %v7266
      %v7484 = vpop.f32.mrb[0].mxu0
      %v7485 = vadd.f32 %v7184, %v7484
      %v7486 = vpop.f32.mrb[0].mxu0
      %v7487 = vpop.f32.mrb[0].mxu0
      %v7488 = vadd.f32 %v7184, %v7487
      %v7489 = vpop.f32.mrb[0].mxu0
      %7490 = vmatprep.mubr.bf16.mxu0 0
      %7491 = vmatmul.mubr.bf16.gmra.mrb[0].mxu0 %v7269
      %v7492 = vpop.f32.mrb[0].mxu0
      %v7493 = vadd.f32 %v7184, %v7492
      %v7494 = vpop.f32.mrb[0].mxu0
      %v7495 = vpop.f32.mrb[0].mxu0
      %v7496 = vadd.f32 %v7184, %v7495
      %v7497 = vpop.f32.mrb[0].mxu0
      %7498 = vmatprep.mubr.bf16.mxu0 0
      %7499 = vmatmul.mubr.bf16.gmra.mrb[0].mxu0 %v7272
      %v7500 = vpop.f32.mrb[0].mxu0
      %v7501 = vadd.f32 %v7184, %v7500
      %v7502 = vpop.f32.mrb[0].mxu0
      %v7503 = vpop.f32.mrb[0].mxu0
      %v7504 = vadd.f32 %v7184, %v7503
      %v7505 = vpop.f32.mrb[0].mxu0
      %7506 = vmatprep.mubr.bf16.mxu0 0
      %7507 = vmatmul.mubr.bf16.gmra.mrb[0].mxu0 %v7275
      %v7508 = vpop.f32.mrb[0].mxu0
      %v7509 = vadd.f32 %v7184, %v7508
      %v7510 = vpop.f32.mrb[0].mxu0
      %v7511 = vpop.f32.mrb[0].mxu0
      %v7512 = vadd.f32 %v7184, %v7511
      %v7513 = vpop.f32.mrb[0].mxu0
      %7514 = vmatprep.mubr.bf16.mxu0 0
      %7515 = vmatmul.mubr.bf16.gmra.mrb[0].mxu0 %v7278
      %v7516 = vpop.f32.mrb[0].mxu0
      %v7517 = vadd.f32 %v7184, %v7516
      %v7518 = vpop.f32.mrb[0].mxu0
      %v7519 = vpop.f32.mrb[0].mxu0
      %v7520 = vadd.f32 %v7184, %v7519
      %v7521 = vpop.f32.mrb[0].mxu0
      %7522 = vmatprep.mubr.bf16.mxu0 0
      %7523 = vmatmul.mubr.bf16.gmra.mrb[0].mxu0 %v7281
      %v7524 = vpop.f32.mrb[0].mxu0
      %v7525 = vadd.f32 %v7184, %v7524
      %v7526 = vpop.f32.mrb[0].mxu0
      %v7527 = vpop.f32.mrb[0].mxu0
      %v7528 = vadd.f32 %v7184, %v7527
      %v7529 = vpop.f32.mrb[0].mxu0
      %7530 = vmatprep.mubr.bf16.mxu0 0
      %7531 = vmatmul.mubr.bf16.gmra.mrb[0].mxu0 %v7284
      %v7532 = vpop.f32.mrb[0].mxu0
      %v7533 = vadd.f32 %v7184, %v7532
      %v7534 = vpop.f32.mrb[0].mxu0
      %v7535 = vpop.f32.mrb[0].mxu0
      %v7536 = vadd.f32 %v7184, %v7535
      %v7537 = vpop.f32.mrb[0].mxu0
      %7538 = vmatprep.mubr.bf16.mxu0 0
      %7539 = vmatmul.mubr.bf16.gmra.mrb[0].mxu0 %v7287
      %v7540 = vpop.f32.mrb[0].mxu0
      %v7541 = vadd.f32 %v7184, %v7540
      %v7542 = vpop.f32.mrb[0].mxu0
      %v7543 = vpop.f32.mrb[0].mxu0
      %v7544 = vadd.f32 %v7184, %v7543
      %v7545 = vpop.f32.mrb[0].mxu0
      %7546 = vmatprep.mubr.bf16.mxu0 0
      %7547 = vmatmul.mubr.bf16.gmra.mrb[0].mxu0 %v7290
      %v7548 = vpop.f32.mrb[0].mxu0
      %v7549 = vadd.f32 %v7184, %v7548
      %v7550 = vpop.f32.mrb[0].mxu0
      %v7551 = vpop.f32.mrb[0].mxu0
      %v7552 = vadd.f32 %v7184, %v7551
      %v7553 = vpop.f32.mrb[0].mxu0
      %7554 = vmatprep.mubr.bf16.mxu0 0
      %7555 = vmatmul.mubr.bf16.gmra.mrb[0].mxu0 %v7293
      %v7556 = vpop.f32.mrb[0].mxu0
      %v7557 = vadd.f32 %v7184, %v7556
      %v7558 = vpop.f32.mrb[0].mxu0
      %v7559 = vpop.f32.mrb[0].mxu0
      %v7560 = vadd.f32 %v7184, %v7559
      %v7561 = vpop.f32.mrb[0].mxu0
      %7562 = vmatprep.mubr.bf16.mxu0 0
      %7563 = vmatmul.mubr.bf16.gmra.mrb[0].mxu0 %v7296
      %v7564 = vpop.f32.mrb[0].mxu0
      %v7565 = vadd.f32 %v7184, %v7564
      %v7566 = vpop.f32.mrb[0].mxu0
      %v7567 = vpop.f32.mrb[0].mxu0
      %v7568 = vadd.f32 %v7184, %v7567
      %v7569 = vpop.f32.mrb[0].mxu0
      %7570 = vmatprep.mubr.bf16.mxu0 0
      %7571 = vmatmul.mubr.bf16.gmra.mrb[0].mxu0 %v7299
      %v7572 = vpop.f32.mrb[0].mxu0
      %v7573 = vadd.f32 %v7184, %v7572
      %v7574 = vpop.f32.mrb[0].mxu0
      %v7575 = vpop.f32.mrb[0].mxu0
      %v7576 = vadd.f32 %v7184, %v7575
      %v7577 = vpop.f32.mrb[0].mxu0
      %7578 = vmatprep.mubr.bf16.mxu0 0
      %7579 = vmatmul.mubr.bf16.gmra.mrb[0].mxu0 %v7302
      %v7580 = vpop.f32.mrb[0].mxu0
      %v7581 = vadd.f32 %v7184, %v7580
      %v7582 = vpop.f32.mrb[0].mxu0
      %v7583 = vpop.f32.mrb[0].mxu0
      %v7584 = vadd.f32 %v7184, %v7583
      %v7585 = vpop.f32.mrb[0].mxu0
      %7586 = vmatprep.mubr.bf16.mxu0 0
      %7587 = vmatmul.mubr.bf16.gmra.mrb[0].mxu0 %v7305
      %v7588 = vpop.f32.mrb[0].mxu0
      %v7589 = vadd.f32 %v7184, %v7588
      %v7590 = vpop.f32.mrb[0].mxu0
      %v7591 = vpop.f32.mrb[0].mxu0
      %v7592 = vadd.f32 %v7184, %v7591
      %v7593 = vpop.f32.mrb[0].mxu0
      %7594 = vmatprep.mubr.bf16.mxu0 0
      %7595 = vmatmul.mubr.bf16.gmra.mrb[0].mxu0 %v7308
      %v7596 = vpop.f32.mrb[0].mxu0
      %v7597 = vadd.f32 %v7184, %v7596
      %v7598 = vpop.f32.mrb[0].mxu0
      %v7599 = vpop.f32.mrb[0].mxu0
      %v7600 = vadd.f32 %v7184, %v7599
      %v7601 = vpop.f32.mrb[0].mxu0
      %7602 = vdwg.mxu0
      %vm7603 = vcmask 130048
      %7604 = vst.msk [vmem:[%s177] sm:$0xff] %vm7603, %v7349
      %7605 = vst.msk [vmem:[%s177 + $0x8] sm:$0xff] %vm7603, %v7352
      %7606 = vst.msk [vmem:[%s177 + $0x10] sm:$0xff] %vm7603, %v7357
      %7607 = vst.msk [vmem:[%s177 + $0x18] sm:$0xff] %vm7603, %v7360
      %7608 = vst.msk [vmem:[%s177 + $0x20] sm:$0xff] %vm7603, %v7365
      %7609 = vst.msk [vmem:[%s177 + $0x28] sm:$0xff] %vm7603, %v7368
      %7610 = vst.msk [vmem:[%s177 + $0x30] sm:$0xff] %vm7603, %v7373
      %7611 = vst.msk [vmem:[%s177 + $0x38] sm:$0xff] %vm7603, %v7376
      %7612 = vst.msk [vmem:[%s177 + $0x40] sm:$0xff] %vm7603, %v7381
      %7613 = vst.msk [vmem:[%s177 + $0x48] sm:$0xff] %vm7603, %v7384
      %7614 = vst.msk [vmem:[%s177 + $0x50] sm:$0xff] %vm7603, %v7389
      %7615 = vst.msk [vmem:[%s177 + $0x58] sm:$0xff] %vm7603, %v7392
      %7616 = vst.msk [vmem:[%s177 + $0x60] sm:$0xff] %vm7603, %v7397
      %7617 = vst.msk [vmem:[%s177 + $0x68] sm:$0xff] %vm7603, %v7400
      %7618 = vst.msk [vmem:[%s177 + $0x70] sm:$0xff] %vm7603, %v7405
      %7619 = vst.msk [vmem:[%s177 + $0x78] sm:$0xff] %vm7603, %v7408
      %7620 = vst.msk [vmem:[%s177 + $0x80] sm:$0xff] %vm7603, %v7413
      %7621 = vst.msk [vmem:[%s177 + $0x88] sm:$0xff] %vm7603, %v7416
      %7622 = vst.msk [vmem:[%s177 + $0x90] sm:$0xff] %vm7603, %v7421
      %7623 = vst.msk [vmem:[%s177 + $0x98] sm:$0xff] %vm7603, %v7424
      %7624 = vst.msk [vmem:[%s177 + $0xa0] sm:$0xff] %vm7603, %v7429
      %7625 = vst.msk [vmem:[%s177 + $0xa8] sm:$0xff] %vm7603, %v7432
      %7626 = vst.msk [vmem:[%s177 + $0xb0] sm:$0xff] %vm7603, %v7437
      %7627 = vst.msk [vmem:[%s177 + $0xb8] sm:$0xff] %vm7603, %v7440
      %7628 = vst.msk [vmem:[%s177 + $0xc0] sm:$0xff] %vm7603, %v7445
      %7629 = vst.msk [vmem:[%s177 + $0xc8] sm:$0xff] %vm7603, %v7448
      %7630 = vst.msk [vmem:[%s177 + $0xd0] sm:$0xff] %vm7603, %v7453
      %7631 = vst.msk [vmem:[%s177 + $0xd8] sm:$0xff] %vm7603, %v7456
      %7632 = vst.msk [vmem:[%s177 + $0xe0] sm:$0xff] %vm7603, %v7461
      %7633 = vst.msk [vmem:[%s177 + $0xe8] sm:$0xff] %vm7603, %v7464
      %7634 = vst.msk [vmem:[%s177 + $0xf0] sm:$0xff] %vm7603, %v7469
      %7635 = vst.msk [vmem:[%s177 + $0xf8] sm:$0xff] %vm7603, %v7472
      %7636 = vst.msk [vmem:[%s177 + $0x100] sm:$0xff] %vm7603, %v7477
      %7637 = vst.msk [vmem:[%s177 + $0x108] sm:$0xff] %vm7603, %v7480
      %7638 = vst.msk [vmem:[%s177 + $0x110] sm:$0xff] %vm7603, %v7485
      %7639 = vst.msk [vmem:[%s177 + $0x118] sm:$0xff] %vm7603, %v7488
      %7640 = vst.msk [vmem:[%s177 + $0x120] sm:$0xff] %vm7603, %v7493
      %7641 = vst.msk [vmem:[%s177 + $0x128] sm:$0xff] %vm7603, %v7496
      %7642 = vst.msk [vmem:[%s177 + $0x130] sm:$0xff] %vm7603, %v7501
      %7643 = vst.msk [vmem:[%s177 + $0x138] sm:$0xff] %vm7603, %v7504
      %7644 = vst.msk [vmem:[%s177 + $0x140] sm:$0xff] %vm7603, %v7509
      %7645 = vst.msk [vmem:[%s177 + $0x148] sm:$0xff] %vm7603, %v7512
      %7646 = vst.msk [vmem:[%s177 + $0x150] sm:$0xff] %vm7603, %v7517
      %7647 = vst.msk [vmem:[%s177 + $0x158] sm:$0xff] %vm7603, %v7520
      %7648 = vst.msk [vmem:[%s177 + $0x160] sm:$0xff] %vm7603, %v7525
      %7649 = vst.msk [vmem:[%s177 + $0x168] sm:$0xff] %vm7603, %v7528
      %7650 = vst.msk [vmem:[%s177 + $0x170] sm:$0xff] %vm7603, %v7533
      %7651 = vst.msk [vmem:[%s177 + $0x178] sm:$0xff] %vm7603, %v7536
      %7652 = vst.msk [vmem:[%s177 + $0x180] sm:$0xff] %vm7603, %v7541
      %7653 = vst.msk [vmem:[%s177 + $0x188] sm:$0xff] %vm7603, %v7544
      %7654 = vst.msk [vmem:[%s177 + $0x190] sm:$0xff] %vm7603, %v7549
      %7655 = vst.msk [vmem:[%s177 + $0x198] sm:$0xff] %vm7603, %v7552
      %7656 = vst.msk [vmem:[%s177 + $0x1a0] sm:$0xff] %vm7603, %v7557
      %7657 = vst.msk [vmem:[%s177 + $0x1a8] sm:$0xff] %vm7603, %v7560
      %7658 = vst.msk [vmem:[%s177 + $0x1b0] sm:$0xff] %vm7603, %v7565
      %7659 = vst.msk [vmem:[%s177 + $0x1b8] sm:$0xff] %vm7603, %v7568
      %7660 = vst.msk [vmem:[%s177 + $0x1c0] sm:$0xff] %vm7603, %v7573
      %7661 = vst.msk [vmem:[%s177 + $0x1c8] sm:$0xff] %vm7603, %v7576
      %7662 = vst.msk [vmem:[%s177 + $0x1d0] sm:$0xff] %vm7603, %v7581
      %7663 = vst.msk [vmem:[%s177 + $0x1d8] sm:$0xff] %vm7603, %v7584
      %7664 = vst.msk [vmem:[%s177 + $0x1e0] sm:$0xff] %vm7603, %v7589
      %7665 = vst.msk [vmem:[%s177 + $0x1e8] sm:$0xff] %vm7603, %v7592
      %7666 = vst.msk [vmem:[%s177 + $0x1f0] sm:$0xff] %vm7603, %v7597
      %7667 = vst.msk [vmem:[%s177 + $0x1f8] sm:$0xff] %vm7603, %v7600
      %s7668 = smul.u32 2, %s14
      %p7669 = scmp.lt.s32.totalorder %s7668, 3
      %s7670 = scalar_select %p7669, %s7668, 3
      %s7671 = smul.addr %s7670, 32
      %s7672 = smul.addr %s7671, 8
      %s7673 = scalar_lea.vmem %s3, %s7672
      // Predicated region
      $region33: #{conv2d_reflect_pallas.1} parent=31 // pred_check
        %p7674 = pneg %p100
      $region34: #{conv2d_reflect_pallas.1} parent=31 // pred_check_branch
        %7676 = sbr.rel (%p7674) target = $region36
      $region35: #{conv2d_reflect_pallas.1} parent=31 // pred_region
        %s7677 = smul.u32 2, %s14
      $region36: #{conv2d_reflect_pallas.1} parent=31 // pred_fallthru
        _
    $region32: #{conv2d_reflect_pallas.1} parent=5 // pred_fallthru
      _
    %p7678 = scmp.le.s32.totalorder 2, %s9
    // Predicated region
    $region37: #{conv2d_reflect_pallas.1} parent=5 // pred_check
      %p7679 = pneg %p7678
    $region38: #{conv2d_reflect_pallas.1} parent=5 // pred_check_branch
      %7681 = sbr.rel (%p7679) target = $region40
    $region39: #{conv2d_reflect_pallas.1} parent=5 // pred_region
      %s7682 = ssub.s32 %s9, 2
      // Predicated region
      $region41: #{conv2d_reflect_pallas.1} parent=39 // pred_check
        %p7683 = pneg %p106
      $region42: #{conv2d_reflect_pallas.1} parent=39 // pred_check_branch
        %7685 = sbr.rel (%p7683) target = $region44
      $region43: #{conv2d_reflect_pallas.1} parent=39 // pred_region
        %s7686 = smul.u32 2, %s15
        %p7687 = scmp.lt.s32.totalorder %s7686, 3
        %s7688 = scalar_select %p7687, %s7686, 3
        %s7689 = smul.addr %s7688, 32
        %s7690 = smul.addr %s7689, 8
        %s7691 = scalar_lea.vmem %s3, %s7690
      $region44: #{conv2d_reflect_pallas.1} parent=39 // pred_fallthru
        _
    $region40: #{conv2d_reflect_pallas.1} parent=5 // pred_fallthru
      _
  $region6: #{conv2d_reflect_pallas.1} parent=0 // loop_footer
    %s13 = sadd.s32 1, %s9
  $region7: #{conv2d_reflect_pallas.1} parent=0 // loop_footer_branch
    %8 = sbr.rel target = $region3
  $region8: #{conv2d_reflect_pallas.1} parent=0 // loop_exit
    _

</llo_original>
